<compile_context>
chip_gen: v7x
topology: tpu7x:2x2x1
jax: 0.10.0
libtpu: 0.0.40
codegen_flags: <defaults>
</compile_context>

<pallas_src>
import functools

import jax
import jax.numpy as jnp
from jax.experimental import pallas as pl
from jax.experimental.pallas import tpu as pltpu


# ----------------------------------------------------------------------------
# Fused RG kernel (one batch element per grid step, everything in VMEM)
# ----------------------------------------------------------------------------
def _rg_kernel(x_ref, w0_ref, b0_ref, w1_ref, b1_ref,
               cw0_ref, cb0_ref, cw1_ref, cb1_ref, wf_ref, bf_ref,
               out_ref, pad_ref, patch_ref,
               *, num_rcab, K, H, W, C):
    p = (K - 1) // 2
    HW = H * W
    inv_hw = 1.0 / float(HW)

    # Zero the padded scratch; the zero border persists across all convs in
    # this grid step (only the interior is rewritten before each conv).
    # NOTE: not guarded by program_id==0 on purpose -- with "parallel" grid
    # semantics each TensorCore has its own scratch and must zero it.
    pad_ref[...] = jnp.zeros_like(pad_ref)

    def conv_same(cur, w_bf16, b_f32):
        """cur: (H*W, C) f32 -> (H*W, C) f32 = 'same' KxK conv + bias."""
        pad_ref[p:p + H, p:p + W, :] = cur.reshape(H, W, C)
        # im2col repack into a bf16 patch buffer: one repack + one deep matmul
        # (contraction K*K*C) instead of K*K shallow C-deep matmuls.
        for kh in range(K):
            for kw in range(K):
                kk = kh * K + kw
                patch_ref[:, kk * C:(kk + 1) * C] = (
                    pad_ref[kh:kh + H, kw:kw + W, :]
                    .reshape(HW, C).astype(jnp.bfloat16))
        return jnp.dot(patch_ref[...], w_bf16,            # bf16 x bf16 -> f32
                       preferred_element_type=jnp.float32) + b_f32

    x = x_ref[...].astype(jnp.float32)                          # (H*W, C)
    res = x
    for r in range(num_rcab):                                   # static unroll
        h = jnp.maximum(conv_same(res, w0_ref[r], b0_ref[r]), 0.0)   # conv0+relu
        h = conv_same(h, w1_ref[r], b1_ref[r])                        # conv1

        # --- channel attention: GAP + 2-layer MLP + sigmoid (all f32) ---
        pooled = jnp.sum(h, axis=0, keepdims=True) * inv_hw          # (1, C)
        pooled8 = jnp.broadcast_to(pooled, (8, C))                   # full sublane tile
        y = jnp.maximum(
            jnp.dot(pooled8, cw0_ref[r], preferred_element_type=jnp.float32)
            + cb0_ref[r], 0.0)                                       # (8, Crp)
        t = (jnp.dot(y, cw1_ref[r], preferred_element_type=jnp.float32)
             + cb1_ref[r])                                           # (8, C)
        attn = 1.0 / (1.0 + jnp.exp(-t[0:1, :]))                     # (1, C)

        res = h * attn + res                                         # f32 VPU

    # trailing conv of the residual group + long skip connection (plain add)
    out = conv_same(res, wf_ref[...], bf_ref[...]) + x
    out_ref[...] = out.astype(out_ref.dtype)


# ----------------------------------------------------------------------------
# Public forward pass (NCHW in / NCHW out, like the PyTorch module)
# ----------------------------------------------------------------------------
def rg_forward(x_nchw, params):
    x = jnp.transpose(x_nchw, (0, 2, 3, 1))                     # NCHW -> NHWC
    N, H, W, C = x.shape
    K = params["wf"].shape[0]
    R = len(params["rcabs"])
    Cr = params["rcabs"][0]["ca_w0"].shape[-1]
    Crp = ((Cr + 7) // 8) * 8                                   # pad CA hidden dim
    KKC = K * K * C

    def _stk(key, shape, dtype=jnp.float32):
        return jnp.stack(
            [q[key].reshape(shape) for q in params["rcabs"]]).astype(dtype)

    # im2col weight layout (K*K*Cin, Cout), bf16 for the MXU.
    w0 = _stk("w0", (KKC, C), jnp.bfloat16)
    b0 = _stk("b0", (1, C))
    w1 = _stk("w1", (KKC, C), jnp.bfloat16)
    b1 = _stk("b1", (1, C))
    # CA weights stay f32; hidden dim zero-padded (exactly equivalent math).
    cw0 = jnp.pad(_stk("ca_w0", (C, Cr)), ((0, 0), (0, 0), (0, Crp - Cr)))
    cb0 = jnp.pad(_stk("ca_b0", (1, Cr)), ((0, 0), (0, 0), (0, Crp - Cr)))
    cw1 = jnp.pad(_stk("ca_w1", (Cr, C)), ((0, 0), (0, Crp - Cr), (0, 0)))
    cb1 = _stk("ca_b1", (1, C))
    wf = params["wf"].reshape(KKC, C).astype(jnp.bfloat16)
    bf = params["bf"].reshape(1, C)

    x2 = x.reshape(N, H * W, C)                                 # free, contiguous
    Hp, Wp = H + K - 1, W + K - 1
    kern = functools.partial(_rg_kernel, num_rcab=R, K=K, H=H, W=W, C=C)

    out = pl.pallas_call(
        kern,
        out_shape=jax.ShapeDtypeStruct((N, H * W, C), x.dtype),
        grid_spec=pltpu.PrefetchScalarGridSpec(
            num_scalar_prefetch=0,
            grid=(N,),
            in_specs=[
                pl.BlockSpec((None, H * W, C), lambda n: (n, 0, 0)),
                pl.BlockSpec((R, KKC, C), lambda n: (0, 0, 0)),
                pl.BlockSpec((R, 1, C), lambda n: (0, 0, 0)),
                pl.BlockSpec((R, KKC, C), lambda n: (0, 0, 0)),
                pl.BlockSpec((R, 1, C), lambda n: (0, 0, 0)),
                pl.BlockSpec((R, C, Crp), lambda n: (0, 0, 0)),
                pl.BlockSpec((R, 1, Crp), lambda n: (0, 0, 0)),
                pl.BlockSpec((R, Crp, C), lambda n: (0, 0, 0)),
                pl.BlockSpec((R, 1, C), lambda n: (0, 0, 0)),
                pl.BlockSpec((KKC, C), lambda n: (0, 0)),
                pl.BlockSpec((1, C), lambda n: (0, 0)),
            ],
            out_specs=pl.BlockSpec((None, H * W, C), lambda n: (n, 0, 0)),
            scratch_shapes=[
                pltpu.VMEM((Hp, Wp, C), jnp.float32),           # padded activation
                pltpu.VMEM((H * W, KKC), jnp.bfloat16),         # im2col patches (bf16)
            ],
        ),
        compiler_params=pltpu.CompilerParams(
            dimension_semantics=("parallel",),
            vmem_limit_bytes=32 * 1024 * 1024,
        ),
    )(x2, w0, b0, w1, b1, cw0, cb0, cw1, cb1, wf, bf)

    return jnp.transpose(out.reshape(N, H, W, C), (0, 3, 1, 2))  # NHWC -> NCHW


# ----------------------------------------------------------------------------
# Deterministic parameter init (PyTorch Conv2d default-style uniform bounds)
# ----------------------------------------------------------------------------
def _conv_params(key, k, cin, cout):
    kw, kb = jax.random.split(key)
    bound = 1.0 / jnp.sqrt(cin * k * k)
    w = jax.random.uniform(kw, (k, k, cin, cout), jnp.float32, -bound, bound)
    b = jax.random.uniform(kb, (cout,), jnp.float32, -bound, bound)
    return w, b


def init_rg_params(key, num_rcab, num_channels, kernel_size, reduction):
    cr = num_channels // reduction
    rcabs = []
    for _ in range(num_rcab):
        key, k0, k1, k2, k3 = jax.random.split(key, 5)
        w0, b0 = _conv_params(k0, kernel_size, num_channels, num_channels)
        w1, b1 = _conv_params(k1, kernel_size, num_channels, num_channels)
        cw0, cb0 = _conv_params(k2, 1, num_channels, cr)
        cw1, cb1 = _conv_params(k3, 1, cr, num_channels)
        rcabs.append(dict(w0=w0, b0=b0, w1=w1, b1=b1,
                          ca_w0=cw0.reshape(num_channels, cr), ca_b0=cb0,
                          ca_w1=cw1.reshape(cr, num_channels), ca_b1=cb1))
    key, kf = jax.random.split(key)
    wf, bf = _conv_params(kf, kernel_size, num_channels, num_channels)
    return dict(rcabs=rcabs, wf=wf, bf=bf)


# ----------------------------------------------------------------------------
# Pure-JAX f32 reference (correctness check only)
# ----------------------------------------------------------------------------
def _conv_ref(x, w, b):
    return jax.lax.conv_general_dilated(
        x, w, (1, 1), "SAME",
        dimension_numbers=("NHWC", "HWIO", "NHWC")) + b


def rg_ref(x_nchw, params):
    x = jnp.transpose(x_nchw, (0, 2, 3, 1))
    res = x
    for p in params["rcabs"]:
        r = jnp.maximum(_conv_ref(res, p["w0"], p["b0"]), 0.0)
        r = _conv_ref(r, p["w1"], p["b1"])
        pooled = jnp.mean(r, axis=(1, 2))
        a = jax.nn.sigmoid(jnp.maximum(pooled @ p["ca_w0"] + p["ca_b0"], 0.0)
                           @ p["ca_w1"] + p["ca_b1"])
        res = r * a[:, None, None, :] + res
    out = _conv_ref(res, params["wf"], params["bf"]) + x
    return jnp.transpose(out, (0, 3, 1, 2))


# ----------------------------------------------------------------------------
if __name__ == "__main__":
    N, C, H, W = 2, 32, 16, 16
    NUM_RCAB, KSIZE, REDUCTION = 2, 3, 8

    key = jax.random.PRNGKey(0)
    key, kx, kp = jax.random.split(key, 3)
    x = jax.random.normal(kx, (N, C, H, W), jnp.float32)        # NCHW like PyTorch
    params = init_rg_params(kp, NUM_RCAB, C, KSIZE, REDUCTION)

    out = jax.block_until_ready(jax.jit(rg_forward)(x, params))
    ref = jax.block_until_ready(jax.jit(rg_ref)(x, params))

    assert out.shape == (N, C, H, W)
    max_err = jnp.max(jnp.abs(out - ref))
    # bf16 MXU inputs (with f32 accumulation) vs an all-f32 reference.
    assert jnp.allclose(out, ref, atol=3e-2, rtol=3e-2), f"max abs diff {max_err}"

    print("KERNEL_OK")
</pallas_src>

<mosaic_0001>
module attributes {stable_mosaic.version = 11 : i64} {
  func.func @_rg_kernel(%arg0: i32, %arg1: memref<1x256x32xf32, #tpu.memory_space<vmem>>, %arg2: memref<2x288x32xbf16, #tpu.memory_space<vmem>>, %arg3: memref<2x1x32xf32, #tpu.memory_space<vmem>>, %arg4: memref<2x288x32xbf16, #tpu.memory_space<vmem>>, %arg5: memref<2x1x32xf32, #tpu.memory_space<vmem>>, %arg6: memref<2x32x8xf32, #tpu.memory_space<vmem>>, %arg7: memref<2x1x8xf32, #tpu.memory_space<vmem>>, %arg8: memref<2x8x32xf32, #tpu.memory_space<vmem>>, %arg9: memref<2x1x32xf32, #tpu.memory_space<vmem>>, %arg10: memref<288x32xbf16, #tpu.memory_space<vmem>>, %arg11: memref<1x32xf32, #tpu.memory_space<vmem>>, %arg12: memref<1x256x32xf32, #tpu.memory_space<vmem>>, %arg13: memref<18x18x32xf32, #tpu.memory_space<vmem>>, %arg14: memref<256x288xbf16, #tpu.memory_space<vmem>>) attributes {dimension_semantics = [#tpu.dimension_semantics<parallel>], iteration_bounds = array<i64: 2>, scalar_prefetch = 0 : i64, scratch_operands = 2 : i64, tpu.core_type = #tpu.core_type<tc>, window_params = [{transform_indices = @transform_0, window_bounds = array<i64: 1, 256, 32>}, {pipeline_mode = #tpu.pipeline_mode<synchronous>, transform_indices = @transform_1, window_bounds = array<i64: 2, 288, 32>}, {pipeline_mode = #tpu.pipeline_mode<synchronous>, transform_indices = @transform_2, window_bounds = array<i64: 2, 1, 32>}, {pipeline_mode = #tpu.pipeline_mode<synchronous>, transform_indices = @transform_3, window_bounds = array<i64: 2, 288, 32>}, {pipeline_mode = #tpu.pipeline_mode<synchronous>, transform_indices = @transform_4, window_bounds = array<i64: 2, 1, 32>}, {pipeline_mode = #tpu.pipeline_mode<synchronous>, transform_indices = @transform_5, window_bounds = array<i64: 2, 32, 8>}, {pipeline_mode = #tpu.pipeline_mode<synchronous>, transform_indices = @transform_6, window_bounds = array<i64: 2, 1, 8>}, {pipeline_mode = #tpu.pipeline_mode<synchronous>, transform_indices = @transform_7, window_bounds = array<i64: 2, 8, 32>}, {pipeline_mode = #tpu.pipeline_mode<synchronous>, transform_indices = @transform_8, window_bounds = array<i64: 2, 1, 32>}, {pipeline_mode = #tpu.pipeline_mode<synchronous>, transform_indices = @transform_9, window_bounds = array<i64: 288, 32>}, {pipeline_mode = #tpu.pipeline_mode<synchronous>, transform_indices = @transform_10, window_bounds = array<i64: 1, 32>}, {transform_indices = @transform_11, window_bounds = array<i64: 1, 256, 32>}]} {
    %cst = arith.constant 0.000000e+00 : f32
    %0 = vector.broadcast %cst : f32 to vector<18x18x32xf32>
    %c0 = arith.constant 0 : index
    %c0_0 = arith.constant 0 : index
    %c0_1 = arith.constant 0 : index
    %1 = vector.load %arg13[%c0, %c0_0, %c0_1] : memref<18x18x32xf32, #tpu.memory_space<vmem>>, vector<18x18x32xf32>
    tpu.vector_store %arg13[%c0, %c0_0, %c0_1], %0 {strides = array<i32>} : memref<18x18x32xf32, #tpu.memory_space<vmem>>, vector<18x18x32xf32>,
    %c0_2 = arith.constant 0 : index
    %c0_3 = arith.constant 0 : index
    %c0_4 = arith.constant 0 : index
    %2 = vector.load %arg1[%c0_2, %c0_3, %c0_4] : memref<1x256x32xf32, #tpu.memory_space<vmem>>, vector<1x256x32xf32>
    %3 = vector.shape_cast %2 : vector<1x256x32xf32> to vector<256x32xf32>
    %c0_5 = arith.constant 0 : index
    %c0_6 = arith.constant 0 : index
    %c0_7 = arith.constant 0 : index
    %4 = vector.load %arg2[%c0_5, %c0_6, %c0_7] : memref<2x288x32xbf16, #tpu.memory_space<vmem>>, vector<1x288x32xbf16>
    %5 = vector.shape_cast %4 : vector<1x288x32xbf16> to vector<288x32xbf16>
    %c0_8 = arith.constant 0 : index
    %c0_9 = arith.constant 0 : index
    %c0_10 = arith.constant 0 : index
    %6 = vector.load %arg3[%c0_8, %c0_9, %c0_10] : memref<2x1x32xf32, #tpu.memory_space<vmem>>, vector<1x1x32xf32>
    %7 = vector.shape_cast %6 : vector<1x1x32xf32> to vector<1x32xf32>
    %8 = vector.shape_cast %3 : vector<256x32xf32> to vector<16x16x32xf32>
    %c1 = arith.constant 1 : index
    %c1_11 = arith.constant 1 : index
    %c0_12 = arith.constant 0 : index
    %9 = vector.load %arg13[%c1, %c1_11, %c0_12] : memref<18x18x32xf32, #tpu.memory_space<vmem>>, vector<16x16x32xf32>
    tpu.vector_store %arg13[%c1, %c1_11, %c0_12], %8 {strides = array<i32>} : memref<18x18x32xf32, #tpu.memory_space<vmem>>, vector<16x16x32xf32>,
    %c0_13 = arith.constant 0 : index
    %c0_14 = arith.constant 0 : index
    %c0_15 = arith.constant 0 : index
    %10 = vector.load %arg13[%c0_13, %c0_14, %c0_15] : memref<18x18x32xf32, #tpu.memory_space<vmem>>, vector<16x16x32xf32>
    %11 = vector.shape_cast %10 : vector<16x16x32xf32> to vector<256x32xf32>
    %12 = arith.truncf %11 : vector<256x32xf32> to vector<256x32xbf16>
    %c0_16 = arith.constant 0 : index
    %c0_17 = arith.constant 0 : index
    %13 = vector.load %arg14[%c0_16, %c0_17] : memref<256x288xbf16, #tpu.memory_space<vmem>>, vector<256x32xbf16>
    tpu.vector_store %arg14[%c0_16, %c0_17], %12 {strides = array<i32>} : memref<256x288xbf16, #tpu.memory_space<vmem>>, vector<256x32xbf16>,
    %c0_18 = arith.constant 0 : index
    %c1_19 = arith.constant 1 : index
    %c0_20 = arith.constant 0 : index
    %14 = vector.load %arg13[%c0_18, %c1_19, %c0_20] : memref<18x18x32xf32, #tpu.memory_space<vmem>>, vector<16x16x32xf32>
    %15 = vector.shape_cast %14 : vector<16x16x32xf32> to vector<256x32xf32>
    %16 = arith.truncf %15 : vector<256x32xf32> to vector<256x32xbf16>
    %c0_21 = arith.constant 0 : index
    %c32 = arith.constant 32 : index
    %17 = vector.load %arg14[%c0_21, %c32] : memref<256x288xbf16, #tpu.memory_space<vmem>>, vector<256x32xbf16>
    tpu.vector_store %arg14[%c0_21, %c32], %16 {strides = array<i32>} : memref<256x288xbf16, #tpu.memory_space<vmem>>, vector<256x32xbf16>,
    %c0_22 = arith.constant 0 : index
    %c2 = arith.constant 2 : index
    %c0_23 = arith.constant 0 : index
    %18 = vector.load %arg13[%c0_22, %c2, %c0_23] : memref<18x18x32xf32, #tpu.memory_space<vmem>>, vector<16x16x32xf32>
    %19 = vector.shape_cast %18 : vector<16x16x32xf32> to vector<256x32xf32>
    %20 = arith.truncf %19 : vector<256x32xf32> to vector<256x32xbf16>
    %c0_24 = arith.constant 0 : index
    %c64 = arith.constant 64 : index
    %21 = vector.load %arg14[%c0_24, %c64] : memref<256x288xbf16, #tpu.memory_space<vmem>>, vector<256x32xbf16>
    tpu.vector_store %arg14[%c0_24, %c64], %20 {strides = array<i32>} : memref<256x288xbf16, #tpu.memory_space<vmem>>, vector<256x32xbf16>,
    %c1_25 = arith.constant 1 : index
    %c0_26 = arith.constant 0 : index
    %c0_27 = arith.constant 0 : index
    %22 = vector.load %arg13[%c1_25, %c0_26, %c0_27] : memref<18x18x32xf32, #tpu.memory_space<vmem>>, vector<16x16x32xf32>
    %23 = vector.shape_cast %22 : vector<16x16x32xf32> to vector<256x32xf32>
    %24 = arith.truncf %23 : vector<256x32xf32> to vector<256x32xbf16>
    %c0_28 = arith.constant 0 : index
    %c96 = arith.constant 96 : index
    %25 = vector.load %arg14[%c0_28, %c96] : memref<256x288xbf16, #tpu.memory_space<vmem>>, vector<256x32xbf16>
    tpu.vector_store %arg14[%c0_28, %c96], %24 {strides = array<i32>} : memref<256x288xbf16, #tpu.memory_space<vmem>>, vector<256x32xbf16>,
    %c1_29 = arith.constant 1 : index
    %c1_30 = arith.constant 1 : index
    %c0_31 = arith.constant 0 : index
    %26 = vector.load %arg13[%c1_29, %c1_30, %c0_31] : memref<18x18x32xf32, #tpu.memory_space<vmem>>, vector<16x16x32xf32>
    %27 = vector.shape_cast %26 : vector<16x16x32xf32> to vector<256x32xf32>
    %28 = arith.truncf %27 : vector<256x32xf32> to vector<256x32xbf16>
    %c0_32 = arith.constant 0 : index
    %c128 = arith.constant 128 : index
    %29 = vector.load %arg14[%c0_32, %c128] : memref<256x288xbf16, #tpu.memory_space<vmem>>, vector<256x32xbf16>
    tpu.vector_store %arg14[%c0_32, %c128], %28 {strides = array<i32>} : memref<256x288xbf16, #tpu.memory_space<vmem>>, vector<256x32xbf16>,
    %c1_33 = arith.constant 1 : index
    %c2_34 = arith.constant 2 : index
    %c0_35 = arith.constant 0 : index
    %30 = vector.load %arg13[%c1_33, %c2_34, %c0_35] : memref<18x18x32xf32, #tpu.memory_space<vmem>>, vector<16x16x32xf32>
    %31 = vector.shape_cast %30 : vector<16x16x32xf32> to vector<256x32xf32>
    %32 = arith.truncf %31 : vector<256x32xf32> to vector<256x32xbf16>
    %c0_36 = arith.constant 0 : index
    %c160 = arith.constant 160 : index
    %33 = vector.load %arg14[%c0_36, %c160] : memref<256x288xbf16, #tpu.memory_space<vmem>>, vector<256x32xbf16>
    tpu.vector_store %arg14[%c0_36, %c160], %32 {strides = array<i32>} : memref<256x288xbf16, #tpu.memory_space<vmem>>, vector<256x32xbf16>,
    %c2_37 = arith.constant 2 : index
    %c0_38 = arith.constant 0 : index
    %c0_39 = arith.constant 0 : index
    %34 = vector.load %arg13[%c2_37, %c0_38, %c0_39] : memref<18x18x32xf32, #tpu.memory_space<vmem>>, vector<16x16x32xf32>
    %35 = vector.shape_cast %34 : vector<16x16x32xf32> to vector<256x32xf32>
    %36 = arith.truncf %35 : vector<256x32xf32> to vector<256x32xbf16>
    %c0_40 = arith.constant 0 : index
    %c192 = arith.constant 192 : index
    %37 = vector.load %arg14[%c0_40, %c192] : memref<256x288xbf16, #tpu.memory_space<vmem>>, vector<256x32xbf16>
    tpu.vector_store %arg14[%c0_40, %c192], %36 {strides = array<i32>} : memref<256x288xbf16, #tpu.memory_space<vmem>>, vector<256x32xbf16>,
    %c2_41 = arith.constant 2 : index
    %c1_42 = arith.constant 1 : index
    %c0_43 = arith.constant 0 : index
    %38 = vector.load %arg13[%c2_41, %c1_42, %c0_43] : memref<18x18x32xf32, #tpu.memory_space<vmem>>, vector<16x16x32xf32>
    %39 = vector.shape_cast %38 : vector<16x16x32xf32> to vector<256x32xf32>
    %40 = arith.truncf %39 : vector<256x32xf32> to vector<256x32xbf16>
    %c0_44 = arith.constant 0 : index
    %c224 = arith.constant 224 : index
    %41 = vector.load %arg14[%c0_44, %c224] : memref<256x288xbf16, #tpu.memory_space<vmem>>, vector<256x32xbf16>
    tpu.vector_store %arg14[%c0_44, %c224], %40 {strides = array<i32>} : memref<256x288xbf16, #tpu.memory_space<vmem>>, vector<256x32xbf16>,
    %c2_45 = arith.constant 2 : index
    %c2_46 = arith.constant 2 : index
    %c0_47 = arith.constant 0 : index
    %42 = vector.load %arg13[%c2_45, %c2_46, %c0_47] : memref<18x18x32xf32, #tpu.memory_space<vmem>>, vector<16x16x32xf32>
    %43 = vector.shape_cast %42 : vector<16x16x32xf32> to vector<256x32xf32>
    %44 = arith.truncf %43 : vector<256x32xf32> to vector<256x32xbf16>
    %c0_48 = arith.constant 0 : index
    %c256 = arith.constant 256 : index
    %45 = vector.load %arg14[%c0_48, %c256] : memref<256x288xbf16, #tpu.memory_space<vmem>>, vector<256x32xbf16>
    tpu.vector_store %arg14[%c0_48, %c256], %44 {strides = array<i32>} : memref<256x288xbf16, #tpu.memory_space<vmem>>, vector<256x32xbf16>,
    %c0_49 = arith.constant 0 : index
    %c0_50 = arith.constant 0 : index
    %46 = vector.load %arg14[%c0_49, %c0_50] : memref<256x288xbf16, #tpu.memory_space<vmem>>, vector<256x288xbf16>
    %cst_51 = arith.constant dense<0.000000e+00> : vector<256x32xf32>
    %47 = tpu.matmul %46, %5, %cst_51 {dimension_numbers = #tpu.dot_dimension_numbers<[1], [0], [0], [1], [0, 0, 1, 1], [], []>} : vector<256x288xbf16>, vector<288x32xbf16>, vector<256x32xf32> -> vector<256x32xf32>
    %48 = vector.broadcast %7 : vector<1x32xf32> to vector<256x32xf32>
    %49 = arith.addf %47, %48 : vector<256x32xf32>
    %cst_52 = arith.constant 0.000000e+00 : f32
    %50 = vector.broadcast %cst_52 : f32 to vector<256x32xf32>
    %51 = arith.maximumf %49, %50 : vector<256x32xf32>
    %c0_53 = arith.constant 0 : index
    %c0_54 = arith.constant 0 : index
    %c0_55 = arith.constant 0 : index
    %52 = vector.load %arg4[%c0_53, %c0_54, %c0_55] : memref<2x288x32xbf16, #tpu.memory_space<vmem>>, vector<1x288x32xbf16>
    %53 = vector.shape_cast %52 : vector<1x288x32xbf16> to vector<288x32xbf16>
    %c0_56 = arith.constant 0 : index
    %c0_57 = arith.constant 0 : index
    %c0_58 = arith.constant 0 : index
    %54 = vector.load %arg5[%c0_56, %c0_57, %c0_58] : memref<2x1x32xf32, #tpu.memory_space<vmem>>, vector<1x1x32xf32>
    %55 = vector.shape_cast %54 : vector<1x1x32xf32> to vector<1x32xf32>
    %56 = vector.shape_cast %51 : vector<256x32xf32> to vector<16x16x32xf32>
    %c1_59 = arith.constant 1 : index
    %c1_60 = arith.constant 1 : index
    %c0_61 = arith.constant 0 : index
    %57 = vector.load %arg13[%c1_59, %c1_60, %c0_61] : memref<18x18x32xf32, #tpu.memory_space<vmem>>, vector<16x16x32xf32>
    tpu.vector_store %arg13[%c1_59, %c1_60, %c0_61], %56 {strides = array<i32>} : memref<18x18x32xf32, #tpu.memory_space<vmem>>, vector<16x16x32xf32>,
    %c0_62 = arith.constant 0 : index
    %c0_63 = arith.constant 0 : index
    %c0_64 = arith.constant 0 : index
    %58 = vector.load %arg13[%c0_62, %c0_63, %c0_64] : memref<18x18x32xf32, #tpu.memory_space<vmem>>, vector<16x16x32xf32>
    %59 = vector.shape_cast %58 : vector<16x16x32xf32> to vector<256x32xf32>
    %60 = arith.truncf %59 : vector<256x32xf32> to vector<256x32xbf16>
    %c0_65 = arith.constant 0 : index
    %c0_66 = arith.constant 0 : index
    %61 = vector.load %arg14[%c0_65, %c0_66] : memref<256x288xbf16, #tpu.memory_space<vmem>>, vector<256x32xbf16>
    tpu.vector_store %arg14[%c0_65, %c0_66], %60 {strides = array<i32>} : memref<256x288xbf16, #tpu.memory_space<vmem>>, vector<256x32xbf16>,
    %c0_67 = arith.constant 0 : index
    %c1_68 = arith.constant 1 : index
    %c0_69 = arith.constant 0 : index
    %62 = vector.load %arg13[%c0_67, %c1_68, %c0_69] : memref<18x18x32xf32, #tpu.memory_space<vmem>>, vector<16x16x32xf32>
    %63 = vector.shape_cast %62 : vector<16x16x32xf32> to vector<256x32xf32>
    %64 = arith.truncf %63 : vector<256x32xf32> to vector<256x32xbf16>
    %c0_70 = arith.constant 0 : index
    %c32_71 = arith.constant 32 : index
    %65 = vector.load %arg14[%c0_70, %c32_71] : memref<256x288xbf16, #tpu.memory_space<vmem>>, vector<256x32xbf16>
    tpu.vector_store %arg14[%c0_70, %c32_71], %64 {strides = array<i32>} : memref<256x288xbf16, #tpu.memory_space<vmem>>, vector<256x32xbf16>,
    %c0_72 = arith.constant 0 : index
    %c2_73 = arith.constant 2 : index
    %c0_74 = arith.constant 0 : index
    %66 = vector.load %arg13[%c0_72, %c2_73, %c0_74] : memref<18x18x32xf32, #tpu.memory_space<vmem>>, vector<16x16x32xf32>
    %67 = vector.shape_cast %66 : vector<16x16x32xf32> to vector<256x32xf32>
    %68 = arith.truncf %67 : vector<256x32xf32> to vector<256x32xbf16>
    %c0_75 = arith.constant 0 : index
    %c64_76 = arith.constant 64 : index
    %69 = vector.load %arg14[%c0_75, %c64_76] : memref<256x288xbf16, #tpu.memory_space<vmem>>, vector<256x32xbf16>
    tpu.vector_store %arg14[%c0_75, %c64_76], %68 {strides = array<i32>} : memref<256x288xbf16, #tpu.memory_space<vmem>>, vector<256x32xbf16>,
    %c1_77 = arith.constant 1 : index
    %c0_78 = arith.constant 0 : index
    %c0_79 = arith.constant 0 : index
    %70 = vector.load %arg13[%c1_77, %c0_78, %c0_79] : memref<18x18x32xf32, #tpu.memory_space<vmem>>, vector<16x16x32xf32>
    %71 = vector.shape_cast %70 : vector<16x16x32xf32> to vector<256x32xf32>
    %72 = arith.truncf %71 : vector<256x32xf32> to vector<256x32xbf16>
    %c0_80 = arith.constant 0 : index
    %c96_81 = arith.constant 96 : index
    %73 = vector.load %arg14[%c0_80, %c96_81] : memref<256x288xbf16, #tpu.memory_space<vmem>>, vector<256x32xbf16>
    tpu.vector_store %arg14[%c0_80, %c96_81], %72 {strides = array<i32>} : memref<256x288xbf16, #tpu.memory_space<vmem>>, vector<256x32xbf16>,
    %c1_82 = arith.constant 1 : index
    %c1_83 = arith.constant 1 : index
    %c0_84 = arith.constant 0 : index
    %74 = vector.load %arg13[%c1_82, %c1_83, %c0_84] : memref<18x18x32xf32, #tpu.memory_space<vmem>>, vector<16x16x32xf32>
    %75 = vector.shape_cast %74 : vector<16x16x32xf32> to vector<256x32xf32>
    %76 = arith.truncf %75 : vector<256x32xf32> to vector<256x32xbf16>
    %c0_85 = arith.constant 0 : index
    %c128_86 = arith.constant 128 : index
    %77 = vector.load %arg14[%c0_85, %c128_86] : memref<256x288xbf16, #tpu.memory_space<vmem>>, vector<256x32xbf16>
    tpu.vector_store %arg14[%c0_85, %c128_86], %76 {strides = array<i32>} : memref<256x288xbf16, #tpu.memory_space<vmem>>, vector<256x32xbf16>,
    %c1_87 = arith.constant 1 : index
    %c2_88 = arith.constant 2 : index
    %c0_89 = arith.constant 0 : index
    %78 = vector.load %arg13[%c1_87, %c2_88, %c0_89] : memref<18x18x32xf32, #tpu.memory_space<vmem>>, vector<16x16x32xf32>
    %79 = vector.shape_cast %78 : vector<16x16x32xf32> to vector<256x32xf32>
    %80 = arith.truncf %79 : vector<256x32xf32> to vector<256x32xbf16>
    %c0_90 = arith.constant 0 : index
    %c160_91 = arith.constant 160 : index
    %81 = vector.load %arg14[%c0_90, %c160_91] : memref<256x288xbf16, #tpu.memory_space<vmem>>, vector<256x32xbf16>
    tpu.vector_store %arg14[%c0_90, %c160_91], %80 {strides = array<i32>} : memref<256x288xbf16, #tpu.memory_space<vmem>>, vector<256x32xbf16>,
    %c2_92 = arith.constant 2 : index
    %c0_93 = arith.constant 0 : index
    %c0_94 = arith.constant 0 : index
    %82 = vector.load %arg13[%c2_92, %c0_93, %c0_94] : memref<18x18x32xf32, #tpu.memory_space<vmem>>, vector<16x16x32xf32>
    %83 = vector.shape_cast %82 : vector<16x16x32xf32> to vector<256x32xf32>
    %84 = arith.truncf %83 : vector<256x32xf32> to vector<256x32xbf16>
    %c0_95 = arith.constant 0 : index
    %c192_96 = arith.constant 192 : index
    %85 = vector.load %arg14[%c0_95, %c192_96] : memref<256x288xbf16, #tpu.memory_space<vmem>>, vector<256x32xbf16>
    tpu.vector_store %arg14[%c0_95, %c192_96], %84 {strides = array<i32>} : memref<256x288xbf16, #tpu.memory_space<vmem>>, vector<256x32xbf16>,
    %c2_97 = arith.constant 2 : index
    %c1_98 = arith.constant 1 : index
    %c0_99 = arith.constant 0 : index
    %86 = vector.load %arg13[%c2_97, %c1_98, %c0_99] : memref<18x18x32xf32, #tpu.memory_space<vmem>>, vector<16x16x32xf32>
    %87 = vector.shape_cast %86 : vector<16x16x32xf32> to vector<256x32xf32>
    %88 = arith.truncf %87 : vector<256x32xf32> to vector<256x32xbf16>
    %c0_100 = arith.constant 0 : index
    %c224_101 = arith.constant 224 : index
    %89 = vector.load %arg14[%c0_100, %c224_101] : memref<256x288xbf16, #tpu.memory_space<vmem>>, vector<256x32xbf16>
    tpu.vector_store %arg14[%c0_100, %c224_101], %88 {strides = array<i32>} : memref<256x288xbf16, #tpu.memory_space<vmem>>, vector<256x32xbf16>,
    %c2_102 = arith.constant 2 : index
    %c2_103 = arith.constant 2 : index
    %c0_104 = arith.constant 0 : index
    %90 = vector.load %arg13[%c2_102, %c2_103, %c0_104] : memref<18x18x32xf32, #tpu.memory_space<vmem>>, vector<16x16x32xf32>
    %91 = vector.shape_cast %90 : vector<16x16x32xf32> to vector<256x32xf32>
    %92 = arith.truncf %91 : vector<256x32xf32> to vector<256x32xbf16>
    %c0_105 = arith.constant 0 : index
    %c256_106 = arith.constant 256 : index
    %93 = vector.load %arg14[%c0_105, %c256_106] : memref<256x288xbf16, #tpu.memory_space<vmem>>, vector<256x32xbf16>
    tpu.vector_store %arg14[%c0_105, %c256_106], %92 {strides = array<i32>} : memref<256x288xbf16, #tpu.memory_space<vmem>>, vector<256x32xbf16>,
    %c0_107 = arith.constant 0 : index
    %c0_108 = arith.constant 0 : index
    %94 = vector.load %arg14[%c0_107, %c0_108] : memref<256x288xbf16, #tpu.memory_space<vmem>>, vector<256x288xbf16>
    %cst_109 = arith.constant dense<0.000000e+00> : vector<256x32xf32>
    %95 = tpu.matmul %94, %53, %cst_109 {dimension_numbers = #tpu.dot_dimension_numbers<[1], [0], [0], [1], [0, 0, 1, 1], [], []>} : vector<256x288xbf16>, vector<288x32xbf16>, vector<256x32xf32> -> vector<256x32xf32>
    %96 = vector.broadcast %55 : vector<1x32xf32> to vector<256x32xf32>
    %97 = arith.addf %95, %96 : vector<256x32xf32>
    %cst_110 = arith.constant dense<0.000000e+00> : vector<32xf32>
    %98 = vector.multi_reduction <add>, %97, %cst_110 [0] : vector<256x32xf32> to vector<32xf32>
    %99 = vector.shape_cast %98 : vector<32xf32> to vector<1x32xf32>
    %cst_111 = arith.constant 3.906250e-03 : f32
    %100 = vector.broadcast %cst_111 : f32 to vector<1x32xf32>
    %101 = arith.mulf %99, %100 : vector<1x32xf32>
    %102 = vector.shape_cast %101 : vector<1x32xf32> to vector<1x32xf32>
    %103 = vector.broadcast %102 : vector<1x32xf32> to vector<8x32xf32>
    %c0_112 = arith.constant 0 : index
    %c0_113 = arith.constant 0 : index
    %c0_114 = arith.constant 0 : index
    %104 = vector.load %arg6[%c0_112, %c0_113, %c0_114] : memref<2x32x8xf32, #tpu.memory_space<vmem>>, vector<1x32x8xf32>
    %105 = vector.shape_cast %104 : vector<1x32x8xf32> to vector<32x8xf32>
    %cst_115 = arith.constant dense<0.000000e+00> : vector<8x8xf32>
    %106 = tpu.matmul %103, %105, %cst_115 {dimension_numbers = #tpu.dot_dimension_numbers<[1], [0], [0], [1], [0, 0, 1, 1], [], []>} : vector<8x32xf32>, vector<32x8xf32>, vector<8x8xf32> -> vector<8x8xf32>
    %c0_116 = arith.constant 0 : index
    %c0_117 = arith.constant 0 : index
    %c0_118 = arith.constant 0 : index
    %107 = vector.load %arg7[%c0_116, %c0_117, %c0_118] : memref<2x1x8xf32, #tpu.memory_space<vmem>>, vector<1x1x8xf32>
    %108 = vector.shape_cast %107 : vector<1x1x8xf32> to vector<1x8xf32>
    %109 = vector.broadcast %108 : vector<1x8xf32> to vector<8x8xf32>
    %110 = arith.addf %106, %109 : vector<8x8xf32>
    %cst_119 = arith.constant 0.000000e+00 : f32
    %111 = vector.broadcast %cst_119 : f32 to vector<8x8xf32>
    %112 = arith.maximumf %110, %111 : vector<8x8xf32>
    %c0_120 = arith.constant 0 : index
    %c0_121 = arith.constant 0 : index
    %c0_122 = arith.constant 0 : index
    %113 = vector.load %arg8[%c0_120, %c0_121, %c0_122] : memref<2x8x32xf32, #tpu.memory_space<vmem>>, vector<1x8x32xf32>
    %114 = vector.shape_cast %113 : vector<1x8x32xf32> to vector<8x32xf32>
    %cst_123 = arith.constant dense<0.000000e+00> : vector<8x32xf32>
    %115 = tpu.matmul %112, %114, %cst_123 {dimension_numbers = #tpu.dot_dimension_numbers<[1], [0], [0], [1], [0, 0, 1, 1], [], []>} : vector<8x8xf32>, vector<8x32xf32>, vector<8x32xf32> -> vector<8x32xf32>
    %c0_124 = arith.constant 0 : index
    %c0_125 = arith.constant 0 : index
    %c0_126 = arith.constant 0 : index
    %116 = vector.load %arg9[%c0_124, %c0_125, %c0_126] : memref<2x1x32xf32, #tpu.memory_space<vmem>>, vector<1x1x32xf32>
    %117 = vector.shape_cast %116 : vector<1x1x32xf32> to vector<1x32xf32>
    %118 = vector.broadcast %117 : vector<1x32xf32> to vector<8x32xf32>
    %119 = arith.addf %115, %118 : vector<8x32xf32>
    %120 = vector.extract_strided_slice %119 {offsets = [0, 0], sizes = [1, 32], strides = [1, 1]} : vector<8x32xf32> to vector<1x32xf32>
    %cst_127 = arith.constant 0.000000e+00 : f32
    %121 = vector.broadcast %cst_127 : f32 to vector<1x32xf32>
    %122 = arith.subf %121, %120 : vector<1x32xf32>
    %123 = math.exp %122 : vector<1x32xf32>
    %cst_128 = arith.constant 1.000000e+00 : f32
    %124 = vector.broadcast %cst_128 : f32 to vector<1x32xf32>
    %125 = arith.addf %124, %123 : vector<1x32xf32>
    %cst_129 = arith.constant 1.000000e+00 : f32
    %126 = vector.broadcast %cst_129 : f32 to vector<1x32xf32>
    %127 = arith.divf %126, %125 : vector<1x32xf32>
    %128 = vector.broadcast %127 : vector<1x32xf32> to vector<256x32xf32>
    %129 = arith.mulf %97, %128 : vector<256x32xf32>
    %130 = arith.addf %129, %3 : vector<256x32xf32>
    %c1_130 = arith.constant 1 : index
    %c0_131 = arith.constant 0 : index
    %c0_132 = arith.constant 0 : index
    %131 = vector.load %arg2[%c1_130, %c0_131, %c0_132] : memref<2x288x32xbf16, #tpu.memory_space<vmem>>, vector<1x288x32xbf16>
    %132 = vector.shape_cast %131 : vector<1x288x32xbf16> to vector<288x32xbf16>
    %c1_133 = arith.constant 1 : index
    %c0_134 = arith.constant 0 : index
    %c0_135 = arith.constant 0 : index
    %133 = vector.load %arg3[%c1_133, %c0_134, %c0_135] : memref<2x1x32xf32, #tpu.memory_space<vmem>>, vector<1x1x32xf32>
    %134 = vector.shape_cast %133 : vector<1x1x32xf32> to vector<1x32xf32>
    %135 = vector.shape_cast %130 : vector<256x32xf32> to vector<16x16x32xf32>
    %c1_136 = arith.constant 1 : index
    %c1_137 = arith.constant 1 : index
    %c0_138 = arith.constant 0 : index
    %136 = vector.load %arg13[%c1_136, %c1_137, %c0_138] : memref<18x18x32xf32, #tpu.memory_space<vmem>>, vector<16x16x32xf32>
    tpu.vector_store %arg13[%c1_136, %c1_137, %c0_138], %135 {strides = array<i32>} : memref<18x18x32xf32, #tpu.memory_space<vmem>>, vector<16x16x32xf32>,
    %c0_139 = arith.constant 0 : index
    %c0_140 = arith.constant 0 : index
    %c0_141 = arith.constant 0 : index
    %137 = vector.load %arg13[%c0_139, %c0_140, %c0_141] : memref<18x18x32xf32, #tpu.memory_space<vmem>>, vector<16x16x32xf32>
    %138 = vector.shape_cast %137 : vector<16x16x32xf32> to vector<256x32xf32>
    %139 = arith.truncf %138 : vector<256x32xf32> to vector<256x32xbf16>
    %c0_142 = arith.constant 0 : index
    %c0_143 = arith.constant 0 : index
    %140 = vector.load %arg14[%c0_142, %c0_143] : memref<256x288xbf16, #tpu.memory_space<vmem>>, vector<256x32xbf16>
    tpu.vector_store %arg14[%c0_142, %c0_143], %139 {strides = array<i32>} : memref<256x288xbf16, #tpu.memory_space<vmem>>, vector<256x32xbf16>,
    %c0_144 = arith.constant 0 : index
    %c1_145 = arith.constant 1 : index
    %c0_146 = arith.constant 0 : index
    %141 = vector.load %arg13[%c0_144, %c1_145, %c0_146] : memref<18x18x32xf32, #tpu.memory_space<vmem>>, vector<16x16x32xf32>
    %142 = vector.shape_cast %141 : vector<16x16x32xf32> to vector<256x32xf32>
    %143 = arith.truncf %142 : vector<256x32xf32> to vector<256x32xbf16>
    %c0_147 = arith.constant 0 : index
    %c32_148 = arith.constant 32 : index
    %144 = vector.load %arg14[%c0_147, %c32_148] : memref<256x288xbf16, #tpu.memory_space<vmem>>, vector<256x32xbf16>
    tpu.vector_store %arg14[%c0_147, %c32_148], %143 {strides = array<i32>} : memref<256x288xbf16, #tpu.memory_space<vmem>>, vector<256x32xbf16>,
    %c0_149 = arith.constant 0 : index
    %c2_150 = arith.constant 2 : index
    %c0_151 = arith.constant 0 : index
    %145 = vector.load %arg13[%c0_149, %c2_150, %c0_151] : memref<18x18x32xf32, #tpu.memory_space<vmem>>, vector<16x16x32xf32>
    %146 = vector.shape_cast %145 : vector<16x16x32xf32> to vector<256x32xf32>
    %147 = arith.truncf %146 : vector<256x32xf32> to vector<256x32xbf16>
    %c0_152 = arith.constant 0 : index
    %c64_153 = arith.constant 64 : index
    %148 = vector.load %arg14[%c0_152, %c64_153] : memref<256x288xbf16, #tpu.memory_space<vmem>>, vector<256x32xbf16>
    tpu.vector_store %arg14[%c0_152, %c64_153], %147 {strides = array<i32>} : memref<256x288xbf16, #tpu.memory_space<vmem>>, vector<256x32xbf16>,
    %c1_154 = arith.constant 1 : index
    %c0_155 = arith.constant 0 : index
    %c0_156 = arith.constant 0 : index
    %149 = vector.load %arg13[%c1_154, %c0_155, %c0_156] : memref<18x18x32xf32, #tpu.memory_space<vmem>>, vector<16x16x32xf32>
    %150 = vector.shape_cast %149 : vector<16x16x32xf32> to vector<256x32xf32>
    %151 = arith.truncf %150 : vector<256x32xf32> to vector<256x32xbf16>
    %c0_157 = arith.constant 0 : index
    %c96_158 = arith.constant 96 : index
    %152 = vector.load %arg14[%c0_157, %c96_158] : memref<256x288xbf16, #tpu.memory_space<vmem>>, vector<256x32xbf16>
    tpu.vector_store %arg14[%c0_157, %c96_158], %151 {strides = array<i32>} : memref<256x288xbf16, #tpu.memory_space<vmem>>, vector<256x32xbf16>,
    %c1_159 = arith.constant 1 : index
    %c1_160 = arith.constant 1 : index
    %c0_161 = arith.constant 0 : index
    %153 = vector.load %arg13[%c1_159, %c1_160, %c0_161] : memref<18x18x32xf32, #tpu.memory_space<vmem>>, vector<16x16x32xf32>
    %154 = vector.shape_cast %153 : vector<16x16x32xf32> to vector<256x32xf32>
    %155 = arith.truncf %154 : vector<256x32xf32> to vector<256x32xbf16>
    %c0_162 = arith.constant 0 : index
    %c128_163 = arith.constant 128 : index
    %156 = vector.load %arg14[%c0_162, %c128_163] : memref<256x288xbf16, #tpu.memory_space<vmem>>, vector<256x32xbf16>
    tpu.vector_store %arg14[%c0_162, %c128_163], %155 {strides = array<i32>} : memref<256x288xbf16, #tpu.memory_space<vmem>>, vector<256x32xbf16>,
    %c1_164 = arith.constant 1 : index
    %c2_165 = arith.constant 2 : index
    %c0_166 = arith.constant 0 : index
    %157 = vector.load %arg13[%c1_164, %c2_165, %c0_166] : memref<18x18x32xf32, #tpu.memory_space<vmem>>, vector<16x16x32xf32>
    %158 = vector.shape_cast %157 : vector<16x16x32xf32> to vector<256x32xf32>
    %159 = arith.truncf %158 : vector<256x32xf32> to vector<256x32xbf16>
    %c0_167 = arith.constant 0 : index
    %c160_168 = arith.constant 160 : index
    %160 = vector.load %arg14[%c0_167, %c160_168] : memref<256x288xbf16, #tpu.memory_space<vmem>>, vector<256x32xbf16>
    tpu.vector_store %arg14[%c0_167, %c160_168], %159 {strides = array<i32>} : memref<256x288xbf16, #tpu.memory_space<vmem>>, vector<256x32xbf16>,
    %c2_169 = arith.constant 2 : index
    %c0_170 = arith.constant 0 : index
    %c0_171 = arith.constant 0 : index
    %161 = vector.load %arg13[%c2_169, %c0_170, %c0_171] : memref<18x18x32xf32, #tpu.memory_space<vmem>>, vector<16x16x32xf32>
    %162 = vector.shape_cast %161 : vector<16x16x32xf32> to vector<256x32xf32>
    %163 = arith.truncf %162 : vector<256x32xf32> to vector<256x32xbf16>
    %c0_172 = arith.constant 0 : index
    %c192_173 = arith.constant 192 : index
    %164 = vector.load %arg14[%c0_172, %c192_173] : memref<256x288xbf16, #tpu.memory_space<vmem>>, vector<256x32xbf16>
    tpu.vector_store %arg14[%c0_172, %c192_173], %163 {strides = array<i32>} : memref<256x288xbf16, #tpu.memory_space<vmem>>, vector<256x32xbf16>,
    %c2_174 = arith.constant 2 : index
    %c1_175 = arith.constant 1 : index
    %c0_176 = arith.constant 0 : index
    %165 = vector.load %arg13[%c2_174, %c1_175, %c0_176] : memref<18x18x32xf32, #tpu.memory_space<vmem>>, vector<16x16x32xf32>
    %166 = vector.shape_cast %165 : vector<16x16x32xf32> to vector<256x32xf32>
    %167 = arith.truncf %166 : vector<256x32xf32> to vector<256x32xbf16>
    %c0_177 = arith.constant 0 : index
    %c224_178 = arith.constant 224 : index
    %168 = vector.load %arg14[%c0_177, %c224_178] : memref<256x288xbf16, #tpu.memory_space<vmem>>, vector<256x32xbf16>
    tpu.vector_store %arg14[%c0_177, %c224_178], %167 {strides = array<i32>} : memref<256x288xbf16, #tpu.memory_space<vmem>>, vector<256x32xbf16>,
    %c2_179 = arith.constant 2 : index
    %c2_180 = arith.constant 2 : index
    %c0_181 = arith.constant 0 : index
    %169 = vector.load %arg13[%c2_179, %c2_180, %c0_181] : memref<18x18x32xf32, #tpu.memory_space<vmem>>, vector<16x16x32xf32>
    %170 = vector.shape_cast %169 : vector<16x16x32xf32> to vector<256x32xf32>
    %171 = arith.truncf %170 : vector<256x32xf32> to vector<256x32xbf16>
    %c0_182 = arith.constant 0 : index
    %c256_183 = arith.constant 256 : index
    %172 = vector.load %arg14[%c0_182, %c256_183] : memref<256x288xbf16, #tpu.memory_space<vmem>>, vector<256x32xbf16>
    tpu.vector_store %arg14[%c0_182, %c256_183], %171 {strides = array<i32>} : memref<256x288xbf16, #tpu.memory_space<vmem>>, vector<256x32xbf16>,
    %c0_184 = arith.constant 0 : index
    %c0_185 = arith.constant 0 : index
    %173 = vector.load %arg14[%c0_184, %c0_185] : memref<256x288xbf16, #tpu.memory_space<vmem>>, vector<256x288xbf16>
    %cst_186 = arith.constant dense<0.000000e+00> : vector<256x32xf32>
    %174 = tpu.matmul %173, %132, %cst_186 {dimension_numbers = #tpu.dot_dimension_numbers<[1], [0], [0], [1], [0, 0, 1, 1], [], []>} : vector<256x288xbf16>, vector<288x32xbf16>, vector<256x32xf32> -> vector<256x32xf32>
    %175 = vector.broadcast %134 : vector<1x32xf32> to vector<256x32xf32>
    %176 = arith.addf %174, %175 : vector<256x32xf32>
    %cst_187 = arith.constant 0.000000e+00 : f32
    %177 = vector.broadcast %cst_187 : f32 to vector<256x32xf32>
    %178 = arith.maximumf %176, %177 : vector<256x32xf32>
    %c1_188 = arith.constant 1 : index
    %c0_189 = arith.constant 0 : index
    %c0_190 = arith.constant 0 : index
    %179 = vector.load %arg4[%c1_188, %c0_189, %c0_190] : memref<2x288x32xbf16, #tpu.memory_space<vmem>>, vector<1x288x32xbf16>
    %180 = vector.shape_cast %179 : vector<1x288x32xbf16> to vector<288x32xbf16>
    %c1_191 = arith.constant 1 : index
    %c0_192 = arith.constant 0 : index
    %c0_193 = arith.constant 0 : index
    %181 = vector.load %arg5[%c1_191, %c0_192, %c0_193] : memref<2x1x32xf32, #tpu.memory_space<vmem>>, vector<1x1x32xf32>
    %182 = vector.shape_cast %181 : vector<1x1x32xf32> to vector<1x32xf32>
    %183 = vector.shape_cast %178 : vector<256x32xf32> to vector<16x16x32xf32>
    %c1_194 = arith.constant 1 : index
    %c1_195 = arith.constant 1 : index
    %c0_196 = arith.constant 0 : index
    %184 = vector.load %arg13[%c1_194, %c1_195, %c0_196] : memref<18x18x32xf32, #tpu.memory_space<vmem>>, vector<16x16x32xf32>
    tpu.vector_store %arg13[%c1_194, %c1_195, %c0_196], %183 {strides = array<i32>} : memref<18x18x32xf32, #tpu.memory_space<vmem>>, vector<16x16x32xf32>,
    %c0_197 = arith.constant 0 : index
    %c0_198 = arith.constant 0 : index
    %c0_199 = arith.constant 0 : index
    %185 = vector.load %arg13[%c0_197, %c0_198, %c0_199] : memref<18x18x32xf32, #tpu.memory_space<vmem>>, vector<16x16x32xf32>
    %186 = vector.shape_cast %185 : vector<16x16x32xf32> to vector<256x32xf32>
    %187 = arith.truncf %186 : vector<256x32xf32> to vector<256x32xbf16>
    %c0_200 = arith.constant 0 : index
    %c0_201 = arith.constant 0 : index
    %188 = vector.load %arg14[%c0_200, %c0_201] : memref<256x288xbf16, #tpu.memory_space<vmem>>, vector<256x32xbf16>
    tpu.vector_store %arg14[%c0_200, %c0_201], %187 {strides = array<i32>} : memref<256x288xbf16, #tpu.memory_space<vmem>>, vector<256x32xbf16>,
    %c0_202 = arith.constant 0 : index
    %c1_203 = arith.constant 1 : index
    %c0_204 = arith.constant 0 : index
    %189 = vector.load %arg13[%c0_202, %c1_203, %c0_204] : memref<18x18x32xf32, #tpu.memory_space<vmem>>, vector<16x16x32xf32>
    %190 = vector.shape_cast %189 : vector<16x16x32xf32> to vector<256x32xf32>
    %191 = arith.truncf %190 : vector<256x32xf32> to vector<256x32xbf16>
    %c0_205 = arith.constant 0 : index
    %c32_206 = arith.constant 32 : index
    %192 = vector.load %arg14[%c0_205, %c32_206] : memref<256x288xbf16, #tpu.memory_space<vmem>>, vector<256x32xbf16>
    tpu.vector_store %arg14[%c0_205, %c32_206], %191 {strides = array<i32>} : memref<256x288xbf16, #tpu.memory_space<vmem>>, vector<256x32xbf16>,
    %c0_207 = arith.constant 0 : index
    %c2_208 = arith.constant 2 : index
    %c0_209 = arith.constant 0 : index
    %193 = vector.load %arg13[%c0_207, %c2_208, %c0_209] : memref<18x18x32xf32, #tpu.memory_space<vmem>>, vector<16x16x32xf32>
    %194 = vector.shape_cast %193 : vector<16x16x32xf32> to vector<256x32xf32>
    %195 = arith.truncf %194 : vector<256x32xf32> to vector<256x32xbf16>
    %c0_210 = arith.constant 0 : index
    %c64_211 = arith.constant 64 : index
    %196 = vector.load %arg14[%c0_210, %c64_211] : memref<256x288xbf16, #tpu.memory_space<vmem>>, vector<256x32xbf16>
    tpu.vector_store %arg14[%c0_210, %c64_211], %195 {strides = array<i32>} : memref<256x288xbf16, #tpu.memory_space<vmem>>, vector<256x32xbf16>,
    %c1_212 = arith.constant 1 : index
    %c0_213 = arith.constant 0 : index
    %c0_214 = arith.constant 0 : index
    %197 = vector.load %arg13[%c1_212, %c0_213, %c0_214] : memref<18x18x32xf32, #tpu.memory_space<vmem>>, vector<16x16x32xf32>
    %198 = vector.shape_cast %197 : vector<16x16x32xf32> to vector<256x32xf32>
    %199 = arith.truncf %198 : vector<256x32xf32> to vector<256x32xbf16>
    %c0_215 = arith.constant 0 : index
    %c96_216 = arith.constant 96 : index
    %200 = vector.load %arg14[%c0_215, %c96_216] : memref<256x288xbf16, #tpu.memory_space<vmem>>, vector<256x32xbf16>
    tpu.vector_store %arg14[%c0_215, %c96_216], %199 {strides = array<i32>} : memref<256x288xbf16, #tpu.memory_space<vmem>>, vector<256x32xbf16>,
    %c1_217 = arith.constant 1 : index
    %c1_218 = arith.constant 1 : index
    %c0_219 = arith.constant 0 : index
    %201 = vector.load %arg13[%c1_217, %c1_218, %c0_219] : memref<18x18x32xf32, #tpu.memory_space<vmem>>, vector<16x16x32xf32>
    %202 = vector.shape_cast %201 : vector<16x16x32xf32> to vector<256x32xf32>
    %203 = arith.truncf %202 : vector<256x32xf32> to vector<256x32xbf16>
    %c0_220 = arith.constant 0 : index
    %c128_221 = arith.constant 128 : index
    %204 = vector.load %arg14[%c0_220, %c128_221] : memref<256x288xbf16, #tpu.memory_space<vmem>>, vector<256x32xbf16>
    tpu.vector_store %arg14[%c0_220, %c128_221], %203 {strides = array<i32>} : memref<256x288xbf16, #tpu.memory_space<vmem>>, vector<256x32xbf16>,
    %c1_222 = arith.constant 1 : index
    %c2_223 = arith.constant 2 : index
    %c0_224 = arith.constant 0 : index
    %205 = vector.load %arg13[%c1_222, %c2_223, %c0_224] : memref<18x18x32xf32, #tpu.memory_space<vmem>>, vector<16x16x32xf32>
    %206 = vector.shape_cast %205 : vector<16x16x32xf32> to vector<256x32xf32>
    %207 = arith.truncf %206 : vector<256x32xf32> to vector<256x32xbf16>
    %c0_225 = arith.constant 0 : index
    %c160_226 = arith.constant 160 : index
    %208 = vector.load %arg14[%c0_225, %c160_226] : memref<256x288xbf16, #tpu.memory_space<vmem>>, vector<256x32xbf16>
    tpu.vector_store %arg14[%c0_225, %c160_226], %207 {strides = array<i32>} : memref<256x288xbf16, #tpu.memory_space<vmem>>, vector<256x32xbf16>,
    %c2_227 = arith.constant 2 : index
    %c0_228 = arith.constant 0 : index
    %c0_229 = arith.constant 0 : index
    %209 = vector.load %arg13[%c2_227, %c0_228, %c0_229] : memref<18x18x32xf32, #tpu.memory_space<vmem>>, vector<16x16x32xf32>
    %210 = vector.shape_cast %209 : vector<16x16x32xf32> to vector<256x32xf32>
    %211 = arith.truncf %210 : vector<256x32xf32> to vector<256x32xbf16>
    %c0_230 = arith.constant 0 : index
    %c192_231 = arith.constant 192 : index
    %212 = vector.load %arg14[%c0_230, %c192_231] : memref<256x288xbf16, #tpu.memory_space<vmem>>, vector<256x32xbf16>
    tpu.vector_store %arg14[%c0_230, %c192_231], %211 {strides = array<i32>} : memref<256x288xbf16, #tpu.memory_space<vmem>>, vector<256x32xbf16>,
    %c2_232 = arith.constant 2 : index
    %c1_233 = arith.constant 1 : index
    %c0_234 = arith.constant 0 : index
    %213 = vector.load %arg13[%c2_232, %c1_233, %c0_234] : memref<18x18x32xf32, #tpu.memory_space<vmem>>, vector<16x16x32xf32>
    %214 = vector.shape_cast %213 : vector<16x16x32xf32> to vector<256x32xf32>
    %215 = arith.truncf %214 : vector<256x32xf32> to vector<256x32xbf16>
    %c0_235 = arith.constant 0 : index
    %c224_236 = arith.constant 224 : index
    %216 = vector.load %arg14[%c0_235, %c224_236] : memref<256x288xbf16, #tpu.memory_space<vmem>>, vector<256x32xbf16>
    tpu.vector_store %arg14[%c0_235, %c224_236], %215 {strides = array<i32>} : memref<256x288xbf16, #tpu.memory_space<vmem>>, vector<256x32xbf16>,
    %c2_237 = arith.constant 2 : index
    %c2_238 = arith.constant 2 : index
    %c0_239 = arith.constant 0 : index
    %217 = vector.load %arg13[%c2_237, %c2_238, %c0_239] : memref<18x18x32xf32, #tpu.memory_space<vmem>>, vector<16x16x32xf32>
    %218 = vector.shape_cast %217 : vector<16x16x32xf32> to vector<256x32xf32>
    %219 = arith.truncf %218 : vector<256x32xf32> to vector<256x32xbf16>
    %c0_240 = arith.constant 0 : index
    %c256_241 = arith.constant 256 : index
    %220 = vector.load %arg14[%c0_240, %c256_241] : memref<256x288xbf16, #tpu.memory_space<vmem>>, vector<256x32xbf16>
    tpu.vector_store %arg14[%c0_240, %c256_241], %219 {strides = array<i32>} : memref<256x288xbf16, #tpu.memory_space<vmem>>, vector<256x32xbf16>,
    %c0_242 = arith.constant 0 : index
    %c0_243 = arith.constant 0 : index
    %221 = vector.load %arg14[%c0_242, %c0_243] : memref<256x288xbf16, #tpu.memory_space<vmem>>, vector<256x288xbf16>
    %cst_244 = arith.constant dense<0.000000e+00> : vector<256x32xf32>
    %222 = tpu.matmul %221, %180, %cst_244 {dimension_numbers = #tpu.dot_dimension_numbers<[1], [0], [0], [1], [0, 0, 1, 1], [], []>} : vector<256x288xbf16>, vector<288x32xbf16>, vector<256x32xf32> -> vector<256x32xf32>
    %223 = vector.broadcast %182 : vector<1x32xf32> to vector<256x32xf32>
    %224 = arith.addf %222, %223 : vector<256x32xf32>
    %cst_245 = arith.constant dense<0.000000e+00> : vector<32xf32>
    %225 = vector.multi_reduction <add>, %224, %cst_245 [0] : vector<256x32xf32> to vector<32xf32>
    %226 = vector.shape_cast %225 : vector<32xf32> to vector<1x32xf32>
    %cst_246 = arith.constant 3.906250e-03 : f32
    %227 = vector.broadcast %cst_246 : f32 to vector<1x32xf32>
    %228 = arith.mulf %226, %227 : vector<1x32xf32>
    %229 = vector.shape_cast %228 : vector<1x32xf32> to vector<1x32xf32>
    %230 = vector.broadcast %229 : vector<1x32xf32> to vector<8x32xf32>
    %c1_247 = arith.constant 1 : index
    %c0_248 = arith.constant 0 : index
    %c0_249 = arith.constant 0 : index
    %231 = vector.load %arg6[%c1_247, %c0_248, %c0_249] : memref<2x32x8xf32, #tpu.memory_space<vmem>>, vector<1x32x8xf32>
    %232 = vector.shape_cast %231 : vector<1x32x8xf32> to vector<32x8xf32>
    %cst_250 = arith.constant dense<0.000000e+00> : vector<8x8xf32>
    %233 = tpu.matmul %230, %232, %cst_250 {dimension_numbers = #tpu.dot_dimension_numbers<[1], [0], [0], [1], [0, 0, 1, 1], [], []>} : vector<8x32xf32>, vector<32x8xf32>, vector<8x8xf32> -> vector<8x8xf32>
    %c1_251 = arith.constant 1 : index
    %c0_252 = arith.constant 0 : index
    %c0_253 = arith.constant 0 : index
    %234 = vector.load %arg7[%c1_251, %c0_252, %c0_253] : memref<2x1x8xf32, #tpu.memory_space<vmem>>, vector<1x1x8xf32>
    %235 = vector.shape_cast %234 : vector<1x1x8xf32> to vector<1x8xf32>
    %236 = vector.broadcast %235 : vector<1x8xf32> to vector<8x8xf32>
    %237 = arith.addf %233, %236 : vector<8x8xf32>
    %cst_254 = arith.constant 0.000000e+00 : f32
    %238 = vector.broadcast %cst_254 : f32 to vector<8x8xf32>
    %239 = arith.maximumf %237, %238 : vector<8x8xf32>
    %c1_255 = arith.constant 1 : index
    %c0_256 = arith.constant 0 : index
    %c0_257 = arith.constant 0 : index
    %240 = vector.load %arg8[%c1_255, %c0_256, %c0_257] : memref<2x8x32xf32, #tpu.memory_space<vmem>>, vector<1x8x32xf32>
    %241 = vector.shape_cast %240 : vector<1x8x32xf32> to vector<8x32xf32>
    %cst_258 = arith.constant dense<0.000000e+00> : vector<8x32xf32>
    %242 = tpu.matmul %239, %241, %cst_258 {dimension_numbers = #tpu.dot_dimension_numbers<[1], [0], [0], [1], [0, 0, 1, 1], [], []>} : vector<8x8xf32>, vector<8x32xf32>, vector<8x32xf32> -> vector<8x32xf32>
    %c1_259 = arith.constant 1 : index
    %c0_260 = arith.constant 0 : index
    %c0_261 = arith.constant 0 : index
    %243 = vector.load %arg9[%c1_259, %c0_260, %c0_261] : memref<2x1x32xf32, #tpu.memory_space<vmem>>, vector<1x1x32xf32>
    %244 = vector.shape_cast %243 : vector<1x1x32xf32> to vector<1x32xf32>
    %245 = vector.broadcast %244 : vector<1x32xf32> to vector<8x32xf32>
    %246 = arith.addf %242, %245 : vector<8x32xf32>
    %247 = vector.extract_strided_slice %246 {offsets = [0, 0], sizes = [1, 32], strides = [1, 1]} : vector<8x32xf32> to vector<1x32xf32>
    %cst_262 = arith.constant 0.000000e+00 : f32
    %248 = vector.broadcast %cst_262 : f32 to vector<1x32xf32>
    %249 = arith.subf %248, %247 : vector<1x32xf32>
    %250 = math.exp %249 : vector<1x32xf32>
    %cst_263 = arith.constant 1.000000e+00 : f32
    %251 = vector.broadcast %cst_263 : f32 to vector<1x32xf32>
    %252 = arith.addf %251, %250 : vector<1x32xf32>
    %cst_264 = arith.constant 1.000000e+00 : f32
    %253 = vector.broadcast %cst_264 : f32 to vector<1x32xf32>
    %254 = arith.divf %253, %252 : vector<1x32xf32>
    %255 = vector.broadcast %254 : vector<1x32xf32> to vector<256x32xf32>
    %256 = arith.mulf %224, %255 : vector<256x32xf32>
    %257 = arith.addf %256, %130 : vector<256x32xf32>
    %c0_265 = arith.constant 0 : index
    %c0_266 = arith.constant 0 : index
    %258 = vector.load %arg10[%c0_265, %c0_266] : memref<288x32xbf16, #tpu.memory_space<vmem>>, vector<288x32xbf16>
    %c0_267 = arith.constant 0 : index
    %c0_268 = arith.constant 0 : index
    %259 = vector.load %arg11[%c0_267, %c0_268] : memref<1x32xf32, #tpu.memory_space<vmem>>, vector<1x32xf32>
    %260 = vector.shape_cast %257 : vector<256x32xf32> to vector<16x16x32xf32>
    %c1_269 = arith.constant 1 : index
    %c1_270 = arith.constant 1 : index
    %c0_271 = arith.constant 0 : index
    %261 = vector.load %arg13[%c1_269, %c1_270, %c0_271] : memref<18x18x32xf32, #tpu.memory_space<vmem>>, vector<16x16x32xf32>
    tpu.vector_store %arg13[%c1_269, %c1_270, %c0_271], %260 {strides = array<i32>} : memref<18x18x32xf32, #tpu.memory_space<vmem>>, vector<16x16x32xf32>,
    %c0_272 = arith.constant 0 : index
    %c0_273 = arith.constant 0 : index
    %c0_274 = arith.constant 0 : index
    %262 = vector.load %arg13[%c0_272, %c0_273, %c0_274] : memref<18x18x32xf32, #tpu.memory_space<vmem>>, vector<16x16x32xf32>
    %263 = vector.shape_cast %262 : vector<16x16x32xf32> to vector<256x32xf32>
    %264 = arith.truncf %263 : vector<256x32xf32> to vector<256x32xbf16>
    %c0_275 = arith.constant 0 : index
    %c0_276 = arith.constant 0 : index
    %265 = vector.load %arg14[%c0_275, %c0_276] : memref<256x288xbf16, #tpu.memory_space<vmem>>, vector<256x32xbf16>
    tpu.vector_store %arg14[%c0_275, %c0_276], %264 {strides = array<i32>} : memref<256x288xbf16, #tpu.memory_space<vmem>>, vector<256x32xbf16>,
    %c0_277 = arith.constant 0 : index
    %c1_278 = arith.constant 1 : index
    %c0_279 = arith.constant 0 : index
    %266 = vector.load %arg13[%c0_277, %c1_278, %c0_279] : memref<18x18x32xf32, #tpu.memory_space<vmem>>, vector<16x16x32xf32>
    %267 = vector.shape_cast %266 : vector<16x16x32xf32> to vector<256x32xf32>
    %268 = arith.truncf %267 : vector<256x32xf32> to vector<256x32xbf16>
    %c0_280 = arith.constant 0 : index
    %c32_281 = arith.constant 32 : index
    %269 = vector.load %arg14[%c0_280, %c32_281] : memref<256x288xbf16, #tpu.memory_space<vmem>>, vector<256x32xbf16>
    tpu.vector_store %arg14[%c0_280, %c32_281], %268 {strides = array<i32>} : memref<256x288xbf16, #tpu.memory_space<vmem>>, vector<256x32xbf16>,
    %c0_282 = arith.constant 0 : index
    %c2_283 = arith.constant 2 : index
    %c0_284 = arith.constant 0 : index
    %270 = vector.load %arg13[%c0_282, %c2_283, %c0_284] : memref<18x18x32xf32, #tpu.memory_space<vmem>>, vector<16x16x32xf32>
    %271 = vector.shape_cast %270 : vector<16x16x32xf32> to vector<256x32xf32>
    %272 = arith.truncf %271 : vector<256x32xf32> to vector<256x32xbf16>
    %c0_285 = arith.constant 0 : index
    %c64_286 = arith.constant 64 : index
    %273 = vector.load %arg14[%c0_285, %c64_286] : memref<256x288xbf16, #tpu.memory_space<vmem>>, vector<256x32xbf16>
    tpu.vector_store %arg14[%c0_285, %c64_286], %272 {strides = array<i32>} : memref<256x288xbf16, #tpu.memory_space<vmem>>, vector<256x32xbf16>,
    %c1_287 = arith.constant 1 : index
    %c0_288 = arith.constant 0 : index
    %c0_289 = arith.constant 0 : index
    %274 = vector.load %arg13[%c1_287, %c0_288, %c0_289] : memref<18x18x32xf32, #tpu.memory_space<vmem>>, vector<16x16x32xf32>
    %275 = vector.shape_cast %274 : vector<16x16x32xf32> to vector<256x32xf32>
    %276 = arith.truncf %275 : vector<256x32xf32> to vector<256x32xbf16>
    %c0_290 = arith.constant 0 : index
    %c96_291 = arith.constant 96 : index
    %277 = vector.load %arg14[%c0_290, %c96_291] : memref<256x288xbf16, #tpu.memory_space<vmem>>, vector<256x32xbf16>
    tpu.vector_store %arg14[%c0_290, %c96_291], %276 {strides = array<i32>} : memref<256x288xbf16, #tpu.memory_space<vmem>>, vector<256x32xbf16>,
    %c1_292 = arith.constant 1 : index
    %c1_293 = arith.constant 1 : index
    %c0_294 = arith.constant 0 : index
    %278 = vector.load %arg13[%c1_292, %c1_293, %c0_294] : memref<18x18x32xf32, #tpu.memory_space<vmem>>, vector<16x16x32xf32>
    %279 = vector.shape_cast %278 : vector<16x16x32xf32> to vector<256x32xf32>
    %280 = arith.truncf %279 : vector<256x32xf32> to vector<256x32xbf16>
    %c0_295 = arith.constant 0 : index
    %c128_296 = arith.constant 128 : index
    %281 = vector.load %arg14[%c0_295, %c128_296] : memref<256x288xbf16, #tpu.memory_space<vmem>>, vector<256x32xbf16>
    tpu.vector_store %arg14[%c0_295, %c128_296], %280 {strides = array<i32>} : memref<256x288xbf16, #tpu.memory_space<vmem>>, vector<256x32xbf16>,
    %c1_297 = arith.constant 1 : index
    %c2_298 = arith.constant 2 : index
    %c0_299 = arith.constant 0 : index
    %282 = vector.load %arg13[%c1_297, %c2_298, %c0_299] : memref<18x18x32xf32, #tpu.memory_space<vmem>>, vector<16x16x32xf32>
    %283 = vector.shape_cast %282 : vector<16x16x32xf32> to vector<256x32xf32>
    %284 = arith.truncf %283 : vector<256x32xf32> to vector<256x32xbf16>
    %c0_300 = arith.constant 0 : index
    %c160_301 = arith.constant 160 : index
    %285 = vector.load %arg14[%c0_300, %c160_301] : memref<256x288xbf16, #tpu.memory_space<vmem>>, vector<256x32xbf16>
    tpu.vector_store %arg14[%c0_300, %c160_301], %284 {strides = array<i32>} : memref<256x288xbf16, #tpu.memory_space<vmem>>, vector<256x32xbf16>,
    %c2_302 = arith.constant 2 : index
    %c0_303 = arith.constant 0 : index
    %c0_304 = arith.constant 0 : index
    %286 = vector.load %arg13[%c2_302, %c0_303, %c0_304] : memref<18x18x32xf32, #tpu.memory_space<vmem>>, vector<16x16x32xf32>
    %287 = vector.shape_cast %286 : vector<16x16x32xf32> to vector<256x32xf32>
    %288 = arith.truncf %287 : vector<256x32xf32> to vector<256x32xbf16>
    %c0_305 = arith.constant 0 : index
    %c192_306 = arith.constant 192 : index
    %289 = vector.load %arg14[%c0_305, %c192_306] : memref<256x288xbf16, #tpu.memory_space<vmem>>, vector<256x32xbf16>
    tpu.vector_store %arg14[%c0_305, %c192_306], %288 {strides = array<i32>} : memref<256x288xbf16, #tpu.memory_space<vmem>>, vector<256x32xbf16>,
    %c2_307 = arith.constant 2 : index
    %c1_308 = arith.constant 1 : index
    %c0_309 = arith.constant 0 : index
    %290 = vector.load %arg13[%c2_307, %c1_308, %c0_309] : memref<18x18x32xf32, #tpu.memory_space<vmem>>, vector<16x16x32xf32>
    %291 = vector.shape_cast %290 : vector<16x16x32xf32> to vector<256x32xf32>
    %292 = arith.truncf %291 : vector<256x32xf32> to vector<256x32xbf16>
    %c0_310 = arith.constant 0 : index
    %c224_311 = arith.constant 224 : index
    %293 = vector.load %arg14[%c0_310, %c224_311] : memref<256x288xbf16, #tpu.memory_space<vmem>>, vector<256x32xbf16>
    tpu.vector_store %arg14[%c0_310, %c224_311], %292 {strides = array<i32>} : memref<256x288xbf16, #tpu.memory_space<vmem>>, vector<256x32xbf16>,
    %c2_312 = arith.constant 2 : index
    %c2_313 = arith.constant 2 : index
    %c0_314 = arith.constant 0 : index
    %294 = vector.load %arg13[%c2_312, %c2_313, %c0_314] : memref<18x18x32xf32, #tpu.memory_space<vmem>>, vector<16x16x32xf32>
    %295 = vector.shape_cast %294 : vector<16x16x32xf32> to vector<256x32xf32>
    %296 = arith.truncf %295 : vector<256x32xf32> to vector<256x32xbf16>
    %c0_315 = arith.constant 0 : index
    %c256_316 = arith.constant 256 : index
    %297 = vector.load %arg14[%c0_315, %c256_316] : memref<256x288xbf16, #tpu.memory_space<vmem>>, vector<256x32xbf16>
    tpu.vector_store %arg14[%c0_315, %c256_316], %296 {strides = array<i32>} : memref<256x288xbf16, #tpu.memory_space<vmem>>, vector<256x32xbf16>,
    %c0_317 = arith.constant 0 : index
    %c0_318 = arith.constant 0 : index
    %298 = vector.load %arg14[%c0_317, %c0_318] : memref<256x288xbf16, #tpu.memory_space<vmem>>, vector<256x288xbf16>
    %cst_319 = arith.constant dense<0.000000e+00> : vector<256x32xf32>
    %299 = tpu.matmul %298, %258, %cst_319 {dimension_numbers = #tpu.dot_dimension_numbers<[1], [0], [0], [1], [0, 0, 1, 1], [], []>} : vector<256x288xbf16>, vector<288x32xbf16>, vector<256x32xf32> -> vector<256x32xf32>
    %300 = vector.broadcast %259 : vector<1x32xf32> to vector<256x32xf32>
    %301 = arith.addf %299, %300 : vector<256x32xf32>
    %302 = arith.addf %301, %3 : vector<256x32xf32>
    %c0_320 = arith.constant 0 : index
    %c0_321 = arith.constant 0 : index
    %c0_322 = arith.constant 0 : index
    %303 = vector.load %arg12[%c0_320, %c0_321, %c0_322] : memref<1x256x32xf32, #tpu.memory_space<vmem>>, vector<1x256x32xf32>
    %304 = vector.shape_cast %303 : vector<1x256x32xf32> to vector<256x32xf32>
    %305 = vector.shape_cast %302 : vector<256x32xf32> to vector<1x256x32xf32>
    tpu.vector_store %arg12[%c0_320, %c0_321, %c0_322], %305 {strides = array<i32>} : memref<1x256x32xf32, #tpu.memory_space<vmem>>, vector<1x256x32xf32>,
    return
  }
  func.func @transform_0(%arg0: i32) -> (i32, i32, i32) {
    %c0_i32 = arith.constant 0 : i32
    %c0_i32_0 = arith.constant 0 : i32
    %c0_i32_1 = arith.constant 0 : i32
    return %arg0, %c0_i32, %c0_i32_0 : i32, i32, i32
  }
  func.func @transform_1(%arg0: i32) -> (i32, i32, i32) {
    %c0_i32 = arith.constant 0 : i32
    %c0_i32_0 = arith.constant 0 : i32
    %c0_i32_1 = arith.constant 0 : i32
    %c0_i32_2 = arith.constant 0 : i32
    return %c0_i32, %c0_i32_0, %c0_i32_1 : i32, i32, i32
  }
  func.func @transform_2(%arg0: i32) -> (i32, i32, i32) {
    %c0_i32 = arith.constant 0 : i32
    %c0_i32_0 = arith.constant 0 : i32
    %c0_i32_1 = arith.constant 0 : i32
    %c0_i32_2 = arith.constant 0 : i32
    return %c0_i32, %c0_i32_0, %c0_i32_1 : i32, i32, i32
  }
  func.func @transform_3(%arg0: i32) -> (i32, i32, i32) {
    %c0_i32 = arith.constant 0 : i32
    %c0_i32_0 = arith.constant 0 : i32
    %c0_i32_1 = arith.constant 0 : i32
    %c0_i32_2 = arith.constant 0 : i32
    return %c0_i32, %c0_i32_0, %c0_i32_1 : i32, i32, i32
  }
  func.func @transform_4(%arg0: i32) -> (i32, i32, i32) {
    %c0_i32 = arith.constant 0 : i32
    %c0_i32_0 = arith.constant 0 : i32
    %c0_i32_1 = arith.constant 0 : i32
    %c0_i32_2 = arith.constant 0 : i32
    return %c0_i32, %c0_i32_0, %c0_i32_1 : i32, i32, i32
  }
  func.func @transform_5(%arg0: i32) -> (i32, i32, i32) {
    %c0_i32 = arith.constant 0 : i32
    %c0_i32_0 = arith.constant 0 : i32
    %c0_i32_1 = arith.constant 0 : i32
    %c0_i32_2 = arith.constant 0 : i32
    return %c0_i32, %c0_i32_0, %c0_i32_1 : i32, i32, i32
  }
  func.func @transform_6(%arg0: i32) -> (i32, i32, i32) {
    %c0_i32 = arith.constant 0 : i32
    %c0_i32_0 = arith.constant 0 : i32
    %c0_i32_1 = arith.constant 0 : i32
    %c0_i32_2 = arith.constant 0 : i32
    return %c0_i32, %c0_i32_0, %c0_i32_1 : i32, i32, i32
  }
  func.func @transform_7(%arg0: i32) -> (i32, i32, i32) {
    %c0_i32 = arith.constant 0 : i32
    %c0_i32_0 = arith.constant 0 : i32
    %c0_i32_1 = arith.constant 0 : i32
    %c0_i32_2 = arith.constant 0 : i32
    return %c0_i32, %c0_i32_0, %c0_i32_1 : i32, i32, i32
  }
  func.func @transform_8(%arg0: i32) -> (i32, i32, i32) {
    %c0_i32 = arith.constant 0 : i32
    %c0_i32_0 = arith.constant 0 : i32
    %c0_i32_1 = arith.constant 0 : i32
    %c0_i32_2 = arith.constant 0 : i32
    return %c0_i32, %c0_i32_0, %c0_i32_1 : i32, i32, i32
  }
  func.func @transform_9(%arg0: i32) -> (i32, i32) {
    %c0_i32 = arith.constant 0 : i32
    %c0_i32_0 = arith.constant 0 : i32
    %c0_i32_1 = arith.constant 0 : i32
    return %c0_i32, %c0_i32_0 : i32, i32
  }
  func.func @transform_10(%arg0: i32) -> (i32, i32) {
    %c0_i32 = arith.constant 0 : i32
    %c0_i32_0 = arith.constant 0 : i32
    %c0_i32_1 = arith.constant 0 : i32
    return %c0_i32, %c0_i32_0 : i32, i32
  }
  func.func @transform_11(%arg0: i32) -> (i32, i32, i32) {
    %c0_i32 = arith.constant 0 : i32
    %c0_i32_0 = arith.constant 0 : i32
    %c0_i32_1 = arith.constant 0 : i32
    return %arg0, %c0_i32, %c0_i32_0 : i32, i32, i32
  }
}

</mosaic_0001>

<llo_original>
// kernel: rg_forward.1
$region0: #{rg_forward.1}
  #allocation0 [shape = 'u32[]', space=smem, size = 0x4, offset = 0x4, fixed_abs, tag = 'smem constant byte address 0x4 - core index']
  #allocation1 [shape = 'u32[144,128]{1,0:T(1,128)}', space=vmem, size = 0x12000, scoped, tag = 'internal scratch']
  #allocation2 [shape = 'f32[18,18,32]{2,1,0:T(8,128)}', space=vmem, size = 0x36000, scoped, tag = 'scratch operand']
  #allocation3 [shape = 'bf16[256,288]{1,0:T(16,128)(2,1)}', space=vmem, size = 0x30000, scoped, tag = 'scratch operand']
  %s0 = inlined_call_operand.vmem [shape: f32[2,256,32], index: 0, kind: input, shape index: {}]
  %s1 = inlined_call_operand.vmem [shape: bf16[2,288,32], index: 1, kind: input, shape index: {}]
  %s2 = inlined_call_operand.vmem [shape: f32[2,1,32], index: 2, kind: input, shape index: {}]
  %s3 = inlined_call_operand.vmem [shape: bf16[2,288,32], index: 3, kind: input, shape index: {}]
  %s4 = inlined_call_operand.vmem [shape: f32[2,1,32], index: 4, kind: input, shape index: {}]
  %s5 = inlined_call_operand.vmem [shape: f32[2,32,8], index: 5, kind: input, shape index: {}]
  %s6 = inlined_call_operand.vmem [shape: f32[2,1,8], index: 6, kind: input, shape index: {}]
  %s7 = inlined_call_operand.vmem [shape: f32[2,8,32], index: 7, kind: input, shape index: {}]
  %s8 = inlined_call_operand.vmem [shape: f32[2,1,32], index: 8, kind: input, shape index: {}]
  %s9 = inlined_call_operand.vmem [shape: bf16[288,32], index: 9, kind: input, shape index: {}]
  %s10 = inlined_call_operand.vmem [shape: f32[1,32], index: 10, kind: input, shape index: {}]
  %s11 = inlined_call_operand.hbm [shape: f32[2,256,32], index: 11, kind: output, shape index: {}]
  %s12 = sld [smem:[#allocation0]]
  $region77: #{rg_forward.1} parent=0
    _
  %s14 = ssub.s32 1, %s12
  %s15 = scalar_select 0, %s14, %s12
  $region1: #{rg_forward.1} parent=0
    #allocation4 [shape = 'u8[262144]{0}', space=vmem, size = 0x40000, scoped, tag = 'output window, operand 0']
    #allocation5 [shape = 's32[2]{0}', space=sflag, size = 0x8, scoped, tag = 'scoped memory for rg_forward.1']
    %16 = vsyncpa [#allocation5], 0
    %s17 = scalar_lea.sflag [#allocation5], 1
    %18 = vsyncpa %s17, 0
    loop: start=0, step=1, limit=4
    $region2: #{rg_forward.1} parent=1 // loop_pre_header
      _
    $region3: #{rg_forward.1} parent=1 // loop_header
      %s20 = sphi 0, %s24
      %p21 = scmp.ge.s32.totalorder %s20, 4
      %s30 = sphi 0, %s32
      %s33 = sphi 0, %s30
      %s34 = sphi 0, %s33
      %s50 = sphi 0, %s34
      %s54 = sphi 0, %s54
      %s56 = sphi 0, %s54
      %s57 = sphi 0, %s56
      %s71 = sphi 0, %s57
      %s75 = sphi 0, %s75
      %s77 = sphi 0, %s75
      %s78 = sphi 0, %s77
      %s92 = sphi 0, %s78
      %s96 = sphi 0, %s96
      %s98 = sphi 0, %s96
      %s99 = sphi 0, %s98
      %s113 = sphi 0, %s99
      %s117 = sphi 0, %s117
      %s119 = sphi 0, %s117
      %s120 = sphi 0, %s119
      %s134 = sphi 0, %s120
      %s138 = sphi 0, %s138
      %s140 = sphi 0, %s138
      %s141 = sphi 0, %s140
      %s155 = sphi 0, %s141
      %s159 = sphi 0, %s159
      %s161 = sphi 0, %s159
      %s162 = sphi 0, %s161
      %s176 = sphi 0, %s162
      %s180 = sphi 0, %s180
      %s182 = sphi 0, %s180
      %s183 = sphi 0, %s182
      %s197 = sphi 0, %s183
      %s201 = sphi 0, %s201
      %s203 = sphi 0, %s201
      %s204 = sphi 0, %s203
      %s218 = sphi 0, %s204
      %s222 = sphi 0, %s222
      %s224 = sphi 0, %s222
      %s225 = sphi 0, %s224
      %s239 = sphi 0, %s225
      %s243 = sphi 0, %s243
      %s245 = sphi 0, %s243
      %s246 = sphi 0, %s245
      %s260 = sphi 0, %s246
      %s266 = sphi 0, %s268
      %s269 = sphi 0, %s266
      %s270 = sphi 0, %s269
      %s286 = sphi 0, %s270
    $region4: #{rg_forward.1} parent=1 // loop_header_branch
      %23 = sbr.rel (%p21) target = $region8
    $region5: #{rg_forward.1} parent=1 // loop_body
      %s25 = ssub.s32 %s20, 1
      %s26 = ssub.s32 %s20, 2
      %s27 = sadd.s32 %s20, 1
      %s28 = ssub.s32 %s20, %s27
      %p29 = scmp.eq.s32.totalorder %s28, 0
      %s31 = sadd.s32 %s30, 1
      %s32 = scalar_select %p29, %s30, %s31
      %p35 = pneg %p29
      %p36 = scmp.eq.s32.totalorder %s20, 1
      %p37 = por %p35, %p36
      %p38 = scmp.ne.s32.totalorder %s30, %s33
      %p39 = scmp.eq.s32.totalorder %s20, 0
      %p40 = por %p38, %p39
      %p41 = scmp.ne.s32.totalorder %s30, %s33
      %p42 = scmp.eq.s32.totalorder %s25, 1
      %p43 = por %p41, %p42
      %p44 = scmp.ne.s32.totalorder %s33, %s34
      %p45 = scmp.eq.s32.totalorder %s25, 0
      %p46 = por %p44, %p45
      %p47 = scmp.ne.s32.totalorder %s33, %s34
      %p48 = scmp.eq.s32.totalorder %s26, 1
      %p49 = por %p47, %p48
      %p51 = scmp.ne.s32.totalorder %s34, %s50
      %p52 = scmp.eq.s32.totalorder %s26, 0
      %p53 = por %p51, %p52
      %s55 = sadd.s32 %s54, 1
      %p58 = scmp.eq.s32.totalorder %s20, 1
      %p59 = scmp.ne.s32.totalorder %s54, %s56
      %p60 = scmp.eq.s32.totalorder %s20, 0
      %p61 = por %p59, %p60
      %p62 = scmp.ne.s32.totalorder %s54, %s56
      %p63 = scmp.eq.s32.totalorder %s25, 1
      %p64 = por %p62, %p63
      %p65 = scmp.ne.s32.totalorder %s56, %s57
      %p66 = scmp.eq.s32.totalorder %s25, 0
      %p67 = por %p65, %p66
      %p68 = scmp.ne.s32.totalorder %s56, %s57
      %p69 = scmp.eq.s32.totalorder %s26, 1
      %p70 = por %p68, %p69
      %p72 = scmp.ne.s32.totalorder %s57, %s71
      %p73 = scmp.eq.s32.totalorder %s26, 0
      %p74 = por %p72, %p73
      %s76 = sadd.s32 %s75, 1
      %p79 = scmp.eq.s32.totalorder %s20, 1
      %p80 = scmp.ne.s32.totalorder %s75, %s77
      %p81 = scmp.eq.s32.totalorder %s20, 0
      %p82 = por %p80, %p81
      %p83 = scmp.ne.s32.totalorder %s75, %s77
      %p84 = scmp.eq.s32.totalorder %s25, 1
      %p85 = por %p83, %p84
      %p86 = scmp.ne.s32.totalorder %s77, %s78
      %p87 = scmp.eq.s32.totalorder %s25, 0
      %p88 = por %p86, %p87
      %p89 = scmp.ne.s32.totalorder %s77, %s78
      %p90 = scmp.eq.s32.totalorder %s26, 1
      %p91 = por %p89, %p90
      %p93 = scmp.ne.s32.totalorder %s78, %s92
      %p94 = scmp.eq.s32.totalorder %s26, 0
      %p95 = por %p93, %p94
      %s97 = sadd.s32 %s96, 1
      %p100 = scmp.eq.s32.totalorder %s20, 1
      %p101 = scmp.ne.s32.totalorder %s96, %s98
      %p102 = scmp.eq.s32.totalorder %s20, 0
      %p103 = por %p101, %p102
      %p104 = scmp.ne.s32.totalorder %s96, %s98
      %p105 = scmp.eq.s32.totalorder %s25, 1
      %p106 = por %p104, %p105
      %p107 = scmp.ne.s32.totalorder %s98, %s99
      %p108 = scmp.eq.s32.totalorder %s25, 0
      %p109 = por %p107, %p108
      %p110 = scmp.ne.s32.totalorder %s98, %s99
      %p111 = scmp.eq.s32.totalorder %s26, 1
      %p112 = por %p110, %p111
      %p114 = scmp.ne.s32.totalorder %s99, %s113
      %p115 = scmp.eq.s32.totalorder %s26, 0
      %p116 = por %p114, %p115
      %s118 = sadd.s32 %s117, 1
      %p121 = scmp.eq.s32.totalorder %s20, 1
      %p122 = scmp.ne.s32.totalorder %s117, %s119
      %p123 = scmp.eq.s32.totalorder %s20, 0
      %p124 = por %p122, %p123
      %p125 = scmp.ne.s32.totalorder %s117, %s119
      %p126 = scmp.eq.s32.totalorder %s25, 1
      %p127 = por %p125, %p126
      %p128 = scmp.ne.s32.totalorder %s119, %s120
      %p129 = scmp.eq.s32.totalorder %s25, 0
      %p130 = por %p128, %p129
      %p131 = scmp.ne.s32.totalorder %s119, %s120
      %p132 = scmp.eq.s32.totalorder %s26, 1
      %p133 = por %p131, %p132
      %p135 = scmp.ne.s32.totalorder %s120, %s134
      %p136 = scmp.eq.s32.totalorder %s26, 0
      %p137 = por %p135, %p136
      %s139 = sadd.s32 %s138, 1
      %p142 = scmp.eq.s32.totalorder %s20, 1
      %p143 = scmp.ne.s32.totalorder %s138, %s140
      %p144 = scmp.eq.s32.totalorder %s20, 0
      %p145 = por %p143, %p144
      %p146 = scmp.ne.s32.totalorder %s138, %s140
      %p147 = scmp.eq.s32.totalorder %s25, 1
      %p148 = por %p146, %p147
      %p149 = scmp.ne.s32.totalorder %s140, %s141
      %p150 = scmp.eq.s32.totalorder %s25, 0
      %p151 = por %p149, %p150
      %p152 = scmp.ne.s32.totalorder %s140, %s141
      %p153 = scmp.eq.s32.totalorder %s26, 1
      %p154 = por %p152, %p153
      %p156 = scmp.ne.s32.totalorder %s141, %s155
      %p157 = scmp.eq.s32.totalorder %s26, 0
      %p158 = por %p156, %p157
      %s160 = sadd.s32 %s159, 1
      %p163 = scmp.eq.s32.totalorder %s20, 1
      %p164 = scmp.ne.s32.totalorder %s159, %s161
      %p165 = scmp.eq.s32.totalorder %s20, 0
      %p166 = por %p164, %p165
      %p167 = scmp.ne.s32.totalorder %s159, %s161
      %p168 = scmp.eq.s32.totalorder %s25, 1
      %p169 = por %p167, %p168
      %p170 = scmp.ne.s32.totalorder %s161, %s162
      %p171 = scmp.eq.s32.totalorder %s25, 0
      %p172 = por %p170, %p171
      %p173 = scmp.ne.s32.totalorder %s161, %s162
      %p174 = scmp.eq.s32.totalorder %s26, 1
      %p175 = por %p173, %p174
      %p177 = scmp.ne.s32.totalorder %s162, %s176
      %p178 = scmp.eq.s32.totalorder %s26, 0
      %p179 = por %p177, %p178
      %s181 = sadd.s32 %s180, 1
      %p184 = scmp.eq.s32.totalorder %s20, 1
      %p185 = scmp.ne.s32.totalorder %s180, %s182
      %p186 = scmp.eq.s32.totalorder %s20, 0
      %p187 = por %p185, %p186
      %p188 = scmp.ne.s32.totalorder %s180, %s182
      %p189 = scmp.eq.s32.totalorder %s25, 1
      %p190 = por %p188, %p189
      %p191 = scmp.ne.s32.totalorder %s182, %s183
      %p192 = scmp.eq.s32.totalorder %s25, 0
      %p193 = por %p191, %p192
      %p194 = scmp.ne.s32.totalorder %s182, %s183
      %p195 = scmp.eq.s32.totalorder %s26, 1
      %p196 = por %p194, %p195
      %p198 = scmp.ne.s32.totalorder %s183, %s197
      %p199 = scmp.eq.s32.totalorder %s26, 0
      %p200 = por %p198, %p199
      %s202 = sadd.s32 %s201, 1
      %p205 = scmp.eq.s32.totalorder %s20, 1
      %p206 = scmp.ne.s32.totalorder %s201, %s203
      %p207 = scmp.eq.s32.totalorder %s20, 0
      %p208 = por %p206, %p207
      %p209 = scmp.ne.s32.totalorder %s201, %s203
      %p210 = scmp.eq.s32.totalorder %s25, 1
      %p211 = por %p209, %p210
      %p212 = scmp.ne.s32.totalorder %s203, %s204
      %p213 = scmp.eq.s32.totalorder %s25, 0
      %p214 = por %p212, %p213
      %p215 = scmp.ne.s32.totalorder %s203, %s204
      %p216 = scmp.eq.s32.totalorder %s26, 1
      %p217 = por %p215, %p216
      %p219 = scmp.ne.s32.totalorder %s204, %s218
      %p220 = scmp.eq.s32.totalorder %s26, 0
      %p221 = por %p219, %p220
      %s223 = sadd.s32 %s222, 1
      %p226 = scmp.eq.s32.totalorder %s20, 1
      %p227 = scmp.ne.s32.totalorder %s222, %s224
      %p228 = scmp.eq.s32.totalorder %s20, 0
      %p229 = por %p227, %p228
      %p230 = scmp.ne.s32.totalorder %s222, %s224
      %p231 = scmp.eq.s32.totalorder %s25, 1
      %p232 = por %p230, %p231
      %p233 = scmp.ne.s32.totalorder %s224, %s225
      %p234 = scmp.eq.s32.totalorder %s25, 0
      %p235 = por %p233, %p234
      %p236 = scmp.ne.s32.totalorder %s224, %s225
      %p237 = scmp.eq.s32.totalorder %s26, 1
      %p238 = por %p236, %p237
      %p240 = scmp.ne.s32.totalorder %s225, %s239
      %p241 = scmp.eq.s32.totalorder %s26, 0
      %p242 = por %p240, %p241
      %s244 = sadd.s32 %s243, 1
      %p247 = scmp.eq.s32.totalorder %s20, 1
      %p248 = scmp.ne.s32.totalorder %s243, %s245
      %p249 = scmp.eq.s32.totalorder %s20, 0
      %p250 = por %p248, %p249
      %p251 = scmp.ne.s32.totalorder %s243, %s245
      %p252 = scmp.eq.s32.totalorder %s25, 1
      %p253 = por %p251, %p252
      %p254 = scmp.ne.s32.totalorder %s245, %s246
      %p255 = scmp.eq.s32.totalorder %s25, 0
      %p256 = por %p254, %p255
      %p257 = scmp.ne.s32.totalorder %s245, %s246
      %p258 = scmp.eq.s32.totalorder %s26, 1
      %p259 = por %p257, %p258
      %p261 = scmp.ne.s32.totalorder %s246, %s260
      %p262 = scmp.eq.s32.totalorder %s26, 0
      %p263 = por %p261, %p262
      %s264 = ssub.s32 %s20, %s27
      %p265 = scmp.eq.s32.totalorder %s264, 0
      %s267 = sadd.s32 %s266, 1
      %s268 = scalar_select %p265, %s266, %s267
      %p271 = pneg %p265
      %p272 = scmp.eq.s32.totalorder %s20, 1
      %p273 = por %p271, %p272
      %p274 = scmp.ne.s32.totalorder %s266, %s269
      %p275 = scmp.eq.s32.totalorder %s20, 0
      %p276 = por %p274, %p275
      %p277 = scmp.ne.s32.totalorder %s266, %s269
      %p278 = scmp.eq.s32.totalorder %s25, 1
      %p279 = por %p277, %p278
      %p280 = scmp.ne.s32.totalorder %s269, %s270
      %p281 = scmp.eq.s32.totalorder %s25, 0
      %p282 = por %p280, %p281
      %p283 = scmp.ne.s32.totalorder %s269, %s270
      %p284 = scmp.eq.s32.totalorder %s26, 1
      %p285 = por %p283, %p284
      %p287 = scmp.ne.s32.totalorder %s270, %s286
      %p288 = scmp.eq.s32.totalorder %s26, 0
      %p289 = por %p287, %p288
      %p290 = scmp.le.s32.totalorder 1, %s20
      %p291 = scmp.lt.s32.totalorder %s20, 3
      %p292 = pnand %p290, %p291
      %p293 = pneg %p292
      // Predicated region
      $region9: #{rg_forward.1} parent=5 // pred_check
        _
      $region10: #{rg_forward.1} parent=5 // pred_check_branch
        %295 = sbr.rel (%p292) target = $region12
      $region11: #{rg_forward.1} parent=5 // pred_region
        %s296 = ssub.s32 %s20, 1
        // Predicated region
        $region13: #{rg_forward.1} parent=11 // pred_check
          %p297 = pneg %p67
        $region14: #{rg_forward.1} parent=11 // pred_check_branch
          %299 = sbr.rel (%p297) target = $region16
        $region15: #{rg_forward.1} parent=11 // pred_region
          _
        $region16: #{rg_forward.1} parent=11 // pred_fallthru
          _
        // Predicated region
        $region17: #{rg_forward.1} parent=11 // pred_check
          %p300 = pneg %p88
        $region18: #{rg_forward.1} parent=11 // pred_check_branch
          %302 = sbr.rel (%p300) target = $region20
        $region19: #{rg_forward.1} parent=11 // pred_region
          _
        $region20: #{rg_forward.1} parent=11 // pred_fallthru
          _
        // Predicated region
        $region21: #{rg_forward.1} parent=11 // pred_check
          %p303 = pneg %p109
        $region22: #{rg_forward.1} parent=11 // pred_check_branch
          %305 = sbr.rel (%p303) target = $region24
        $region23: #{rg_forward.1} parent=11 // pred_region
          _
        $region24: #{rg_forward.1} parent=11 // pred_fallthru
          _
        // Predicated region
        $region25: #{rg_forward.1} parent=11 // pred_check
          %p306 = pneg %p130
        $region26: #{rg_forward.1} parent=11 // pred_check_branch
          %308 = sbr.rel (%p306) target = $region28
        $region27: #{rg_forward.1} parent=11 // pred_region
          _
        $region28: #{rg_forward.1} parent=11 // pred_fallthru
          _
        // Predicated region
        $region29: #{rg_forward.1} parent=11 // pred_check
          %p309 = pneg %p151
        $region30: #{rg_forward.1} parent=11 // pred_check_branch
          %311 = sbr.rel (%p309) target = $region32
        $region31: #{rg_forward.1} parent=11 // pred_region
          _
        $region32: #{rg_forward.1} parent=11 // pred_fallthru
          _
        // Predicated region
        $region33: #{rg_forward.1} parent=11 // pred_check
          %p312 = pneg %p172
        $region34: #{rg_forward.1} parent=11 // pred_check_branch
          %314 = sbr.rel (%p312) target = $region36
        $region35: #{rg_forward.1} parent=11 // pred_region
          _
        $region36: #{rg_forward.1} parent=11 // pred_fallthru
          _
        // Predicated region
        $region37: #{rg_forward.1} parent=11 // pred_check
          %p315 = pneg %p193
        $region38: #{rg_forward.1} parent=11 // pred_check_branch
          %317 = sbr.rel (%p315) target = $region40
        $region39: #{rg_forward.1} parent=11 // pred_region
          _
        $region40: #{rg_forward.1} parent=11 // pred_fallthru
          _
        // Predicated region
        $region41: #{rg_forward.1} parent=11 // pred_check
          %p318 = pneg %p214
        $region42: #{rg_forward.1} parent=11 // pred_check_branch
          %320 = sbr.rel (%p318) target = $region44
        $region43: #{rg_forward.1} parent=11 // pred_region
          _
        $region44: #{rg_forward.1} parent=11 // pred_fallthru
          _
        // Predicated region
        $region45: #{rg_forward.1} parent=11 // pred_check
          %p321 = pneg %p235
        $region46: #{rg_forward.1} parent=11 // pred_check_branch
          %323 = sbr.rel (%p321) target = $region48
        $region47: #{rg_forward.1} parent=11 // pred_region
          _
        $region48: #{rg_forward.1} parent=11 // pred_fallthru
          _
        // Predicated region
        $region49: #{rg_forward.1} parent=11 // pred_check
          %p324 = pneg %p256
        $region50: #{rg_forward.1} parent=11 // pred_check_branch
          %326 = sbr.rel (%p324) target = $region52
        $region51: #{rg_forward.1} parent=11 // pred_region
          _
        $region52: #{rg_forward.1} parent=11 // pred_fallthru
          _
      $region12: #{rg_forward.1} parent=5 // pred_fallthru
        _
      %p327 = scmp.lt.s32.totalorder %s20, 2
      // Predicated region
      $region53: #{rg_forward.1} parent=5 // pred_check
        %p328 = pneg %p327
      $region54: #{rg_forward.1} parent=5 // pred_check_branch
        %330 = sbr.rel (%p328) target = $region56
      $region55: #{rg_forward.1} parent=5 // pred_region
        // Predicated region
        $region57: #{rg_forward.1} parent=55 // pred_check
          %p331 = pneg %p40
        $region58: #{rg_forward.1} parent=55 // pred_check_branch
          %333 = sbr.rel (%p331) target = $region60
        $region59: #{rg_forward.1} parent=55 // pred_region
          %p334 = scmp.lt.s32.totalorder %s20, 1
          %s335 = scalar_select %p334, %s20, 1
          %s336 = smul.addr %s335, 32
          %s337 = smul.addr %s336, 8
          %s338 = scalar_lea.vmem %s0, %s337
        $region60: #{rg_forward.1} parent=55 // pred_fallthru
          _
      $region56: #{rg_forward.1} parent=5 // pred_fallthru
        _
      %p339 = scmp.le.s32.totalorder 1, %s20
      %p340 = scmp.lt.s32.totalorder %s20, 3
      %p341 = pnand %p339, %p340
      %p342 = pneg %p341
      // Predicated region
      $region61: #{rg_forward.1} parent=5 // pred_check
        _
      $region62: #{rg_forward.1} parent=5 // pred_check_branch
        %344 = sbr.rel (%p341) target = $region64
      $region63: #{rg_forward.1} parent=5 // pred_region
        %s345 = ssub.s32 %s20, 1
        %p346 = scmp.lt.s32.totalorder %s25, 1
        %s347 = scalar_select %p346, %s25, 1
        %s348 = smul.addr %s347, 32
        %s349 = smul.addr %s348, 8
        %s350 = scalar_lea.vmem %s0, %s349
        %p351 = pneg %p46
        %p352 = pneg %p43
        %p353 = pneg %p67
        %p354 = pneg %p64
        %p355 = pneg %p88
        %p356 = pneg %p85
        %p357 = pneg %p109
        %p358 = pneg %p106
        %p359 = pneg %p130
        %p360 = pneg %p127
        %p361 = pneg %p151
        %p362 = pneg %p148
        %p363 = pneg %p172
        %p364 = pneg %p169
        %p365 = pneg %p193
        %p366 = pneg %p190
        %p367 = pneg %p214
        %p368 = pneg %p211
        %p369 = pneg %p235
        %p370 = pneg %p232
        %p371 = pneg %p256
        %p372 = pneg %p253
        %p373 = pneg %p282
        %p374 = pneg %p279
        %s375 = sand.u32 %s269, 1
        %s376 = scalar_lea.sflag [#allocation5], %s375
        %s377 = sand.u32 %s269, 1
        %s378 = smul.addr %s377, 256
        %s379 = scalar_lea.vmem [#allocation4], %s378
        %p380 = scmp.lt.s32.totalorder %s25, 1
        %s381 = scalar_select %p380, %s25, 1
        %s382 = smul.addr %s381, 32
        %s383 = smul.addr %s382, 8
        %s384 = scalar_lea.vmem %s0, %s383
        %vm386 = vcmask 261120
        %387 = vst.msk [vmem:[#allocation2] sm:$0xff] %vm386, 0.0
        %388 = vst.msk [vmem:[#allocation2 + $0x8] sm:$0xff] %vm386, 0.0
        %vm389 = vcmask 254976
        %390 = vst.msk [vmem:[#allocation2 + $0x10] sm:$0x3] %vm389, 0.0
        %391 = vst.msk [vmem:[#allocation2 + $0x18] sm:$0xff] %vm386, 0.0
        %392 = vst.msk [vmem:[#allocation2 + $0x20] sm:$0xff] %vm386, 0.0
        %393 = vst.msk [vmem:[#allocation2 + $0x28] sm:$0x3] %vm389, 0.0
        %394 = vst.msk [vmem:[#allocation2 + $0x30] sm:$0xff] %vm386, 0.0
        %395 = vst.msk [vmem:[#allocation2 + $0x38] sm:$0xff] %vm386, 0.0
        %396 = vst.msk [vmem:[#allocation2 + $0x40] sm:$0x3] %vm389, 0.0
        %397 = vst.msk [vmem:[#allocation2 + $0x48] sm:$0xff] %vm386, 0.0
        %398 = vst.msk [vmem:[#allocation2 + $0x50] sm:$0xff] %vm386, 0.0
        %399 = vst.msk [vmem:[#allocation2 + $0x58] sm:$0x3] %vm389, 0.0
        %400 = vst.msk [vmem:[#allocation2 + $0x60] sm:$0xff] %vm386, 0.0
        %401 = vst.msk [vmem:[#allocation2 + $0x68] sm:$0xff] %vm386, 0.0
        %402 = vst.msk [vmem:[#allocation2 + $0x70] sm:$0x3] %vm389, 0.0
        %403 = vst.msk [vmem:[#allocation2 + $0x78] sm:$0xff] %vm386, 0.0
        %404 = vst.msk [vmem:[#allocation2 + $0x80] sm:$0xff] %vm386, 0.0
        %405 = vst.msk [vmem:[#allocation2 + $0x88] sm:$0x3] %vm389, 0.0
        %406 = vst.msk [vmem:[#allocation2 + $0x90] sm:$0xff] %vm386, 0.0
        %407 = vst.msk [vmem:[#allocation2 + $0x98] sm:$0xff] %vm386, 0.0
        %408 = vst.msk [vmem:[#allocation2 + $0xa0] sm:$0x3] %vm389, 0.0
        %409 = vst.msk [vmem:[#allocation2 + $0xa8] sm:$0xff] %vm386, 0.0
        %410 = vst.msk [vmem:[#allocation2 + $0xb0] sm:$0xff] %vm386, 0.0
        %411 = vst.msk [vmem:[#allocation2 + $0xb8] sm:$0x3] %vm389, 0.0
        %412 = vst.msk [vmem:[#allocation2 + $0xc0] sm:$0xff] %vm386, 0.0
        %413 = vst.msk [vmem:[#allocation2 + $0xc8] sm:$0xff] %vm386, 0.0
        %414 = vst.msk [vmem:[#allocation2 + $0xd0] sm:$0x3] %vm389, 0.0
        %415 = vst.msk [vmem:[#allocation2 + $0xd8] sm:$0xff] %vm386, 0.0
        %416 = vst.msk [vmem:[#allocation2 + $0xe0] sm:$0xff] %vm386, 0.0
        %417 = vst.msk [vmem:[#allocation2 + $0xe8] sm:$0x3] %vm389, 0.0
        %418 = vst.msk [vmem:[#allocation2 + $0xf0] sm:$0xff] %vm386, 0.0
        %419 = vst.msk [vmem:[#allocation2 + $0xf8] sm:$0xff] %vm386, 0.0
        %420 = vst.msk [vmem:[#allocation2 + $0x100] sm:$0x3] %vm389, 0.0
        %421 = vst.msk [vmem:[#allocation2 + $0x108] sm:$0xff] %vm386, 0.0
        %422 = vst.msk [vmem:[#allocation2 + $0x110] sm:$0xff] %vm386, 0.0
        %423 = vst.msk [vmem:[#allocation2 + $0x118] sm:$0x3] %vm389, 0.0
        %424 = vst.msk [vmem:[#allocation2 + $0x120] sm:$0xff] %vm386, 0.0
        %425 = vst.msk [vmem:[#allocation2 + $0x128] sm:$0xff] %vm386, 0.0
        %426 = vst.msk [vmem:[#allocation2 + $0x130] sm:$0x3] %vm389, 0.0
        %427 = vst.msk [vmem:[#allocation2 + $0x138] sm:$0xff] %vm386, 0.0
        %428 = vst.msk [vmem:[#allocation2 + $0x140] sm:$0xff] %vm386, 0.0
        %429 = vst.msk [vmem:[#allocation2 + $0x148] sm:$0x3] %vm389, 0.0
        %430 = vst.msk [vmem:[#allocation2 + $0x150] sm:$0xff] %vm386, 0.0
        %431 = vst.msk [vmem:[#allocation2 + $0x158] sm:$0xff] %vm386, 0.0
        %432 = vst.msk [vmem:[#allocation2 + $0x160] sm:$0x3] %vm389, 0.0
        %433 = vst.msk [vmem:[#allocation2 + $0x168] sm:$0xff] %vm386, 0.0
        %434 = vst.msk [vmem:[#allocation2 + $0x170] sm:$0xff] %vm386, 0.0
        %435 = vst.msk [vmem:[#allocation2 + $0x178] sm:$0x3] %vm389, 0.0
        %436 = vst.msk [vmem:[#allocation2 + $0x180] sm:$0xff] %vm386, 0.0
        %437 = vst.msk [vmem:[#allocation2 + $0x188] sm:$0xff] %vm386, 0.0
        %438 = vst.msk [vmem:[#allocation2 + $0x190] sm:$0x3] %vm389, 0.0
        %439 = vst.msk [vmem:[#allocation2 + $0x198] sm:$0xff] %vm386, 0.0
        %440 = vst.msk [vmem:[#allocation2 + $0x1a0] sm:$0xff] %vm386, 0.0
        %441 = vst.msk [vmem:[#allocation2 + $0x1a8] sm:$0x3] %vm389, 0.0
        %v442 = vld [vmem:[%s384] sm:$0xff]
        %v443 = vld [vmem:[%s384 + $0x8] sm:$0xff]
        %v444 = vld [vmem:[%s384 + $0x10] sm:$0xff]
        %v445 = vld [vmem:[%s384 + $0x18] sm:$0xff]
        %v446 = vld [vmem:[%s384 + $0x20] sm:$0xff]
        %v447 = vld [vmem:[%s384 + $0x28] sm:$0xff]
        %v448 = vld [vmem:[%s384 + $0x30] sm:$0xff]
        %v449 = vld [vmem:[%s384 + $0x38] sm:$0xff]
        %v450 = vld [vmem:[%s384 + $0x40] sm:$0xff]
        %v451 = vld [vmem:[%s384 + $0x48] sm:$0xff]
        %v452 = vld [vmem:[%s384 + $0x50] sm:$0xff]
        %v453 = vld [vmem:[%s384 + $0x58] sm:$0xff]
        %v454 = vld [vmem:[%s384 + $0x60] sm:$0xff]
        %v455 = vld [vmem:[%s384 + $0x68] sm:$0xff]
        %v456 = vld [vmem:[%s384 + $0x70] sm:$0xff]
        %v457 = vld [vmem:[%s384 + $0x78] sm:$0xff]
        %v458 = vld [vmem:[%s384 + $0x80] sm:$0xff]
        %v459 = vld [vmem:[%s384 + $0x88] sm:$0xff]
        %v460 = vld [vmem:[%s384 + $0x90] sm:$0xff]
        %v461 = vld [vmem:[%s384 + $0x98] sm:$0xff]
        %v462 = vld [vmem:[%s384 + $0xa0] sm:$0xff]
        %v463 = vld [vmem:[%s384 + $0xa8] sm:$0xff]
        %v464 = vld [vmem:[%s384 + $0xb0] sm:$0xff]
        %v465 = vld [vmem:[%s384 + $0xb8] sm:$0xff]
        %v466 = vld [vmem:[%s384 + $0xc0] sm:$0xff]
        %v467 = vld [vmem:[%s384 + $0xc8] sm:$0xff]
        %v468 = vld [vmem:[%s384 + $0xd0] sm:$0xff]
        %v469 = vld [vmem:[%s384 + $0xd8] sm:$0xff]
        %v470 = vld [vmem:[%s384 + $0xe0] sm:$0xff]
        %v471 = vld [vmem:[%s384 + $0xe8] sm:$0xff]
        %v472 = vld [vmem:[%s384 + $0xf0] sm:$0xff]
        %v473 = vld [vmem:[%s384 + $0xf8] sm:$0xff]
        %v474 = vld [vmem:[%s1] sm:$0xf]
        %v475 = vld [vmem:[%s1 + $0x4] sm:$0xf]
        %v476 = vld [vmem:[%s1 + $0x8] sm:$0xf]
        %v477 = vld [vmem:[%s1 + $0xc] sm:$0xf]
        %v478 = vld [vmem:[%s1 + $0x10] sm:$0xf]
        %v479 = vld [vmem:[%s1 + $0x14] sm:$0xf]
        %v480 = vld [vmem:[%s1 + $0x18] sm:$0xf]
        %v481 = vld [vmem:[%s1 + $0x1c] sm:$0xf]
        %v482 = vld [vmem:[%s1 + $0x20] sm:$0xf]
        %v483 = vld [vmem:[%s1 + $0x24] sm:$0xf]
        %v484 = vld [vmem:[%s1 + $0x28] sm:$0xf]
        %v485 = vld [vmem:[%s1 + $0x2c] sm:$0xf]
        %v486 = vld [vmem:[%s1 + $0x30] sm:$0xf]
        %v487 = vld [vmem:[%s1 + $0x34] sm:$0xf]
        %v488 = vld [vmem:[%s1 + $0x38] sm:$0xf]
        %v489 = vld [vmem:[%s1 + $0x3c] sm:$0xf]
        %v490 = vld [vmem:[%s1 + $0x40] sm:$0xf]
        %v491 = vld [vmem:[%s1 + $0x44] sm:$0xf]
        %v492 = vld [vmem:[%s1 + $0x48] sm:$0xf]
        %v493 = vld [vmem:[%s1 + $0x4c] sm:$0xf]
        %v494 = vld [vmem:[%s1 + $0x50] sm:$0xf]
        %v495 = vld [vmem:[%s1 + $0x54] sm:$0xf]
        %v496 = vld [vmem:[%s1 + $0x58] sm:$0xf]
        %v497 = vld [vmem:[%s1 + $0x5c] sm:$0xf]
        %v498 = vld [vmem:[%s1 + $0x60] sm:$0xf]
        %v499 = vld [vmem:[%s1 + $0x64] sm:$0xf]
        %v500 = vld [vmem:[%s1 + $0x68] sm:$0xf]
        %v501 = vld [vmem:[%s1 + $0x6c] sm:$0xf]
        %v502 = vld [vmem:[%s1 + $0x70] sm:$0xf]
        %v503 = vld [vmem:[%s1 + $0x74] sm:$0xf]
        %v504 = vld [vmem:[%s1 + $0x78] sm:$0xf]
        %v505 = vld [vmem:[%s1 + $0x7c] sm:$0xf]
        %v506 = vld [vmem:[%s1 + $0x80] sm:$0xf]
        %v507 = vld [vmem:[%s1 + $0x84] sm:$0xf]
        %v508 = vld [vmem:[%s1 + $0x88] sm:$0xf]
        %v509 = vld [vmem:[%s1 + $0x8c] sm:$0xf]
        %v510 = vld [vmem:[%s2] sm:$0x1]
        %s511 = scalar_lea.vmem [#allocation2], 24
        %512 = vst.msk [vmem:[%s511 + $0x1] sm:$0xff] %vm386, %v442
        %513 = vst.msk [vmem:[%s511 + $0x9] sm:$0xff] %vm386, %v443
        %514 = vst.msk [vmem:[%s511 + $0x19] sm:$0xff] %vm386, %v444
        %515 = vst.msk [vmem:[%s511 + $0x21] sm:$0xff] %vm386, %v445
        %516 = vst.msk [vmem:[%s511 + $0x31] sm:$0xff] %vm386, %v446
        %517 = vst.msk [vmem:[%s511 + $0x39] sm:$0xff] %vm386, %v447
        %518 = vst.msk [vmem:[%s511 + $0x49] sm:$0xff] %vm386, %v448
        %519 = vst.msk [vmem:[%s511 + $0x51] sm:$0xff] %vm386, %v449
        %520 = vst.msk [vmem:[%s511 + $0x61] sm:$0xff] %vm386, %v450
        %521 = vst.msk [vmem:[%s511 + $0x69] sm:$0xff] %vm386, %v451
        %522 = vst.msk [vmem:[%s511 + $0x79] sm:$0xff] %vm386, %v452
        %523 = vst.msk [vmem:[%s511 + $0x81] sm:$0xff] %vm386, %v453
        %524 = vst.msk [vmem:[%s511 + $0x91] sm:$0xff] %vm386, %v454
        %525 = vst.msk [vmem:[%s511 + $0x99] sm:$0xff] %vm386, %v455
        %526 = vst.msk [vmem:[%s511 + $0xa9] sm:$0xff] %vm386, %v456
        %527 = vst.msk [vmem:[%s511 + $0xb1] sm:$0xff] %vm386, %v457
        %528 = vst.msk [vmem:[%s511 + $0xc1] sm:$0xff] %vm386, %v458
        %529 = vst.msk [vmem:[%s511 + $0xc9] sm:$0xff] %vm386, %v459
        %530 = vst.msk [vmem:[%s511 + $0xd9] sm:$0xff] %vm386, %v460
        %531 = vst.msk [vmem:[%s511 + $0xe1] sm:$0xff] %vm386, %v461
        %532 = vst.msk [vmem:[%s511 + $0xf1] sm:$0xff] %vm386, %v462
        %533 = vst.msk [vmem:[%s511 + $0xf9] sm:$0xff] %vm386, %v463
        %534 = vst.msk [vmem:[%s511 + $0x109] sm:$0xff] %vm386, %v464
        %535 = vst.msk [vmem:[%s511 + $0x111] sm:$0xff] %vm386, %v465
        %536 = vst.msk [vmem:[%s511 + $0x121] sm:$0xff] %vm386, %v466
        %537 = vst.msk [vmem:[%s511 + $0x129] sm:$0xff] %vm386, %v467
        %538 = vst.msk [vmem:[%s511 + $0x139] sm:$0xff] %vm386, %v468
        %539 = vst.msk [vmem:[%s511 + $0x141] sm:$0xff] %vm386, %v469
        %540 = vst.msk [vmem:[%s511 + $0x151] sm:$0xff] %vm386, %v470
        %541 = vst.msk [vmem:[%s511 + $0x159] sm:$0xff] %vm386, %v471
        %542 = vst.msk [vmem:[%s511 + $0x169] sm:$0xff] %vm386, %v472
        %543 = vst.msk [vmem:[%s511 + $0x171] sm:$0xff] %vm386, %v473
        %v544 = vld [vmem:[#allocation2] sm:$0xff]
        %v545 = vld [vmem:[#allocation2 + $0x8] sm:$0xff]
        %v546 = vld [vmem:[#allocation2 + $0x18] sm:$0xff]
        %v547 = vld [vmem:[#allocation2 + $0x20] sm:$0xff]
        %v548 = vld [vmem:[#allocation2 + $0x30] sm:$0xff]
        %v549 = vld [vmem:[#allocation2 + $0x38] sm:$0xff]
        %v550 = vld [vmem:[#allocation2 + $0x48] sm:$0xff]
        %v551 = vld [vmem:[#allocation2 + $0x50] sm:$0xff]
        %v552 = vld [vmem:[#allocation2 + $0x60] sm:$0xff]
        %v553 = vld [vmem:[#allocation2 + $0x68] sm:$0xff]
        %v554 = vld [vmem:[#allocation2 + $0x78] sm:$0xff]
        %v555 = vld [vmem:[#allocation2 + $0x80] sm:$0xff]
        %v556 = vld [vmem:[#allocation2 + $0x90] sm:$0xff]
        %v557 = vld [vmem:[#allocation2 + $0x98] sm:$0xff]
        %v558 = vld [vmem:[#allocation2 + $0xa8] sm:$0xff]
        %v559 = vld [vmem:[#allocation2 + $0xb0] sm:$0xff]
        %v560 = vld [vmem:[#allocation2 + $0xc0] sm:$0xff]
        %v561 = vld [vmem:[#allocation2 + $0xc8] sm:$0xff]
        %v562 = vld [vmem:[#allocation2 + $0xd8] sm:$0xff]
        %v563 = vld [vmem:[#allocation2 + $0xe0] sm:$0xff]
        %v564 = vld [vmem:[#allocation2 + $0xf0] sm:$0xff]
        %v565 = vld [vmem:[#allocation2 + $0xf8] sm:$0xff]
        %v566 = vld [vmem:[#allocation2 + $0x108] sm:$0xff]
        %v567 = vld [vmem:[#allocation2 + $0x110] sm:$0xff]
        %v568 = vld [vmem:[#allocation2 + $0x120] sm:$0xff]
        %v569 = vld [vmem:[#allocation2 + $0x128] sm:$0xff]
        %v570 = vld [vmem:[#allocation2 + $0x138] sm:$0xff]
        %v571 = vld [vmem:[#allocation2 + $0x140] sm:$0xff]
        %v572 = vld [vmem:[#allocation2 + $0x150] sm:$0xff]
        %v573 = vld [vmem:[#allocation2 + $0x158] sm:$0xff]
        %v574 = vld [vmem:[#allocation2 + $0x168] sm:$0xff]
        %v575 = vld [vmem:[#allocation2 + $0x170] sm:$0xff]
        %v576 = vpack.c.bf16 %v545, %v544
        %v577 = vpack.c.bf16 %v547, %v546
        %v578 = vpack.c.bf16 %v549, %v548
        %v579 = vpack.c.bf16 %v551, %v550
        %v580 = vpack.c.bf16 %v553, %v552
        %v581 = vpack.c.bf16 %v555, %v554
        %v582 = vpack.c.bf16 %v557, %v556
        %v583 = vpack.c.bf16 %v559, %v558
        %v584 = vpack.c.bf16 %v561, %v560
        %v585 = vpack.c.bf16 %v563, %v562
        %v586 = vpack.c.bf16 %v565, %v564
        %v587 = vpack.c.bf16 %v567, %v566
        %v588 = vpack.c.bf16 %v569, %v568
        %v589 = vpack.c.bf16 %v571, %v570
        %v590 = vpack.c.bf16 %v573, %v572
        %v591 = vpack.c.bf16 %v575, %v574
        %592 = vst.msk [vmem:[#allocation3] sm:$0xff] %vm386, %v576
        %593 = vst.msk [vmem:[#allocation3 + $0x18] sm:$0xff] %vm386, %v577
        %594 = vst.msk [vmem:[#allocation3 + $0x30] sm:$0xff] %vm386, %v578
        %595 = vst.msk [vmem:[#allocation3 + $0x48] sm:$0xff] %vm386, %v579
        %596 = vst.msk [vmem:[#allocation3 + $0x60] sm:$0xff] %vm386, %v580
        %597 = vst.msk [vmem:[#allocation3 + $0x78] sm:$0xff] %vm386, %v581
        %598 = vst.msk [vmem:[#allocation3 + $0x90] sm:$0xff] %vm386, %v582
        %599 = vst.msk [vmem:[#allocation3 + $0xa8] sm:$0xff] %vm386, %v583
        %600 = vst.msk [vmem:[#allocation3 + $0xc0] sm:$0xff] %vm386, %v584
        %601 = vst.msk [vmem:[#allocation3 + $0xd8] sm:$0xff] %vm386, %v585
        %602 = vst.msk [vmem:[#allocation3 + $0xf0] sm:$0xff] %vm386, %v586
        %603 = vst.msk [vmem:[#allocation3 + $0x108] sm:$0xff] %vm386, %v587
        %604 = vst.msk [vmem:[#allocation3 + $0x120] sm:$0xff] %vm386, %v588
        %605 = vst.msk [vmem:[#allocation3 + $0x138] sm:$0xff] %vm386, %v589
        %606 = vst.msk [vmem:[#allocation3 + $0x150] sm:$0xff] %vm386, %v590
        %607 = vst.msk [vmem:[#allocation3 + $0x168] sm:$0xff] %vm386, %v591
        %v608 = vld [vmem:[#allocation2 + $0x1] sm:$0xff]
        %v609 = vld [vmem:[#allocation2 + $0x9] sm:$0xff]
        %v610 = vld [vmem:[#allocation2 + $0x19] sm:$0xff]
        %v611 = vld [vmem:[#allocation2 + $0x21] sm:$0xff]
        %v612 = vld [vmem:[#allocation2 + $0x31] sm:$0xff]
        %v613 = vld [vmem:[#allocation2 + $0x39] sm:$0xff]
        %v614 = vld [vmem:[#allocation2 + $0x49] sm:$0xff]
        %v615 = vld [vmem:[#allocation2 + $0x51] sm:$0xff]
        %v616 = vld [vmem:[#allocation2 + $0x61] sm:$0xff]
        %v617 = vld [vmem:[#allocation2 + $0x69] sm:$0xff]
        %v618 = vld [vmem:[#allocation2 + $0x79] sm:$0xff]
        %v619 = vld [vmem:[#allocation2 + $0x81] sm:$0xff]
        %v620 = vld [vmem:[#allocation2 + $0x91] sm:$0xff]
        %v621 = vld [vmem:[#allocation2 + $0x99] sm:$0xff]
        %v622 = vld [vmem:[#allocation2 + $0xa9] sm:$0xff]
        %v623 = vld [vmem:[#allocation2 + $0xb1] sm:$0xff]
        %v624 = vld [vmem:[#allocation2 + $0xc1] sm:$0xff]
        %v625 = vld [vmem:[#allocation2 + $0xc9] sm:$0xff]
        %v626 = vld [vmem:[#allocation2 + $0xd9] sm:$0xff]
        %v627 = vld [vmem:[#allocation2 + $0xe1] sm:$0xff]
        %v628 = vld [vmem:[#allocation2 + $0xf1] sm:$0xff]
        %v629 = vld [vmem:[#allocation2 + $0xf9] sm:$0xff]
        %v630 = vld [vmem:[#allocation2 + $0x109] sm:$0xff]
        %v631 = vld [vmem:[#allocation2 + $0x111] sm:$0xff]
        %v632 = vld [vmem:[#allocation2 + $0x121] sm:$0xff]
        %v633 = vld [vmem:[#allocation2 + $0x129] sm:$0xff]
        %v634 = vld [vmem:[#allocation2 + $0x139] sm:$0xff]
        %v635 = vld [vmem:[#allocation2 + $0x141] sm:$0xff]
        %v636 = vld [vmem:[#allocation2 + $0x151] sm:$0xff]
        %v637 = vld [vmem:[#allocation2 + $0x159] sm:$0xff]
        %v638 = vld [vmem:[#allocation2 + $0x169] sm:$0xff]
        %v639 = vld [vmem:[#allocation2 + $0x171] sm:$0xff]
        %v640 = vpack.c.bf16 %v609, %v608
        %v641 = vpack.c.bf16 %v611, %v610
        %v642 = vpack.c.bf16 %v613, %v612
        %v643 = vpack.c.bf16 %v615, %v614
        %v644 = vpack.c.bf16 %v617, %v616
        %v645 = vpack.c.bf16 %v619, %v618
        %v646 = vpack.c.bf16 %v621, %v620
        %v647 = vpack.c.bf16 %v623, %v622
        %v648 = vpack.c.bf16 %v625, %v624
        %v649 = vpack.c.bf16 %v627, %v626
        %v650 = vpack.c.bf16 %v629, %v628
        %v651 = vpack.c.bf16 %v631, %v630
        %v652 = vpack.c.bf16 %v633, %v632
        %v653 = vpack.c.bf16 %v635, %v634
        %v654 = vpack.c.bf16 %v637, %v636
        %v655 = vpack.c.bf16 %v639, %v638
        %672 = vrot.lane.b32.xlu0 %v640, 32
        %v673 = vpop.permute.xlu0 %672
        %674 = vrot.lane.b32.xlu0 %v641, 32
        %v675 = vpop.permute.xlu0 %674
        %676 = vrot.lane.b32.xlu0 %v642, 32
        %v677 = vpop.permute.xlu0 %676
        %678 = vrot.lane.b32.xlu0 %v643, 32
        %v679 = vpop.permute.xlu0 %678
        %680 = vrot.lane.b32.xlu0 %v644, 32
        %v681 = vpop.permute.xlu0 %680
        %682 = vrot.lane.b32.xlu0 %v645, 32
        %v683 = vpop.permute.xlu0 %682
        %684 = vrot.lane.b32.xlu0 %v646, 32
        %v685 = vpop.permute.xlu0 %684
        %686 = vrot.lane.b32.xlu0 %v647, 32
        %v687 = vpop.permute.xlu0 %686
        %688 = vrot.lane.b32.xlu0 %v648, 32
        %v689 = vpop.permute.xlu0 %688
        %690 = vrot.lane.b32.xlu0 %v649, 32
        %v691 = vpop.permute.xlu0 %690
        %692 = vrot.lane.b32.xlu0 %v650, 32
        %v693 = vpop.permute.xlu0 %692
        %694 = vrot.lane.b32.xlu0 %v651, 32
        %v695 = vpop.permute.xlu0 %694
        %696 = vrot.lane.b32.xlu0 %v652, 32
        %v697 = vpop.permute.xlu0 %696
        %698 = vrot.lane.b32.xlu0 %v653, 32
        %v699 = vpop.permute.xlu0 %698
        %700 = vrot.lane.b32.xlu0 %v654, 32
        %v701 = vpop.permute.xlu0 %700
        %702 = vrot.lane.b32.xlu0 %v655, 32
        %v703 = vpop.permute.xlu0 %702
        %vm720 = vcmask 523520
        %721 = vst.msk [vmem:[#allocation3] sm:$0xff] %vm720, %v673
        %722 = vst.msk [vmem:[#allocation3 + $0x18] sm:$0xff] %vm720, %v675
        %723 = vst.msk [vmem:[#allocation3 + $0x30] sm:$0xff] %vm720, %v677
        %724 = vst.msk [vmem:[#allocation3 + $0x48] sm:$0xff] %vm720, %v679
        %725 = vst.msk [vmem:[#allocation3 + $0x60] sm:$0xff] %vm720, %v681
        %726 = vst.msk [vmem:[#allocation3 + $0x78] sm:$0xff] %vm720, %v683
        %727 = vst.msk [vmem:[#allocation3 + $0x90] sm:$0xff] %vm720, %v685
        %728 = vst.msk [vmem:[#allocation3 + $0xa8] sm:$0xff] %vm720, %v687
        %729 = vst.msk [vmem:[#allocation3 + $0xc0] sm:$0xff] %vm720, %v689
        %730 = vst.msk [vmem:[#allocation3 + $0xd8] sm:$0xff] %vm720, %v691
        %731 = vst.msk [vmem:[#allocation3 + $0xf0] sm:$0xff] %vm720, %v693
        %732 = vst.msk [vmem:[#allocation3 + $0x108] sm:$0xff] %vm720, %v695
        %733 = vst.msk [vmem:[#allocation3 + $0x120] sm:$0xff] %vm720, %v697
        %734 = vst.msk [vmem:[#allocation3 + $0x138] sm:$0xff] %vm720, %v699
        %735 = vst.msk [vmem:[#allocation3 + $0x150] sm:$0xff] %vm720, %v701
        %736 = vst.msk [vmem:[#allocation3 + $0x168] sm:$0xff] %vm720, %v703
        %v737 = vld [vmem:[#allocation2 + $0x2] sm:$0xff]
        %v738 = vld [vmem:[#allocation2 + $0xa] sm:$0xff]
        %v739 = vld [vmem:[#allocation2 + $0x1a] sm:$0xff]
        %v740 = vld [vmem:[#allocation2 + $0x22] sm:$0xff]
        %v741 = vld [vmem:[#allocation2 + $0x32] sm:$0xff]
        %v742 = vld [vmem:[#allocation2 + $0x3a] sm:$0xff]
        %v743 = vld [vmem:[#allocation2 + $0x4a] sm:$0xff]
        %v744 = vld [vmem:[#allocation2 + $0x52] sm:$0xff]
        %v745 = vld [vmem:[#allocation2 + $0x62] sm:$0xff]
        %v746 = vld [vmem:[#allocation2 + $0x6a] sm:$0xff]
        %v747 = vld [vmem:[#allocation2 + $0x7a] sm:$0xff]
        %v748 = vld [vmem:[#allocation2 + $0x82] sm:$0xff]
        %v749 = vld [vmem:[#allocation2 + $0x92] sm:$0xff]
        %v750 = vld [vmem:[#allocation2 + $0x9a] sm:$0xff]
        %v751 = vld [vmem:[#allocation2 + $0xaa] sm:$0xff]
        %v752 = vld [vmem:[#allocation2 + $0xb2] sm:$0xff]
        %v753 = vld [vmem:[#allocation2 + $0xc2] sm:$0xff]
        %v754 = vld [vmem:[#allocation2 + $0xca] sm:$0xff]
        %v755 = vld [vmem:[#allocation2 + $0xda] sm:$0xff]
        %v756 = vld [vmem:[#allocation2 + $0xe2] sm:$0xff]
        %v757 = vld [vmem:[#allocation2 + $0xf2] sm:$0xff]
        %v758 = vld [vmem:[#allocation2 + $0xfa] sm:$0xff]
        %v759 = vld [vmem:[#allocation2 + $0x10a] sm:$0xff]
        %v760 = vld [vmem:[#allocation2 + $0x112] sm:$0xff]
        %v761 = vld [vmem:[#allocation2 + $0x122] sm:$0xff]
        %v762 = vld [vmem:[#allocation2 + $0x12a] sm:$0xff]
        %v763 = vld [vmem:[#allocation2 + $0x13a] sm:$0xff]
        %v764 = vld [vmem:[#allocation2 + $0x142] sm:$0xff]
        %v765 = vld [vmem:[#allocation2 + $0x152] sm:$0xff]
        %v766 = vld [vmem:[#allocation2 + $0x15a] sm:$0xff]
        %v767 = vld [vmem:[#allocation2 + $0x16a] sm:$0xff]
        %v768 = vld [vmem:[#allocation2 + $0x172] sm:$0xff]
        %v769 = vpack.c.bf16 %v738, %v737
        %v770 = vpack.c.bf16 %v740, %v739
        %v771 = vpack.c.bf16 %v742, %v741
        %v772 = vpack.c.bf16 %v744, %v743
        %v773 = vpack.c.bf16 %v746, %v745
        %v774 = vpack.c.bf16 %v748, %v747
        %v775 = vpack.c.bf16 %v750, %v749
        %v776 = vpack.c.bf16 %v752, %v751
        %v777 = vpack.c.bf16 %v754, %v753
        %v778 = vpack.c.bf16 %v756, %v755
        %v779 = vpack.c.bf16 %v758, %v757
        %v780 = vpack.c.bf16 %v760, %v759
        %v781 = vpack.c.bf16 %v762, %v761
        %v782 = vpack.c.bf16 %v764, %v763
        %v783 = vpack.c.bf16 %v766, %v765
        %v784 = vpack.c.bf16 %v768, %v767
        %801 = vrot.lane.b32.xlu0 %v769, 64
        %v802 = vpop.permute.xlu0 %801
        %803 = vrot.lane.b32.xlu0 %v770, 64
        %v804 = vpop.permute.xlu0 %803
        %805 = vrot.lane.b32.xlu0 %v771, 64
        %v806 = vpop.permute.xlu0 %805
        %807 = vrot.lane.b32.xlu0 %v772, 64
        %v808 = vpop.permute.xlu0 %807
        %809 = vrot.lane.b32.xlu0 %v773, 64
        %v810 = vpop.permute.xlu0 %809
        %811 = vrot.lane.b32.xlu0 %v774, 64
        %v812 = vpop.permute.xlu0 %811
        %813 = vrot.lane.b32.xlu0 %v775, 64
        %v814 = vpop.permute.xlu0 %813
        %815 = vrot.lane.b32.xlu0 %v776, 64
        %v816 = vpop.permute.xlu0 %815
        %817 = vrot.lane.b32.xlu0 %v777, 64
        %v818 = vpop.permute.xlu0 %817
        %819 = vrot.lane.b32.xlu0 %v778, 64
        %v820 = vpop.permute.xlu0 %819
        %821 = vrot.lane.b32.xlu0 %v779, 64
        %v822 = vpop.permute.xlu0 %821
        %823 = vrot.lane.b32.xlu0 %v780, 64
        %v824 = vpop.permute.xlu0 %823
        %825 = vrot.lane.b32.xlu0 %v781, 64
        %v826 = vpop.permute.xlu0 %825
        %827 = vrot.lane.b32.xlu0 %v782, 64
        %v828 = vpop.permute.xlu0 %827
        %829 = vrot.lane.b32.xlu0 %v783, 64
        %v830 = vpop.permute.xlu0 %829
        %831 = vrot.lane.b32.xlu0 %v784, 64
        %v832 = vpop.permute.xlu0 %831
        %vm849 = vcmask 785920
        %850 = vst.msk [vmem:[#allocation3] sm:$0xff] %vm849, %v802
        %851 = vst.msk [vmem:[#allocation3 + $0x18] sm:$0xff] %vm849, %v804
        %852 = vst.msk [vmem:[#allocation3 + $0x30] sm:$0xff] %vm849, %v806
        %853 = vst.msk [vmem:[#allocation3 + $0x48] sm:$0xff] %vm849, %v808
        %854 = vst.msk [vmem:[#allocation3 + $0x60] sm:$0xff] %vm849, %v810
        %855 = vst.msk [vmem:[#allocation3 + $0x78] sm:$0xff] %vm849, %v812
        %856 = vst.msk [vmem:[#allocation3 + $0x90] sm:$0xff] %vm849, %v814
        %857 = vst.msk [vmem:[#allocation3 + $0xa8] sm:$0xff] %vm849, %v816
        %858 = vst.msk [vmem:[#allocation3 + $0xc0] sm:$0xff] %vm849, %v818
        %859 = vst.msk [vmem:[#allocation3 + $0xd8] sm:$0xff] %vm849, %v820
        %860 = vst.msk [vmem:[#allocation3 + $0xf0] sm:$0xff] %vm849, %v822
        %861 = vst.msk [vmem:[#allocation3 + $0x108] sm:$0xff] %vm849, %v824
        %862 = vst.msk [vmem:[#allocation3 + $0x120] sm:$0xff] %vm849, %v826
        %863 = vst.msk [vmem:[#allocation3 + $0x138] sm:$0xff] %vm849, %v828
        %864 = vst.msk [vmem:[#allocation3 + $0x150] sm:$0xff] %vm849, %v830
        %865 = vst.msk [vmem:[#allocation3 + $0x168] sm:$0xff] %vm849, %v832
        %v866 = vld [vmem:[%s511] sm:$0xff]
        %v867 = vld [vmem:[%s511 + $0x8] sm:$0xff]
        %v868 = vld [vmem:[%s511 + $0x18] sm:$0xff]
        %v869 = vld [vmem:[%s511 + $0x20] sm:$0xff]
        %v870 = vld [vmem:[%s511 + $0x30] sm:$0xff]
        %v871 = vld [vmem:[%s511 + $0x38] sm:$0xff]
        %v872 = vld [vmem:[%s511 + $0x48] sm:$0xff]
        %v873 = vld [vmem:[%s511 + $0x50] sm:$0xff]
        %v874 = vld [vmem:[%s511 + $0x60] sm:$0xff]
        %v875 = vld [vmem:[%s511 + $0x68] sm:$0xff]
        %v876 = vld [vmem:[%s511 + $0x78] sm:$0xff]
        %v877 = vld [vmem:[%s511 + $0x80] sm:$0xff]
        %v878 = vld [vmem:[%s511 + $0x90] sm:$0xff]
        %v879 = vld [vmem:[%s511 + $0x98] sm:$0xff]
        %v880 = vld [vmem:[%s511 + $0xa8] sm:$0xff]
        %v881 = vld [vmem:[%s511 + $0xb0] sm:$0xff]
        %v882 = vld [vmem:[%s511 + $0xc0] sm:$0xff]
        %v883 = vld [vmem:[%s511 + $0xc8] sm:$0xff]
        %v884 = vld [vmem:[%s511 + $0xd8] sm:$0xff]
        %v885 = vld [vmem:[%s511 + $0xe0] sm:$0xff]
        %v886 = vld [vmem:[%s511 + $0xf0] sm:$0xff]
        %v887 = vld [vmem:[%s511 + $0xf8] sm:$0xff]
        %v888 = vld [vmem:[%s511 + $0x108] sm:$0xff]
        %v889 = vld [vmem:[%s511 + $0x110] sm:$0xff]
        %v890 = vld [vmem:[%s511 + $0x120] sm:$0xff]
        %v891 = vld [vmem:[%s511 + $0x128] sm:$0xff]
        %v892 = vld [vmem:[%s511 + $0x138] sm:$0xff]
        %v893 = vld [vmem:[%s511 + $0x140] sm:$0xff]
        %v894 = vld [vmem:[%s511 + $0x150] sm:$0xff]
        %v895 = vld [vmem:[%s511 + $0x158] sm:$0xff]
        %v896 = vld [vmem:[%s511 + $0x168] sm:$0xff]
        %v897 = vld [vmem:[%s511 + $0x170] sm:$0xff]
        %v898 = vpack.c.bf16 %v867, %v866
        %v899 = vpack.c.bf16 %v869, %v868
        %v900 = vpack.c.bf16 %v871, %v870
        %v901 = vpack.c.bf16 %v873, %v872
        %v902 = vpack.c.bf16 %v875, %v874
        %v903 = vpack.c.bf16 %v877, %v876
        %v904 = vpack.c.bf16 %v879, %v878
        %v905 = vpack.c.bf16 %v881, %v880
        %v906 = vpack.c.bf16 %v883, %v882
        %v907 = vpack.c.bf16 %v885, %v884
        %v908 = vpack.c.bf16 %v887, %v886
        %v909 = vpack.c.bf16 %v889, %v888
        %v910 = vpack.c.bf16 %v891, %v890
        %v911 = vpack.c.bf16 %v893, %v892
        %v912 = vpack.c.bf16 %v895, %v894
        %v913 = vpack.c.bf16 %v897, %v896
        %930 = vrot.lane.b32.xlu0 %v898, 96
        %v931 = vpop.permute.xlu0 %930
        %932 = vrot.lane.b32.xlu0 %v899, 96
        %v933 = vpop.permute.xlu0 %932
        %934 = vrot.lane.b32.xlu0 %v900, 96
        %v935 = vpop.permute.xlu0 %934
        %936 = vrot.lane.b32.xlu0 %v901, 96
        %v937 = vpop.permute.xlu0 %936
        %938 = vrot.lane.b32.xlu0 %v902, 96
        %v939 = vpop.permute.xlu0 %938
        %940 = vrot.lane.b32.xlu0 %v903, 96
        %v941 = vpop.permute.xlu0 %940
        %942 = vrot.lane.b32.xlu0 %v904, 96
        %v943 = vpop.permute.xlu0 %942
        %944 = vrot.lane.b32.xlu0 %v905, 96
        %v945 = vpop.permute.xlu0 %944
        %946 = vrot.lane.b32.xlu0 %v906, 96
        %v947 = vpop.permute.xlu0 %946
        %948 = vrot.lane.b32.xlu0 %v907, 96
        %v949 = vpop.permute.xlu0 %948
        %950 = vrot.lane.b32.xlu0 %v908, 96
        %v951 = vpop.permute.xlu0 %950
        %952 = vrot.lane.b32.xlu0 %v909, 96
        %v953 = vpop.permute.xlu0 %952
        %954 = vrot.lane.b32.xlu0 %v910, 96
        %v955 = vpop.permute.xlu0 %954
        %956 = vrot.lane.b32.xlu0 %v911, 96
        %v957 = vpop.permute.xlu0 %956
        %958 = vrot.lane.b32.xlu0 %v912, 96
        %v959 = vpop.permute.xlu0 %958
        %960 = vrot.lane.b32.xlu0 %v913, 96
        %v961 = vpop.permute.xlu0 %960
        %vm978 = vcmask 1048320
        %979 = vst.msk [vmem:[#allocation3] sm:$0xff] %vm978, %v931
        %980 = vst.msk [vmem:[#allocation3 + $0x18] sm:$0xff] %vm978, %v933
        %981 = vst.msk [vmem:[#allocation3 + $0x30] sm:$0xff] %vm978, %v935
        %982 = vst.msk [vmem:[#allocation3 + $0x48] sm:$0xff] %vm978, %v937
        %983 = vst.msk [vmem:[#allocation3 + $0x60] sm:$0xff] %vm978, %v939
        %984 = vst.msk [vmem:[#allocation3 + $0x78] sm:$0xff] %vm978, %v941
        %985 = vst.msk [vmem:[#allocation3 + $0x90] sm:$0xff] %vm978, %v943
        %986 = vst.msk [vmem:[#allocation3 + $0xa8] sm:$0xff] %vm978, %v945
        %987 = vst.msk [vmem:[#allocation3 + $0xc0] sm:$0xff] %vm978, %v947
        %988 = vst.msk [vmem:[#allocation3 + $0xd8] sm:$0xff] %vm978, %v949
        %989 = vst.msk [vmem:[#allocation3 + $0xf0] sm:$0xff] %vm978, %v951
        %990 = vst.msk [vmem:[#allocation3 + $0x108] sm:$0xff] %vm978, %v953
        %991 = vst.msk [vmem:[#allocation3 + $0x120] sm:$0xff] %vm978, %v955
        %992 = vst.msk [vmem:[#allocation3 + $0x138] sm:$0xff] %vm978, %v957
        %993 = vst.msk [vmem:[#allocation3 + $0x150] sm:$0xff] %vm978, %v959
        %994 = vst.msk [vmem:[#allocation3 + $0x168] sm:$0xff] %vm978, %v961
        %v995 = vld [vmem:[%s511 + $0x1] sm:$0xff]
        %v996 = vld [vmem:[%s511 + $0x9] sm:$0xff]
        %v997 = vld [vmem:[%s511 + $0x19] sm:$0xff]
        %v998 = vld [vmem:[%s511 + $0x21] sm:$0xff]
        %v999 = vld [vmem:[%s511 + $0x31] sm:$0xff]
        %v1000 = vld [vmem:[%s511 + $0x39] sm:$0xff]
        %v1001 = vld [vmem:[%s511 + $0x49] sm:$0xff]
        %v1002 = vld [vmem:[%s511 + $0x51] sm:$0xff]
        %v1003 = vld [vmem:[%s511 + $0x61] sm:$0xff]
        %v1004 = vld [vmem:[%s511 + $0x69] sm:$0xff]
        %v1005 = vld [vmem:[%s511 + $0x79] sm:$0xff]
        %v1006 = vld [vmem:[%s511 + $0x81] sm:$0xff]
        %v1007 = vld [vmem:[%s511 + $0x91] sm:$0xff]
        %v1008 = vld [vmem:[%s511 + $0x99] sm:$0xff]
        %v1009 = vld [vmem:[%s511 + $0xa9] sm:$0xff]
        %v1010 = vld [vmem:[%s511 + $0xb1] sm:$0xff]
        %v1011 = vld [vmem:[%s511 + $0xc1] sm:$0xff]
        %v1012 = vld [vmem:[%s511 + $0xc9] sm:$0xff]
        %v1013 = vld [vmem:[%s511 + $0xd9] sm:$0xff]
        %v1014 = vld [vmem:[%s511 + $0xe1] sm:$0xff]
        %v1015 = vld [vmem:[%s511 + $0xf1] sm:$0xff]
        %v1016 = vld [vmem:[%s511 + $0xf9] sm:$0xff]
        %v1017 = vld [vmem:[%s511 + $0x109] sm:$0xff]
        %v1018 = vld [vmem:[%s511 + $0x111] sm:$0xff]
        %v1019 = vld [vmem:[%s511 + $0x121] sm:$0xff]
        %v1020 = vld [vmem:[%s511 + $0x129] sm:$0xff]
        %v1021 = vld [vmem:[%s511 + $0x139] sm:$0xff]
        %v1022 = vld [vmem:[%s511 + $0x141] sm:$0xff]
        %v1023 = vld [vmem:[%s511 + $0x151] sm:$0xff]
        %v1024 = vld [vmem:[%s511 + $0x159] sm:$0xff]
        %v1025 = vld [vmem:[%s511 + $0x169] sm:$0xff]
        %v1026 = vld [vmem:[%s511 + $0x171] sm:$0xff]
        %v1027 = vpack.c.bf16 %v996, %v995
        %v1028 = vpack.c.bf16 %v998, %v997
        %v1029 = vpack.c.bf16 %v1000, %v999
        %v1030 = vpack.c.bf16 %v1002, %v1001
        %v1031 = vpack.c.bf16 %v1004, %v1003
        %v1032 = vpack.c.bf16 %v1006, %v1005
        %v1033 = vpack.c.bf16 %v1008, %v1007
        %v1034 = vpack.c.bf16 %v1010, %v1009
        %v1035 = vpack.c.bf16 %v1012, %v1011
        %v1036 = vpack.c.bf16 %v1014, %v1013
        %v1037 = vpack.c.bf16 %v1016, %v1015
        %v1038 = vpack.c.bf16 %v1018, %v1017
        %v1039 = vpack.c.bf16 %v1020, %v1019
        %v1040 = vpack.c.bf16 %v1022, %v1021
        %v1041 = vpack.c.bf16 %v1024, %v1023
        %v1042 = vpack.c.bf16 %v1026, %v1025
        %1043 = vst.msk [vmem:[#allocation3 + $0x8] sm:$0xff] %vm386, %v1027
        %1044 = vst.msk [vmem:[#allocation3 + $0x20] sm:$0xff] %vm386, %v1028
        %1045 = vst.msk [vmem:[#allocation3 + $0x38] sm:$0xff] %vm386, %v1029
        %1046 = vst.msk [vmem:[#allocation3 + $0x50] sm:$0xff] %vm386, %v1030
        %1047 = vst.msk [vmem:[#allocation3 + $0x68] sm:$0xff] %vm386, %v1031
        %1048 = vst.msk [vmem:[#allocation3 + $0x80] sm:$0xff] %vm386, %v1032
        %1049 = vst.msk [vmem:[#allocation3 + $0x98] sm:$0xff] %vm386, %v1033
        %1050 = vst.msk [vmem:[#allocation3 + $0xb0] sm:$0xff] %vm386, %v1034
        %1051 = vst.msk [vmem:[#allocation3 + $0xc8] sm:$0xff] %vm386, %v1035
        %1052 = vst.msk [vmem:[#allocation3 + $0xe0] sm:$0xff] %vm386, %v1036
        %1053 = vst.msk [vmem:[#allocation3 + $0xf8] sm:$0xff] %vm386, %v1037
        %1054 = vst.msk [vmem:[#allocation3 + $0x110] sm:$0xff] %vm386, %v1038
        %1055 = vst.msk [vmem:[#allocation3 + $0x128] sm:$0xff] %vm386, %v1039
        %1056 = vst.msk [vmem:[#allocation3 + $0x140] sm:$0xff] %vm386, %v1040
        %1057 = vst.msk [vmem:[#allocation3 + $0x158] sm:$0xff] %vm386, %v1041
        %1058 = vst.msk [vmem:[#allocation3 + $0x170] sm:$0xff] %vm386, %v1042
        %v1059 = vld [vmem:[%s511 + $0x2] sm:$0xff]
        %v1060 = vld [vmem:[%s511 + $0xa] sm:$0xff]
        %v1061 = vld [vmem:[%s511 + $0x1a] sm:$0xff]
        %v1062 = vld [vmem:[%s511 + $0x22] sm:$0xff]
        %v1063 = vld [vmem:[%s511 + $0x32] sm:$0xff]
        %v1064 = vld [vmem:[%s511 + $0x3a] sm:$0xff]
        %v1065 = vld [vmem:[%s511 + $0x4a] sm:$0xff]
        %v1066 = vld [vmem:[%s511 + $0x52] sm:$0xff]
        %v1067 = vld [vmem:[%s511 + $0x62] sm:$0xff]
        %v1068 = vld [vmem:[%s511 + $0x6a] sm:$0xff]
        %v1069 = vld [vmem:[%s511 + $0x7a] sm:$0xff]
        %v1070 = vld [vmem:[%s511 + $0x82] sm:$0xff]
        %v1071 = vld [vmem:[%s511 + $0x92] sm:$0xff]
        %v1072 = vld [vmem:[%s511 + $0x9a] sm:$0xff]
        %v1073 = vld [vmem:[%s511 + $0xaa] sm:$0xff]
        %v1074 = vld [vmem:[%s511 + $0xb2] sm:$0xff]
        %v1075 = vld [vmem:[%s511 + $0xc2] sm:$0xff]
        %v1076 = vld [vmem:[%s511 + $0xca] sm:$0xff]
        %v1077 = vld [vmem:[%s511 + $0xda] sm:$0xff]
        %v1078 = vld [vmem:[%s511 + $0xe2] sm:$0xff]
        %v1079 = vld [vmem:[%s511 + $0xf2] sm:$0xff]
        %v1080 = vld [vmem:[%s511 + $0xfa] sm:$0xff]
        %v1081 = vld [vmem:[%s511 + $0x10a] sm:$0xff]
        %v1082 = vld [vmem:[%s511 + $0x112] sm:$0xff]
        %v1083 = vld [vmem:[%s511 + $0x122] sm:$0xff]
        %v1084 = vld [vmem:[%s511 + $0x12a] sm:$0xff]
        %v1085 = vld [vmem:[%s511 + $0x13a] sm:$0xff]
        %v1086 = vld [vmem:[%s511 + $0x142] sm:$0xff]
        %v1087 = vld [vmem:[%s511 + $0x152] sm:$0xff]
        %v1088 = vld [vmem:[%s511 + $0x15a] sm:$0xff]
        %v1089 = vld [vmem:[%s511 + $0x16a] sm:$0xff]
        %v1090 = vld [vmem:[%s511 + $0x172] sm:$0xff]
        %v1091 = vpack.c.bf16 %v1060, %v1059
        %v1092 = vpack.c.bf16 %v1062, %v1061
        %v1093 = vpack.c.bf16 %v1064, %v1063
        %v1094 = vpack.c.bf16 %v1066, %v1065
        %v1095 = vpack.c.bf16 %v1068, %v1067
        %v1096 = vpack.c.bf16 %v1070, %v1069
        %v1097 = vpack.c.bf16 %v1072, %v1071
        %v1098 = vpack.c.bf16 %v1074, %v1073
        %v1099 = vpack.c.bf16 %v1076, %v1075
        %v1100 = vpack.c.bf16 %v1078, %v1077
        %v1101 = vpack.c.bf16 %v1080, %v1079
        %v1102 = vpack.c.bf16 %v1082, %v1081
        %v1103 = vpack.c.bf16 %v1084, %v1083
        %v1104 = vpack.c.bf16 %v1086, %v1085
        %v1105 = vpack.c.bf16 %v1088, %v1087
        %v1106 = vpack.c.bf16 %v1090, %v1089
        %1123 = vrot.lane.b32.xlu0 %v1091, 32
        %v1124 = vpop.permute.xlu0 %1123
        %1125 = vrot.lane.b32.xlu0 %v1092, 32
        %v1126 = vpop.permute.xlu0 %1125
        %1127 = vrot.lane.b32.xlu0 %v1093, 32
        %v1128 = vpop.permute.xlu0 %1127
        %1129 = vrot.lane.b32.xlu0 %v1094, 32
        %v1130 = vpop.permute.xlu0 %1129
        %1131 = vrot.lane.b32.xlu0 %v1095, 32
        %v1132 = vpop.permute.xlu0 %1131
        %1133 = vrot.lane.b32.xlu0 %v1096, 32
        %v1134 = vpop.permute.xlu0 %1133
        %1135 = vrot.lane.b32.xlu0 %v1097, 32
        %v1136 = vpop.permute.xlu0 %1135
        %1137 = vrot.lane.b32.xlu0 %v1098, 32
        %v1138 = vpop.permute.xlu0 %1137
        %1139 = vrot.lane.b32.xlu0 %v1099, 32
        %v1140 = vpop.permute.xlu0 %1139
        %1141 = vrot.lane.b32.xlu0 %v1100, 32
        %v1142 = vpop.permute.xlu0 %1141
        %1143 = vrot.lane.b32.xlu0 %v1101, 32
        %v1144 = vpop.permute.xlu0 %1143
        %1145 = vrot.lane.b32.xlu0 %v1102, 32
        %v1146 = vpop.permute.xlu0 %1145
        %1147 = vrot.lane.b32.xlu0 %v1103, 32
        %v1148 = vpop.permute.xlu0 %1147
        %1149 = vrot.lane.b32.xlu0 %v1104, 32
        %v1150 = vpop.permute.xlu0 %1149
        %1151 = vrot.lane.b32.xlu0 %v1105, 32
        %v1152 = vpop.permute.xlu0 %1151
        %1153 = vrot.lane.b32.xlu0 %v1106, 32
        %v1154 = vpop.permute.xlu0 %1153
        %1171 = vst.msk [vmem:[#allocation3 + $0x8] sm:$0xff] %vm720, %v1124
        %1172 = vst.msk [vmem:[#allocation3 + $0x20] sm:$0xff] %vm720, %v1126
        %1173 = vst.msk [vmem:[#allocation3 + $0x38] sm:$0xff] %vm720, %v1128
        %1174 = vst.msk [vmem:[#allocation3 + $0x50] sm:$0xff] %vm720, %v1130
        %1175 = vst.msk [vmem:[#allocation3 + $0x68] sm:$0xff] %vm720, %v1132
        %1176 = vst.msk [vmem:[#allocation3 + $0x80] sm:$0xff] %vm720, %v1134
        %1177 = vst.msk [vmem:[#allocation3 + $0x98] sm:$0xff] %vm720, %v1136
        %1178 = vst.msk [vmem:[#allocation3 + $0xb0] sm:$0xff] %vm720, %v1138
        %1179 = vst.msk [vmem:[#allocation3 + $0xc8] sm:$0xff] %vm720, %v1140
        %1180 = vst.msk [vmem:[#allocation3 + $0xe0] sm:$0xff] %vm720, %v1142
        %1181 = vst.msk [vmem:[#allocation3 + $0xf8] sm:$0xff] %vm720, %v1144
        %1182 = vst.msk [vmem:[#allocation3 + $0x110] sm:$0xff] %vm720, %v1146
        %1183 = vst.msk [vmem:[#allocation3 + $0x128] sm:$0xff] %vm720, %v1148
        %1184 = vst.msk [vmem:[#allocation3 + $0x140] sm:$0xff] %vm720, %v1150
        %1185 = vst.msk [vmem:[#allocation3 + $0x158] sm:$0xff] %vm720, %v1152
        %1186 = vst.msk [vmem:[#allocation3 + $0x170] sm:$0xff] %vm720, %v1154
        %s1187 = scalar_lea.vmem [#allocation2], 48
        %v1188 = vld [vmem:[%s1187] sm:$0xff]
        %v1189 = vld [vmem:[%s1187 + $0x8] sm:$0xff]
        %v1190 = vld [vmem:[%s1187 + $0x18] sm:$0xff]
        %v1191 = vld [vmem:[%s1187 + $0x20] sm:$0xff]
        %v1192 = vld [vmem:[%s1187 + $0x30] sm:$0xff]
        %v1193 = vld [vmem:[%s1187 + $0x38] sm:$0xff]
        %v1194 = vld [vmem:[%s1187 + $0x48] sm:$0xff]
        %v1195 = vld [vmem:[%s1187 + $0x50] sm:$0xff]
        %v1196 = vld [vmem:[%s1187 + $0x60] sm:$0xff]
        %v1197 = vld [vmem:[%s1187 + $0x68] sm:$0xff]
        %v1198 = vld [vmem:[%s1187 + $0x78] sm:$0xff]
        %v1199 = vld [vmem:[%s1187 + $0x80] sm:$0xff]
        %v1200 = vld [vmem:[%s1187 + $0x90] sm:$0xff]
        %v1201 = vld [vmem:[%s1187 + $0x98] sm:$0xff]
        %v1202 = vld [vmem:[%s1187 + $0xa8] sm:$0xff]
        %v1203 = vld [vmem:[%s1187 + $0xb0] sm:$0xff]
        %v1204 = vld [vmem:[%s1187 + $0xc0] sm:$0xff]
        %v1205 = vld [vmem:[%s1187 + $0xc8] sm:$0xff]
        %v1206 = vld [vmem:[%s1187 + $0xd8] sm:$0xff]
        %v1207 = vld [vmem:[%s1187 + $0xe0] sm:$0xff]
        %v1208 = vld [vmem:[%s1187 + $0xf0] sm:$0xff]
        %v1209 = vld [vmem:[%s1187 + $0xf8] sm:$0xff]
        %v1210 = vld [vmem:[%s1187 + $0x108] sm:$0xff]
        %v1211 = vld [vmem:[%s1187 + $0x110] sm:$0xff]
        %v1212 = vld [vmem:[%s1187 + $0x120] sm:$0xff]
        %v1213 = vld [vmem:[%s1187 + $0x128] sm:$0xff]
        %v1214 = vld [vmem:[%s1187 + $0x138] sm:$0xff]
        %v1215 = vld [vmem:[%s1187 + $0x140] sm:$0xff]
        %v1216 = vld [vmem:[%s1187 + $0x150] sm:$0xff]
        %v1217 = vld [vmem:[%s1187 + $0x158] sm:$0xff]
        %v1218 = vld [vmem:[%s1187 + $0x168] sm:$0xff]
        %v1219 = vld [vmem:[%s1187 + $0x170] sm:$0xff]
        %v1220 = vpack.c.bf16 %v1189, %v1188
        %v1221 = vpack.c.bf16 %v1191, %v1190
        %v1222 = vpack.c.bf16 %v1193, %v1192
        %v1223 = vpack.c.bf16 %v1195, %v1194
        %v1224 = vpack.c.bf16 %v1197, %v1196
        %v1225 = vpack.c.bf16 %v1199, %v1198
        %v1226 = vpack.c.bf16 %v1201, %v1200
        %v1227 = vpack.c.bf16 %v1203, %v1202
        %v1228 = vpack.c.bf16 %v1205, %v1204
        %v1229 = vpack.c.bf16 %v1207, %v1206
        %v1230 = vpack.c.bf16 %v1209, %v1208
        %v1231 = vpack.c.bf16 %v1211, %v1210
        %v1232 = vpack.c.bf16 %v1213, %v1212
        %v1233 = vpack.c.bf16 %v1215, %v1214
        %v1234 = vpack.c.bf16 %v1217, %v1216
        %v1235 = vpack.c.bf16 %v1219, %v1218
        %1252 = vrot.lane.b32.xlu0 %v1220, 64
        %v1253 = vpop.permute.xlu0 %1252
        %1254 = vrot.lane.b32.xlu0 %v1221, 64
        %v1255 = vpop.permute.xlu0 %1254
        %1256 = vrot.lane.b32.xlu0 %v1222, 64
        %v1257 = vpop.permute.xlu0 %1256
        %1258 = vrot.lane.b32.xlu0 %v1223, 64
        %v1259 = vpop.permute.xlu0 %1258
        %1260 = vrot.lane.b32.xlu0 %v1224, 64
        %v1261 = vpop.permute.xlu0 %1260
        %1262 = vrot.lane.b32.xlu0 %v1225, 64
        %v1263 = vpop.permute.xlu0 %1262
        %1264 = vrot.lane.b32.xlu0 %v1226, 64
        %v1265 = vpop.permute.xlu0 %1264
        %1266 = vrot.lane.b32.xlu0 %v1227, 64
        %v1267 = vpop.permute.xlu0 %1266
        %1268 = vrot.lane.b32.xlu0 %v1228, 64
        %v1269 = vpop.permute.xlu0 %1268
        %1270 = vrot.lane.b32.xlu0 %v1229, 64
        %v1271 = vpop.permute.xlu0 %1270
        %1272 = vrot.lane.b32.xlu0 %v1230, 64
        %v1273 = vpop.permute.xlu0 %1272
        %1274 = vrot.lane.b32.xlu0 %v1231, 64
        %v1275 = vpop.permute.xlu0 %1274
        %1276 = vrot.lane.b32.xlu0 %v1232, 64
        %v1277 = vpop.permute.xlu0 %1276
        %1278 = vrot.lane.b32.xlu0 %v1233, 64
        %v1279 = vpop.permute.xlu0 %1278
        %1280 = vrot.lane.b32.xlu0 %v1234, 64
        %v1281 = vpop.permute.xlu0 %1280
        %1282 = vrot.lane.b32.xlu0 %v1235, 64
        %v1283 = vpop.permute.xlu0 %1282
        %1300 = vst.msk [vmem:[#allocation3 + $0x8] sm:$0xff] %vm849, %v1253
        %1301 = vst.msk [vmem:[#allocation3 + $0x20] sm:$0xff] %vm849, %v1255
        %1302 = vst.msk [vmem:[#allocation3 + $0x38] sm:$0xff] %vm849, %v1257
        %1303 = vst.msk [vmem:[#allocation3 + $0x50] sm:$0xff] %vm849, %v1259
        %1304 = vst.msk [vmem:[#allocation3 + $0x68] sm:$0xff] %vm849, %v1261
        %1305 = vst.msk [vmem:[#allocation3 + $0x80] sm:$0xff] %vm849, %v1263
        %1306 = vst.msk [vmem:[#allocation3 + $0x98] sm:$0xff] %vm849, %v1265
        %1307 = vst.msk [vmem:[#allocation3 + $0xb0] sm:$0xff] %vm849, %v1267
        %1308 = vst.msk [vmem:[#allocation3 + $0xc8] sm:$0xff] %vm849, %v1269
        %1309 = vst.msk [vmem:[#allocation3 + $0xe0] sm:$0xff] %vm849, %v1271
        %1310 = vst.msk [vmem:[#allocation3 + $0xf8] sm:$0xff] %vm849, %v1273
        %1311 = vst.msk [vmem:[#allocation3 + $0x110] sm:$0xff] %vm849, %v1275
        %1312 = vst.msk [vmem:[#allocation3 + $0x128] sm:$0xff] %vm849, %v1277
        %1313 = vst.msk [vmem:[#allocation3 + $0x140] sm:$0xff] %vm849, %v1279
        %1314 = vst.msk [vmem:[#allocation3 + $0x158] sm:$0xff] %vm849, %v1281
        %1315 = vst.msk [vmem:[#allocation3 + $0x170] sm:$0xff] %vm849, %v1283
        %v1316 = vld [vmem:[%s1187 + $0x1] sm:$0xff]
        %v1317 = vld [vmem:[%s1187 + $0x9] sm:$0xff]
        %v1318 = vld [vmem:[%s1187 + $0x19] sm:$0xff]
        %v1319 = vld [vmem:[%s1187 + $0x21] sm:$0xff]
        %v1320 = vld [vmem:[%s1187 + $0x31] sm:$0xff]
        %v1321 = vld [vmem:[%s1187 + $0x39] sm:$0xff]
        %v1322 = vld [vmem:[%s1187 + $0x49] sm:$0xff]
        %v1323 = vld [vmem:[%s1187 + $0x51] sm:$0xff]
        %v1324 = vld [vmem:[%s1187 + $0x61] sm:$0xff]
        %v1325 = vld [vmem:[%s1187 + $0x69] sm:$0xff]
        %v1326 = vld [vmem:[%s1187 + $0x79] sm:$0xff]
        %v1327 = vld [vmem:[%s1187 + $0x81] sm:$0xff]
        %v1328 = vld [vmem:[%s1187 + $0x91] sm:$0xff]
        %v1329 = vld [vmem:[%s1187 + $0x99] sm:$0xff]
        %v1330 = vld [vmem:[%s1187 + $0xa9] sm:$0xff]
        %v1331 = vld [vmem:[%s1187 + $0xb1] sm:$0xff]
        %v1332 = vld [vmem:[%s1187 + $0xc1] sm:$0xff]
        %v1333 = vld [vmem:[%s1187 + $0xc9] sm:$0xff]
        %v1334 = vld [vmem:[%s1187 + $0xd9] sm:$0xff]
        %v1335 = vld [vmem:[%s1187 + $0xe1] sm:$0xff]
        %v1336 = vld [vmem:[%s1187 + $0xf1] sm:$0xff]
        %v1337 = vld [vmem:[%s1187 + $0xf9] sm:$0xff]
        %v1338 = vld [vmem:[%s1187 + $0x109] sm:$0xff]
        %v1339 = vld [vmem:[%s1187 + $0x111] sm:$0xff]
        %v1340 = vld [vmem:[%s1187 + $0x121] sm:$0xff]
        %v1341 = vld [vmem:[%s1187 + $0x129] sm:$0xff]
        %v1342 = vld [vmem:[%s1187 + $0x139] sm:$0xff]
        %v1343 = vld [vmem:[%s1187 + $0x141] sm:$0xff]
        %v1344 = vld [vmem:[%s1187 + $0x151] sm:$0xff]
        %v1345 = vld [vmem:[%s1187 + $0x159] sm:$0xff]
        %v1346 = vld [vmem:[%s1187 + $0x169] sm:$0xff]
        %v1347 = vld [vmem:[%s1187 + $0x171] sm:$0xff]
        %v1348 = vpack.c.bf16 %v1317, %v1316
        %v1349 = vpack.c.bf16 %v1319, %v1318
        %v1350 = vpack.c.bf16 %v1321, %v1320
        %v1351 = vpack.c.bf16 %v1323, %v1322
        %v1352 = vpack.c.bf16 %v1325, %v1324
        %v1353 = vpack.c.bf16 %v1327, %v1326
        %v1354 = vpack.c.bf16 %v1329, %v1328
        %v1355 = vpack.c.bf16 %v1331, %v1330
        %v1356 = vpack.c.bf16 %v1333, %v1332
        %v1357 = vpack.c.bf16 %v1335, %v1334
        %v1358 = vpack.c.bf16 %v1337, %v1336
        %v1359 = vpack.c.bf16 %v1339, %v1338
        %v1360 = vpack.c.bf16 %v1341, %v1340
        %v1361 = vpack.c.bf16 %v1343, %v1342
        %v1362 = vpack.c.bf16 %v1345, %v1344
        %v1363 = vpack.c.bf16 %v1347, %v1346
        %1380 = vrot.lane.b32.xlu0 %v1348, 96
        %v1381 = vpop.permute.xlu0 %1380
        %1382 = vrot.lane.b32.xlu0 %v1349, 96
        %v1383 = vpop.permute.xlu0 %1382
        %1384 = vrot.lane.b32.xlu0 %v1350, 96
        %v1385 = vpop.permute.xlu0 %1384
        %1386 = vrot.lane.b32.xlu0 %v1351, 96
        %v1387 = vpop.permute.xlu0 %1386
        %1388 = vrot.lane.b32.xlu0 %v1352, 96
        %v1389 = vpop.permute.xlu0 %1388
        %1390 = vrot.lane.b32.xlu0 %v1353, 96
        %v1391 = vpop.permute.xlu0 %1390
        %1392 = vrot.lane.b32.xlu0 %v1354, 96
        %v1393 = vpop.permute.xlu0 %1392
        %1394 = vrot.lane.b32.xlu0 %v1355, 96
        %v1395 = vpop.permute.xlu0 %1394
        %1396 = vrot.lane.b32.xlu0 %v1356, 96
        %v1397 = vpop.permute.xlu0 %1396
        %1398 = vrot.lane.b32.xlu0 %v1357, 96
        %v1399 = vpop.permute.xlu0 %1398
        %1400 = vrot.lane.b32.xlu0 %v1358, 96
        %v1401 = vpop.permute.xlu0 %1400
        %1402 = vrot.lane.b32.xlu0 %v1359, 96
        %v1403 = vpop.permute.xlu0 %1402
        %1404 = vrot.lane.b32.xlu0 %v1360, 96
        %v1405 = vpop.permute.xlu0 %1404
        %1406 = vrot.lane.b32.xlu0 %v1361, 96
        %v1407 = vpop.permute.xlu0 %1406
        %1408 = vrot.lane.b32.xlu0 %v1362, 96
        %v1409 = vpop.permute.xlu0 %1408
        %1410 = vrot.lane.b32.xlu0 %v1363, 96
        %v1411 = vpop.permute.xlu0 %1410
        %1428 = vst.msk [vmem:[#allocation3 + $0x8] sm:$0xff] %vm978, %v1381
        %1429 = vst.msk [vmem:[#allocation3 + $0x20] sm:$0xff] %vm978, %v1383
        %1430 = vst.msk [vmem:[#allocation3 + $0x38] sm:$0xff] %vm978, %v1385
        %1431 = vst.msk [vmem:[#allocation3 + $0x50] sm:$0xff] %vm978, %v1387
        %1432 = vst.msk [vmem:[#allocation3 + $0x68] sm:$0xff] %vm978, %v1389
        %1433 = vst.msk [vmem:[#allocation3 + $0x80] sm:$0xff] %vm978, %v1391
        %1434 = vst.msk [vmem:[#allocation3 + $0x98] sm:$0xff] %vm978, %v1393
        %1435 = vst.msk [vmem:[#allocation3 + $0xb0] sm:$0xff] %vm978, %v1395
        %1436 = vst.msk [vmem:[#allocation3 + $0xc8] sm:$0xff] %vm978, %v1397
        %1437 = vst.msk [vmem:[#allocation3 + $0xe0] sm:$0xff] %vm978, %v1399
        %1438 = vst.msk [vmem:[#allocation3 + $0xf8] sm:$0xff] %vm978, %v1401
        %1439 = vst.msk [vmem:[#allocation3 + $0x110] sm:$0xff] %vm978, %v1403
        %1440 = vst.msk [vmem:[#allocation3 + $0x128] sm:$0xff] %vm978, %v1405
        %1441 = vst.msk [vmem:[#allocation3 + $0x140] sm:$0xff] %vm978, %v1407
        %1442 = vst.msk [vmem:[#allocation3 + $0x158] sm:$0xff] %vm978, %v1409
        %1443 = vst.msk [vmem:[#allocation3 + $0x170] sm:$0xff] %vm978, %v1411
        %v1444 = vld [vmem:[%s1187 + $0x2] sm:$0xff]
        %v1445 = vld [vmem:[%s1187 + $0xa] sm:$0xff]
        %v1446 = vld [vmem:[%s1187 + $0x1a] sm:$0xff]
        %v1447 = vld [vmem:[%s1187 + $0x22] sm:$0xff]
        %v1448 = vld [vmem:[%s1187 + $0x32] sm:$0xff]
        %v1449 = vld [vmem:[%s1187 + $0x3a] sm:$0xff]
        %v1450 = vld [vmem:[%s1187 + $0x4a] sm:$0xff]
        %v1451 = vld [vmem:[%s1187 + $0x52] sm:$0xff]
        %v1452 = vld [vmem:[%s1187 + $0x62] sm:$0xff]
        %v1453 = vld [vmem:[%s1187 + $0x6a] sm:$0xff]
        %v1454 = vld [vmem:[%s1187 + $0x7a] sm:$0xff]
        %v1455 = vld [vmem:[%s1187 + $0x82] sm:$0xff]
        %v1456 = vld [vmem:[%s1187 + $0x92] sm:$0xff]
        %v1457 = vld [vmem:[%s1187 + $0x9a] sm:$0xff]
        %v1458 = vld [vmem:[%s1187 + $0xaa] sm:$0xff]
        %v1459 = vld [vmem:[%s1187 + $0xb2] sm:$0xff]
        %v1460 = vld [vmem:[%s1187 + $0xc2] sm:$0xff]
        %v1461 = vld [vmem:[%s1187 + $0xca] sm:$0xff]
        %v1462 = vld [vmem:[%s1187 + $0xda] sm:$0xff]
        %v1463 = vld [vmem:[%s1187 + $0xe2] sm:$0xff]
        %v1464 = vld [vmem:[%s1187 + $0xf2] sm:$0xff]
        %v1465 = vld [vmem:[%s1187 + $0xfa] sm:$0xff]
        %v1466 = vld [vmem:[%s1187 + $0x10a] sm:$0xff]
        %v1467 = vld [vmem:[%s1187 + $0x112] sm:$0xff]
        %v1468 = vld [vmem:[%s1187 + $0x122] sm:$0xff]
        %v1469 = vld [vmem:[%s1187 + $0x12a] sm:$0xff]
        %v1470 = vld [vmem:[%s1187 + $0x13a] sm:$0xff]
        %v1471 = vld [vmem:[%s1187 + $0x142] sm:$0xff]
        %v1472 = vld [vmem:[%s1187 + $0x152] sm:$0xff]
        %v1473 = vld [vmem:[%s1187 + $0x15a] sm:$0xff]
        %v1474 = vld [vmem:[%s1187 + $0x16a] sm:$0xff]
        %v1475 = vld [vmem:[%s1187 + $0x172] sm:$0xff]
        %v1476 = vpack.c.bf16 %v1445, %v1444
        %v1477 = vpack.c.bf16 %v1447, %v1446
        %v1478 = vpack.c.bf16 %v1449, %v1448
        %v1479 = vpack.c.bf16 %v1451, %v1450
        %v1480 = vpack.c.bf16 %v1453, %v1452
        %v1481 = vpack.c.bf16 %v1455, %v1454
        %v1482 = vpack.c.bf16 %v1457, %v1456
        %v1483 = vpack.c.bf16 %v1459, %v1458
        %v1484 = vpack.c.bf16 %v1461, %v1460
        %v1485 = vpack.c.bf16 %v1463, %v1462
        %v1486 = vpack.c.bf16 %v1465, %v1464
        %v1487 = vpack.c.bf16 %v1467, %v1466
        %v1488 = vpack.c.bf16 %v1469, %v1468
        %v1489 = vpack.c.bf16 %v1471, %v1470
        %v1490 = vpack.c.bf16 %v1473, %v1472
        %v1491 = vpack.c.bf16 %v1475, %v1474
        %1492 = vst.msk [vmem:[#allocation3 + $0x10] sm:$0xff] %vm386, %v1476
        %1493 = vst.msk [vmem:[#allocation3 + $0x28] sm:$0xff] %vm386, %v1477
        %1494 = vst.msk [vmem:[#allocation3 + $0x40] sm:$0xff] %vm386, %v1478
        %1495 = vst.msk [vmem:[#allocation3 + $0x58] sm:$0xff] %vm386, %v1479
        %1496 = vst.msk [vmem:[#allocation3 + $0x70] sm:$0xff] %vm386, %v1480
        %1497 = vst.msk [vmem:[#allocation3 + $0x88] sm:$0xff] %vm386, %v1481
        %1498 = vst.msk [vmem:[#allocation3 + $0xa0] sm:$0xff] %vm386, %v1482
        %1499 = vst.msk [vmem:[#allocation3 + $0xb8] sm:$0xff] %vm386, %v1483
        %1500 = vst.msk [vmem:[#allocation3 + $0xd0] sm:$0xff] %vm386, %v1484
        %1501 = vst.msk [vmem:[#allocation3 + $0xe8] sm:$0xff] %vm386, %v1485
        %1502 = vst.msk [vmem:[#allocation3 + $0x100] sm:$0xff] %vm386, %v1486
        %1503 = vst.msk [vmem:[#allocation3 + $0x118] sm:$0xff] %vm386, %v1487
        %1504 = vst.msk [vmem:[#allocation3 + $0x130] sm:$0xff] %vm386, %v1488
        %1505 = vst.msk [vmem:[#allocation3 + $0x148] sm:$0xff] %vm386, %v1489
        %1506 = vst.msk [vmem:[#allocation3 + $0x160] sm:$0xff] %vm386, %v1490
        %1507 = vst.msk [vmem:[#allocation3 + $0x178] sm:$0xff] %vm386, %v1491
        %v1508 = vld [vmem:[#allocation3] sm:$0xff]
        %v1509 = vld [vmem:[#allocation3 + $0x8] sm:$0xff]
        %v1510 = vld [vmem:[#allocation3 + $0x10] sm:$0xff]
        %v1511 = vld [vmem:[#allocation3 + $0x18] sm:$0xff]
        %v1512 = vld [vmem:[#allocation3 + $0x20] sm:$0xff]
        %v1513 = vld [vmem:[#allocation3 + $0x28] sm:$0xff]
        %v1514 = vld [vmem:[#allocation3 + $0x30] sm:$0xff]
        %v1515 = vld [vmem:[#allocation3 + $0x38] sm:$0xff]
        %v1516 = vld [vmem:[#allocation3 + $0x40] sm:$0xff]
        %v1517 = vld [vmem:[#allocation3 + $0x48] sm:$0xff]
        %v1518 = vld [vmem:[#allocation3 + $0x50] sm:$0xff]
        %v1519 = vld [vmem:[#allocation3 + $0x58] sm:$0xff]
        %v1520 = vld [vmem:[#allocation3 + $0x60] sm:$0xff]
        %v1521 = vld [vmem:[#allocation3 + $0x68] sm:$0xff]
        %v1522 = vld [vmem:[#allocation3 + $0x70] sm:$0xff]
        %v1523 = vld [vmem:[#allocation3 + $0x78] sm:$0xff]
        %v1524 = vld [vmem:[#allocation3 + $0x80] sm:$0xff]
        %v1525 = vld [vmem:[#allocation3 + $0x88] sm:$0xff]
        %v1526 = vld [vmem:[#allocation3 + $0x90] sm:$0xff]
        %v1527 = vld [vmem:[#allocation3 + $0x98] sm:$0xff]
        %v1528 = vld [vmem:[#allocation3 + $0xa0] sm:$0xff]
        %v1529 = vld [vmem:[#allocation3 + $0xa8] sm:$0xff]
        %v1530 = vld [vmem:[#allocation3 + $0xb0] sm:$0xff]
        %v1531 = vld [vmem:[#allocation3 + $0xb8] sm:$0xff]
        %v1532 = vld [vmem:[#allocation3 + $0xc0] sm:$0xff]
        %v1533 = vld [vmem:[#allocation3 + $0xc8] sm:$0xff]
        %v1534 = vld [vmem:[#allocation3 + $0xd0] sm:$0xff]
        %v1535 = vld [vmem:[#allocation3 + $0xd8] sm:$0xff]
        %v1536 = vld [vmem:[#allocation3 + $0xe0] sm:$0xff]
        %v1537 = vld [vmem:[#allocation3 + $0xe8] sm:$0xff]
        %v1538 = vld [vmem:[#allocation3 + $0xf0] sm:$0xff]
        %v1539 = vld [vmem:[#allocation3 + $0xf8] sm:$0xff]
        %v1540 = vld [vmem:[#allocation3 + $0x100] sm:$0xff]
        %v1541 = vld [vmem:[#allocation3 + $0x108] sm:$0xff]
        %v1542 = vld [vmem:[#allocation3 + $0x110] sm:$0xff]
        %v1543 = vld [vmem:[#allocation3 + $0x118] sm:$0xff]
        %v1544 = vld [vmem:[#allocation3 + $0x120] sm:$0xff]
        %v1545 = vld [vmem:[#allocation3 + $0x128] sm:$0xff]
        %v1546 = vld [vmem:[#allocation3 + $0x130] sm:$0xff]
        %v1547 = vld [vmem:[#allocation3 + $0x138] sm:$0xff]
        %v1548 = vld [vmem:[#allocation3 + $0x140] sm:$0xff]
        %v1549 = vld [vmem:[#allocation3 + $0x148] sm:$0xff]
        %v1550 = vld [vmem:[#allocation3 + $0x150] sm:$0xff]
        %v1551 = vld [vmem:[#allocation3 + $0x158] sm:$0xff]
        %v1552 = vld [vmem:[#allocation3 + $0x160] sm:$0xff]
        %v1553 = vld [vmem:[#allocation3 + $0x168] sm:$0xff]
        %v1554 = vld [vmem:[#allocation3 + $0x170] sm:$0xff]
        %v1555 = vld [vmem:[#allocation3 + $0x178] sm:$0xff]
        %v1557 = vlaneseq
        %v1558 = vshrl.u32 %v1557, 7
        %v1559 = vsub.s32 0, %v1558
        %v1560 = vrot.slane %v510, %v1559
        %v1598 = vunpack.c.l.b16 %v474
        %v1599 = vunpack.c.l.b16 %v475
        %v1600 = vunpack.c.l.b16 %v476
        %v1601 = vunpack.c.l.b16 %v477
        %v1602 = vunpack.c.l.b16 %v478
        %v1603 = vunpack.c.l.b16 %v479
        %v1604 = vunpack.c.l.b16 %v480
        %v1605 = vunpack.c.l.b16 %v481
        %v1606 = vunpack.c.l.b16 %v482
        %v1607 = vunpack.c.l.b16 %v483
        %v1608 = vunpack.c.l.b16 %v484
        %v1609 = vunpack.c.l.b16 %v485
        %v1610 = vunpack.c.l.b16 %v486
        %v1611 = vunpack.c.l.b16 %v487
        %v1612 = vunpack.c.l.b16 %v488
        %v1613 = vunpack.c.l.b16 %v489
        %v1614 = vunpack.c.l.b16 %v490
        %v1615 = vunpack.c.l.b16 %v491
        %v1616 = vunpack.c.l.b16 %v492
        %v1617 = vunpack.c.l.b16 %v493
        %v1618 = vunpack.c.l.b16 %v494
        %v1619 = vunpack.c.l.b16 %v495
        %v1620 = vunpack.c.l.b16 %v496
        %v1621 = vunpack.c.l.b16 %v497
        %v1622 = vunpack.c.l.b16 %v498
        %v1623 = vunpack.c.l.b16 %v499
        %v1624 = vunpack.c.l.b16 %v500
        %v1625 = vunpack.c.l.b16 %v501
        %v1626 = vunpack.c.l.b16 %v502
        %v1627 = vunpack.c.l.b16 %v503
        %v1628 = vunpack.c.l.b16 %v504
        %v1629 = vunpack.c.l.b16 %v505
        %v1630 = vunpack.c.l.b16 %v506
        %v1631 = vunpack.c.l.b16 %v507
        %v1632 = vunpack.c.l.b16 %v508
        %v1633 = vunpack.c.l.b16 %v509
        %v1634 = vpack.c.b16 %v1599, %v1598
        %v1635 = vpack.c.b16 %v1601, %v1600
        %v1636 = vpack.c.b16 %v1603, %v1602
        %v1637 = vpack.c.b16 %v1605, %v1604
        %v1638 = vpack.c.b16 %v1607, %v1606
        %v1639 = vpack.c.b16 %v1609, %v1608
        %v1640 = vpack.c.b16 %v1611, %v1610
        %v1641 = vpack.c.b16 %v1613, %v1612
        %v1642 = vpack.c.b16 %v1615, %v1614
        %v1643 = vpack.c.b16 %v1617, %v1616
        %v1644 = vpack.c.b16 %v1619, %v1618
        %v1645 = vpack.c.b16 %v1621, %v1620
        %v1646 = vpack.c.b16 %v1623, %v1622
        %v1647 = vpack.c.b16 %v1625, %v1624
        %v1648 = vpack.c.b16 %v1627, %v1626
        %v1649 = vpack.c.b16 %v1629, %v1628
        %v1650 = vpack.c.b16 %v1631, %v1630
        %v1651 = vpack.c.b16 %v1633, %v1632
        %v1671 = vsel %vm386, %v1510, 0
        %v1674 = vsel %vm386, %v1513, 0
        %v1677 = vsel %vm386, %v1516, 0
        %v1680 = vsel %vm386, %v1519, 0
        %v1683 = vsel %vm386, %v1522, 0
        %v1686 = vsel %vm386, %v1525, 0
        %v1689 = vsel %vm386, %v1528, 0
        %v1692 = vsel %vm386, %v1531, 0
        %v1695 = vsel %vm386, %v1534, 0
        %v1698 = vsel %vm386, %v1537, 0
        %v1701 = vsel %vm386, %v1540, 0
        %v1704 = vsel %vm386, %v1543, 0
        %v1707 = vsel %vm386, %v1546, 0
        %v1710 = vsel %vm386, %v1549, 0
        %v1713 = vsel %vm386, %v1552, 0
        %v1716 = vsel %vm386, %v1555, 0
        %1718 = vmatprep.subr.bf16.mxu0 0
        %1719 = vmatpush1.bf16.msra.mxu0 %v1634
        %1720 = vmatprep.subr.bf16.mxu0 0
        %1721 = vmatpush1.bf16.msra.mxu0 %v1635
        %1722 = vmatprep.subr.bf16.mxu0 0
        %1723 = vmatpush1.bf16.msra.mxu0 %v1636
        %1724 = vmatprep.subr.bf16.mxu0 0
        %1725 = vmatpush1.bf16.msra.mxu0 %v1637
        %1726 = vmatprep.subr.bf16.mxu0 0
        %1727 = vmatpush1.bf16.msra.mxu0 %v1638
        %1728 = vmatprep.subr.bf16.mxu0 0
        %1729 = vmatpush1.bf16.msra.mxu0 %v1639
        %1730 = vmatprep.subr.bf16.mxu0 0
        %1731 = vmatpush1.bf16.msra.mxu0 %v1640
        %1732 = vmatprep.subr.bf16.mxu0 0
        %1733 = vmatpush1.bf16.msra.mxu0 %v1641
        %1734 = vmatprep.subr.bf16.mxu0 0
        %1735 = vmatpush1.bf16.msra.mxu0 %v1642
        %1736 = vmatprep.subr.bf16.mxu0 0
        %1737 = vmatpush1.bf16.msra.mxu0 %v1643
        %1738 = vmatprep.subr.bf16.mxu0 0
        %1739 = vmatpush1.bf16.msra.mxu0 %v1644
        %1740 = vmatprep.subr.bf16.mxu0 0
        %1741 = vmatpush1.bf16.msra.mxu0 %v1645
        %1742 = vmatprep.subr.bf16.mxu0 0
        %1743 = vmatpush1.bf16.msra.mxu0 %v1646
        %1744 = vmatprep.subr.bf16.mxu0 0
        %1745 = vmatpush1.bf16.msra.mxu0 %v1647
        %1746 = vmatprep.subr.bf16.mxu0 0
        %1747 = vmatpush1.bf16.msra.mxu0 %v1648
        %1748 = vmatprep.subr.bf16.mxu0 0
        %1749 = vmatpush1.bf16.msra.mxu0 %v1649
        %1750 = vmatprep.mubr.bf16.mxu0 %v1509
        %1751 = vmatmul.mubr.bf16.gmra.mrb[0].mxu0 %v1508
        %v1752 = vpop.f32.mrb[0].mxu0
        %v1753 = vadd.f32 %v1560, %v1752
        %v1754 = vpop.f32.mrb[0].mxu0
        %v1755 = vpop.f32.mrb[0].mxu0
        %v1756 = vadd.f32 %v1560, %v1755
        %v1757 = vpop.f32.mrb[0].mxu0
        %1758 = vmatprep.mubr.bf16.mxu0 %v1512
        %1759 = vmatmul.mubr.bf16.gmra.mrb[0].mxu0 %v1511
        %v1760 = vpop.f32.mrb[0].mxu0
        %v1761 = vadd.f32 %v1560, %v1760
        %v1762 = vpop.f32.mrb[0].mxu0
        %v1763 = vpop.f32.mrb[0].mxu0
        %v1764 = vadd.f32 %v1560, %v1763
        %v1765 = vpop.f32.mrb[0].mxu0
        %1766 = vmatprep.mubr.bf16.mxu0 %v1515
        %1767 = vmatmul.mubr.bf16.gmra.mrb[0].mxu0 %v1514
        %v1768 = vpop.f32.mrb[0].mxu0
        %v1769 = vadd.f32 %v1560, %v1768
        %v1770 = vpop.f32.mrb[0].mxu0
        %v1771 = vpop.f32.mrb[0].mxu0
        %v1772 = vadd.f32 %v1560, %v1771
        %v1773 = vpop.f32.mrb[0].mxu0
        %1774 = vmatprep.mubr.bf16.mxu0 %v1518
        %1775 = vmatmul.mubr.bf16.gmra.mrb[0].mxu0 %v1517
        %v1776 = vpop.f32.mrb[0].mxu0
        %v1777 = vadd.f32 %v1560, %v1776
        %v1778 = vpop.f32.mrb[0].mxu0
        %v1779 = vpop.f32.mrb[0].mxu0
        %v1780 = vadd.f32 %v1560, %v1779
        %v1781 = vpop.f32.mrb[0].mxu0
        %1782 = vmatprep.mubr.bf16.mxu0 %v1521
        %1783 = vmatmul.mubr.bf16.gmra.mrb[0].mxu0 %v1520
        %v1784 = vpop.f32.mrb[0].mxu0
        %v1785 = vadd.f32 %v1560, %v1784
        %v1786 = vpop.f32.mrb[0].mxu0
        %v1787 = vpop.f32.mrb[0].mxu0
        %v1788 = vadd.f32 %v1560, %v1787
        %v1789 = vpop.f32.mrb[0].mxu0
        %1790 = vmatprep.mubr.bf16.mxu0 %v1524
        %1791 = vmatmul.mubr.bf16.gmra.mrb[0].mxu0 %v1523
        %v1792 = vpop.f32.mrb[0].mxu0
        %v1793 = vadd.f32 %v1560, %v1792
        %v1794 = vpop.f32.mrb[0].mxu0
        %v1795 = vpop.f32.mrb[0].mxu0
        %v1796 = vadd.f32 %v1560, %v1795
        %v1797 = vpop.f32.mrb[0].mxu0
        %1798 = vmatprep.mubr.bf16.mxu0 %v1527
        %1799 = vmatmul.mubr.bf16.gmra.mrb[0].mxu0 %v1526
        %v1800 = vpop.f32.mrb[0].mxu0
        %v1801 = vadd.f32 %v1560, %v1800
        %v1802 = vpop.f32.mrb[0].mxu0
        %v1803 = vpop.f32.mrb[0].mxu0
        %v1804 = vadd.f32 %v1560, %v1803
        %v1805 = vpop.f32.mrb[0].mxu0
        %1806 = vmatprep.mubr.bf16.mxu0 %v1530
        %1807 = vmatmul.mubr.bf16.gmra.mrb[0].mxu0 %v1529
        %v1808 = vpop.f32.mrb[0].mxu0
        %v1809 = vadd.f32 %v1560, %v1808
        %v1810 = vpop.f32.mrb[0].mxu0
        %v1811 = vpop.f32.mrb[0].mxu0
        %v1812 = vadd.f32 %v1560, %v1811
        %v1813 = vpop.f32.mrb[0].mxu0
        %1814 = vmatprep.mubr.bf16.mxu0 %v1533
        %1815 = vmatmul.mubr.bf16.gmra.mrb[0].mxu0 %v1532
        %v1816 = vpop.f32.mrb[0].mxu0
        %v1817 = vadd.f32 %v1560, %v1816
        %v1818 = vpop.f32.mrb[0].mxu0
        %v1819 = vpop.f32.mrb[0].mxu0
        %v1820 = vadd.f32 %v1560, %v1819
        %v1821 = vpop.f32.mrb[0].mxu0
        %1822 = vmatprep.mubr.bf16.mxu0 %v1536
        %1823 = vmatmul.mubr.bf16.gmra.mrb[0].mxu0 %v1535
        %v1824 = vpop.f32.mrb[0].mxu0
        %v1825 = vadd.f32 %v1560, %v1824
        %v1826 = vpop.f32.mrb[0].mxu0
        %v1827 = vpop.f32.mrb[0].mxu0
        %v1828 = vadd.f32 %v1560, %v1827
        %v1829 = vpop.f32.mrb[0].mxu0
        %1830 = vmatprep.mubr.bf16.mxu0 %v1539
        %1831 = vmatmul.mubr.bf16.gmra.mrb[0].mxu0 %v1538
        %v1832 = vpop.f32.mrb[0].mxu0
        %v1833 = vadd.f32 %v1560, %v1832
        %v1834 = vpop.f32.mrb[0].mxu0
        %v1835 = vpop.f32.mrb[0].mxu0
        %v1836 = vadd.f32 %v1560, %v1835
        %v1837 = vpop.f32.mrb[0].mxu0
        %1838 = vmatprep.mubr.bf16.mxu0 %v1542
        %1839 = vmatmul.mubr.bf16.gmra.mrb[0].mxu0 %v1541
        %v1840 = vpop.f32.mrb[0].mxu0
        %v1841 = vadd.f32 %v1560, %v1840
        %v1842 = vpop.f32.mrb[0].mxu0
        %v1843 = vpop.f32.mrb[0].mxu0
        %v1844 = vadd.f32 %v1560, %v1843
        %v1845 = vpop.f32.mrb[0].mxu0
        %1846 = vmatprep.mubr.bf16.mxu0 %v1545
        %1847 = vmatmul.mubr.bf16.gmra.mrb[0].mxu0 %v1544
        %v1848 = vpop.f32.mrb[0].mxu0
        %v1849 = vadd.f32 %v1560, %v1848
        %v1850 = vpop.f32.mrb[0].mxu0
        %v1851 = vpop.f32.mrb[0].mxu0
        %v1852 = vadd.f32 %v1560, %v1851
        %v1853 = vpop.f32.mrb[0].mxu0
        %1854 = vmatprep.mubr.bf16.mxu0 %v1548
        %1855 = vmatmul.mubr.bf16.gmra.mrb[0].mxu0 %v1547
        %v1856 = vpop.f32.mrb[0].mxu0
        %v1857 = vadd.f32 %v1560, %v1856
        %v1858 = vpop.f32.mrb[0].mxu0
        %v1859 = vpop.f32.mrb[0].mxu0
        %v1860 = vadd.f32 %v1560, %v1859
        %v1861 = vpop.f32.mrb[0].mxu0
        %1862 = vmatprep.mubr.bf16.mxu0 %v1551
        %1863 = vmatmul.mubr.bf16.gmra.mrb[0].mxu0 %v1550
        %v1864 = vpop.f32.mrb[0].mxu0
        %v1865 = vadd.f32 %v1560, %v1864
        %v1866 = vpop.f32.mrb[0].mxu0
        %v1867 = vpop.f32.mrb[0].mxu0
        %v1868 = vadd.f32 %v1560, %v1867
        %v1869 = vpop.f32.mrb[0].mxu0
        %1870 = vmatprep.mubr.bf16.mxu0 %v1554
        %1871 = vmatmul.mubr.bf16.gmra.mrb[0].mxu0 %v1553
        %v1872 = vpop.f32.mrb[0].mxu0
        %v1873 = vadd.f32 %v1560, %v1872
        %v1874 = vpop.f32.mrb[0].mxu0
        %v1875 = vpop.f32.mrb[0].mxu0
        %v1876 = vadd.f32 %v1560, %v1875
        %v1877 = vpop.f32.mrb[0].mxu0
        %1878 = vdwg.mxu0
        %1879 = vmatprep.subr.bf16.mxu0 0
        %1880 = vmatpush1.bf16.msra.mxu0 %v1650
        %1881 = vmatprep.subr.bf16.mxu0 0
        %1882 = vmatpush1.bf16.msra.mxu0 %v1651
        %1883 = vmatprep.subr.bf16.mxu0 0
        %1884 = vmatpush1.bf16.msra.mxu0 0
        %1885 = vmatprep.subr.bf16.mxu0 0
        %1886 = vmatpush1.bf16.msra.mxu0 0
        %1887 = vmatprep.subr.bf16.mxu0 0
        %1888 = vmatpush1.bf16.msra.mxu0 0
        %1889 = vmatprep.subr.bf16.mxu0 0
        %1890 = vmatpush1.bf16.msra.mxu0 0
        %1891 = vmatprep.subr.bf16.mxu0 0
        %1892 = vmatpush1.bf16.msra.mxu0 0
        %1893 = vmatprep.subr.bf16.mxu0 0
        %1894 = vmatpush1.bf16.msra.mxu0 0
        %1895 = vmatprep.subr.bf16.mxu0 0
        %1896 = vmatpush1.bf16.msra.mxu0 0
        %1897 = vmatprep.subr.bf16.mxu0 0
        %1898 = vmatpush1.bf16.msra.mxu0 0
        %1899 = vmatprep.subr.bf16.mxu0 0
        %1900 = vmatpush1.bf16.msra.mxu0 0
        %1901 = vmatprep.subr.bf16.mxu0 0
        %1902 = vmatpush1.bf16.msra.mxu0 0
        %1903 = vmatprep.subr.bf16.mxu0 0
        %1904 = vmatpush1.bf16.msra.mxu0 0
        %1905 = vmatprep.subr.bf16.mxu0 0
        %1906 = vmatpush1.bf16.msra.mxu0 0
        %1907 = vmatprep.subr.bf16.mxu0 0
        %1908 = vmatpush1.bf16.msra.mxu0 0
        %1909 = vmatprep.subr.bf16.mxu0 0
        %1910 = vmatpush1.bf16.msra.mxu0 0
        %1911 = vmatprep.mubr.bf16.mxu0 0
        %1912 = vmatmul.mubr.bf16.gmra.mrb[0].mxu0 %v1671
        %v1913 = vpop.f32.mrb[0].mxu0
        %v1914 = vadd.f32 %v1753, %v1913
        %v1915 = vpop.f32.mrb[0].mxu0
        %v1916 = vpop.f32.mrb[0].mxu0
        %v1917 = vadd.f32 %v1756, %v1916
        %v1918 = vpop.f32.mrb[0].mxu0
        %1919 = vmatprep.mubr.bf16.mxu0 0
        %1920 = vmatmul.mubr.bf16.gmra.mrb[0].mxu0 %v1674
        %v1921 = vpop.f32.mrb[0].mxu0
        %v1922 = vadd.f32 %v1761, %v1921
        %v1923 = vpop.f32.mrb[0].mxu0
        %v1924 = vpop.f32.mrb[0].mxu0
        %v1925 = vadd.f32 %v1764, %v1924
        %v1926 = vpop.f32.mrb[0].mxu0
        %1927 = vmatprep.mubr.bf16.mxu0 0
        %1928 = vmatmul.mubr.bf16.gmra.mrb[0].mxu0 %v1677
        %v1929 = vpop.f32.mrb[0].mxu0
        %v1930 = vadd.f32 %v1769, %v1929
        %v1931 = vpop.f32.mrb[0].mxu0
        %v1932 = vpop.f32.mrb[0].mxu0
        %v1933 = vadd.f32 %v1772, %v1932
        %v1934 = vpop.f32.mrb[0].mxu0
        %1935 = vmatprep.mubr.bf16.mxu0 0
        %1936 = vmatmul.mubr.bf16.gmra.mrb[0].mxu0 %v1680
        %v1937 = vpop.f32.mrb[0].mxu0
        %v1938 = vadd.f32 %v1777, %v1937
        %v1939 = vpop.f32.mrb[0].mxu0
        %v1940 = vpop.f32.mrb[0].mxu0
        %v1941 = vadd.f32 %v1780, %v1940
        %v1942 = vpop.f32.mrb[0].mxu0
        %1943 = vmatprep.mubr.bf16.mxu0 0
        %1944 = vmatmul.mubr.bf16.gmra.mrb[0].mxu0 %v1683
        %v1945 = vpop.f32.mrb[0].mxu0
        %v1946 = vadd.f32 %v1785, %v1945
        %v1947 = vpop.f32.mrb[0].mxu0
        %v1948 = vpop.f32.mrb[0].mxu0
        %v1949 = vadd.f32 %v1788, %v1948
        %v1950 = vpop.f32.mrb[0].mxu0
        %1951 = vmatprep.mubr.bf16.mxu0 0
        %1952 = vmatmul.mubr.bf16.gmra.mrb[0].mxu0 %v1686
        %v1953 = vpop.f32.mrb[0].mxu0
        %v1954 = vadd.f32 %v1793, %v1953
        %v1955 = vpop.f32.mrb[0].mxu0
        %v1956 = vpop.f32.mrb[0].mxu0
        %v1957 = vadd.f32 %v1796, %v1956
        %v1958 = vpop.f32.mrb[0].mxu0
        %1959 = vmatprep.mubr.bf16.mxu0 0
        %1960 = vmatmul.mubr.bf16.gmra.mrb[0].mxu0 %v1689
        %v1961 = vpop.f32.mrb[0].mxu0
        %v1962 = vadd.f32 %v1801, %v1961
        %v1963 = vpop.f32.mrb[0].mxu0
        %v1964 = vpop.f32.mrb[0].mxu0
        %v1965 = vadd.f32 %v1804, %v1964
        %v1966 = vpop.f32.mrb[0].mxu0
        %1967 = vmatprep.mubr.bf16.mxu0 0
        %1968 = vmatmul.mubr.bf16.gmra.mrb[0].mxu0 %v1692
        %v1969 = vpop.f32.mrb[0].mxu0
        %v1970 = vadd.f32 %v1809, %v1969
        %v1971 = vpop.f32.mrb[0].mxu0
        %v1972 = vpop.f32.mrb[0].mxu0
        %v1973 = vadd.f32 %v1812, %v1972
        %v1974 = vpop.f32.mrb[0].mxu0
        %1975 = vmatprep.mubr.bf16.mxu0 0
        %1976 = vmatmul.mubr.bf16.gmra.mrb[0].mxu0 %v1695
        %v1977 = vpop.f32.mrb[0].mxu0
        %v1978 = vadd.f32 %v1817, %v1977
        %v1979 = vpop.f32.mrb[0].mxu0
        %v1980 = vpop.f32.mrb[0].mxu0
        %v1981 = vadd.f32 %v1820, %v1980
        %v1982 = vpop.f32.mrb[0].mxu0
        %1983 = vmatprep.mubr.bf16.mxu0 0
        %1984 = vmatmul.mubr.bf16.gmra.mrb[0].mxu0 %v1698
        %v1985 = vpop.f32.mrb[0].mxu0
        %v1986 = vadd.f32 %v1825, %v1985
        %v1987 = vpop.f32.mrb[0].mxu0
        %v1988 = vpop.f32.mrb[0].mxu0
        %v1989 = vadd.f32 %v1828, %v1988
        %v1990 = vpop.f32.mrb[0].mxu0
        %1991 = vmatprep.mubr.bf16.mxu0 0
        %1992 = vmatmul.mubr.bf16.gmra.mrb[0].mxu0 %v1701
        %v1993 = vpop.f32.mrb[0].mxu0
        %v1994 = vadd.f32 %v1833, %v1993
        %v1995 = vpop.f32.mrb[0].mxu0
        %v1996 = vpop.f32.mrb[0].mxu0
        %v1997 = vadd.f32 %v1836, %v1996
        %v1998 = vpop.f32.mrb[0].mxu0
        %1999 = vmatprep.mubr.bf16.mxu0 0
        %2000 = vmatmul.mubr.bf16.gmra.mrb[0].mxu0 %v1704
        %v2001 = vpop.f32.mrb[0].mxu0
        %v2002 = vadd.f32 %v1841, %v2001
        %v2003 = vpop.f32.mrb[0].mxu0
        %v2004 = vpop.f32.mrb[0].mxu0
        %v2005 = vadd.f32 %v1844, %v2004
        %v2006 = vpop.f32.mrb[0].mxu0
        %2007 = vmatprep.mubr.bf16.mxu0 0
        %2008 = vmatmul.mubr.bf16.gmra.mrb[0].mxu0 %v1707
        %v2009 = vpop.f32.mrb[0].mxu0
        %v2010 = vadd.f32 %v1849, %v2009
        %v2011 = vpop.f32.mrb[0].mxu0
        %v2012 = vpop.f32.mrb[0].mxu0
        %v2013 = vadd.f32 %v1852, %v2012
        %v2014 = vpop.f32.mrb[0].mxu0
        %2015 = vmatprep.mubr.bf16.mxu0 0
        %2016 = vmatmul.mubr.bf16.gmra.mrb[0].mxu0 %v1710
        %v2017 = vpop.f32.mrb[0].mxu0
        %v2018 = vadd.f32 %v1857, %v2017
        %v2019 = vpop.f32.mrb[0].mxu0
        %v2020 = vpop.f32.mrb[0].mxu0
        %v2021 = vadd.f32 %v1860, %v2020
        %v2022 = vpop.f32.mrb[0].mxu0
        %2023 = vmatprep.mubr.bf16.mxu0 0
        %2024 = vmatmul.mubr.bf16.gmra.mrb[0].mxu0 %v1713
        %v2025 = vpop.f32.mrb[0].mxu0
        %v2026 = vadd.f32 %v1865, %v2025
        %v2027 = vpop.f32.mrb[0].mxu0
        %v2028 = vpop.f32.mrb[0].mxu0
        %v2029 = vadd.f32 %v1868, %v2028
        %v2030 = vpop.f32.mrb[0].mxu0
        %2031 = vmatprep.mubr.bf16.mxu0 0
        %2032 = vmatmul.mubr.bf16.gmra.mrb[0].mxu0 %v1716
        %v2033 = vpop.f32.mrb[0].mxu0
        %v2034 = vadd.f32 %v1873, %v2033
        %v2035 = vpop.f32.mrb[0].mxu0
        %v2036 = vpop.f32.mrb[0].mxu0
        %v2037 = vadd.f32 %v1876, %v2036
        %v2038 = vpop.f32.mrb[0].mxu0
        %2039 = vdwg.mxu0
        %v2040 = vmax.f32 %v1914, 0.0
        %v2041 = vmax.f32 %v1917, 0.0
        %v2042 = vmax.f32 %v1922, 0.0
        %v2043 = vmax.f32 %v1925, 0.0
        %v2044 = vmax.f32 %v1930, 0.0
        %v2045 = vmax.f32 %v1933, 0.0
        %v2046 = vmax.f32 %v1938, 0.0
        %v2047 = vmax.f32 %v1941, 0.0
        %v2048 = vmax.f32 %v1946, 0.0
        %v2049 = vmax.f32 %v1949, 0.0
        %v2050 = vmax.f32 %v1954, 0.0
        %v2051 = vmax.f32 %v1957, 0.0
        %v2052 = vmax.f32 %v1962, 0.0
        %v2053 = vmax.f32 %v1965, 0.0
        %v2054 = vmax.f32 %v1970, 0.0
        %v2055 = vmax.f32 %v1973, 0.0
        %v2056 = vmax.f32 %v1978, 0.0
        %v2057 = vmax.f32 %v1981, 0.0
        %v2058 = vmax.f32 %v1986, 0.0
        %v2059 = vmax.f32 %v1989, 0.0
        %v2060 = vmax.f32 %v1994, 0.0
        %v2061 = vmax.f32 %v1997, 0.0
        %v2062 = vmax.f32 %v2002, 0.0
        %v2063 = vmax.f32 %v2005, 0.0
        %v2064 = vmax.f32 %v2010, 0.0
        %v2065 = vmax.f32 %v2013, 0.0
        %v2066 = vmax.f32 %v2018, 0.0
        %v2067 = vmax.f32 %v2021, 0.0
        %v2068 = vmax.f32 %v2026, 0.0
        %v2069 = vmax.f32 %v2029, 0.0
        %v2070 = vmax.f32 %v2034, 0.0
        %v2071 = vmax.f32 %v2037, 0.0
        %v2072 = vld [vmem:[%s3] sm:$0xf]
        %v2073 = vld [vmem:[%s3 + $0x4] sm:$0xf]
        %v2074 = vld [vmem:[%s3 + $0x8] sm:$0xf]
        %v2075 = vld [vmem:[%s3 + $0xc] sm:$0xf]
        %v2076 = vld [vmem:[%s3 + $0x10] sm:$0xf]
        %v2077 = vld [vmem:[%s3 + $0x14] sm:$0xf]
        %v2078 = vld [vmem:[%s3 + $0x18] sm:$0xf]
        %v2079 = vld [vmem:[%s3 + $0x1c] sm:$0xf]
        %v2080 = vld [vmem:[%s3 + $0x20] sm:$0xf]
        %v2081 = vld [vmem:[%s3 + $0x24] sm:$0xf]
        %v2082 = vld [vmem:[%s3 + $0x28] sm:$0xf]
        %v2083 = vld [vmem:[%s3 + $0x2c] sm:$0xf]
        %v2084 = vld [vmem:[%s3 + $0x30] sm:$0xf]
        %v2085 = vld [vmem:[%s3 + $0x34] sm:$0xf]
        %v2086 = vld [vmem:[%s3 + $0x38] sm:$0xf]
        %v2087 = vld [vmem:[%s3 + $0x3c] sm:$0xf]
        %v2088 = vld [vmem:[%s3 + $0x40] sm:$0xf]
        %v2089 = vld [vmem:[%s3 + $0x44] sm:$0xf]
        %v2090 = vld [vmem:[%s3 + $0x48] sm:$0xf]
        %v2091 = vld [vmem:[%s3 + $0x4c] sm:$0xf]
        %v2092 = vld [vmem:[%s3 + $0x50] sm:$0xf]
        %v2093 = vld [vmem:[%s3 + $0x54] sm:$0xf]
        %v2094 = vld [vmem:[%s3 + $0x58] sm:$0xf]
        %v2095 = vld [vmem:[%s3 + $0x5c] sm:$0xf]
        %v2096 = vld [vmem:[%s3 + $0x60] sm:$0xf]
        %v2097 = vld [vmem:[%s3 + $0x64] sm:$0xf]
        %v2098 = vld [vmem:[%s3 + $0x68] sm:$0xf]
        %v2099 = vld [vmem:[%s3 + $0x6c] sm:$0xf]
        %v2100 = vld [vmem:[%s3 + $0x70] sm:$0xf]
        %v2101 = vld [vmem:[%s3 + $0x74] sm:$0xf]
        %v2102 = vld [vmem:[%s3 + $0x78] sm:$0xf]
        %v2103 = vld [vmem:[%s3 + $0x7c] sm:$0xf]
        %v2104 = vld [vmem:[%s3 + $0x80] sm:$0xf]
        %v2105 = vld [vmem:[%s3 + $0x84] sm:$0xf]
        %v2106 = vld [vmem:[%s3 + $0x88] sm:$0xf]
        %v2107 = vld [vmem:[%s3 + $0x8c] sm:$0xf]
        %v2108 = vld [vmem:[%s4] sm:$0x1]
        %2109 = vst.msk [vmem:[%s511 + $0x1] sm:$0xff] %vm386, %v2040
        %2110 = vst.msk [vmem:[%s511 + $0x9] sm:$0xff] %vm386, %v2041
        %2111 = vst.msk [vmem:[%s511 + $0x19] sm:$0xff] %vm386, %v2042
        %2112 = vst.msk [vmem:[%s511 + $0x21] sm:$0xff] %vm386, %v2043
        %2113 = vst.msk [vmem:[%s511 + $0x31] sm:$0xff] %vm386, %v2044
        %2114 = vst.msk [vmem:[%s511 + $0x39] sm:$0xff] %vm386, %v2045
        %2115 = vst.msk [vmem:[%s511 + $0x49] sm:$0xff] %vm386, %v2046
        %2116 = vst.msk [vmem:[%s511 + $0x51] sm:$0xff] %vm386, %v2047
        %2117 = vst.msk [vmem:[%s511 + $0x61] sm:$0xff] %vm386, %v2048
        %2118 = vst.msk [vmem:[%s511 + $0x69] sm:$0xff] %vm386, %v2049
        %2119 = vst.msk [vmem:[%s511 + $0x79] sm:$0xff] %vm386, %v2050
        %2120 = vst.msk [vmem:[%s511 + $0x81] sm:$0xff] %vm386, %v2051
        %2121 = vst.msk [vmem:[%s511 + $0x91] sm:$0xff] %vm386, %v2052
        %2122 = vst.msk [vmem:[%s511 + $0x99] sm:$0xff] %vm386, %v2053
        %2123 = vst.msk [vmem:[%s511 + $0xa9] sm:$0xff] %vm386, %v2054
        %2124 = vst.msk [vmem:[%s511 + $0xb1] sm:$0xff] %vm386, %v2055
        %2125 = vst.msk [vmem:[%s511 + $0xc1] sm:$0xff] %vm386, %v2056
        %2126 = vst.msk [vmem:[%s511 + $0xc9] sm:$0xff] %vm386, %v2057
        %2127 = vst.msk [vmem:[%s511 + $0xd9] sm:$0xff] %vm386, %v2058
        %2128 = vst.msk [vmem:[%s511 + $0xe1] sm:$0xff] %vm386, %v2059
        %2129 = vst.msk [vmem:[%s511 + $0xf1] sm:$0xff] %vm386, %v2060
        %2130 = vst.msk [vmem:[%s511 + $0xf9] sm:$0xff] %vm386, %v2061
        %2131 = vst.msk [vmem:[%s511 + $0x109] sm:$0xff] %vm386, %v2062
        %2132 = vst.msk [vmem:[%s511 + $0x111] sm:$0xff] %vm386, %v2063
        %2133 = vst.msk [vmem:[%s511 + $0x121] sm:$0xff] %vm386, %v2064
        %2134 = vst.msk [vmem:[%s511 + $0x129] sm:$0xff] %vm386, %v2065
        %2135 = vst.msk [vmem:[%s511 + $0x139] sm:$0xff] %vm386, %v2066
        %2136 = vst.msk [vmem:[%s511 + $0x141] sm:$0xff] %vm386, %v2067
        %2137 = vst.msk [vmem:[%s511 + $0x151] sm:$0xff] %vm386, %v2068
        %2138 = vst.msk [vmem:[%s511 + $0x159] sm:$0xff] %vm386, %v2069
        %2139 = vst.msk [vmem:[%s511 + $0x169] sm:$0xff] %vm386, %v2070
        %2140 = vst.msk [vmem:[%s511 + $0x171] sm:$0xff] %vm386, %v2071
        %v2141 = vld [vmem:[#allocation2] sm:$0xff]
        %v2142 = vld [vmem:[#allocation2 + $0x8] sm:$0xff]
        %v2143 = vld [vmem:[#allocation2 + $0x18] sm:$0xff]
        %v2144 = vld [vmem:[#allocation2 + $0x20] sm:$0xff]
        %v2145 = vld [vmem:[#allocation2 + $0x30] sm:$0xff]
        %v2146 = vld [vmem:[#allocation2 + $0x38] sm:$0xff]
        %v2147 = vld [vmem:[#allocation2 + $0x48] sm:$0xff]
        %v2148 = vld [vmem:[#allocation2 + $0x50] sm:$0xff]
        %v2149 = vld [vmem:[#allocation2 + $0x60] sm:$0xff]
        %v2150 = vld [vmem:[#allocation2 + $0x68] sm:$0xff]
        %v2151 = vld [vmem:[#allocation2 + $0x78] sm:$0xff]
        %v2152 = vld [vmem:[#allocation2 + $0x80] sm:$0xff]
        %v2153 = vld [vmem:[#allocation2 + $0x90] sm:$0xff]
        %v2154 = vld [vmem:[#allocation2 + $0x98] sm:$0xff]
        %v2155 = vld [vmem:[#allocation2 + $0xa8] sm:$0xff]
        %v2156 = vld [vmem:[#allocation2 + $0xb0] sm:$0xff]
        %v2157 = vld [vmem:[#allocation2 + $0xc0] sm:$0xff]
        %v2158 = vld [vmem:[#allocation2 + $0xc8] sm:$0xff]
        %v2159 = vld [vmem:[#allocation2 + $0xd8] sm:$0xff]
        %v2160 = vld [vmem:[#allocation2 + $0xe0] sm:$0xff]
        %v2161 = vld [vmem:[#allocation2 + $0xf0] sm:$0xff]
        %v2162 = vld [vmem:[#allocation2 + $0xf8] sm:$0xff]
        %v2163 = vld [vmem:[#allocation2 + $0x108] sm:$0xff]
        %v2164 = vld [vmem:[#allocation2 + $0x110] sm:$0xff]
        %v2165 = vld [vmem:[#allocation2 + $0x120] sm:$0xff]
        %v2166 = vld [vmem:[#allocation2 + $0x128] sm:$0xff]
        %v2167 = vld [vmem:[#allocation2 + $0x138] sm:$0xff]
        %v2168 = vld [vmem:[#allocation2 + $0x140] sm:$0xff]
        %v2169 = vld [vmem:[#allocation2 + $0x150] sm:$0xff]
        %v2170 = vld [vmem:[#allocation2 + $0x158] sm:$0xff]
        %v2171 = vld [vmem:[#allocation2 + $0x168] sm:$0xff]
        %v2172 = vld [vmem:[#allocation2 + $0x170] sm:$0xff]
        %v2173 = vpack.c.bf16 %v2142, %v2141
        %v2174 = vpack.c.bf16 %v2144, %v2143
        %v2175 = vpack.c.bf16 %v2146, %v2145
        %v2176 = vpack.c.bf16 %v2148, %v2147
        %v2177 = vpack.c.bf16 %v2150, %v2149
        %v2178 = vpack.c.bf16 %v2152, %v2151
        %v2179 = vpack.c.bf16 %v2154, %v2153
        %v2180 = vpack.c.bf16 %v2156, %v2155
        %v2181 = vpack.c.bf16 %v2158, %v2157
        %v2182 = vpack.c.bf16 %v2160, %v2159
        %v2183 = vpack.c.bf16 %v2162, %v2161
        %v2184 = vpack.c.bf16 %v2164, %v2163
        %v2185 = vpack.c.bf16 %v2166, %v2165
        %v2186 = vpack.c.bf16 %v2168, %v2167
        %v2187 = vpack.c.bf16 %v2170, %v2169
        %v2188 = vpack.c.bf16 %v2172, %v2171
        %2189 = vst.msk [vmem:[#allocation3] sm:$0xff] %vm386, %v2173
        %2190 = vst.msk [vmem:[#allocation3 + $0x18] sm:$0xff] %vm386, %v2174
        %2191 = vst.msk [vmem:[#allocation3 + $0x30] sm:$0xff] %vm386, %v2175
        %2192 = vst.msk [vmem:[#allocation3 + $0x48] sm:$0xff] %vm386, %v2176
        %2193 = vst.msk [vmem:[#allocation3 + $0x60] sm:$0xff] %vm386, %v2177
        %2194 = vst.msk [vmem:[#allocation3 + $0x78] sm:$0xff] %vm386, %v2178
        %2195 = vst.msk [vmem:[#allocation3 + $0x90] sm:$0xff] %vm386, %v2179
        %2196 = vst.msk [vmem:[#allocation3 + $0xa8] sm:$0xff] %vm386, %v2180
        %2197 = vst.msk [vmem:[#allocation3 + $0xc0] sm:$0xff] %vm386, %v2181
        %2198 = vst.msk [vmem:[#allocation3 + $0xd8] sm:$0xff] %vm386, %v2182
        %2199 = vst.msk [vmem:[#allocation3 + $0xf0] sm:$0xff] %vm386, %v2183
        %2200 = vst.msk [vmem:[#allocation3 + $0x108] sm:$0xff] %vm386, %v2184
        %2201 = vst.msk [vmem:[#allocation3 + $0x120] sm:$0xff] %vm386, %v2185
        %2202 = vst.msk [vmem:[#allocation3 + $0x138] sm:$0xff] %vm386, %v2186
        %2203 = vst.msk [vmem:[#allocation3 + $0x150] sm:$0xff] %vm386, %v2187
        %2204 = vst.msk [vmem:[#allocation3 + $0x168] sm:$0xff] %vm386, %v2188
        %v2205 = vld [vmem:[#allocation2 + $0x1] sm:$0xff]
        %v2206 = vld [vmem:[#allocation2 + $0x9] sm:$0xff]
        %v2207 = vld [vmem:[#allocation2 + $0x19] sm:$0xff]
        %v2208 = vld [vmem:[#allocation2 + $0x21] sm:$0xff]
        %v2209 = vld [vmem:[#allocation2 + $0x31] sm:$0xff]
        %v2210 = vld [vmem:[#allocation2 + $0x39] sm:$0xff]
        %v2211 = vld [vmem:[#allocation2 + $0x49] sm:$0xff]
        %v2212 = vld [vmem:[#allocation2 + $0x51] sm:$0xff]
        %v2213 = vld [vmem:[#allocation2 + $0x61] sm:$0xff]
        %v2214 = vld [vmem:[#allocation2 + $0x69] sm:$0xff]
        %v2215 = vld [vmem:[#allocation2 + $0x79] sm:$0xff]
        %v2216 = vld [vmem:[#allocation2 + $0x81] sm:$0xff]
        %v2217 = vld [vmem:[#allocation2 + $0x91] sm:$0xff]
        %v2218 = vld [vmem:[#allocation2 + $0x99] sm:$0xff]
        %v2219 = vld [vmem:[#allocation2 + $0xa9] sm:$0xff]
        %v2220 = vld [vmem:[#allocation2 + $0xb1] sm:$0xff]
        %v2221 = vld [vmem:[#allocation2 + $0xc1] sm:$0xff]
        %v2222 = vld [vmem:[#allocation2 + $0xc9] sm:$0xff]
        %v2223 = vld [vmem:[#allocation2 + $0xd9] sm:$0xff]
        %v2224 = vld [vmem:[#allocation2 + $0xe1] sm:$0xff]
        %v2225 = vld [vmem:[#allocation2 + $0xf1] sm:$0xff]
        %v2226 = vld [vmem:[#allocation2 + $0xf9] sm:$0xff]
        %v2227 = vld [vmem:[#allocation2 + $0x109] sm:$0xff]
        %v2228 = vld [vmem:[#allocation2 + $0x111] sm:$0xff]
        %v2229 = vld [vmem:[#allocation2 + $0x121] sm:$0xff]
        %v2230 = vld [vmem:[#allocation2 + $0x129] sm:$0xff]
        %v2231 = vld [vmem:[#allocation2 + $0x139] sm:$0xff]
        %v2232 = vld [vmem:[#allocation2 + $0x141] sm:$0xff]
        %v2233 = vld [vmem:[#allocation2 + $0x151] sm:$0xff]
        %v2234 = vld [vmem:[#allocation2 + $0x159] sm:$0xff]
        %v2235 = vld [vmem:[#allocation2 + $0x169] sm:$0xff]
        %v2236 = vld [vmem:[#allocation2 + $0x171] sm:$0xff]
        %v2237 = vpack.c.bf16 %v2206, %v2205
        %v2238 = vpack.c.bf16 %v2208, %v2207
        %v2239 = vpack.c.bf16 %v2210, %v2209
        %v2240 = vpack.c.bf16 %v2212, %v2211
        %v2241 = vpack.c.bf16 %v2214, %v2213
        %v2242 = vpack.c.bf16 %v2216, %v2215
        %v2243 = vpack.c.bf16 %v2218, %v2217
        %v2244 = vpack.c.bf16 %v2220, %v2219
        %v2245 = vpack.c.bf16 %v2222, %v2221
        %v2246 = vpack.c.bf16 %v2224, %v2223
        %v2247 = vpack.c.bf16 %v2226, %v2225
        %v2248 = vpack.c.bf16 %v2228, %v2227
        %v2249 = vpack.c.bf16 %v2230, %v2229
        %v2250 = vpack.c.bf16 %v2232, %v2231
        %v2251 = vpack.c.bf16 %v2234, %v2233
        %v2252 = vpack.c.bf16 %v2236, %v2235
        %2269 = vrot.lane.b32.xlu0 %v2237, 32
        %v2270 = vpop.permute.xlu0 %2269
        %2271 = vrot.lane.b32.xlu0 %v2238, 32
        %v2272 = vpop.permute.xlu0 %2271
        %2273 = vrot.lane.b32.xlu0 %v2239, 32
        %v2274 = vpop.permute.xlu0 %2273
        %2275 = vrot.lane.b32.xlu0 %v2240, 32
        %v2276 = vpop.permute.xlu0 %2275
        %2277 = vrot.lane.b32.xlu0 %v2241, 32
        %v2278 = vpop.permute.xlu0 %2277
        %2279 = vrot.lane.b32.xlu0 %v2242, 32
        %v2280 = vpop.permute.xlu0 %2279
        %2281 = vrot.lane.b32.xlu0 %v2243, 32
        %v2282 = vpop.permute.xlu0 %2281
        %2283 = vrot.lane.b32.xlu0 %v2244, 32
        %v2284 = vpop.permute.xlu0 %2283
        %2285 = vrot.lane.b32.xlu0 %v2245, 32
        %v2286 = vpop.permute.xlu0 %2285
        %2287 = vrot.lane.b32.xlu0 %v2246, 32
        %v2288 = vpop.permute.xlu0 %2287
        %2289 = vrot.lane.b32.xlu0 %v2247, 32
        %v2290 = vpop.permute.xlu0 %2289
        %2291 = vrot.lane.b32.xlu0 %v2248, 32
        %v2292 = vpop.permute.xlu0 %2291
        %2293 = vrot.lane.b32.xlu0 %v2249, 32
        %v2294 = vpop.permute.xlu0 %2293
        %2295 = vrot.lane.b32.xlu0 %v2250, 32
        %v2296 = vpop.permute.xlu0 %2295
        %2297 = vrot.lane.b32.xlu0 %v2251, 32
        %v2298 = vpop.permute.xlu0 %2297
        %2299 = vrot.lane.b32.xlu0 %v2252, 32
        %v2300 = vpop.permute.xlu0 %2299
        %2317 = vst.msk [vmem:[#allocation3] sm:$0xff] %vm720, %v2270
        %2318 = vst.msk [vmem:[#allocation3 + $0x18] sm:$0xff] %vm720, %v2272
        %2319 = vst.msk [vmem:[#allocation3 + $0x30] sm:$0xff] %vm720, %v2274
        %2320 = vst.msk [vmem:[#allocation3 + $0x48] sm:$0xff] %vm720, %v2276
        %2321 = vst.msk [vmem:[#allocation3 + $0x60] sm:$0xff] %vm720, %v2278
        %2322 = vst.msk [vmem:[#allocation3 + $0x78] sm:$0xff] %vm720, %v2280
        %2323 = vst.msk [vmem:[#allocation3 + $0x90] sm:$0xff] %vm720, %v2282
        %2324 = vst.msk [vmem:[#allocation3 + $0xa8] sm:$0xff] %vm720, %v2284
        %2325 = vst.msk [vmem:[#allocation3 + $0xc0] sm:$0xff] %vm720, %v2286
        %2326 = vst.msk [vmem:[#allocation3 + $0xd8] sm:$0xff] %vm720, %v2288
        %2327 = vst.msk [vmem:[#allocation3 + $0xf0] sm:$0xff] %vm720, %v2290
        %2328 = vst.msk [vmem:[#allocation3 + $0x108] sm:$0xff] %vm720, %v2292
        %2329 = vst.msk [vmem:[#allocation3 + $0x120] sm:$0xff] %vm720, %v2294
        %2330 = vst.msk [vmem:[#allocation3 + $0x138] sm:$0xff] %vm720, %v2296
        %2331 = vst.msk [vmem:[#allocation3 + $0x150] sm:$0xff] %vm720, %v2298
        %2332 = vst.msk [vmem:[#allocation3 + $0x168] sm:$0xff] %vm720, %v2300
        %v2333 = vld [vmem:[#allocation2 + $0x2] sm:$0xff]
        %v2334 = vld [vmem:[#allocation2 + $0xa] sm:$0xff]
        %v2335 = vld [vmem:[#allocation2 + $0x1a] sm:$0xff]
        %v2336 = vld [vmem:[#allocation2 + $0x22] sm:$0xff]
        %v2337 = vld [vmem:[#allocation2 + $0x32] sm:$0xff]
        %v2338 = vld [vmem:[#allocation2 + $0x3a] sm:$0xff]
        %v2339 = vld [vmem:[#allocation2 + $0x4a] sm:$0xff]
        %v2340 = vld [vmem:[#allocation2 + $0x52] sm:$0xff]
        %v2341 = vld [vmem:[#allocation2 + $0x62] sm:$0xff]
        %v2342 = vld [vmem:[#allocation2 + $0x6a] sm:$0xff]
        %v2343 = vld [vmem:[#allocation2 + $0x7a] sm:$0xff]
        %v2344 = vld [vmem:[#allocation2 + $0x82] sm:$0xff]
        %v2345 = vld [vmem:[#allocation2 + $0x92] sm:$0xff]
        %v2346 = vld [vmem:[#allocation2 + $0x9a] sm:$0xff]
        %v2347 = vld [vmem:[#allocation2 + $0xaa] sm:$0xff]
        %v2348 = vld [vmem:[#allocation2 + $0xb2] sm:$0xff]
        %v2349 = vld [vmem:[#allocation2 + $0xc2] sm:$0xff]
        %v2350 = vld [vmem:[#allocation2 + $0xca] sm:$0xff]
        %v2351 = vld [vmem:[#allocation2 + $0xda] sm:$0xff]
        %v2352 = vld [vmem:[#allocation2 + $0xe2] sm:$0xff]
        %v2353 = vld [vmem:[#allocation2 + $0xf2] sm:$0xff]
        %v2354 = vld [vmem:[#allocation2 + $0xfa] sm:$0xff]
        %v2355 = vld [vmem:[#allocation2 + $0x10a] sm:$0xff]
        %v2356 = vld [vmem:[#allocation2 + $0x112] sm:$0xff]
        %v2357 = vld [vmem:[#allocation2 + $0x122] sm:$0xff]
        %v2358 = vld [vmem:[#allocation2 + $0x12a] sm:$0xff]
        %v2359 = vld [vmem:[#allocation2 + $0x13a] sm:$0xff]
        %v2360 = vld [vmem:[#allocation2 + $0x142] sm:$0xff]
        %v2361 = vld [vmem:[#allocation2 + $0x152] sm:$0xff]
        %v2362 = vld [vmem:[#allocation2 + $0x15a] sm:$0xff]
        %v2363 = vld [vmem:[#allocation2 + $0x16a] sm:$0xff]
        %v2364 = vld [vmem:[#allocation2 + $0x172] sm:$0xff]
        %v2365 = vpack.c.bf16 %v2334, %v2333
        %v2366 = vpack.c.bf16 %v2336, %v2335
        %v2367 = vpack.c.bf16 %v2338, %v2337
        %v2368 = vpack.c.bf16 %v2340, %v2339
        %v2369 = vpack.c.bf16 %v2342, %v2341
        %v2370 = vpack.c.bf16 %v2344, %v2343
        %v2371 = vpack.c.bf16 %v2346, %v2345
        %v2372 = vpack.c.bf16 %v2348, %v2347
        %v2373 = vpack.c.bf16 %v2350, %v2349
        %v2374 = vpack.c.bf16 %v2352, %v2351
        %v2375 = vpack.c.bf16 %v2354, %v2353
        %v2376 = vpack.c.bf16 %v2356, %v2355
        %v2377 = vpack.c.bf16 %v2358, %v2357
        %v2378 = vpack.c.bf16 %v2360, %v2359
        %v2379 = vpack.c.bf16 %v2362, %v2361
        %v2380 = vpack.c.bf16 %v2364, %v2363
        %2397 = vrot.lane.b32.xlu0 %v2365, 64
        %v2398 = vpop.permute.xlu0 %2397
        %2399 = vrot.lane.b32.xlu0 %v2366, 64
        %v2400 = vpop.permute.xlu0 %2399
        %2401 = vrot.lane.b32.xlu0 %v2367, 64
        %v2402 = vpop.permute.xlu0 %2401
        %2403 = vrot.lane.b32.xlu0 %v2368, 64
        %v2404 = vpop.permute.xlu0 %2403
        %2405 = vrot.lane.b32.xlu0 %v2369, 64
        %v2406 = vpop.permute.xlu0 %2405
        %2407 = vrot.lane.b32.xlu0 %v2370, 64
        %v2408 = vpop.permute.xlu0 %2407
        %2409 = vrot.lane.b32.xlu0 %v2371, 64
        %v2410 = vpop.permute.xlu0 %2409
        %2411 = vrot.lane.b32.xlu0 %v2372, 64
        %v2412 = vpop.permute.xlu0 %2411
        %2413 = vrot.lane.b32.xlu0 %v2373, 64
        %v2414 = vpop.permute.xlu0 %2413
        %2415 = vrot.lane.b32.xlu0 %v2374, 64
        %v2416 = vpop.permute.xlu0 %2415
        %2417 = vrot.lane.b32.xlu0 %v2375, 64
        %v2418 = vpop.permute.xlu0 %2417
        %2419 = vrot.lane.b32.xlu0 %v2376, 64
        %v2420 = vpop.permute.xlu0 %2419
        %2421 = vrot.lane.b32.xlu0 %v2377, 64
        %v2422 = vpop.permute.xlu0 %2421
        %2423 = vrot.lane.b32.xlu0 %v2378, 64
        %v2424 = vpop.permute.xlu0 %2423
        %2425 = vrot.lane.b32.xlu0 %v2379, 64
        %v2426 = vpop.permute.xlu0 %2425
        %2427 = vrot.lane.b32.xlu0 %v2380, 64
        %v2428 = vpop.permute.xlu0 %2427
        %2445 = vst.msk [vmem:[#allocation3] sm:$0xff] %vm849, %v2398
        %2446 = vst.msk [vmem:[#allocation3 + $0x18] sm:$0xff] %vm849, %v2400
        %2447 = vst.msk [vmem:[#allocation3 + $0x30] sm:$0xff] %vm849, %v2402
        %2448 = vst.msk [vmem:[#allocation3 + $0x48] sm:$0xff] %vm849, %v2404
        %2449 = vst.msk [vmem:[#allocation3 + $0x60] sm:$0xff] %vm849, %v2406
        %2450 = vst.msk [vmem:[#allocation3 + $0x78] sm:$0xff] %vm849, %v2408
        %2451 = vst.msk [vmem:[#allocation3 + $0x90] sm:$0xff] %vm849, %v2410
        %2452 = vst.msk [vmem:[#allocation3 + $0xa8] sm:$0xff] %vm849, %v2412
        %2453 = vst.msk [vmem:[#allocation3 + $0xc0] sm:$0xff] %vm849, %v2414
        %2454 = vst.msk [vmem:[#allocation3 + $0xd8] sm:$0xff] %vm849, %v2416
        %2455 = vst.msk [vmem:[#allocation3 + $0xf0] sm:$0xff] %vm849, %v2418
        %2456 = vst.msk [vmem:[#allocation3 + $0x108] sm:$0xff] %vm849, %v2420
        %2457 = vst.msk [vmem:[#allocation3 + $0x120] sm:$0xff] %vm849, %v2422
        %2458 = vst.msk [vmem:[#allocation3 + $0x138] sm:$0xff] %vm849, %v2424
        %2459 = vst.msk [vmem:[#allocation3 + $0x150] sm:$0xff] %vm849, %v2426
        %2460 = vst.msk [vmem:[#allocation3 + $0x168] sm:$0xff] %vm849, %v2428
        %v2461 = vld [vmem:[%s511] sm:$0xff]
        %v2462 = vld [vmem:[%s511 + $0x8] sm:$0xff]
        %v2463 = vld [vmem:[%s511 + $0x18] sm:$0xff]
        %v2464 = vld [vmem:[%s511 + $0x20] sm:$0xff]
        %v2465 = vld [vmem:[%s511 + $0x30] sm:$0xff]
        %v2466 = vld [vmem:[%s511 + $0x38] sm:$0xff]
        %v2467 = vld [vmem:[%s511 + $0x48] sm:$0xff]
        %v2468 = vld [vmem:[%s511 + $0x50] sm:$0xff]
        %v2469 = vld [vmem:[%s511 + $0x60] sm:$0xff]
        %v2470 = vld [vmem:[%s511 + $0x68] sm:$0xff]
        %v2471 = vld [vmem:[%s511 + $0x78] sm:$0xff]
        %v2472 = vld [vmem:[%s511 + $0x80] sm:$0xff]
        %v2473 = vld [vmem:[%s511 + $0x90] sm:$0xff]
        %v2474 = vld [vmem:[%s511 + $0x98] sm:$0xff]
        %v2475 = vld [vmem:[%s511 + $0xa8] sm:$0xff]
        %v2476 = vld [vmem:[%s511 + $0xb0] sm:$0xff]
        %v2477 = vld [vmem:[%s511 + $0xc0] sm:$0xff]
        %v2478 = vld [vmem:[%s511 + $0xc8] sm:$0xff]
        %v2479 = vld [vmem:[%s511 + $0xd8] sm:$0xff]
        %v2480 = vld [vmem:[%s511 + $0xe0] sm:$0xff]
        %v2481 = vld [vmem:[%s511 + $0xf0] sm:$0xff]
        %v2482 = vld [vmem:[%s511 + $0xf8] sm:$0xff]
        %v2483 = vld [vmem:[%s511 + $0x108] sm:$0xff]
        %v2484 = vld [vmem:[%s511 + $0x110] sm:$0xff]
        %v2485 = vld [vmem:[%s511 + $0x120] sm:$0xff]
        %v2486 = vld [vmem:[%s511 + $0x128] sm:$0xff]
        %v2487 = vld [vmem:[%s511 + $0x138] sm:$0xff]
        %v2488 = vld [vmem:[%s511 + $0x140] sm:$0xff]
        %v2489 = vld [vmem:[%s511 + $0x150] sm:$0xff]
        %v2490 = vld [vmem:[%s511 + $0x158] sm:$0xff]
        %v2491 = vld [vmem:[%s511 + $0x168] sm:$0xff]
        %v2492 = vld [vmem:[%s511 + $0x170] sm:$0xff]
        %v2493 = vpack.c.bf16 %v2462, %v2461
        %v2494 = vpack.c.bf16 %v2464, %v2463
        %v2495 = vpack.c.bf16 %v2466, %v2465
        %v2496 = vpack.c.bf16 %v2468, %v2467
        %v2497 = vpack.c.bf16 %v2470, %v2469
        %v2498 = vpack.c.bf16 %v2472, %v2471
        %v2499 = vpack.c.bf16 %v2474, %v2473
        %v2500 = vpack.c.bf16 %v2476, %v2475
        %v2501 = vpack.c.bf16 %v2478, %v2477
        %v2502 = vpack.c.bf16 %v2480, %v2479
        %v2503 = vpack.c.bf16 %v2482, %v2481
        %v2504 = vpack.c.bf16 %v2484, %v2483
        %v2505 = vpack.c.bf16 %v2486, %v2485
        %v2506 = vpack.c.bf16 %v2488, %v2487
        %v2507 = vpack.c.bf16 %v2490, %v2489
        %v2508 = vpack.c.bf16 %v2492, %v2491
        %2525 = vrot.lane.b32.xlu0 %v2493, 96
        %v2526 = vpop.permute.xlu0 %2525
        %2527 = vrot.lane.b32.xlu0 %v2494, 96
        %v2528 = vpop.permute.xlu0 %2527
        %2529 = vrot.lane.b32.xlu0 %v2495, 96
        %v2530 = vpop.permute.xlu0 %2529
        %2531 = vrot.lane.b32.xlu0 %v2496, 96
        %v2532 = vpop.permute.xlu0 %2531
        %2533 = vrot.lane.b32.xlu0 %v2497, 96
        %v2534 = vpop.permute.xlu0 %2533
        %2535 = vrot.lane.b32.xlu0 %v2498, 96
        %v2536 = vpop.permute.xlu0 %2535
        %2537 = vrot.lane.b32.xlu0 %v2499, 96
        %v2538 = vpop.permute.xlu0 %2537
        %2539 = vrot.lane.b32.xlu0 %v2500, 96
        %v2540 = vpop.permute.xlu0 %2539
        %2541 = vrot.lane.b32.xlu0 %v2501, 96
        %v2542 = vpop.permute.xlu0 %2541
        %2543 = vrot.lane.b32.xlu0 %v2502, 96
        %v2544 = vpop.permute.xlu0 %2543
        %2545 = vrot.lane.b32.xlu0 %v2503, 96
        %v2546 = vpop.permute.xlu0 %2545
        %2547 = vrot.lane.b32.xlu0 %v2504, 96
        %v2548 = vpop.permute.xlu0 %2547
        %2549 = vrot.lane.b32.xlu0 %v2505, 96
        %v2550 = vpop.permute.xlu0 %2549
        %2551 = vrot.lane.b32.xlu0 %v2506, 96
        %v2552 = vpop.permute.xlu0 %2551
        %2553 = vrot.lane.b32.xlu0 %v2507, 96
        %v2554 = vpop.permute.xlu0 %2553
        %2555 = vrot.lane.b32.xlu0 %v2508, 96
        %v2556 = vpop.permute.xlu0 %2555
        %2573 = vst.msk [vmem:[#allocation3] sm:$0xff] %vm978, %v2526
        %2574 = vst.msk [vmem:[#allocation3 + $0x18] sm:$0xff] %vm978, %v2528
        %2575 = vst.msk [vmem:[#allocation3 + $0x30] sm:$0xff] %vm978, %v2530
        %2576 = vst.msk [vmem:[#allocation3 + $0x48] sm:$0xff] %vm978, %v2532
        %2577 = vst.msk [vmem:[#allocation3 + $0x60] sm:$0xff] %vm978, %v2534
        %2578 = vst.msk [vmem:[#allocation3 + $0x78] sm:$0xff] %vm978, %v2536
        %2579 = vst.msk [vmem:[#allocation3 + $0x90] sm:$0xff] %vm978, %v2538
        %2580 = vst.msk [vmem:[#allocation3 + $0xa8] sm:$0xff] %vm978, %v2540
        %2581 = vst.msk [vmem:[#allocation3 + $0xc0] sm:$0xff] %vm978, %v2542
        %2582 = vst.msk [vmem:[#allocation3 + $0xd8] sm:$0xff] %vm978, %v2544
        %2583 = vst.msk [vmem:[#allocation3 + $0xf0] sm:$0xff] %vm978, %v2546
        %2584 = vst.msk [vmem:[#allocation3 + $0x108] sm:$0xff] %vm978, %v2548
        %2585 = vst.msk [vmem:[#allocation3 + $0x120] sm:$0xff] %vm978, %v2550
        %2586 = vst.msk [vmem:[#allocation3 + $0x138] sm:$0xff] %vm978, %v2552
        %2587 = vst.msk [vmem:[#allocation3 + $0x150] sm:$0xff] %vm978, %v2554
        %2588 = vst.msk [vmem:[#allocation3 + $0x168] sm:$0xff] %vm978, %v2556
        %v2589 = vld [vmem:[%s511 + $0x1] sm:$0xff]
        %v2590 = vld [vmem:[%s511 + $0x9] sm:$0xff]
        %v2591 = vld [vmem:[%s511 + $0x19] sm:$0xff]
        %v2592 = vld [vmem:[%s511 + $0x21] sm:$0xff]
        %v2593 = vld [vmem:[%s511 + $0x31] sm:$0xff]
        %v2594 = vld [vmem:[%s511 + $0x39] sm:$0xff]
        %v2595 = vld [vmem:[%s511 + $0x49] sm:$0xff]
        %v2596 = vld [vmem:[%s511 + $0x51] sm:$0xff]
        %v2597 = vld [vmem:[%s511 + $0x61] sm:$0xff]
        %v2598 = vld [vmem:[%s511 + $0x69] sm:$0xff]
        %v2599 = vld [vmem:[%s511 + $0x79] sm:$0xff]
        %v2600 = vld [vmem:[%s511 + $0x81] sm:$0xff]
        %v2601 = vld [vmem:[%s511 + $0x91] sm:$0xff]
        %v2602 = vld [vmem:[%s511 + $0x99] sm:$0xff]
        %v2603 = vld [vmem:[%s511 + $0xa9] sm:$0xff]
        %v2604 = vld [vmem:[%s511 + $0xb1] sm:$0xff]
        %v2605 = vld [vmem:[%s511 + $0xc1] sm:$0xff]
        %v2606 = vld [vmem:[%s511 + $0xc9] sm:$0xff]
        %v2607 = vld [vmem:[%s511 + $0xd9] sm:$0xff]
        %v2608 = vld [vmem:[%s511 + $0xe1] sm:$0xff]
        %v2609 = vld [vmem:[%s511 + $0xf1] sm:$0xff]
        %v2610 = vld [vmem:[%s511 + $0xf9] sm:$0xff]
        %v2611 = vld [vmem:[%s511 + $0x109] sm:$0xff]
        %v2612 = vld [vmem:[%s511 + $0x111] sm:$0xff]
        %v2613 = vld [vmem:[%s511 + $0x121] sm:$0xff]
        %v2614 = vld [vmem:[%s511 + $0x129] sm:$0xff]
        %v2615 = vld [vmem:[%s511 + $0x139] sm:$0xff]
        %v2616 = vld [vmem:[%s511 + $0x141] sm:$0xff]
        %v2617 = vld [vmem:[%s511 + $0x151] sm:$0xff]
        %v2618 = vld [vmem:[%s511 + $0x159] sm:$0xff]
        %v2619 = vld [vmem:[%s511 + $0x169] sm:$0xff]
        %v2620 = vld [vmem:[%s511 + $0x171] sm:$0xff]
        %v2621 = vpack.c.bf16 %v2590, %v2589
        %v2622 = vpack.c.bf16 %v2592, %v2591
        %v2623 = vpack.c.bf16 %v2594, %v2593
        %v2624 = vpack.c.bf16 %v2596, %v2595
        %v2625 = vpack.c.bf16 %v2598, %v2597
        %v2626 = vpack.c.bf16 %v2600, %v2599
        %v2627 = vpack.c.bf16 %v2602, %v2601
        %v2628 = vpack.c.bf16 %v2604, %v2603
        %v2629 = vpack.c.bf16 %v2606, %v2605
        %v2630 = vpack.c.bf16 %v2608, %v2607
        %v2631 = vpack.c.bf16 %v2610, %v2609
        %v2632 = vpack.c.bf16 %v2612, %v2611
        %v2633 = vpack.c.bf16 %v2614, %v2613
        %v2634 = vpack.c.bf16 %v2616, %v2615
        %v2635 = vpack.c.bf16 %v2618, %v2617
        %v2636 = vpack.c.bf16 %v2620, %v2619
        %2637 = vst.msk [vmem:[#allocation3 + $0x8] sm:$0xff] %vm386, %v2621
        %2638 = vst.msk [vmem:[#allocation3 + $0x20] sm:$0xff] %vm386, %v2622
        %2639 = vst.msk [vmem:[#allocation3 + $0x38] sm:$0xff] %vm386, %v2623
        %2640 = vst.msk [vmem:[#allocation3 + $0x50] sm:$0xff] %vm386, %v2624
        %2641 = vst.msk [vmem:[#allocation3 + $0x68] sm:$0xff] %vm386, %v2625
        %2642 = vst.msk [vmem:[#allocation3 + $0x80] sm:$0xff] %vm386, %v2626
        %2643 = vst.msk [vmem:[#allocation3 + $0x98] sm:$0xff] %vm386, %v2627
        %2644 = vst.msk [vmem:[#allocation3 + $0xb0] sm:$0xff] %vm386, %v2628
        %2645 = vst.msk [vmem:[#allocation3 + $0xc8] sm:$0xff] %vm386, %v2629
        %2646 = vst.msk [vmem:[#allocation3 + $0xe0] sm:$0xff] %vm386, %v2630
        %2647 = vst.msk [vmem:[#allocation3 + $0xf8] sm:$0xff] %vm386, %v2631
        %2648 = vst.msk [vmem:[#allocation3 + $0x110] sm:$0xff] %vm386, %v2632
        %2649 = vst.msk [vmem:[#allocation3 + $0x128] sm:$0xff] %vm386, %v2633
        %2650 = vst.msk [vmem:[#allocation3 + $0x140] sm:$0xff] %vm386, %v2634
        %2651 = vst.msk [vmem:[#allocation3 + $0x158] sm:$0xff] %vm386, %v2635
        %2652 = vst.msk [vmem:[#allocation3 + $0x170] sm:$0xff] %vm386, %v2636
        %v2653 = vld [vmem:[%s511 + $0x2] sm:$0xff]
        %v2654 = vld [vmem:[%s511 + $0xa] sm:$0xff]
        %v2655 = vld [vmem:[%s511 + $0x1a] sm:$0xff]
        %v2656 = vld [vmem:[%s511 + $0x22] sm:$0xff]
        %v2657 = vld [vmem:[%s511 + $0x32] sm:$0xff]
        %v2658 = vld [vmem:[%s511 + $0x3a] sm:$0xff]
        %v2659 = vld [vmem:[%s511 + $0x4a] sm:$0xff]
        %v2660 = vld [vmem:[%s511 + $0x52] sm:$0xff]
        %v2661 = vld [vmem:[%s511 + $0x62] sm:$0xff]
        %v2662 = vld [vmem:[%s511 + $0x6a] sm:$0xff]
        %v2663 = vld [vmem:[%s511 + $0x7a] sm:$0xff]
        %v2664 = vld [vmem:[%s511 + $0x82] sm:$0xff]
        %v2665 = vld [vmem:[%s511 + $0x92] sm:$0xff]
        %v2666 = vld [vmem:[%s511 + $0x9a] sm:$0xff]
        %v2667 = vld [vmem:[%s511 + $0xaa] sm:$0xff]
        %v2668 = vld [vmem:[%s511 + $0xb2] sm:$0xff]
        %v2669 = vld [vmem:[%s511 + $0xc2] sm:$0xff]
        %v2670 = vld [vmem:[%s511 + $0xca] sm:$0xff]
        %v2671 = vld [vmem:[%s511 + $0xda] sm:$0xff]
        %v2672 = vld [vmem:[%s511 + $0xe2] sm:$0xff]
        %v2673 = vld [vmem:[%s511 + $0xf2] sm:$0xff]
        %v2674 = vld [vmem:[%s511 + $0xfa] sm:$0xff]
        %v2675 = vld [vmem:[%s511 + $0x10a] sm:$0xff]
        %v2676 = vld [vmem:[%s511 + $0x112] sm:$0xff]
        %v2677 = vld [vmem:[%s511 + $0x122] sm:$0xff]
        %v2678 = vld [vmem:[%s511 + $0x12a] sm:$0xff]
        %v2679 = vld [vmem:[%s511 + $0x13a] sm:$0xff]
        %v2680 = vld [vmem:[%s511 + $0x142] sm:$0xff]
        %v2681 = vld [vmem:[%s511 + $0x152] sm:$0xff]
        %v2682 = vld [vmem:[%s511 + $0x15a] sm:$0xff]
        %v2683 = vld [vmem:[%s511 + $0x16a] sm:$0xff]
        %v2684 = vld [vmem:[%s511 + $0x172] sm:$0xff]
        %v2685 = vpack.c.bf16 %v2654, %v2653
        %v2686 = vpack.c.bf16 %v2656, %v2655
        %v2687 = vpack.c.bf16 %v2658, %v2657
        %v2688 = vpack.c.bf16 %v2660, %v2659
        %v2689 = vpack.c.bf16 %v2662, %v2661
        %v2690 = vpack.c.bf16 %v2664, %v2663
        %v2691 = vpack.c.bf16 %v2666, %v2665
        %v2692 = vpack.c.bf16 %v2668, %v2667
        %v2693 = vpack.c.bf16 %v2670, %v2669
        %v2694 = vpack.c.bf16 %v2672, %v2671
        %v2695 = vpack.c.bf16 %v2674, %v2673
        %v2696 = vpack.c.bf16 %v2676, %v2675
        %v2697 = vpack.c.bf16 %v2678, %v2677
        %v2698 = vpack.c.bf16 %v2680, %v2679
        %v2699 = vpack.c.bf16 %v2682, %v2681
        %v2700 = vpack.c.bf16 %v2684, %v2683
        %2717 = vrot.lane.b32.xlu0 %v2685, 32
        %v2718 = vpop.permute.xlu0 %2717
        %2719 = vrot.lane.b32.xlu0 %v2686, 32
        %v2720 = vpop.permute.xlu0 %2719
        %2721 = vrot.lane.b32.xlu0 %v2687, 32
        %v2722 = vpop.permute.xlu0 %2721
        %2723 = vrot.lane.b32.xlu0 %v2688, 32
        %v2724 = vpop.permute.xlu0 %2723
        %2725 = vrot.lane.b32.xlu0 %v2689, 32
        %v2726 = vpop.permute.xlu0 %2725
        %2727 = vrot.lane.b32.xlu0 %v2690, 32
        %v2728 = vpop.permute.xlu0 %2727
        %2729 = vrot.lane.b32.xlu0 %v2691, 32
        %v2730 = vpop.permute.xlu0 %2729
        %2731 = vrot.lane.b32.xlu0 %v2692, 32
        %v2732 = vpop.permute.xlu0 %2731
        %2733 = vrot.lane.b32.xlu0 %v2693, 32
        %v2734 = vpop.permute.xlu0 %2733
        %2735 = vrot.lane.b32.xlu0 %v2694, 32
        %v2736 = vpop.permute.xlu0 %2735
        %2737 = vrot.lane.b32.xlu0 %v2695, 32
        %v2738 = vpop.permute.xlu0 %2737
        %2739 = vrot.lane.b32.xlu0 %v2696, 32
        %v2740 = vpop.permute.xlu0 %2739
        %2741 = vrot.lane.b32.xlu0 %v2697, 32
        %v2742 = vpop.permute.xlu0 %2741
        %2743 = vrot.lane.b32.xlu0 %v2698, 32
        %v2744 = vpop.permute.xlu0 %2743
        %2745 = vrot.lane.b32.xlu0 %v2699, 32
        %v2746 = vpop.permute.xlu0 %2745
        %2747 = vrot.lane.b32.xlu0 %v2700, 32
        %v2748 = vpop.permute.xlu0 %2747
        %2765 = vst.msk [vmem:[#allocation3 + $0x8] sm:$0xff] %vm720, %v2718
        %2766 = vst.msk [vmem:[#allocation3 + $0x20] sm:$0xff] %vm720, %v2720
        %2767 = vst.msk [vmem:[#allocation3 + $0x38] sm:$0xff] %vm720, %v2722
        %2768 = vst.msk [vmem:[#allocation3 + $0x50] sm:$0xff] %vm720, %v2724
        %2769 = vst.msk [vmem:[#allocation3 + $0x68] sm:$0xff] %vm720, %v2726
        %2770 = vst.msk [vmem:[#allocation3 + $0x80] sm:$0xff] %vm720, %v2728
        %2771 = vst.msk [vmem:[#allocation3 + $0x98] sm:$0xff] %vm720, %v2730
        %2772 = vst.msk [vmem:[#allocation3 + $0xb0] sm:$0xff] %vm720, %v2732
        %2773 = vst.msk [vmem:[#allocation3 + $0xc8] sm:$0xff] %vm720, %v2734
        %2774 = vst.msk [vmem:[#allocation3 + $0xe0] sm:$0xff] %vm720, %v2736
        %2775 = vst.msk [vmem:[#allocation3 + $0xf8] sm:$0xff] %vm720, %v2738
        %2776 = vst.msk [vmem:[#allocation3 + $0x110] sm:$0xff] %vm720, %v2740
        %2777 = vst.msk [vmem:[#allocation3 + $0x128] sm:$0xff] %vm720, %v2742
        %2778 = vst.msk [vmem:[#allocation3 + $0x140] sm:$0xff] %vm720, %v2744
        %2779 = vst.msk [vmem:[#allocation3 + $0x158] sm:$0xff] %vm720, %v2746
        %2780 = vst.msk [vmem:[#allocation3 + $0x170] sm:$0xff] %vm720, %v2748
        %v2781 = vld [vmem:[%s1187] sm:$0xff]
        %v2782 = vld [vmem:[%s1187 + $0x8] sm:$0xff]
        %v2783 = vld [vmem:[%s1187 + $0x18] sm:$0xff]
        %v2784 = vld [vmem:[%s1187 + $0x20] sm:$0xff]
        %v2785 = vld [vmem:[%s1187 + $0x30] sm:$0xff]
        %v2786 = vld [vmem:[%s1187 + $0x38] sm:$0xff]
        %v2787 = vld [vmem:[%s1187 + $0x48] sm:$0xff]
        %v2788 = vld [vmem:[%s1187 + $0x50] sm:$0xff]
        %v2789 = vld [vmem:[%s1187 + $0x60] sm:$0xff]
        %v2790 = vld [vmem:[%s1187 + $0x68] sm:$0xff]
        %v2791 = vld [vmem:[%s1187 + $0x78] sm:$0xff]
        %v2792 = vld [vmem:[%s1187 + $0x80] sm:$0xff]
        %v2793 = vld [vmem:[%s1187 + $0x90] sm:$0xff]
        %v2794 = vld [vmem:[%s1187 + $0x98] sm:$0xff]
        %v2795 = vld [vmem:[%s1187 + $0xa8] sm:$0xff]
        %v2796 = vld [vmem:[%s1187 + $0xb0] sm:$0xff]
        %v2797 = vld [vmem:[%s1187 + $0xc0] sm:$0xff]
        %v2798 = vld [vmem:[%s1187 + $0xc8] sm:$0xff]
        %v2799 = vld [vmem:[%s1187 + $0xd8] sm:$0xff]
        %v2800 = vld [vmem:[%s1187 + $0xe0] sm:$0xff]
        %v2801 = vld [vmem:[%s1187 + $0xf0] sm:$0xff]
        %v2802 = vld [vmem:[%s1187 + $0xf8] sm:$0xff]
        %v2803 = vld [vmem:[%s1187 + $0x108] sm:$0xff]
        %v2804 = vld [vmem:[%s1187 + $0x110] sm:$0xff]
        %v2805 = vld [vmem:[%s1187 + $0x120] sm:$0xff]
        %v2806 = vld [vmem:[%s1187 + $0x128] sm:$0xff]
        %v2807 = vld [vmem:[%s1187 + $0x138] sm:$0xff]
        %v2808 = vld [vmem:[%s1187 + $0x140] sm:$0xff]
        %v2809 = vld [vmem:[%s1187 + $0x150] sm:$0xff]
        %v2810 = vld [vmem:[%s1187 + $0x158] sm:$0xff]
        %v2811 = vld [vmem:[%s1187 + $0x168] sm:$0xff]
        %v2812 = vld [vmem:[%s1187 + $0x170] sm:$0xff]
        %v2813 = vpack.c.bf16 %v2782, %v2781
        %v2814 = vpack.c.bf16 %v2784, %v2783
        %v2815 = vpack.c.bf16 %v2786, %v2785
        %v2816 = vpack.c.bf16 %v2788, %v2787
        %v2817 = vpack.c.bf16 %v2790, %v2789
        %v2818 = vpack.c.bf16 %v2792, %v2791
        %v2819 = vpack.c.bf16 %v2794, %v2793
        %v2820 = vpack.c.bf16 %v2796, %v2795
        %v2821 = vpack.c.bf16 %v2798, %v2797
        %v2822 = vpack.c.bf16 %v2800, %v2799
        %v2823 = vpack.c.bf16 %v2802, %v2801
        %v2824 = vpack.c.bf16 %v2804, %v2803
        %v2825 = vpack.c.bf16 %v2806, %v2805
        %v2826 = vpack.c.bf16 %v2808, %v2807
        %v2827 = vpack.c.bf16 %v2810, %v2809
        %v2828 = vpack.c.bf16 %v2812, %v2811
        %2845 = vrot.lane.b32.xlu0 %v2813, 64
        %v2846 = vpop.permute.xlu0 %2845
        %2847 = vrot.lane.b32.xlu0 %v2814, 64
        %v2848 = vpop.permute.xlu0 %2847
        %2849 = vrot.lane.b32.xlu0 %v2815, 64
        %v2850 = vpop.permute.xlu0 %2849
        %2851 = vrot.lane.b32.xlu0 %v2816, 64
        %v2852 = vpop.permute.xlu0 %2851
        %2853 = vrot.lane.b32.xlu0 %v2817, 64
        %v2854 = vpop.permute.xlu0 %2853
        %2855 = vrot.lane.b32.xlu0 %v2818, 64
        %v2856 = vpop.permute.xlu0 %2855
        %2857 = vrot.lane.b32.xlu0 %v2819, 64
        %v2858 = vpop.permute.xlu0 %2857
        %2859 = vrot.lane.b32.xlu0 %v2820, 64
        %v2860 = vpop.permute.xlu0 %2859
        %2861 = vrot.lane.b32.xlu0 %v2821, 64
        %v2862 = vpop.permute.xlu0 %2861
        %2863 = vrot.lane.b32.xlu0 %v2822, 64
        %v2864 = vpop.permute.xlu0 %2863
        %2865 = vrot.lane.b32.xlu0 %v2823, 64
        %v2866 = vpop.permute.xlu0 %2865
        %2867 = vrot.lane.b32.xlu0 %v2824, 64
        %v2868 = vpop.permute.xlu0 %2867
        %2869 = vrot.lane.b32.xlu0 %v2825, 64
        %v2870 = vpop.permute.xlu0 %2869
        %2871 = vrot.lane.b32.xlu0 %v2826, 64
        %v2872 = vpop.permute.xlu0 %2871
        %2873 = vrot.lane.b32.xlu0 %v2827, 64
        %v2874 = vpop.permute.xlu0 %2873
        %2875 = vrot.lane.b32.xlu0 %v2828, 64
        %v2876 = vpop.permute.xlu0 %2875
        %2893 = vst.msk [vmem:[#allocation3 + $0x8] sm:$0xff] %vm849, %v2846
        %2894 = vst.msk [vmem:[#allocation3 + $0x20] sm:$0xff] %vm849, %v2848
        %2895 = vst.msk [vmem:[#allocation3 + $0x38] sm:$0xff] %vm849, %v2850
        %2896 = vst.msk [vmem:[#allocation3 + $0x50] sm:$0xff] %vm849, %v2852
        %2897 = vst.msk [vmem:[#allocation3 + $0x68] sm:$0xff] %vm849, %v2854
        %2898 = vst.msk [vmem:[#allocation3 + $0x80] sm:$0xff] %vm849, %v2856
        %2899 = vst.msk [vmem:[#allocation3 + $0x98] sm:$0xff] %vm849, %v2858
        %2900 = vst.msk [vmem:[#allocation3 + $0xb0] sm:$0xff] %vm849, %v2860
        %2901 = vst.msk [vmem:[#allocation3 + $0xc8] sm:$0xff] %vm849, %v2862
        %2902 = vst.msk [vmem:[#allocation3 + $0xe0] sm:$0xff] %vm849, %v2864
        %2903 = vst.msk [vmem:[#allocation3 + $0xf8] sm:$0xff] %vm849, %v2866
        %2904 = vst.msk [vmem:[#allocation3 + $0x110] sm:$0xff] %vm849, %v2868
        %2905 = vst.msk [vmem:[#allocation3 + $0x128] sm:$0xff] %vm849, %v2870
        %2906 = vst.msk [vmem:[#allocation3 + $0x140] sm:$0xff] %vm849, %v2872
        %2907 = vst.msk [vmem:[#allocation3 + $0x158] sm:$0xff] %vm849, %v2874
        %2908 = vst.msk [vmem:[#allocation3 + $0x170] sm:$0xff] %vm849, %v2876
        %v2909 = vld [vmem:[%s1187 + $0x1] sm:$0xff]
        %v2910 = vld [vmem:[%s1187 + $0x9] sm:$0xff]
        %v2911 = vld [vmem:[%s1187 + $0x19] sm:$0xff]
        %v2912 = vld [vmem:[%s1187 + $0x21] sm:$0xff]
        %v2913 = vld [vmem:[%s1187 + $0x31] sm:$0xff]
        %v2914 = vld [vmem:[%s1187 + $0x39] sm:$0xff]
        %v2915 = vld [vmem:[%s1187 + $0x49] sm:$0xff]
        %v2916 = vld [vmem:[%s1187 + $0x51] sm:$0xff]
        %v2917 = vld [vmem:[%s1187 + $0x61] sm:$0xff]
        %v2918 = vld [vmem:[%s1187 + $0x69] sm:$0xff]
        %v2919 = vld [vmem:[%s1187 + $0x79] sm:$0xff]
        %v2920 = vld [vmem:[%s1187 + $0x81] sm:$0xff]
        %v2921 = vld [vmem:[%s1187 + $0x91] sm:$0xff]
        %v2922 = vld [vmem:[%s1187 + $0x99] sm:$0xff]
        %v2923 = vld [vmem:[%s1187 + $0xa9] sm:$0xff]
        %v2924 = vld [vmem:[%s1187 + $0xb1] sm:$0xff]
        %v2925 = vld [vmem:[%s1187 + $0xc1] sm:$0xff]
        %v2926 = vld [vmem:[%s1187 + $0xc9] sm:$0xff]
        %v2927 = vld [vmem:[%s1187 + $0xd9] sm:$0xff]
        %v2928 = vld [vmem:[%s1187 + $0xe1] sm:$0xff]
        %v2929 = vld [vmem:[%s1187 + $0xf1] sm:$0xff]
        %v2930 = vld [vmem:[%s1187 + $0xf9] sm:$0xff]
        %v2931 = vld [vmem:[%s1187 + $0x109] sm:$0xff]
        %v2932 = vld [vmem:[%s1187 + $0x111] sm:$0xff]
        %v2933 = vld [vmem:[%s1187 + $0x121] sm:$0xff]
        %v2934 = vld [vmem:[%s1187 + $0x129] sm:$0xff]
        %v2935 = vld [vmem:[%s1187 + $0x139] sm:$0xff]
        %v2936 = vld [vmem:[%s1187 + $0x141] sm:$0xff]
        %v2937 = vld [vmem:[%s1187 + $0x151] sm:$0xff]
        %v2938 = vld [vmem:[%s1187 + $0x159] sm:$0xff]
        %v2939 = vld [vmem:[%s1187 + $0x169] sm:$0xff]
        %v2940 = vld [vmem:[%s1187 + $0x171] sm:$0xff]
        %v2941 = vpack.c.bf16 %v2910, %v2909
        %v2942 = vpack.c.bf16 %v2912, %v2911
        %v2943 = vpack.c.bf16 %v2914, %v2913
        %v2944 = vpack.c.bf16 %v2916, %v2915
        %v2945 = vpack.c.bf16 %v2918, %v2917
        %v2946 = vpack.c.bf16 %v2920, %v2919
        %v2947 = vpack.c.bf16 %v2922, %v2921
        %v2948 = vpack.c.bf16 %v2924, %v2923
        %v2949 = vpack.c.bf16 %v2926, %v2925
        %v2950 = vpack.c.bf16 %v2928, %v2927
        %v2951 = vpack.c.bf16 %v2930, %v2929
        %v2952 = vpack.c.bf16 %v2932, %v2931
        %v2953 = vpack.c.bf16 %v2934, %v2933
        %v2954 = vpack.c.bf16 %v2936, %v2935
        %v2955 = vpack.c.bf16 %v2938, %v2937
        %v2956 = vpack.c.bf16 %v2940, %v2939
        %2973 = vrot.lane.b32.xlu0 %v2941, 96
        %v2974 = vpop.permute.xlu0 %2973
        %2975 = vrot.lane.b32.xlu0 %v2942, 96
        %v2976 = vpop.permute.xlu0 %2975
        %2977 = vrot.lane.b32.xlu0 %v2943, 96
        %v2978 = vpop.permute.xlu0 %2977
        %2979 = vrot.lane.b32.xlu0 %v2944, 96
        %v2980 = vpop.permute.xlu0 %2979
        %2981 = vrot.lane.b32.xlu0 %v2945, 96
        %v2982 = vpop.permute.xlu0 %2981
        %2983 = vrot.lane.b32.xlu0 %v2946, 96
        %v2984 = vpop.permute.xlu0 %2983
        %2985 = vrot.lane.b32.xlu0 %v2947, 96
        %v2986 = vpop.permute.xlu0 %2985
        %2987 = vrot.lane.b32.xlu0 %v2948, 96
        %v2988 = vpop.permute.xlu0 %2987
        %2989 = vrot.lane.b32.xlu0 %v2949, 96
        %v2990 = vpop.permute.xlu0 %2989
        %2991 = vrot.lane.b32.xlu0 %v2950, 96
        %v2992 = vpop.permute.xlu0 %2991
        %2993 = vrot.lane.b32.xlu0 %v2951, 96
        %v2994 = vpop.permute.xlu0 %2993
        %2995 = vrot.lane.b32.xlu0 %v2952, 96
        %v2996 = vpop.permute.xlu0 %2995
        %2997 = vrot.lane.b32.xlu0 %v2953, 96
        %v2998 = vpop.permute.xlu0 %2997
        %2999 = vrot.lane.b32.xlu0 %v2954, 96
        %v3000 = vpop.permute.xlu0 %2999
        %3001 = vrot.lane.b32.xlu0 %v2955, 96
        %v3002 = vpop.permute.xlu0 %3001
        %3003 = vrot.lane.b32.xlu0 %v2956, 96
        %v3004 = vpop.permute.xlu0 %3003
        %3021 = vst.msk [vmem:[#allocation3 + $0x8] sm:$0xff] %vm978, %v2974
        %3022 = vst.msk [vmem:[#allocation3 + $0x20] sm:$0xff] %vm978, %v2976
        %3023 = vst.msk [vmem:[#allocation3 + $0x38] sm:$0xff] %vm978, %v2978
        %3024 = vst.msk [vmem:[#allocation3 + $0x50] sm:$0xff] %vm978, %v2980
        %3025 = vst.msk [vmem:[#allocation3 + $0x68] sm:$0xff] %vm978, %v2982
        %3026 = vst.msk [vmem:[#allocation3 + $0x80] sm:$0xff] %vm978, %v2984
        %3027 = vst.msk [vmem:[#allocation3 + $0x98] sm:$0xff] %vm978, %v2986
        %3028 = vst.msk [vmem:[#allocation3 + $0xb0] sm:$0xff] %vm978, %v2988
        %3029 = vst.msk [vmem:[#allocation3 + $0xc8] sm:$0xff] %vm978, %v2990
        %3030 = vst.msk [vmem:[#allocation3 + $0xe0] sm:$0xff] %vm978, %v2992
        %3031 = vst.msk [vmem:[#allocation3 + $0xf8] sm:$0xff] %vm978, %v2994
        %3032 = vst.msk [vmem:[#allocation3 + $0x110] sm:$0xff] %vm978, %v2996
        %3033 = vst.msk [vmem:[#allocation3 + $0x128] sm:$0xff] %vm978, %v2998
        %3034 = vst.msk [vmem:[#allocation3 + $0x140] sm:$0xff] %vm978, %v3000
        %3035 = vst.msk [vmem:[#allocation3 + $0x158] sm:$0xff] %vm978, %v3002
        %3036 = vst.msk [vmem:[#allocation3 + $0x170] sm:$0xff] %vm978, %v3004
        %v3037 = vld [vmem:[%s1187 + $0x2] sm:$0xff]
        %v3038 = vld [vmem:[%s1187 + $0xa] sm:$0xff]
        %v3039 = vld [vmem:[%s1187 + $0x1a] sm:$0xff]
        %v3040 = vld [vmem:[%s1187 + $0x22] sm:$0xff]
        %v3041 = vld [vmem:[%s1187 + $0x32] sm:$0xff]
        %v3042 = vld [vmem:[%s1187 + $0x3a] sm:$0xff]
        %v3043 = vld [vmem:[%s1187 + $0x4a] sm:$0xff]
        %v3044 = vld [vmem:[%s1187 + $0x52] sm:$0xff]
        %v3045 = vld [vmem:[%s1187 + $0x62] sm:$0xff]
        %v3046 = vld [vmem:[%s1187 + $0x6a] sm:$0xff]
        %v3047 = vld [vmem:[%s1187 + $0x7a] sm:$0xff]
        %v3048 = vld [vmem:[%s1187 + $0x82] sm:$0xff]
        %v3049 = vld [vmem:[%s1187 + $0x92] sm:$0xff]
        %v3050 = vld [vmem:[%s1187 + $0x9a] sm:$0xff]
        %v3051 = vld [vmem:[%s1187 + $0xaa] sm:$0xff]
        %v3052 = vld [vmem:[%s1187 + $0xb2] sm:$0xff]
        %v3053 = vld [vmem:[%s1187 + $0xc2] sm:$0xff]
        %v3054 = vld [vmem:[%s1187 + $0xca] sm:$0xff]
        %v3055 = vld [vmem:[%s1187 + $0xda] sm:$0xff]
        %v3056 = vld [vmem:[%s1187 + $0xe2] sm:$0xff]
        %v3057 = vld [vmem:[%s1187 + $0xf2] sm:$0xff]
        %v3058 = vld [vmem:[%s1187 + $0xfa] sm:$0xff]
        %v3059 = vld [vmem:[%s1187 + $0x10a] sm:$0xff]
        %v3060 = vld [vmem:[%s1187 + $0x112] sm:$0xff]
        %v3061 = vld [vmem:[%s1187 + $0x122] sm:$0xff]
        %v3062 = vld [vmem:[%s1187 + $0x12a] sm:$0xff]
        %v3063 = vld [vmem:[%s1187 + $0x13a] sm:$0xff]
        %v3064 = vld [vmem:[%s1187 + $0x142] sm:$0xff]
        %v3065 = vld [vmem:[%s1187 + $0x152] sm:$0xff]
        %v3066 = vld [vmem:[%s1187 + $0x15a] sm:$0xff]
        %v3067 = vld [vmem:[%s1187 + $0x16a] sm:$0xff]
        %v3068 = vld [vmem:[%s1187 + $0x172] sm:$0xff]
        %v3069 = vpack.c.bf16 %v3038, %v3037
        %v3070 = vpack.c.bf16 %v3040, %v3039
        %v3071 = vpack.c.bf16 %v3042, %v3041
        %v3072 = vpack.c.bf16 %v3044, %v3043
        %v3073 = vpack.c.bf16 %v3046, %v3045
        %v3074 = vpack.c.bf16 %v3048, %v3047
        %v3075 = vpack.c.bf16 %v3050, %v3049
        %v3076 = vpack.c.bf16 %v3052, %v3051
        %v3077 = vpack.c.bf16 %v3054, %v3053
        %v3078 = vpack.c.bf16 %v3056, %v3055
        %v3079 = vpack.c.bf16 %v3058, %v3057
        %v3080 = vpack.c.bf16 %v3060, %v3059
        %v3081 = vpack.c.bf16 %v3062, %v3061
        %v3082 = vpack.c.bf16 %v3064, %v3063
        %v3083 = vpack.c.bf16 %v3066, %v3065
        %v3084 = vpack.c.bf16 %v3068, %v3067
        %3085 = vst.msk [vmem:[#allocation3 + $0x10] sm:$0xff] %vm386, %v3069
        %3086 = vst.msk [vmem:[#allocation3 + $0x28] sm:$0xff] %vm386, %v3070
        %3087 = vst.msk [vmem:[#allocation3 + $0x40] sm:$0xff] %vm386, %v3071
        %3088 = vst.msk [vmem:[#allocation3 + $0x58] sm:$0xff] %vm386, %v3072
        %3089 = vst.msk [vmem:[#allocation3 + $0x70] sm:$0xff] %vm386, %v3073
        %3090 = vst.msk [vmem:[#allocation3 + $0x88] sm:$0xff] %vm386, %v3074
        %3091 = vst.msk [vmem:[#allocation3 + $0xa0] sm:$0xff] %vm386, %v3075
        %3092 = vst.msk [vmem:[#allocation3 + $0xb8] sm:$0xff] %vm386, %v3076
        %3093 = vst.msk [vmem:[#allocation3 + $0xd0] sm:$0xff] %vm386, %v3077
        %3094 = vst.msk [vmem:[#allocation3 + $0xe8] sm:$0xff] %vm386, %v3078
        %3095 = vst.msk [vmem:[#allocation3 + $0x100] sm:$0xff] %vm386, %v3079
        %3096 = vst.msk [vmem:[#allocation3 + $0x118] sm:$0xff] %vm386, %v3080
        %3097 = vst.msk [vmem:[#allocation3 + $0x130] sm:$0xff] %vm386, %v3081
        %3098 = vst.msk [vmem:[#allocation3 + $0x148] sm:$0xff] %vm386, %v3082
        %3099 = vst.msk [vmem:[#allocation3 + $0x160] sm:$0xff] %vm386, %v3083
        %3100 = vst.msk [vmem:[#allocation3 + $0x178] sm:$0xff] %vm386, %v3084
        %v3101 = vld [vmem:[#allocation3] sm:$0xff]
        %v3102 = vld [vmem:[#allocation3 + $0x8] sm:$0xff]
        %v3103 = vld [vmem:[#allocation3 + $0x10] sm:$0xff]
        %v3104 = vld [vmem:[#allocation3 + $0x18] sm:$0xff]
        %v3105 = vld [vmem:[#allocation3 + $0x20] sm:$0xff]
        %v3106 = vld [vmem:[#allocation3 + $0x28] sm:$0xff]
        %v3107 = vld [vmem:[#allocation3 + $0x30] sm:$0xff]
        %v3108 = vld [vmem:[#allocation3 + $0x38] sm:$0xff]
        %v3109 = vld [vmem:[#allocation3 + $0x40] sm:$0xff]
        %v3110 = vld [vmem:[#allocation3 + $0x48] sm:$0xff]
        %v3111 = vld [vmem:[#allocation3 + $0x50] sm:$0xff]
        %v3112 = vld [vmem:[#allocation3 + $0x58] sm:$0xff]
        %v3113 = vld [vmem:[#allocation3 + $0x60] sm:$0xff]
        %v3114 = vld [vmem:[#allocation3 + $0x68] sm:$0xff]
        %v3115 = vld [vmem:[#allocation3 + $0x70] sm:$0xff]
        %v3116 = vld [vmem:[#allocation3 + $0x78] sm:$0xff]
        %v3117 = vld [vmem:[#allocation3 + $0x80] sm:$0xff]
        %v3118 = vld [vmem:[#allocation3 + $0x88] sm:$0xff]
        %v3119 = vld [vmem:[#allocation3 + $0x90] sm:$0xff]
        %v3120 = vld [vmem:[#allocation3 + $0x98] sm:$0xff]
        %v3121 = vld [vmem:[#allocation3 + $0xa0] sm:$0xff]
        %v3122 = vld [vmem:[#allocation3 + $0xa8] sm:$0xff]
        %v3123 = vld [vmem:[#allocation3 + $0xb0] sm:$0xff]
        %v3124 = vld [vmem:[#allocation3 + $0xb8] sm:$0xff]
        %v3125 = vld [vmem:[#allocation3 + $0xc0] sm:$0xff]
        %v3126 = vld [vmem:[#allocation3 + $0xc8] sm:$0xff]
        %v3127 = vld [vmem:[#allocation3 + $0xd0] sm:$0xff]
        %v3128 = vld [vmem:[#allocation3 + $0xd8] sm:$0xff]
        %v3129 = vld [vmem:[#allocation3 + $0xe0] sm:$0xff]
        %v3130 = vld [vmem:[#allocation3 + $0xe8] sm:$0xff]
        %v3131 = vld [vmem:[#allocation3 + $0xf0] sm:$0xff]
        %v3132 = vld [vmem:[#allocation3 + $0xf8] sm:$0xff]
        %v3133 = vld [vmem:[#allocation3 + $0x100] sm:$0xff]
        %v3134 = vld [vmem:[#allocation3 + $0x108] sm:$0xff]
        %v3135 = vld [vmem:[#allocation3 + $0x110] sm:$0xff]
        %v3136 = vld [vmem:[#allocation3 + $0x118] sm:$0xff]
        %v3137 = vld [vmem:[#allocation3 + $0x120] sm:$0xff]
        %v3138 = vld [vmem:[#allocation3 + $0x128] sm:$0xff]
        %v3139 = vld [vmem:[#allocation3 + $0x130] sm:$0xff]
        %v3140 = vld [vmem:[#allocation3 + $0x138] sm:$0xff]
        %v3141 = vld [vmem:[#allocation3 + $0x140] sm:$0xff]
        %v3142 = vld [vmem:[#allocation3 + $0x148] sm:$0xff]
        %v3143 = vld [vmem:[#allocation3 + $0x150] sm:$0xff]
        %v3144 = vld [vmem:[#allocation3 + $0x158] sm:$0xff]
        %v3145 = vld [vmem:[#allocation3 + $0x160] sm:$0xff]
        %v3146 = vld [vmem:[#allocation3 + $0x168] sm:$0xff]
        %v3147 = vld [vmem:[#allocation3 + $0x170] sm:$0xff]
        %v3148 = vld [vmem:[#allocation3 + $0x178] sm:$0xff]
        %v3150 = vlaneseq
        %v3151 = vshrl.u32 %v3150, 7
        %v3152 = vsub.s32 0, %v3151
        %v3153 = vrot.slane %v2108, %v3152
        %v3191 = vunpack.c.l.b16 %v2072
        %v3192 = vunpack.c.l.b16 %v2073
        %v3193 = vunpack.c.l.b16 %v2074
        %v3194 = vunpack.c.l.b16 %v2075
        %v3195 = vunpack.c.l.b16 %v2076
        %v3196 = vunpack.c.l.b16 %v2077
        %v3197 = vunpack.c.l.b16 %v2078
        %v3198 = vunpack.c.l.b16 %v2079
        %v3199 = vunpack.c.l.b16 %v2080
        %v3200 = vunpack.c.l.b16 %v2081
        %v3201 = vunpack.c.l.b16 %v2082
        %v3202 = vunpack.c.l.b16 %v2083
        %v3203 = vunpack.c.l.b16 %v2084
        %v3204 = vunpack.c.l.b16 %v2085
        %v3205 = vunpack.c.l.b16 %v2086
        %v3206 = vunpack.c.l.b16 %v2087
        %v3207 = vunpack.c.l.b16 %v2088
        %v3208 = vunpack.c.l.b16 %v2089
        %v3209 = vunpack.c.l.b16 %v2090
        %v3210 = vunpack.c.l.b16 %v2091
        %v3211 = vunpack.c.l.b16 %v2092
        %v3212 = vunpack.c.l.b16 %v2093
        %v3213 = vunpack.c.l.b16 %v2094
        %v3214 = vunpack.c.l.b16 %v2095
        %v3215 = vunpack.c.l.b16 %v2096
        %v3216 = vunpack.c.l.b16 %v2097
        %v3217 = vunpack.c.l.b16 %v2098
        %v3218 = vunpack.c.l.b16 %v2099
        %v3219 = vunpack.c.l.b16 %v2100
        %v3220 = vunpack.c.l.b16 %v2101
        %v3221 = vunpack.c.l.b16 %v2102
        %v3222 = vunpack.c.l.b16 %v2103
        %v3223 = vunpack.c.l.b16 %v2104
        %v3224 = vunpack.c.l.b16 %v2105
        %v3225 = vunpack.c.l.b16 %v2106
        %v3226 = vunpack.c.l.b16 %v2107
        %v3227 = vpack.c.b16 %v3192, %v3191
        %v3228 = vpack.c.b16 %v3194, %v3193
        %v3229 = vpack.c.b16 %v3196, %v3195
        %v3230 = vpack.c.b16 %v3198, %v3197
        %v3231 = vpack.c.b16 %v3200, %v3199
        %v3232 = vpack.c.b16 %v3202, %v3201
        %v3233 = vpack.c.b16 %v3204, %v3203
        %v3234 = vpack.c.b16 %v3206, %v3205
        %v3235 = vpack.c.b16 %v3208, %v3207
        %v3236 = vpack.c.b16 %v3210, %v3209
        %v3237 = vpack.c.b16 %v3212, %v3211
        %v3238 = vpack.c.b16 %v3214, %v3213
        %v3239 = vpack.c.b16 %v3216, %v3215
        %v3240 = vpack.c.b16 %v3218, %v3217
        %v3241 = vpack.c.b16 %v3220, %v3219
        %v3242 = vpack.c.b16 %v3222, %v3221
        %v3243 = vpack.c.b16 %v3224, %v3223
        %v3244 = vpack.c.b16 %v3226, %v3225
        %v3264 = vsel %vm386, %v3103, 0
        %v3267 = vsel %vm386, %v3106, 0
        %v3270 = vsel %vm386, %v3109, 0
        %v3273 = vsel %vm386, %v3112, 0
        %v3276 = vsel %vm386, %v3115, 0
        %v3279 = vsel %vm386, %v3118, 0
        %v3282 = vsel %vm386, %v3121, 0
        %v3285 = vsel %vm386, %v3124, 0
        %v3288 = vsel %vm386, %v3127, 0
        %v3291 = vsel %vm386, %v3130, 0
        %v3294 = vsel %vm386, %v3133, 0
        %v3297 = vsel %vm386, %v3136, 0
        %v3300 = vsel %vm386, %v3139, 0
        %v3303 = vsel %vm386, %v3142, 0
        %v3306 = vsel %vm386, %v3145, 0
        %v3309 = vsel %vm386, %v3148, 0
        %3311 = vmatprep.subr.bf16.mxu0 0
        %3312 = vmatpush1.bf16.msra.mxu0 %v3227
        %3313 = vmatprep.subr.bf16.mxu0 0
        %3314 = vmatpush1.bf16.msra.mxu0 %v3228
        %3315 = vmatprep.subr.bf16.mxu0 0
        %3316 = vmatpush1.bf16.msra.mxu0 %v3229
        %3317 = vmatprep.subr.bf16.mxu0 0
        %3318 = vmatpush1.bf16.msra.mxu0 %v3230
        %3319 = vmatprep.subr.bf16.mxu0 0
        %3320 = vmatpush1.bf16.msra.mxu0 %v3231
        %3321 = vmatprep.subr.bf16.mxu0 0
        %3322 = vmatpush1.bf16.msra.mxu0 %v3232
        %3323 = vmatprep.subr.bf16.mxu0 0
        %3324 = vmatpush1.bf16.msra.mxu0 %v3233
        %3325 = vmatprep.subr.bf16.mxu0 0
        %3326 = vmatpush1.bf16.msra.mxu0 %v3234
        %3327 = vmatprep.subr.bf16.mxu0 0
        %3328 = vmatpush1.bf16.msra.mxu0 %v3235
        %3329 = vmatprep.subr.bf16.mxu0 0
        %3330 = vmatpush1.bf16.msra.mxu0 %v3236
        %3331 = vmatprep.subr.bf16.mxu0 0
        %3332 = vmatpush1.bf16.msra.mxu0 %v3237
        %3333 = vmatprep.subr.bf16.mxu0 0
        %3334 = vmatpush1.bf16.msra.mxu0 %v3238
        %3335 = vmatprep.subr.bf16.mxu0 0
        %3336 = vmatpush1.bf16.msra.mxu0 %v3239
        %3337 = vmatprep.subr.bf16.mxu0 0
        %3338 = vmatpush1.bf16.msra.mxu0 %v3240
        %3339 = vmatprep.subr.bf16.mxu0 0
        %3340 = vmatpush1.bf16.msra.mxu0 %v3241
        %3341 = vmatprep.subr.bf16.mxu0 0
        %3342 = vmatpush1.bf16.msra.mxu0 %v3242
        %3343 = vmatprep.mubr.bf16.mxu0 %v3102
        %3344 = vmatmul.mubr.bf16.gmra.mrb[0].mxu0 %v3101
        %v3345 = vpop.f32.mrb[0].mxu0
        %v3346 = vadd.f32 %v3153, %v3345
        %v3347 = vpop.f32.mrb[0].mxu0
        %v3348 = vpop.f32.mrb[0].mxu0
        %v3349 = vadd.f32 %v3153, %v3348
        %v3350 = vpop.f32.mrb[0].mxu0
        %3351 = vmatprep.mubr.bf16.mxu0 %v3105
        %3352 = vmatmul.mubr.bf16.gmra.mrb[0].mxu0 %v3104
        %v3353 = vpop.f32.mrb[0].mxu0
        %v3354 = vadd.f32 %v3153, %v3353
        %v3355 = vpop.f32.mrb[0].mxu0
        %v3356 = vpop.f32.mrb[0].mxu0
        %v3357 = vadd.f32 %v3153, %v3356
        %v3358 = vpop.f32.mrb[0].mxu0
        %3359 = vmatprep.mubr.bf16.mxu0 %v3108
        %3360 = vmatmul.mubr.bf16.gmra.mrb[0].mxu0 %v3107
        %v3361 = vpop.f32.mrb[0].mxu0
        %v3362 = vadd.f32 %v3153, %v3361
        %v3363 = vpop.f32.mrb[0].mxu0
        %v3364 = vpop.f32.mrb[0].mxu0
        %v3365 = vadd.f32 %v3153, %v3364
        %v3366 = vpop.f32.mrb[0].mxu0
        %3367 = vmatprep.mubr.bf16.mxu0 %v3111
        %3368 = vmatmul.mubr.bf16.gmra.mrb[0].mxu0 %v3110
        %v3369 = vpop.f32.mrb[0].mxu0
        %v3370 = vadd.f32 %v3153, %v3369
        %v3371 = vpop.f32.mrb[0].mxu0
        %v3372 = vpop.f32.mrb[0].mxu0
        %v3373 = vadd.f32 %v3153, %v3372
        %v3374 = vpop.f32.mrb[0].mxu0
        %3375 = vmatprep.mubr.bf16.mxu0 %v3114
        %3376 = vmatmul.mubr.bf16.gmra.mrb[0].mxu0 %v3113
        %v3377 = vpop.f32.mrb[0].mxu0
        %v3378 = vadd.f32 %v3153, %v3377
        %v3379 = vpop.f32.mrb[0].mxu0
        %v3380 = vpop.f32.mrb[0].mxu0
        %v3381 = vadd.f32 %v3153, %v3380
        %v3382 = vpop.f32.mrb[0].mxu0
        %3383 = vmatprep.mubr.bf16.mxu0 %v3117
        %3384 = vmatmul.mubr.bf16.gmra.mrb[0].mxu0 %v3116
        %v3385 = vpop.f32.mrb[0].mxu0
        %v3386 = vadd.f32 %v3153, %v3385
        %v3387 = vpop.f32.mrb[0].mxu0
        %v3388 = vpop.f32.mrb[0].mxu0
        %v3389 = vadd.f32 %v3153, %v3388
        %v3390 = vpop.f32.mrb[0].mxu0
        %3391 = vmatprep.mubr.bf16.mxu0 %v3120
        %3392 = vmatmul.mubr.bf16.gmra.mrb[0].mxu0 %v3119
        %v3393 = vpop.f32.mrb[0].mxu0
        %v3394 = vadd.f32 %v3153, %v3393
        %v3395 = vpop.f32.mrb[0].mxu0
        %v3396 = vpop.f32.mrb[0].mxu0
        %v3397 = vadd.f32 %v3153, %v3396
        %v3398 = vpop.f32.mrb[0].mxu0
        %3399 = vmatprep.mubr.bf16.mxu0 %v3123
        %3400 = vmatmul.mubr.bf16.gmra.mrb[0].mxu0 %v3122
        %v3401 = vpop.f32.mrb[0].mxu0
        %v3402 = vadd.f32 %v3153, %v3401
        %v3403 = vpop.f32.mrb[0].mxu0
        %v3404 = vpop.f32.mrb[0].mxu0
        %v3405 = vadd.f32 %v3153, %v3404
        %v3406 = vpop.f32.mrb[0].mxu0
        %3407 = vmatprep.mubr.bf16.mxu0 %v3126
        %3408 = vmatmul.mubr.bf16.gmra.mrb[0].mxu0 %v3125
        %v3409 = vpop.f32.mrb[0].mxu0
        %v3410 = vadd.f32 %v3153, %v3409
        %v3411 = vpop.f32.mrb[0].mxu0
        %v3412 = vpop.f32.mrb[0].mxu0
        %v3413 = vadd.f32 %v3153, %v3412
        %v3414 = vpop.f32.mrb[0].mxu0
        %3415 = vmatprep.mubr.bf16.mxu0 %v3129
        %3416 = vmatmul.mubr.bf16.gmra.mrb[0].mxu0 %v3128
        %v3417 = vpop.f32.mrb[0].mxu0
        %v3418 = vadd.f32 %v3153, %v3417
        %v3419 = vpop.f32.mrb[0].mxu0
        %v3420 = vpop.f32.mrb[0].mxu0
        %v3421 = vadd.f32 %v3153, %v3420
        %v3422 = vpop.f32.mrb[0].mxu0
        %3423 = vmatprep.mubr.bf16.mxu0 %v3132
        %3424 = vmatmul.mubr.bf16.gmra.mrb[0].mxu0 %v3131
        %v3425 = vpop.f32.mrb[0].mxu0
        %v3426 = vadd.f32 %v3153, %v3425
        %v3427 = vpop.f32.mrb[0].mxu0
        %v3428 = vpop.f32.mrb[0].mxu0
        %v3429 = vadd.f32 %v3153, %v3428
        %v3430 = vpop.f32.mrb[0].mxu0
        %3431 = vmatprep.mubr.bf16.mxu0 %v3135
        %3432 = vmatmul.mubr.bf16.gmra.mrb[0].mxu0 %v3134
        %v3433 = vpop.f32.mrb[0].mxu0
        %v3434 = vadd.f32 %v3153, %v3433
        %v3435 = vpop.f32.mrb[0].mxu0
        %v3436 = vpop.f32.mrb[0].mxu0
        %v3437 = vadd.f32 %v3153, %v3436
        %v3438 = vpop.f32.mrb[0].mxu0
        %3439 = vmatprep.mubr.bf16.mxu0 %v3138
        %3440 = vmatmul.mubr.bf16.gmra.mrb[0].mxu0 %v3137
        %v3441 = vpop.f32.mrb[0].mxu0
        %v3442 = vadd.f32 %v3153, %v3441
        %v3443 = vpop.f32.mrb[0].mxu0
        %v3444 = vpop.f32.mrb[0].mxu0
        %v3445 = vadd.f32 %v3153, %v3444
        %v3446 = vpop.f32.mrb[0].mxu0
        %3447 = vmatprep.mubr.bf16.mxu0 %v3141
        %3448 = vmatmul.mubr.bf16.gmra.mrb[0].mxu0 %v3140
        %v3449 = vpop.f32.mrb[0].mxu0
        %v3450 = vadd.f32 %v3153, %v3449
        %v3451 = vpop.f32.mrb[0].mxu0
        %v3452 = vpop.f32.mrb[0].mxu0
        %v3453 = vadd.f32 %v3153, %v3452
        %v3454 = vpop.f32.mrb[0].mxu0
        %3455 = vmatprep.mubr.bf16.mxu0 %v3144
        %3456 = vmatmul.mubr.bf16.gmra.mrb[0].mxu0 %v3143
        %v3457 = vpop.f32.mrb[0].mxu0
        %v3458 = vadd.f32 %v3153, %v3457
        %v3459 = vpop.f32.mrb[0].mxu0
        %v3460 = vpop.f32.mrb[0].mxu0
        %v3461 = vadd.f32 %v3153, %v3460
        %v3462 = vpop.f32.mrb[0].mxu0
        %3463 = vmatprep.mubr.bf16.mxu0 %v3147
        %3464 = vmatmul.mubr.bf16.gmra.mrb[0].mxu0 %v3146
        %v3465 = vpop.f32.mrb[0].mxu0
        %v3466 = vadd.f32 %v3153, %v3465
        %v3467 = vpop.f32.mrb[0].mxu0
        %v3468 = vpop.f32.mrb[0].mxu0
        %v3469 = vadd.f32 %v3153, %v3468
        %v3470 = vpop.f32.mrb[0].mxu0
        %3471 = vdwg.mxu0
        %3472 = vmatprep.subr.bf16.mxu0 0
        %3473 = vmatpush1.bf16.msra.mxu0 %v3243
        %3474 = vmatprep.subr.bf16.mxu0 0
        %3475 = vmatpush1.bf16.msra.mxu0 %v3244
        %3476 = vmatprep.subr.bf16.mxu0 0
        %3477 = vmatpush1.bf16.msra.mxu0 0
        %3478 = vmatprep.subr.bf16.mxu0 0
        %3479 = vmatpush1.bf16.msra.mxu0 0
        %3480 = vmatprep.subr.bf16.mxu0 0
        %3481 = vmatpush1.bf16.msra.mxu0 0
        %3482 = vmatprep.subr.bf16.mxu0 0
        %3483 = vmatpush1.bf16.msra.mxu0 0
        %3484 = vmatprep.subr.bf16.mxu0 0
        %3485 = vmatpush1.bf16.msra.mxu0 0
        %3486 = vmatprep.subr.bf16.mxu0 0
        %3487 = vmatpush1.bf16.msra.mxu0 0
        %3488 = vmatprep.subr.bf16.mxu0 0
        %3489 = vmatpush1.bf16.msra.mxu0 0
        %3490 = vmatprep.subr.bf16.mxu0 0
        %3491 = vmatpush1.bf16.msra.mxu0 0
        %3492 = vmatprep.subr.bf16.mxu0 0
        %3493 = vmatpush1.bf16.msra.mxu0 0
        %3494 = vmatprep.subr.bf16.mxu0 0
        %3495 = vmatpush1.bf16.msra.mxu0 0
        %3496 = vmatprep.subr.bf16.mxu0 0
        %3497 = vmatpush1.bf16.msra.mxu0 0
        %3498 = vmatprep.subr.bf16.mxu0 0
        %3499 = vmatpush1.bf16.msra.mxu0 0
        %3500 = vmatprep.subr.bf16.mxu0 0
        %3501 = vmatpush1.bf16.msra.mxu0 0
        %3502 = vmatprep.subr.bf16.mxu0 0
        %3503 = vmatpush1.bf16.msra.mxu0 0
        %3504 = vmatprep.mubr.bf16.mxu0 0
        %3505 = vmatmul.mubr.bf16.gmra.mrb[0].mxu0 %v3264
        %v3506 = vpop.f32.mrb[0].mxu0
        %v3507 = vadd.f32 %v3346, %v3506
        %v3508 = vpop.f32.mrb[0].mxu0
        %v3509 = vpop.f32.mrb[0].mxu0
        %v3510 = vadd.f32 %v3349, %v3509
        %v3511 = vpop.f32.mrb[0].mxu0
        %3512 = vmatprep.mubr.bf16.mxu0 0
        %3513 = vmatmul.mubr.bf16.gmra.mrb[0].mxu0 %v3267
        %v3514 = vpop.f32.mrb[0].mxu0
        %v3515 = vadd.f32 %v3354, %v3514
        %v3516 = vpop.f32.mrb[0].mxu0
        %v3517 = vpop.f32.mrb[0].mxu0
        %v3518 = vadd.f32 %v3357, %v3517
        %v3519 = vpop.f32.mrb[0].mxu0
        %3520 = vmatprep.mubr.bf16.mxu0 0
        %3521 = vmatmul.mubr.bf16.gmra.mrb[0].mxu0 %v3270
        %v3522 = vpop.f32.mrb[0].mxu0
        %v3523 = vadd.f32 %v3362, %v3522
        %v3524 = vpop.f32.mrb[0].mxu0
        %v3525 = vpop.f32.mrb[0].mxu0
        %v3526 = vadd.f32 %v3365, %v3525
        %v3527 = vpop.f32.mrb[0].mxu0
        %3528 = vmatprep.mubr.bf16.mxu0 0
        %3529 = vmatmul.mubr.bf16.gmra.mrb[0].mxu0 %v3273
        %v3530 = vpop.f32.mrb[0].mxu0
        %v3531 = vadd.f32 %v3370, %v3530
        %v3532 = vpop.f32.mrb[0].mxu0
        %v3533 = vpop.f32.mrb[0].mxu0
        %v3534 = vadd.f32 %v3373, %v3533
        %v3535 = vpop.f32.mrb[0].mxu0
        %3536 = vmatprep.mubr.bf16.mxu0 0
        %3537 = vmatmul.mubr.bf16.gmra.mrb[0].mxu0 %v3276
        %v3538 = vpop.f32.mrb[0].mxu0
        %v3539 = vadd.f32 %v3378, %v3538
        %v3540 = vpop.f32.mrb[0].mxu0
        %v3541 = vpop.f32.mrb[0].mxu0
        %v3542 = vadd.f32 %v3381, %v3541
        %v3543 = vpop.f32.mrb[0].mxu0
        %3544 = vmatprep.mubr.bf16.mxu0 0
        %3545 = vmatmul.mubr.bf16.gmra.mrb[0].mxu0 %v3279
        %v3546 = vpop.f32.mrb[0].mxu0
        %v3547 = vadd.f32 %v3386, %v3546
        %v3548 = vpop.f32.mrb[0].mxu0
        %v3549 = vpop.f32.mrb[0].mxu0
        %v3550 = vadd.f32 %v3389, %v3549
        %v3551 = vpop.f32.mrb[0].mxu0
        %3552 = vmatprep.mubr.bf16.mxu0 0
        %3553 = vmatmul.mubr.bf16.gmra.mrb[0].mxu0 %v3282
        %v3554 = vpop.f32.mrb[0].mxu0
        %v3555 = vadd.f32 %v3394, %v3554
        %v3556 = vpop.f32.mrb[0].mxu0
        %v3557 = vpop.f32.mrb[0].mxu0
        %v3558 = vadd.f32 %v3397, %v3557
        %v3559 = vpop.f32.mrb[0].mxu0
        %3560 = vmatprep.mubr.bf16.mxu0 0
        %3561 = vmatmul.mubr.bf16.gmra.mrb[0].mxu0 %v3285
        %v3562 = vpop.f32.mrb[0].mxu0
        %v3563 = vadd.f32 %v3402, %v3562
        %v3564 = vpop.f32.mrb[0].mxu0
        %v3565 = vpop.f32.mrb[0].mxu0
        %v3566 = vadd.f32 %v3405, %v3565
        %v3567 = vpop.f32.mrb[0].mxu0
        %3568 = vmatprep.mubr.bf16.mxu0 0
        %3569 = vmatmul.mubr.bf16.gmra.mrb[0].mxu0 %v3288
        %v3570 = vpop.f32.mrb[0].mxu0
        %v3571 = vadd.f32 %v3410, %v3570
        %v3572 = vpop.f32.mrb[0].mxu0
        %v3573 = vpop.f32.mrb[0].mxu0
        %v3574 = vadd.f32 %v3413, %v3573
        %v3575 = vpop.f32.mrb[0].mxu0
        %3576 = vmatprep.mubr.bf16.mxu0 0
        %3577 = vmatmul.mubr.bf16.gmra.mrb[0].mxu0 %v3291
        %v3578 = vpop.f32.mrb[0].mxu0
        %v3579 = vadd.f32 %v3418, %v3578
        %v3580 = vpop.f32.mrb[0].mxu0
        %v3581 = vpop.f32.mrb[0].mxu0
        %v3582 = vadd.f32 %v3421, %v3581
        %v3583 = vpop.f32.mrb[0].mxu0
        %3584 = vmatprep.mubr.bf16.mxu0 0
        %3585 = vmatmul.mubr.bf16.gmra.mrb[0].mxu0 %v3294
        %v3586 = vpop.f32.mrb[0].mxu0
        %v3587 = vadd.f32 %v3426, %v3586
        %v3588 = vpop.f32.mrb[0].mxu0
        %v3589 = vpop.f32.mrb[0].mxu0
        %v3590 = vadd.f32 %v3429, %v3589
        %v3591 = vpop.f32.mrb[0].mxu0
        %3592 = vmatprep.mubr.bf16.mxu0 0
        %3593 = vmatmul.mubr.bf16.gmra.mrb[0].mxu0 %v3297
        %v3594 = vpop.f32.mrb[0].mxu0
        %v3595 = vadd.f32 %v3434, %v3594
        %v3596 = vpop.f32.mrb[0].mxu0
        %v3597 = vpop.f32.mrb[0].mxu0
        %v3598 = vadd.f32 %v3437, %v3597
        %v3599 = vpop.f32.mrb[0].mxu0
        %3600 = vmatprep.mubr.bf16.mxu0 0
        %3601 = vmatmul.mubr.bf16.gmra.mrb[0].mxu0 %v3300
        %v3602 = vpop.f32.mrb[0].mxu0
        %v3603 = vadd.f32 %v3442, %v3602
        %v3604 = vpop.f32.mrb[0].mxu0
        %v3605 = vpop.f32.mrb[0].mxu0
        %v3606 = vadd.f32 %v3445, %v3605
        %v3607 = vpop.f32.mrb[0].mxu0
        %3608 = vmatprep.mubr.bf16.mxu0 0
        %3609 = vmatmul.mubr.bf16.gmra.mrb[0].mxu0 %v3303
        %v3610 = vpop.f32.mrb[0].mxu0
        %v3611 = vadd.f32 %v3450, %v3610
        %v3612 = vpop.f32.mrb[0].mxu0
        %v3613 = vpop.f32.mrb[0].mxu0
        %v3614 = vadd.f32 %v3453, %v3613
        %v3615 = vpop.f32.mrb[0].mxu0
        %3616 = vmatprep.mubr.bf16.mxu0 0
        %3617 = vmatmul.mubr.bf16.gmra.mrb[0].mxu0 %v3306
        %v3618 = vpop.f32.mrb[0].mxu0
        %v3619 = vadd.f32 %v3458, %v3618
        %v3620 = vpop.f32.mrb[0].mxu0
        %v3621 = vpop.f32.mrb[0].mxu0
        %v3622 = vadd.f32 %v3461, %v3621
        %v3623 = vpop.f32.mrb[0].mxu0
        %3624 = vmatprep.mubr.bf16.mxu0 0
        %3625 = vmatmul.mubr.bf16.gmra.mrb[0].mxu0 %v3309
        %v3626 = vpop.f32.mrb[0].mxu0
        %v3627 = vadd.f32 %v3466, %v3626
        %v3628 = vpop.f32.mrb[0].mxu0
        %v3629 = vpop.f32.mrb[0].mxu0
        %v3630 = vadd.f32 %v3469, %v3629
        %v3631 = vpop.f32.mrb[0].mxu0
        %3632 = vdwg.mxu0
        %v3633 = vsel %vm386, %v3507, 0.0
        %v3634 = vsel %vm386, %v3510, 0.0
        %v3635 = vadd.f32 %v3633, %v3634
        %v3636 = vsel %vm386, %v3515, 0.0
        %v3637 = vadd.f32 %v3635, %v3636
        %v3638 = vsel %vm386, %v3518, 0.0
        %v3639 = vadd.f32 %v3637, %v3638
        %v3640 = vsel %vm386, %v3523, 0.0
        %v3641 = vadd.f32 %v3639, %v3640
        %v3642 = vsel %vm386, %v3526, 0.0
        %v3643 = vadd.f32 %v3641, %v3642
        %v3644 = vsel %vm386, %v3531, 0.0
        %v3645 = vadd.f32 %v3643, %v3644
        %v3646 = vsel %vm386, %v3534, 0.0
        %v3647 = vadd.f32 %v3645, %v3646
        %v3648 = vsel %vm386, %v3539, 0.0
        %v3649 = vadd.f32 %v3647, %v3648
        %v3650 = vsel %vm386, %v3542, 0.0
        %v3651 = vadd.f32 %v3649, %v3650
        %v3652 = vsel %vm386, %v3547, 0.0
        %v3653 = vadd.f32 %v3651, %v3652
        %v3654 = vsel %vm386, %v3550, 0.0
        %v3655 = vadd.f32 %v3653, %v3654
        %v3656 = vsel %vm386, %v3555, 0.0
        %v3657 = vadd.f32 %v3655, %v3656
        %v3658 = vsel %vm386, %v3558, 0.0
        %v3659 = vadd.f32 %v3657, %v3658
        %v3660 = vsel %vm386, %v3563, 0.0
        %v3661 = vadd.f32 %v3659, %v3660
        %v3662 = vsel %vm386, %v3566, 0.0
        %v3663 = vadd.f32 %v3661, %v3662
        %v3664 = vsel %vm386, %v3571, 0.0
        %v3665 = vadd.f32 %v3663, %v3664
        %v3666 = vsel %vm386, %v3574, 0.0
        %v3667 = vadd.f32 %v3665, %v3666
        %v3668 = vsel %vm386, %v3579, 0.0
        %v3669 = vadd.f32 %v3667, %v3668
        %v3670 = vsel %vm386, %v3582, 0.0
        %v3671 = vadd.f32 %v3669, %v3670
        %v3672 = vsel %vm386, %v3587, 0.0
        %v3673 = vadd.f32 %v3671, %v3672
        %v3674 = vsel %vm386, %v3590, 0.0
        %v3675 = vadd.f32 %v3673, %v3674
        %v3676 = vsel %vm386, %v3595, 0.0
        %v3677 = vadd.f32 %v3675, %v3676
        %v3678 = vsel %vm386, %v3598, 0.0
        %v3679 = vadd.f32 %v3677, %v3678
        %v3680 = vsel %vm386, %v3603, 0.0
        %v3681 = vadd.f32 %v3679, %v3680
        %v3682 = vsel %vm386, %v3606, 0.0
        %v3683 = vadd.f32 %v3681, %v3682
        %v3684 = vsel %vm386, %v3611, 0.0
        %v3685 = vadd.f32 %v3683, %v3684
        %v3686 = vsel %vm386, %v3614, 0.0
        %v3687 = vadd.f32 %v3685, %v3686
        %v3688 = vsel %vm386, %v3619, 0.0
        %v3689 = vadd.f32 %v3687, %v3688
        %v3690 = vsel %vm386, %v3622, 0.0
        %v3691 = vadd.f32 %v3689, %v3690
        %v3692 = vsel %vm386, %v3627, 0.0
        %v3693 = vadd.f32 %v3691, %v3692
        %v3694 = vsel %vm386, %v3630, 0.0
        %v3695 = vadd.f32 %v3693, %v3694
        %v3696 = vrot.slane %v3695, 4
        %v3697 = vadd.f32 %v3695, %v3696
        %v3698 = vrot.slane %v3697, 2
        %v3699 = vadd.f32 %v3697, %v3698
        %v3700 = vrot.slane %v3699, 1
        %v3701 = vadd.f32 %v3699, %v3700
        %v3702 = vmul.f32 %v3701, 0.00390625
        %v3703 = vld [vmem:[%s5] sm:$0xff]
        %v3704 = vld [vmem:[%s5 + $0x8] sm:$0xff]
        %v3705 = vld [vmem:[%s5 + $0x10] sm:$0xff]
        %v3706 = vld [vmem:[%s5 + $0x18] sm:$0xff]
        %v3707 = vld [vmem:[%s6] sm:$0x1]
        %v3709 = vlaneseq
        %v3710 = vshrl.u32 %v3709, 7
        %v3711 = vsub.s32 0, %v3710
        %v3712 = vrot.slane %v3707, %v3711
        %v3715 = vsel %vm386, %v3702, 0
        %3717 = vmatprep.subr.mxu0 0.0
        %3718 = vmatpush1.msra.mxu0 %v3703
        %3719 = vmatprep.subr.mxu0 0.0
        %3720 = vmatpush1.msra.mxu0 %v3704
        %3721 = vmatprep.subr.mxu0 0.0
        %3722 = vmatpush1.msra.mxu0 %v3705
        %3723 = vmatprep.subr.mxu0 0.0
        %3724 = vmatpush1.msra.mxu0 %v3706
        %3725 = vmatprep.subr.mxu0 0.0
        %3726 = vmatpush1.msra.mxu0 0.0
        %3727 = vmatprep.subr.mxu0 0.0
        %3728 = vmatpush1.msra.mxu0 0.0
        %3729 = vmatprep.subr.mxu0 0.0
        %3730 = vmatpush1.msra.mxu0 0.0
        %3731 = vmatprep.subr.mxu0 0.0
        %3732 = vmatpush1.msra.mxu0 0.0
        %3733 = vmatprep.subr.mxu0 0.0
        %3734 = vmatpush1.msra.mxu0 0.0
        %3735 = vmatprep.subr.mxu0 0.0
        %3736 = vmatpush1.msra.mxu0 0.0
        %3737 = vmatprep.subr.mxu0 0.0
        %3738 = vmatpush1.msra.mxu0 0.0
        %3739 = vmatprep.subr.mxu0 0.0
        %3740 = vmatpush1.msra.mxu0 0.0
        %3741 = vmatprep.subr.mxu0 0.0
        %3742 = vmatpush1.msra.mxu0 0.0
        %3743 = vmatprep.subr.mxu0 0.0
        %3744 = vmatpush1.msra.mxu0 0.0
        %3745 = vmatprep.subr.mxu0 0.0
        %3746 = vmatpush1.msra.mxu0 0.0
        %3747 = vmatprep.subr.mxu0 0.0
        %3748 = vmatpush1.msra.mxu0 0.0
        %3749 = vmatprep.subr.mxu0 0.0
        %3750 = vmatpush1.msra.mxu0 0.0
        %3751 = vmatprep.subr.mxu0 0.0
        %3752 = vmatpush1.msra.mxu0 0.0
        %3753 = vmatprep.subr.mxu0 0.0
        %3754 = vmatpush1.msra.mxu0 0.0
        %3755 = vmatprep.subr.mxu0 0.0
        %3756 = vmatpush1.msra.mxu0 0.0
        %3757 = vmatprep.subr.mxu0 0.0
        %3758 = vmatpush1.msra.mxu0 0.0
        %3759 = vmatprep.subr.mxu0 0.0
        %3760 = vmatpush1.msra.mxu0 0.0
        %3761 = vmatprep.subr.mxu0 0.0
        %3762 = vmatpush1.msra.mxu0 0.0
        %3763 = vmatprep.subr.mxu0 0.0
        %3764 = vmatpush1.msra.mxu0 0.0
        %3765 = vmatprep.subr.mxu0 0.0
        %3766 = vmatpush1.msra.mxu0 0.0
        %3767 = vmatprep.subr.mxu0 0.0
        %3768 = vmatpush1.msra.mxu0 0.0
        %3769 = vmatprep.subr.mxu0 0.0
        %3770 = vmatpush1.msra.mxu0 0.0
        %3771 = vmatprep.subr.mxu0 0.0
        %3772 = vmatpush1.msra.mxu0 0.0
        %3773 = vmatprep.subr.mxu0 0.0
        %3774 = vmatpush1.msra.mxu0 0.0
        %3775 = vmatprep.subr.mxu0 0.0
        %3776 = vmatpush1.msra.mxu0 0.0
        %3777 = vmatprep.subr.mxu0 0.0
        %3778 = vmatpush1.msra.mxu0 0.0
        %3779 = vmatprep.subr.mxu0 0.0
        %3780 = vmatpush1.msra.mxu0 0.0
        %3781 = vmatprep.mubr.f32.mxu0 0.0
        %3782 = vmatmul.mubr.f32.gmra.mrb[0].mxu0 %v3715
        %v3783 = vpop.f32.mrb[0].mxu0
        %v3784 = vadd.f32 %v3712, %v3783
        %v3785 = vpop.f32.mrb[0].mxu0
        %3786 = vdwg.mxu0
        %v3787 = vmax.f32 %v3784, 0.0
        %v3788 = vld [vmem:[%s7] sm:$0xff]
        %v3789 = vld [vmem:[%s8] sm:$0x1]
        %v3791 = vlaneseq
        %v3792 = vshrl.u32 %v3791, 7
        %v3793 = vsub.s32 0, %v3792
        %v3794 = vrot.slane %v3789, %v3793
        %vm3796 = vcmask 64512
        %v3798 = vsel %vm3796, %v3787, 0
        %3800 = vmatprep.subr.mxu0 0.0
        %3801 = vmatpush1.msra.mxu0 %v3788
        %3802 = vmatprep.subr.mxu0 0.0
        %3803 = vmatpush1.msra.mxu0 0.0
        %3804 = vmatprep.subr.mxu0 0.0
        %3805 = vmatpush1.msra.mxu0 0.0
        %3806 = vmatprep.subr.mxu0 0.0
        %3807 = vmatpush1.msra.mxu0 0.0
        %3808 = vmatprep.subr.mxu0 0.0
        %3809 = vmatpush1.msra.mxu0 0.0
        %3810 = vmatprep.subr.mxu0 0.0
        %3811 = vmatpush1.msra.mxu0 0.0
        %3812 = vmatprep.subr.mxu0 0.0
        %3813 = vmatpush1.msra.mxu0 0.0
        %3814 = vmatprep.subr.mxu0 0.0
        %3815 = vmatpush1.msra.mxu0 0.0
        %3816 = vmatprep.subr.mxu0 0.0
        %3817 = vmatpush1.msra.mxu0 0.0
        %3818 = vmatprep.subr.mxu0 0.0
        %3819 = vmatpush1.msra.mxu0 0.0
        %3820 = vmatprep.subr.mxu0 0.0
        %3821 = vmatpush1.msra.mxu0 0.0
        %3822 = vmatprep.subr.mxu0 0.0
        %3823 = vmatpush1.msra.mxu0 0.0
        %3824 = vmatprep.subr.mxu0 0.0
        %3825 = vmatpush1.msra.mxu0 0.0
        %3826 = vmatprep.subr.mxu0 0.0
        %3827 = vmatpush1.msra.mxu0 0.0
        %3828 = vmatprep.subr.mxu0 0.0
        %3829 = vmatpush1.msra.mxu0 0.0
        %3830 = vmatprep.subr.mxu0 0.0
        %3831 = vmatpush1.msra.mxu0 0.0
        %3832 = vmatprep.subr.mxu0 0.0
        %3833 = vmatpush1.msra.mxu0 0.0
        %3834 = vmatprep.subr.mxu0 0.0
        %3835 = vmatpush1.msra.mxu0 0.0
        %3836 = vmatprep.subr.mxu0 0.0
        %3837 = vmatpush1.msra.mxu0 0.0
        %3838 = vmatprep.subr.mxu0 0.0
        %3839 = vmatpush1.msra.mxu0 0.0
        %3840 = vmatprep.subr.mxu0 0.0
        %3841 = vmatpush1.msra.mxu0 0.0
        %3842 = vmatprep.subr.mxu0 0.0
        %3843 = vmatpush1.msra.mxu0 0.0
        %3844 = vmatprep.subr.mxu0 0.0
        %3845 = vmatpush1.msra.mxu0 0.0
        %3846 = vmatprep.subr.mxu0 0.0
        %3847 = vmatpush1.msra.mxu0 0.0
        %3848 = vmatprep.subr.mxu0 0.0
        %3849 = vmatpush1.msra.mxu0 0.0
        %3850 = vmatprep.subr.mxu0 0.0
        %3851 = vmatpush1.msra.mxu0 0.0
        %3852 = vmatprep.subr.mxu0 0.0
        %3853 = vmatpush1.msra.mxu0 0.0
        %3854 = vmatprep.subr.mxu0 0.0
        %3855 = vmatpush1.msra.mxu0 0.0
        %3856 = vmatprep.subr.mxu0 0.0
        %3857 = vmatpush1.msra.mxu0 0.0
        %3858 = vmatprep.subr.mxu0 0.0
        %3859 = vmatpush1.msra.mxu0 0.0
        %3860 = vmatprep.subr.mxu0 0.0
        %3861 = vmatpush1.msra.mxu0 0.0
        %3862 = vmatprep.subr.mxu0 0.0
        %3863 = vmatpush1.msra.mxu0 0.0
        %3864 = vmatprep.mubr.f32.mxu0 0.0
        %3865 = vmatmul.mubr.f32.gmra.mrb[0].mxu0 %v3798
        %v3866 = vpop.f32.mrb[0].mxu0
        %v3867 = vadd.f32 %v3794, %v3866
        %v3868 = vpop.f32.mrb[0].mxu0
        %3869 = vdwg.mxu0
        %v3870 = vsub.f32 0.0, %v3867
        %v3871 = vmul.f32 %v3870, 1.442695
        %v3872 = vpow.pop %v3871
        %v3873 = vadd.f32 %v3872, 1.0
        %v3874 = vrcp.pop %v3873
        %v3875 = vmul.f32 1.0, %v3874
        %v3876 = vlaneseq
        %v3877 = vshrl.u32 %v3876, 7
        %v3878 = vsub.s32 0, %v3877
        %v3879 = vrot.slane %v3875, %v3878
        %v3880 = vmul.f32 %v3507, %v3879
        %v3881 = vmul.f32 %v3510, %v3879
        %v3882 = vmul.f32 %v3515, %v3879
        %v3883 = vmul.f32 %v3518, %v3879
        %v3884 = vmul.f32 %v3523, %v3879
        %v3885 = vmul.f32 %v3526, %v3879
        %v3886 = vmul.f32 %v3531, %v3879
        %v3887 = vmul.f32 %v3534, %v3879
        %v3888 = vmul.f32 %v3539, %v3879
        %v3889 = vmul.f32 %v3542, %v3879
        %v3890 = vmul.f32 %v3547, %v3879
        %v3891 = vmul.f32 %v3550, %v3879
        %v3892 = vmul.f32 %v3555, %v3879
        %v3893 = vmul.f32 %v3558, %v3879
        %v3894 = vmul.f32 %v3563, %v3879
        %v3895 = vmul.f32 %v3566, %v3879
        %v3896 = vmul.f32 %v3571, %v3879
        %v3897 = vmul.f32 %v3574, %v3879
        %v3898 = vmul.f32 %v3579, %v3879
        %v3899 = vmul.f32 %v3582, %v3879
        %v3900 = vmul.f32 %v3587, %v3879
        %v3901 = vmul.f32 %v3590, %v3879
        %v3902 = vmul.f32 %v3595, %v3879
        %v3903 = vmul.f32 %v3598, %v3879
        %v3904 = vmul.f32 %v3603, %v3879
        %v3905 = vmul.f32 %v3606, %v3879
        %v3906 = vmul.f32 %v3611, %v3879
        %v3907 = vmul.f32 %v3614, %v3879
        %v3908 = vmul.f32 %v3619, %v3879
        %v3909 = vmul.f32 %v3622, %v3879
        %v3910 = vmul.f32 %v3627, %v3879
        %v3911 = vmul.f32 %v3630, %v3879
        %v3912 = vadd.f32 %v3880, %v442
        %v3913 = vadd.f32 %v3881, %v443
        %v3914 = vadd.f32 %v3882, %v444
        %v3915 = vadd.f32 %v3883, %v445
        %v3916 = vadd.f32 %v3884, %v446
        %v3917 = vadd.f32 %v3885, %v447
        %v3918 = vadd.f32 %v3886, %v448
        %v3919 = vadd.f32 %v3887, %v449
        %v3920 = vadd.f32 %v3888, %v450
        %v3921 = vadd.f32 %v3889, %v451
        %v3922 = vadd.f32 %v3890, %v452
        %v3923 = vadd.f32 %v3891, %v453
        %v3924 = vadd.f32 %v3892, %v454
        %v3925 = vadd.f32 %v3893, %v455
        %v3926 = vadd.f32 %v3894, %v456
        %v3927 = vadd.f32 %v3895, %v457
        %v3928 = vadd.f32 %v3896, %v458
        %v3929 = vadd.f32 %v3897, %v459
        %v3930 = vadd.f32 %v3898, %v460
        %v3931 = vadd.f32 %v3899, %v461
        %v3932 = vadd.f32 %v3900, %v462
        %v3933 = vadd.f32 %v3901, %v463
        %v3934 = vadd.f32 %v3902, %v464
        %v3935 = vadd.f32 %v3903, %v465
        %v3936 = vadd.f32 %v3904, %v466
        %v3937 = vadd.f32 %v3905, %v467
        %v3938 = vadd.f32 %v3906, %v468
        %v3939 = vadd.f32 %v3907, %v469
        %v3940 = vadd.f32 %v3908, %v470
        %v3941 = vadd.f32 %v3909, %v471
        %v3942 = vadd.f32 %v3910, %v472
        %v3943 = vadd.f32 %v3911, %v473
        %s3944 = scalar_lea.vmem %s1, 144
        %v3945 = vld [vmem:[%s3944] sm:$0xf]
        %v3946 = vld [vmem:[%s3944 + $0x4] sm:$0xf]
        %v3947 = vld [vmem:[%s3944 + $0x8] sm:$0xf]
        %v3948 = vld [vmem:[%s3944 + $0xc] sm:$0xf]
        %v3949 = vld [vmem:[%s3944 + $0x10] sm:$0xf]
        %v3950 = vld [vmem:[%s3944 + $0x14] sm:$0xf]
        %v3951 = vld [vmem:[%s3944 + $0x18] sm:$0xf]
        %v3952 = vld [vmem:[%s3944 + $0x1c] sm:$0xf]
        %v3953 = vld [vmem:[%s3944 + $0x20] sm:$0xf]
        %v3954 = vld [vmem:[%s3944 + $0x24] sm:$0xf]
        %v3955 = vld [vmem:[%s3944 + $0x28] sm:$0xf]
        %v3956 = vld [vmem:[%s3944 + $0x2c] sm:$0xf]
        %v3957 = vld [vmem:[%s3944 + $0x30] sm:$0xf]
        %v3958 = vld [vmem:[%s3944 + $0x34] sm:$0xf]
        %v3959 = vld [vmem:[%s3944 + $0x38] sm:$0xf]
        %v3960 = vld [vmem:[%s3944 + $0x3c] sm:$0xf]
        %v3961 = vld [vmem:[%s3944 + $0x40] sm:$0xf]
        %v3962 = vld [vmem:[%s3944 + $0x44] sm:$0xf]
        %v3963 = vld [vmem:[%s3944 + $0x48] sm:$0xf]
        %v3964 = vld [vmem:[%s3944 + $0x4c] sm:$0xf]
        %v3965 = vld [vmem:[%s3944 + $0x50] sm:$0xf]
        %v3966 = vld [vmem:[%s3944 + $0x54] sm:$0xf]
        %v3967 = vld [vmem:[%s3944 + $0x58] sm:$0xf]
        %v3968 = vld [vmem:[%s3944 + $0x5c] sm:$0xf]
        %v3969 = vld [vmem:[%s3944 + $0x60] sm:$0xf]
        %v3970 = vld [vmem:[%s3944 + $0x64] sm:$0xf]
        %v3971 = vld [vmem:[%s3944 + $0x68] sm:$0xf]
        %v3972 = vld [vmem:[%s3944 + $0x6c] sm:$0xf]
        %v3973 = vld [vmem:[%s3944 + $0x70] sm:$0xf]
        %v3974 = vld [vmem:[%s3944 + $0x74] sm:$0xf]
        %v3975 = vld [vmem:[%s3944 + $0x78] sm:$0xf]
        %v3976 = vld [vmem:[%s3944 + $0x7c] sm:$0xf]
        %v3977 = vld [vmem:[%s3944 + $0x80] sm:$0xf]
        %v3978 = vld [vmem:[%s3944 + $0x84] sm:$0xf]
        %v3979 = vld [vmem:[%s3944 + $0x88] sm:$0xf]
        %v3980 = vld [vmem:[%s3944 + $0x8c] sm:$0xf]
        %s3981 = scalar_lea.vmem %s2, 1
        %v3982 = vld [vmem:[%s3981] sm:$0x1]
        %3983 = vst.msk [vmem:[%s511 + $0x1] sm:$0xff] %vm386, %v3912
        %3984 = vst.msk [vmem:[%s511 + $0x9] sm:$0xff] %vm386, %v3913
        %3985 = vst.msk [vmem:[%s511 + $0x19] sm:$0xff] %vm386, %v3914
        %3986 = vst.msk [vmem:[%s511 + $0x21] sm:$0xff] %vm386, %v3915
        %3987 = vst.msk [vmem:[%s511 + $0x31] sm:$0xff] %vm386, %v3916
        %3988 = vst.msk [vmem:[%s511 + $0x39] sm:$0xff] %vm386, %v3917
        %3989 = vst.msk [vmem:[%s511 + $0x49] sm:$0xff] %vm386, %v3918
        %3990 = vst.msk [vmem:[%s511 + $0x51] sm:$0xff] %vm386, %v3919
        %3991 = vst.msk [vmem:[%s511 + $0x61] sm:$0xff] %vm386, %v3920
        %3992 = vst.msk [vmem:[%s511 + $0x69] sm:$0xff] %vm386, %v3921
        %3993 = vst.msk [vmem:[%s511 + $0x79] sm:$0xff] %vm386, %v3922
        %3994 = vst.msk [vmem:[%s511 + $0x81] sm:$0xff] %vm386, %v3923
        %3995 = vst.msk [vmem:[%s511 + $0x91] sm:$0xff] %vm386, %v3924
        %3996 = vst.msk [vmem:[%s511 + $0x99] sm:$0xff] %vm386, %v3925
        %3997 = vst.msk [vmem:[%s511 + $0xa9] sm:$0xff] %vm386, %v3926
        %3998 = vst.msk [vmem:[%s511 + $0xb1] sm:$0xff] %vm386, %v3927
        %3999 = vst.msk [vmem:[%s511 + $0xc1] sm:$0xff] %vm386, %v3928
        %4000 = vst.msk [vmem:[%s511 + $0xc9] sm:$0xff] %vm386, %v3929
        %4001 = vst.msk [vmem:[%s511 + $0xd9] sm:$0xff] %vm386, %v3930
        %4002 = vst.msk [vmem:[%s511 + $0xe1] sm:$0xff] %vm386, %v3931
        %4003 = vst.msk [vmem:[%s511 + $0xf1] sm:$0xff] %vm386, %v3932
        %4004 = vst.msk [vmem:[%s511 + $0xf9] sm:$0xff] %vm386, %v3933
        %4005 = vst.msk [vmem:[%s511 + $0x109] sm:$0xff] %vm386, %v3934
        %4006 = vst.msk [vmem:[%s511 + $0x111] sm:$0xff] %vm386, %v3935
        %4007 = vst.msk [vmem:[%s511 + $0x121] sm:$0xff] %vm386, %v3936
        %4008 = vst.msk [vmem:[%s511 + $0x129] sm:$0xff] %vm386, %v3937
        %4009 = vst.msk [vmem:[%s511 + $0x139] sm:$0xff] %vm386, %v3938
        %4010 = vst.msk [vmem:[%s511 + $0x141] sm:$0xff] %vm386, %v3939
        %4011 = vst.msk [vmem:[%s511 + $0x151] sm:$0xff] %vm386, %v3940
        %4012 = vst.msk [vmem:[%s511 + $0x159] sm:$0xff] %vm386, %v3941
        %4013 = vst.msk [vmem:[%s511 + $0x169] sm:$0xff] %vm386, %v3942
        %4014 = vst.msk [vmem:[%s511 + $0x171] sm:$0xff] %vm386, %v3943
        %v4015 = vld [vmem:[#allocation2] sm:$0xff]
        %v4016 = vld [vmem:[#allocation2 + $0x8] sm:$0xff]
        %v4017 = vld [vmem:[#allocation2 + $0x18] sm:$0xff]
        %v4018 = vld [vmem:[#allocation2 + $0x20] sm:$0xff]
        %v4019 = vld [vmem:[#allocation2 + $0x30] sm:$0xff]
        %v4020 = vld [vmem:[#allocation2 + $0x38] sm:$0xff]
        %v4021 = vld [vmem:[#allocation2 + $0x48] sm:$0xff]
        %v4022 = vld [vmem:[#allocation2 + $0x50] sm:$0xff]
        %v4023 = vld [vmem:[#allocation2 + $0x60] sm:$0xff]
        %v4024 = vld [vmem:[#allocation2 + $0x68] sm:$0xff]
        %v4025 = vld [vmem:[#allocation2 + $0x78] sm:$0xff]
        %v4026 = vld [vmem:[#allocation2 + $0x80] sm:$0xff]
        %v4027 = vld [vmem:[#allocation2 + $0x90] sm:$0xff]
        %v4028 = vld [vmem:[#allocation2 + $0x98] sm:$0xff]
        %v4029 = vld [vmem:[#allocation2 + $0xa8] sm:$0xff]
        %v4030 = vld [vmem:[#allocation2 + $0xb0] sm:$0xff]
        %v4031 = vld [vmem:[#allocation2 + $0xc0] sm:$0xff]
        %v4032 = vld [vmem:[#allocation2 + $0xc8] sm:$0xff]
        %v4033 = vld [vmem:[#allocation2 + $0xd8] sm:$0xff]
        %v4034 = vld [vmem:[#allocation2 + $0xe0] sm:$0xff]
        %v4035 = vld [vmem:[#allocation2 + $0xf0] sm:$0xff]
        %v4036 = vld [vmem:[#allocation2 + $0xf8] sm:$0xff]
        %v4037 = vld [vmem:[#allocation2 + $0x108] sm:$0xff]
        %v4038 = vld [vmem:[#allocation2 + $0x110] sm:$0xff]
        %v4039 = vld [vmem:[#allocation2 + $0x120] sm:$0xff]
        %v4040 = vld [vmem:[#allocation2 + $0x128] sm:$0xff]
        %v4041 = vld [vmem:[#allocation2 + $0x138] sm:$0xff]
        %v4042 = vld [vmem:[#allocation2 + $0x140] sm:$0xff]
        %v4043 = vld [vmem:[#allocation2 + $0x150] sm:$0xff]
        %v4044 = vld [vmem:[#allocation2 + $0x158] sm:$0xff]
        %v4045 = vld [vmem:[#allocation2 + $0x168] sm:$0xff]
        %v4046 = vld [vmem:[#allocation2 + $0x170] sm:$0xff]
        %v4047 = vpack.c.bf16 %v4016, %v4015
        %v4048 = vpack.c.bf16 %v4018, %v4017
        %v4049 = vpack.c.bf16 %v4020, %v4019
        %v4050 = vpack.c.bf16 %v4022, %v4021
        %v4051 = vpack.c.bf16 %v4024, %v4023
        %v4052 = vpack.c.bf16 %v4026, %v4025
        %v4053 = vpack.c.bf16 %v4028, %v4027
        %v4054 = vpack.c.bf16 %v4030, %v4029
        %v4055 = vpack.c.bf16 %v4032, %v4031
        %v4056 = vpack.c.bf16 %v4034, %v4033
        %v4057 = vpack.c.bf16 %v4036, %v4035
        %v4058 = vpack.c.bf16 %v4038, %v4037
        %v4059 = vpack.c.bf16 %v4040, %v4039
        %v4060 = vpack.c.bf16 %v4042, %v4041
        %v4061 = vpack.c.bf16 %v4044, %v4043
        %v4062 = vpack.c.bf16 %v4046, %v4045
        %4063 = vst.msk [vmem:[#allocation3] sm:$0xff] %vm386, %v4047
        %4064 = vst.msk [vmem:[#allocation3 + $0x18] sm:$0xff] %vm386, %v4048
        %4065 = vst.msk [vmem:[#allocation3 + $0x30] sm:$0xff] %vm386, %v4049
        %4066 = vst.msk [vmem:[#allocation3 + $0x48] sm:$0xff] %vm386, %v4050
        %4067 = vst.msk [vmem:[#allocation3 + $0x60] sm:$0xff] %vm386, %v4051
        %4068 = vst.msk [vmem:[#allocation3 + $0x78] sm:$0xff] %vm386, %v4052
        %4069 = vst.msk [vmem:[#allocation3 + $0x90] sm:$0xff] %vm386, %v4053
        %4070 = vst.msk [vmem:[#allocation3 + $0xa8] sm:$0xff] %vm386, %v4054
        %4071 = vst.msk [vmem:[#allocation3 + $0xc0] sm:$0xff] %vm386, %v4055
        %4072 = vst.msk [vmem:[#allocation3 + $0xd8] sm:$0xff] %vm386, %v4056
        %4073 = vst.msk [vmem:[#allocation3 + $0xf0] sm:$0xff] %vm386, %v4057
        %4074 = vst.msk [vmem:[#allocation3 + $0x108] sm:$0xff] %vm386, %v4058
        %4075 = vst.msk [vmem:[#allocation3 + $0x120] sm:$0xff] %vm386, %v4059
        %4076 = vst.msk [vmem:[#allocation3 + $0x138] sm:$0xff] %vm386, %v4060
        %4077 = vst.msk [vmem:[#allocation3 + $0x150] sm:$0xff] %vm386, %v4061
        %4078 = vst.msk [vmem:[#allocation3 + $0x168] sm:$0xff] %vm386, %v4062
        %v4079 = vld [vmem:[#allocation2 + $0x1] sm:$0xff]
        %v4080 = vld [vmem:[#allocation2 + $0x9] sm:$0xff]
        %v4081 = vld [vmem:[#allocation2 + $0x19] sm:$0xff]
        %v4082 = vld [vmem:[#allocation2 + $0x21] sm:$0xff]
        %v4083 = vld [vmem:[#allocation2 + $0x31] sm:$0xff]
        %v4084 = vld [vmem:[#allocation2 + $0x39] sm:$0xff]
        %v4085 = vld [vmem:[#allocation2 + $0x49] sm:$0xff]
        %v4086 = vld [vmem:[#allocation2 + $0x51] sm:$0xff]
        %v4087 = vld [vmem:[#allocation2 + $0x61] sm:$0xff]
        %v4088 = vld [vmem:[#allocation2 + $0x69] sm:$0xff]
        %v4089 = vld [vmem:[#allocation2 + $0x79] sm:$0xff]
        %v4090 = vld [vmem:[#allocation2 + $0x81] sm:$0xff]
        %v4091 = vld [vmem:[#allocation2 + $0x91] sm:$0xff]
        %v4092 = vld [vmem:[#allocation2 + $0x99] sm:$0xff]
        %v4093 = vld [vmem:[#allocation2 + $0xa9] sm:$0xff]
        %v4094 = vld [vmem:[#allocation2 + $0xb1] sm:$0xff]
        %v4095 = vld [vmem:[#allocation2 + $0xc1] sm:$0xff]
        %v4096 = vld [vmem:[#allocation2 + $0xc9] sm:$0xff]
        %v4097 = vld [vmem:[#allocation2 + $0xd9] sm:$0xff]
        %v4098 = vld [vmem:[#allocation2 + $0xe1] sm:$0xff]
        %v4099 = vld [vmem:[#allocation2 + $0xf1] sm:$0xff]
        %v4100 = vld [vmem:[#allocation2 + $0xf9] sm:$0xff]
        %v4101 = vld [vmem:[#allocation2 + $0x109] sm:$0xff]
        %v4102 = vld [vmem:[#allocation2 + $0x111] sm:$0xff]
        %v4103 = vld [vmem:[#allocation2 + $0x121] sm:$0xff]
        %v4104 = vld [vmem:[#allocation2 + $0x129] sm:$0xff]
        %v4105 = vld [vmem:[#allocation2 + $0x139] sm:$0xff]
        %v4106 = vld [vmem:[#allocation2 + $0x141] sm:$0xff]
        %v4107 = vld [vmem:[#allocation2 + $0x151] sm:$0xff]
        %v4108 = vld [vmem:[#allocation2 + $0x159] sm:$0xff]
        %v4109 = vld [vmem:[#allocation2 + $0x169] sm:$0xff]
        %v4110 = vld [vmem:[#allocation2 + $0x171] sm:$0xff]
        %v4111 = vpack.c.bf16 %v4080, %v4079
        %v4112 = vpack.c.bf16 %v4082, %v4081
        %v4113 = vpack.c.bf16 %v4084, %v4083
        %v4114 = vpack.c.bf16 %v4086, %v4085
        %v4115 = vpack.c.bf16 %v4088, %v4087
        %v4116 = vpack.c.bf16 %v4090, %v4089
        %v4117 = vpack.c.bf16 %v4092, %v4091
        %v4118 = vpack.c.bf16 %v4094, %v4093
        %v4119 = vpack.c.bf16 %v4096, %v4095
        %v4120 = vpack.c.bf16 %v4098, %v4097
        %v4121 = vpack.c.bf16 %v4100, %v4099
        %v4122 = vpack.c.bf16 %v4102, %v4101
        %v4123 = vpack.c.bf16 %v4104, %v4103
        %v4124 = vpack.c.bf16 %v4106, %v4105
        %v4125 = vpack.c.bf16 %v4108, %v4107
        %v4126 = vpack.c.bf16 %v4110, %v4109
        %4143 = vrot.lane.b32.xlu0 %v4111, 32
        %v4144 = vpop.permute.xlu0 %4143
        %4145 = vrot.lane.b32.xlu0 %v4112, 32
        %v4146 = vpop.permute.xlu0 %4145
        %4147 = vrot.lane.b32.xlu0 %v4113, 32
        %v4148 = vpop.permute.xlu0 %4147
        %4149 = vrot.lane.b32.xlu0 %v4114, 32
        %v4150 = vpop.permute.xlu0 %4149
        %4151 = vrot.lane.b32.xlu0 %v4115, 32
        %v4152 = vpop.permute.xlu0 %4151
        %4153 = vrot.lane.b32.xlu0 %v4116, 32
        %v4154 = vpop.permute.xlu0 %4153
        %4155 = vrot.lane.b32.xlu0 %v4117, 32
        %v4156 = vpop.permute.xlu0 %4155
        %4157 = vrot.lane.b32.xlu0 %v4118, 32
        %v4158 = vpop.permute.xlu0 %4157
        %4159 = vrot.lane.b32.xlu0 %v4119, 32
        %v4160 = vpop.permute.xlu0 %4159
        %4161 = vrot.lane.b32.xlu0 %v4120, 32
        %v4162 = vpop.permute.xlu0 %4161
        %4163 = vrot.lane.b32.xlu0 %v4121, 32
        %v4164 = vpop.permute.xlu0 %4163
        %4165 = vrot.lane.b32.xlu0 %v4122, 32
        %v4166 = vpop.permute.xlu0 %4165
        %4167 = vrot.lane.b32.xlu0 %v4123, 32
        %v4168 = vpop.permute.xlu0 %4167
        %4169 = vrot.lane.b32.xlu0 %v4124, 32
        %v4170 = vpop.permute.xlu0 %4169
        %4171 = vrot.lane.b32.xlu0 %v4125, 32
        %v4172 = vpop.permute.xlu0 %4171
        %4173 = vrot.lane.b32.xlu0 %v4126, 32
        %v4174 = vpop.permute.xlu0 %4173
        %4191 = vst.msk [vmem:[#allocation3] sm:$0xff] %vm720, %v4144
        %4192 = vst.msk [vmem:[#allocation3 + $0x18] sm:$0xff] %vm720, %v4146
        %4193 = vst.msk [vmem:[#allocation3 + $0x30] sm:$0xff] %vm720, %v4148
        %4194 = vst.msk [vmem:[#allocation3 + $0x48] sm:$0xff] %vm720, %v4150
        %4195 = vst.msk [vmem:[#allocation3 + $0x60] sm:$0xff] %vm720, %v4152
        %4196 = vst.msk [vmem:[#allocation3 + $0x78] sm:$0xff] %vm720, %v4154
        %4197 = vst.msk [vmem:[#allocation3 + $0x90] sm:$0xff] %vm720, %v4156
        %4198 = vst.msk [vmem:[#allocation3 + $0xa8] sm:$0xff] %vm720, %v4158
        %4199 = vst.msk [vmem:[#allocation3 + $0xc0] sm:$0xff] %vm720, %v4160
        %4200 = vst.msk [vmem:[#allocation3 + $0xd8] sm:$0xff] %vm720, %v4162
        %4201 = vst.msk [vmem:[#allocation3 + $0xf0] sm:$0xff] %vm720, %v4164
        %4202 = vst.msk [vmem:[#allocation3 + $0x108] sm:$0xff] %vm720, %v4166
        %4203 = vst.msk [vmem:[#allocation3 + $0x120] sm:$0xff] %vm720, %v4168
        %4204 = vst.msk [vmem:[#allocation3 + $0x138] sm:$0xff] %vm720, %v4170
        %4205 = vst.msk [vmem:[#allocation3 + $0x150] sm:$0xff] %vm720, %v4172
        %4206 = vst.msk [vmem:[#allocation3 + $0x168] sm:$0xff] %vm720, %v4174
        %v4207 = vld [vmem:[#allocation2 + $0x2] sm:$0xff]
        %v4208 = vld [vmem:[#allocation2 + $0xa] sm:$0xff]
        %v4209 = vld [vmem:[#allocation2 + $0x1a] sm:$0xff]
        %v4210 = vld [vmem:[#allocation2 + $0x22] sm:$0xff]
        %v4211 = vld [vmem:[#allocation2 + $0x32] sm:$0xff]
        %v4212 = vld [vmem:[#allocation2 + $0x3a] sm:$0xff]
        %v4213 = vld [vmem:[#allocation2 + $0x4a] sm:$0xff]
        %v4214 = vld [vmem:[#allocation2 + $0x52] sm:$0xff]
        %v4215 = vld [vmem:[#allocation2 + $0x62] sm:$0xff]
        %v4216 = vld [vmem:[#allocation2 + $0x6a] sm:$0xff]
        %v4217 = vld [vmem:[#allocation2 + $0x7a] sm:$0xff]
        %v4218 = vld [vmem:[#allocation2 + $0x82] sm:$0xff]
        %v4219 = vld [vmem:[#allocation2 + $0x92] sm:$0xff]
        %v4220 = vld [vmem:[#allocation2 + $0x9a] sm:$0xff]
        %v4221 = vld [vmem:[#allocation2 + $0xaa] sm:$0xff]
        %v4222 = vld [vmem:[#allocation2 + $0xb2] sm:$0xff]
        %v4223 = vld [vmem:[#allocation2 + $0xc2] sm:$0xff]
        %v4224 = vld [vmem:[#allocation2 + $0xca] sm:$0xff]
        %v4225 = vld [vmem:[#allocation2 + $0xda] sm:$0xff]
        %v4226 = vld [vmem:[#allocation2 + $0xe2] sm:$0xff]
        %v4227 = vld [vmem:[#allocation2 + $0xf2] sm:$0xff]
        %v4228 = vld [vmem:[#allocation2 + $0xfa] sm:$0xff]
        %v4229 = vld [vmem:[#allocation2 + $0x10a] sm:$0xff]
        %v4230 = vld [vmem:[#allocation2 + $0x112] sm:$0xff]
        %v4231 = vld [vmem:[#allocation2 + $0x122] sm:$0xff]
        %v4232 = vld [vmem:[#allocation2 + $0x12a] sm:$0xff]
        %v4233 = vld [vmem:[#allocation2 + $0x13a] sm:$0xff]
        %v4234 = vld [vmem:[#allocation2 + $0x142] sm:$0xff]
        %v4235 = vld [vmem:[#allocation2 + $0x152] sm:$0xff]
        %v4236 = vld [vmem:[#allocation2 + $0x15a] sm:$0xff]
        %v4237 = vld [vmem:[#allocation2 + $0x16a] sm:$0xff]
        %v4238 = vld [vmem:[#allocation2 + $0x172] sm:$0xff]
        %v4239 = vpack.c.bf16 %v4208, %v4207
        %v4240 = vpack.c.bf16 %v4210, %v4209
        %v4241 = vpack.c.bf16 %v4212, %v4211
        %v4242 = vpack.c.bf16 %v4214, %v4213
        %v4243 = vpack.c.bf16 %v4216, %v4215
        %v4244 = vpack.c.bf16 %v4218, %v4217
        %v4245 = vpack.c.bf16 %v4220, %v4219
        %v4246 = vpack.c.bf16 %v4222, %v4221
        %v4247 = vpack.c.bf16 %v4224, %v4223
        %v4248 = vpack.c.bf16 %v4226, %v4225
        %v4249 = vpack.c.bf16 %v4228, %v4227
        %v4250 = vpack.c.bf16 %v4230, %v4229
        %v4251 = vpack.c.bf16 %v4232, %v4231
        %v4252 = vpack.c.bf16 %v4234, %v4233
        %v4253 = vpack.c.bf16 %v4236, %v4235
        %v4254 = vpack.c.bf16 %v4238, %v4237
        %4271 = vrot.lane.b32.xlu0 %v4239, 64
        %v4272 = vpop.permute.xlu0 %4271
        %4273 = vrot.lane.b32.xlu0 %v4240, 64
        %v4274 = vpop.permute.xlu0 %4273
        %4275 = vrot.lane.b32.xlu0 %v4241, 64
        %v4276 = vpop.permute.xlu0 %4275
        %4277 = vrot.lane.b32.xlu0 %v4242, 64
        %v4278 = vpop.permute.xlu0 %4277
        %4279 = vrot.lane.b32.xlu0 %v4243, 64
        %v4280 = vpop.permute.xlu0 %4279
        %4281 = vrot.lane.b32.xlu0 %v4244, 64
        %v4282 = vpop.permute.xlu0 %4281
        %4283 = vrot.lane.b32.xlu0 %v4245, 64
        %v4284 = vpop.permute.xlu0 %4283
        %4285 = vrot.lane.b32.xlu0 %v4246, 64
        %v4286 = vpop.permute.xlu0 %4285
        %4287 = vrot.lane.b32.xlu0 %v4247, 64
        %v4288 = vpop.permute.xlu0 %4287
        %4289 = vrot.lane.b32.xlu0 %v4248, 64
        %v4290 = vpop.permute.xlu0 %4289
        %4291 = vrot.lane.b32.xlu0 %v4249, 64
        %v4292 = vpop.permute.xlu0 %4291
        %4293 = vrot.lane.b32.xlu0 %v4250, 64
        %v4294 = vpop.permute.xlu0 %4293
        %4295 = vrot.lane.b32.xlu0 %v4251, 64
        %v4296 = vpop.permute.xlu0 %4295
        %4297 = vrot.lane.b32.xlu0 %v4252, 64
        %v4298 = vpop.permute.xlu0 %4297
        %4299 = vrot.lane.b32.xlu0 %v4253, 64
        %v4300 = vpop.permute.xlu0 %4299
        %4301 = vrot.lane.b32.xlu0 %v4254, 64
        %v4302 = vpop.permute.xlu0 %4301
        %4319 = vst.msk [vmem:[#allocation3] sm:$0xff] %vm849, %v4272
        %4320 = vst.msk [vmem:[#allocation3 + $0x18] sm:$0xff] %vm849, %v4274
        %4321 = vst.msk [vmem:[#allocation3 + $0x30] sm:$0xff] %vm849, %v4276
        %4322 = vst.msk [vmem:[#allocation3 + $0x48] sm:$0xff] %vm849, %v4278
        %4323 = vst.msk [vmem:[#allocation3 + $0x60] sm:$0xff] %vm849, %v4280
        %4324 = vst.msk [vmem:[#allocation3 + $0x78] sm:$0xff] %vm849, %v4282
        %4325 = vst.msk [vmem:[#allocation3 + $0x90] sm:$0xff] %vm849, %v4284
        %4326 = vst.msk [vmem:[#allocation3 + $0xa8] sm:$0xff] %vm849, %v4286
        %4327 = vst.msk [vmem:[#allocation3 + $0xc0] sm:$0xff] %vm849, %v4288
        %4328 = vst.msk [vmem:[#allocation3 + $0xd8] sm:$0xff] %vm849, %v4290
        %4329 = vst.msk [vmem:[#allocation3 + $0xf0] sm:$0xff] %vm849, %v4292
        %4330 = vst.msk [vmem:[#allocation3 + $0x108] sm:$0xff] %vm849, %v4294
        %4331 = vst.msk [vmem:[#allocation3 + $0x120] sm:$0xff] %vm849, %v4296
        %4332 = vst.msk [vmem:[#allocation3 + $0x138] sm:$0xff] %vm849, %v4298
        %4333 = vst.msk [vmem:[#allocation3 + $0x150] sm:$0xff] %vm849, %v4300
        %4334 = vst.msk [vmem:[#allocation3 + $0x168] sm:$0xff] %vm849, %v4302
        %v4335 = vld [vmem:[%s511] sm:$0xff]
        %v4336 = vld [vmem:[%s511 + $0x8] sm:$0xff]
        %v4337 = vld [vmem:[%s511 + $0x18] sm:$0xff]
        %v4338 = vld [vmem:[%s511 + $0x20] sm:$0xff]
        %v4339 = vld [vmem:[%s511 + $0x30] sm:$0xff]
        %v4340 = vld [vmem:[%s511 + $0x38] sm:$0xff]
        %v4341 = vld [vmem:[%s511 + $0x48] sm:$0xff]
        %v4342 = vld [vmem:[%s511 + $0x50] sm:$0xff]
        %v4343 = vld [vmem:[%s511 + $0x60] sm:$0xff]
        %v4344 = vld [vmem:[%s511 + $0x68] sm:$0xff]
        %v4345 = vld [vmem:[%s511 + $0x78] sm:$0xff]
        %v4346 = vld [vmem:[%s511 + $0x80] sm:$0xff]
        %v4347 = vld [vmem:[%s511 + $0x90] sm:$0xff]
        %v4348 = vld [vmem:[%s511 + $0x98] sm:$0xff]
        %v4349 = vld [vmem:[%s511 + $0xa8] sm:$0xff]
        %v4350 = vld [vmem:[%s511 + $0xb0] sm:$0xff]
        %v4351 = vld [vmem:[%s511 + $0xc0] sm:$0xff]
        %v4352 = vld [vmem:[%s511 + $0xc8] sm:$0xff]
        %v4353 = vld [vmem:[%s511 + $0xd8] sm:$0xff]
        %v4354 = vld [vmem:[%s511 + $0xe0] sm:$0xff]
        %v4355 = vld [vmem:[%s511 + $0xf0] sm:$0xff]
        %v4356 = vld [vmem:[%s511 + $0xf8] sm:$0xff]
        %v4357 = vld [vmem:[%s511 + $0x108] sm:$0xff]
        %v4358 = vld [vmem:[%s511 + $0x110] sm:$0xff]
        %v4359 = vld [vmem:[%s511 + $0x120] sm:$0xff]
        %v4360 = vld [vmem:[%s511 + $0x128] sm:$0xff]
        %v4361 = vld [vmem:[%s511 + $0x138] sm:$0xff]
        %v4362 = vld [vmem:[%s511 + $0x140] sm:$0xff]
        %v4363 = vld [vmem:[%s511 + $0x150] sm:$0xff]
        %v4364 = vld [vmem:[%s511 + $0x158] sm:$0xff]
        %v4365 = vld [vmem:[%s511 + $0x168] sm:$0xff]
        %v4366 = vld [vmem:[%s511 + $0x170] sm:$0xff]
        %v4367 = vpack.c.bf16 %v4336, %v4335
        %v4368 = vpack.c.bf16 %v4338, %v4337
        %v4369 = vpack.c.bf16 %v4340, %v4339
        %v4370 = vpack.c.bf16 %v4342, %v4341
        %v4371 = vpack.c.bf16 %v4344, %v4343
        %v4372 = vpack.c.bf16 %v4346, %v4345
        %v4373 = vpack.c.bf16 %v4348, %v4347
        %v4374 = vpack.c.bf16 %v4350, %v4349
        %v4375 = vpack.c.bf16 %v4352, %v4351
        %v4376 = vpack.c.bf16 %v4354, %v4353
        %v4377 = vpack.c.bf16 %v4356, %v4355
        %v4378 = vpack.c.bf16 %v4358, %v4357
        %v4379 = vpack.c.bf16 %v4360, %v4359
        %v4380 = vpack.c.bf16 %v4362, %v4361
        %v4381 = vpack.c.bf16 %v4364, %v4363
        %v4382 = vpack.c.bf16 %v4366, %v4365
        %4399 = vrot.lane.b32.xlu0 %v4367, 96
        %v4400 = vpop.permute.xlu0 %4399
        %4401 = vrot.lane.b32.xlu0 %v4368, 96
        %v4402 = vpop.permute.xlu0 %4401
        %4403 = vrot.lane.b32.xlu0 %v4369, 96
        %v4404 = vpop.permute.xlu0 %4403
        %4405 = vrot.lane.b32.xlu0 %v4370, 96
        %v4406 = vpop.permute.xlu0 %4405
        %4407 = vrot.lane.b32.xlu0 %v4371, 96
        %v4408 = vpop.permute.xlu0 %4407
        %4409 = vrot.lane.b32.xlu0 %v4372, 96
        %v4410 = vpop.permute.xlu0 %4409
        %4411 = vrot.lane.b32.xlu0 %v4373, 96
        %v4412 = vpop.permute.xlu0 %4411
        %4413 = vrot.lane.b32.xlu0 %v4374, 96
        %v4414 = vpop.permute.xlu0 %4413
        %4415 = vrot.lane.b32.xlu0 %v4375, 96
        %v4416 = vpop.permute.xlu0 %4415
        %4417 = vrot.lane.b32.xlu0 %v4376, 96
        %v4418 = vpop.permute.xlu0 %4417
        %4419 = vrot.lane.b32.xlu0 %v4377, 96
        %v4420 = vpop.permute.xlu0 %4419
        %4421 = vrot.lane.b32.xlu0 %v4378, 96
        %v4422 = vpop.permute.xlu0 %4421
        %4423 = vrot.lane.b32.xlu0 %v4379, 96
        %v4424 = vpop.permute.xlu0 %4423
        %4425 = vrot.lane.b32.xlu0 %v4380, 96
        %v4426 = vpop.permute.xlu0 %4425
        %4427 = vrot.lane.b32.xlu0 %v4381, 96
        %v4428 = vpop.permute.xlu0 %4427
        %4429 = vrot.lane.b32.xlu0 %v4382, 96
        %v4430 = vpop.permute.xlu0 %4429
        %4447 = vst.msk [vmem:[#allocation3] sm:$0xff] %vm978, %v4400
        %4448 = vst.msk [vmem:[#allocation3 + $0x18] sm:$0xff] %vm978, %v4402
        %4449 = vst.msk [vmem:[#allocation3 + $0x30] sm:$0xff] %vm978, %v4404
        %4450 = vst.msk [vmem:[#allocation3 + $0x48] sm:$0xff] %vm978, %v4406
        %4451 = vst.msk [vmem:[#allocation3 + $0x60] sm:$0xff] %vm978, %v4408
        %4452 = vst.msk [vmem:[#allocation3 + $0x78] sm:$0xff] %vm978, %v4410
        %4453 = vst.msk [vmem:[#allocation3 + $0x90] sm:$0xff] %vm978, %v4412
        %4454 = vst.msk [vmem:[#allocation3 + $0xa8] sm:$0xff] %vm978, %v4414
        %4455 = vst.msk [vmem:[#allocation3 + $0xc0] sm:$0xff] %vm978, %v4416
        %4456 = vst.msk [vmem:[#allocation3 + $0xd8] sm:$0xff] %vm978, %v4418
        %4457 = vst.msk [vmem:[#allocation3 + $0xf0] sm:$0xff] %vm978, %v4420
        %4458 = vst.msk [vmem:[#allocation3 + $0x108] sm:$0xff] %vm978, %v4422
        %4459 = vst.msk [vmem:[#allocation3 + $0x120] sm:$0xff] %vm978, %v4424
        %4460 = vst.msk [vmem:[#allocation3 + $0x138] sm:$0xff] %vm978, %v4426
        %4461 = vst.msk [vmem:[#allocation3 + $0x150] sm:$0xff] %vm978, %v4428
        %4462 = vst.msk [vmem:[#allocation3 + $0x168] sm:$0xff] %vm978, %v4430
        %v4463 = vld [vmem:[%s511 + $0x1] sm:$0xff]
        %v4464 = vld [vmem:[%s511 + $0x9] sm:$0xff]
        %v4465 = vld [vmem:[%s511 + $0x19] sm:$0xff]
        %v4466 = vld [vmem:[%s511 + $0x21] sm:$0xff]
        %v4467 = vld [vmem:[%s511 + $0x31] sm:$0xff]
        %v4468 = vld [vmem:[%s511 + $0x39] sm:$0xff]
        %v4469 = vld [vmem:[%s511 + $0x49] sm:$0xff]
        %v4470 = vld [vmem:[%s511 + $0x51] sm:$0xff]
        %v4471 = vld [vmem:[%s511 + $0x61] sm:$0xff]
        %v4472 = vld [vmem:[%s511 + $0x69] sm:$0xff]
        %v4473 = vld [vmem:[%s511 + $0x79] sm:$0xff]
        %v4474 = vld [vmem:[%s511 + $0x81] sm:$0xff]
        %v4475 = vld [vmem:[%s511 + $0x91] sm:$0xff]
        %v4476 = vld [vmem:[%s511 + $0x99] sm:$0xff]
        %v4477 = vld [vmem:[%s511 + $0xa9] sm:$0xff]
        %v4478 = vld [vmem:[%s511 + $0xb1] sm:$0xff]
        %v4479 = vld [vmem:[%s511 + $0xc1] sm:$0xff]
        %v4480 = vld [vmem:[%s511 + $0xc9] sm:$0xff]
        %v4481 = vld [vmem:[%s511 + $0xd9] sm:$0xff]
        %v4482 = vld [vmem:[%s511 + $0xe1] sm:$0xff]
        %v4483 = vld [vmem:[%s511 + $0xf1] sm:$0xff]
        %v4484 = vld [vmem:[%s511 + $0xf9] sm:$0xff]
        %v4485 = vld [vmem:[%s511 + $0x109] sm:$0xff]
        %v4486 = vld [vmem:[%s511 + $0x111] sm:$0xff]
        %v4487 = vld [vmem:[%s511 + $0x121] sm:$0xff]
        %v4488 = vld [vmem:[%s511 + $0x129] sm:$0xff]
        %v4489 = vld [vmem:[%s511 + $0x139] sm:$0xff]
        %v4490 = vld [vmem:[%s511 + $0x141] sm:$0xff]
        %v4491 = vld [vmem:[%s511 + $0x151] sm:$0xff]
        %v4492 = vld [vmem:[%s511 + $0x159] sm:$0xff]
        %v4493 = vld [vmem:[%s511 + $0x169] sm:$0xff]
        %v4494 = vld [vmem:[%s511 + $0x171] sm:$0xff]
        %v4495 = vpack.c.bf16 %v4464, %v4463
        %v4496 = vpack.c.bf16 %v4466, %v4465
        %v4497 = vpack.c.bf16 %v4468, %v4467
        %v4498 = vpack.c.bf16 %v4470, %v4469
        %v4499 = vpack.c.bf16 %v4472, %v4471
        %v4500 = vpack.c.bf16 %v4474, %v4473
        %v4501 = vpack.c.bf16 %v4476, %v4475
        %v4502 = vpack.c.bf16 %v4478, %v4477
        %v4503 = vpack.c.bf16 %v4480, %v4479
        %v4504 = vpack.c.bf16 %v4482, %v4481
        %v4505 = vpack.c.bf16 %v4484, %v4483
        %v4506 = vpack.c.bf16 %v4486, %v4485
        %v4507 = vpack.c.bf16 %v4488, %v4487
        %v4508 = vpack.c.bf16 %v4490, %v4489
        %v4509 = vpack.c.bf16 %v4492, %v4491
        %v4510 = vpack.c.bf16 %v4494, %v4493
        %4511 = vst.msk [vmem:[#allocation3 + $0x8] sm:$0xff] %vm386, %v4495
        %4512 = vst.msk [vmem:[#allocation3 + $0x20] sm:$0xff] %vm386, %v4496
        %4513 = vst.msk [vmem:[#allocation3 + $0x38] sm:$0xff] %vm386, %v4497
        %4514 = vst.msk [vmem:[#allocation3 + $0x50] sm:$0xff] %vm386, %v4498
        %4515 = vst.msk [vmem:[#allocation3 + $0x68] sm:$0xff] %vm386, %v4499
        %4516 = vst.msk [vmem:[#allocation3 + $0x80] sm:$0xff] %vm386, %v4500
        %4517 = vst.msk [vmem:[#allocation3 + $0x98] sm:$0xff] %vm386, %v4501
        %4518 = vst.msk [vmem:[#allocation3 + $0xb0] sm:$0xff] %vm386, %v4502
        %4519 = vst.msk [vmem:[#allocation3 + $0xc8] sm:$0xff] %vm386, %v4503
        %4520 = vst.msk [vmem:[#allocation3 + $0xe0] sm:$0xff] %vm386, %v4504
        %4521 = vst.msk [vmem:[#allocation3 + $0xf8] sm:$0xff] %vm386, %v4505
        %4522 = vst.msk [vmem:[#allocation3 + $0x110] sm:$0xff] %vm386, %v4506
        %4523 = vst.msk [vmem:[#allocation3 + $0x128] sm:$0xff] %vm386, %v4507
        %4524 = vst.msk [vmem:[#allocation3 + $0x140] sm:$0xff] %vm386, %v4508
        %4525 = vst.msk [vmem:[#allocation3 + $0x158] sm:$0xff] %vm386, %v4509
        %4526 = vst.msk [vmem:[#allocation3 + $0x170] sm:$0xff] %vm386, %v4510
        %v4527 = vld [vmem:[%s511 + $0x2] sm:$0xff]
        %v4528 = vld [vmem:[%s511 + $0xa] sm:$0xff]
        %v4529 = vld [vmem:[%s511 + $0x1a] sm:$0xff]
        %v4530 = vld [vmem:[%s511 + $0x22] sm:$0xff]
        %v4531 = vld [vmem:[%s511 + $0x32] sm:$0xff]
        %v4532 = vld [vmem:[%s511 + $0x3a] sm:$0xff]
        %v4533 = vld [vmem:[%s511 + $0x4a] sm:$0xff]
        %v4534 = vld [vmem:[%s511 + $0x52] sm:$0xff]
        %v4535 = vld [vmem:[%s511 + $0x62] sm:$0xff]
        %v4536 = vld [vmem:[%s511 + $0x6a] sm:$0xff]
        %v4537 = vld [vmem:[%s511 + $0x7a] sm:$0xff]
        %v4538 = vld [vmem:[%s511 + $0x82] sm:$0xff]
        %v4539 = vld [vmem:[%s511 + $0x92] sm:$0xff]
        %v4540 = vld [vmem:[%s511 + $0x9a] sm:$0xff]
        %v4541 = vld [vmem:[%s511 + $0xaa] sm:$0xff]
        %v4542 = vld [vmem:[%s511 + $0xb2] sm:$0xff]
        %v4543 = vld [vmem:[%s511 + $0xc2] sm:$0xff]
        %v4544 = vld [vmem:[%s511 + $0xca] sm:$0xff]
        %v4545 = vld [vmem:[%s511 + $0xda] sm:$0xff]
        %v4546 = vld [vmem:[%s511 + $0xe2] sm:$0xff]
        %v4547 = vld [vmem:[%s511 + $0xf2] sm:$0xff]
        %v4548 = vld [vmem:[%s511 + $0xfa] sm:$0xff]
        %v4549 = vld [vmem:[%s511 + $0x10a] sm:$0xff]
        %v4550 = vld [vmem:[%s511 + $0x112] sm:$0xff]
        %v4551 = vld [vmem:[%s511 + $0x122] sm:$0xff]
        %v4552 = vld [vmem:[%s511 + $0x12a] sm:$0xff]
        %v4553 = vld [vmem:[%s511 + $0x13a] sm:$0xff]
        %v4554 = vld [vmem:[%s511 + $0x142] sm:$0xff]
        %v4555 = vld [vmem:[%s511 + $0x152] sm:$0xff]
        %v4556 = vld [vmem:[%s511 + $0x15a] sm:$0xff]
        %v4557 = vld [vmem:[%s511 + $0x16a] sm:$0xff]
        %v4558 = vld [vmem:[%s511 + $0x172] sm:$0xff]
        %v4559 = vpack.c.bf16 %v4528, %v4527
        %v4560 = vpack.c.bf16 %v4530, %v4529
        %v4561 = vpack.c.bf16 %v4532, %v4531
        %v4562 = vpack.c.bf16 %v4534, %v4533
        %v4563 = vpack.c.bf16 %v4536, %v4535
        %v4564 = vpack.c.bf16 %v4538, %v4537
        %v4565 = vpack.c.bf16 %v4540, %v4539
        %v4566 = vpack.c.bf16 %v4542, %v4541
        %v4567 = vpack.c.bf16 %v4544, %v4543
        %v4568 = vpack.c.bf16 %v4546, %v4545
        %v4569 = vpack.c.bf16 %v4548, %v4547
        %v4570 = vpack.c.bf16 %v4550, %v4549
        %v4571 = vpack.c.bf16 %v4552, %v4551
        %v4572 = vpack.c.bf16 %v4554, %v4553
        %v4573 = vpack.c.bf16 %v4556, %v4555
        %v4574 = vpack.c.bf16 %v4558, %v4557
        %4591 = vrot.lane.b32.xlu0 %v4559, 32
        %v4592 = vpop.permute.xlu0 %4591
        %4593 = vrot.lane.b32.xlu0 %v4560, 32
        %v4594 = vpop.permute.xlu0 %4593
        %4595 = vrot.lane.b32.xlu0 %v4561, 32
        %v4596 = vpop.permute.xlu0 %4595
        %4597 = vrot.lane.b32.xlu0 %v4562, 32
        %v4598 = vpop.permute.xlu0 %4597
        %4599 = vrot.lane.b32.xlu0 %v4563, 32
        %v4600 = vpop.permute.xlu0 %4599
        %4601 = vrot.lane.b32.xlu0 %v4564, 32
        %v4602 = vpop.permute.xlu0 %4601
        %4603 = vrot.lane.b32.xlu0 %v4565, 32
        %v4604 = vpop.permute.xlu0 %4603
        %4605 = vrot.lane.b32.xlu0 %v4566, 32
        %v4606 = vpop.permute.xlu0 %4605
        %4607 = vrot.lane.b32.xlu0 %v4567, 32
        %v4608 = vpop.permute.xlu0 %4607
        %4609 = vrot.lane.b32.xlu0 %v4568, 32
        %v4610 = vpop.permute.xlu0 %4609
        %4611 = vrot.lane.b32.xlu0 %v4569, 32
        %v4612 = vpop.permute.xlu0 %4611
        %4613 = vrot.lane.b32.xlu0 %v4570, 32
        %v4614 = vpop.permute.xlu0 %4613
        %4615 = vrot.lane.b32.xlu0 %v4571, 32
        %v4616 = vpop.permute.xlu0 %4615
        %4617 = vrot.lane.b32.xlu0 %v4572, 32
        %v4618 = vpop.permute.xlu0 %4617
        %4619 = vrot.lane.b32.xlu0 %v4573, 32
        %v4620 = vpop.permute.xlu0 %4619
        %4621 = vrot.lane.b32.xlu0 %v4574, 32
        %v4622 = vpop.permute.xlu0 %4621
        %4639 = vst.msk [vmem:[#allocation3 + $0x8] sm:$0xff] %vm720, %v4592
        %4640 = vst.msk [vmem:[#allocation3 + $0x20] sm:$0xff] %vm720, %v4594
        %4641 = vst.msk [vmem:[#allocation3 + $0x38] sm:$0xff] %vm720, %v4596
        %4642 = vst.msk [vmem:[#allocation3 + $0x50] sm:$0xff] %vm720, %v4598
        %4643 = vst.msk [vmem:[#allocation3 + $0x68] sm:$0xff] %vm720, %v4600
        %4644 = vst.msk [vmem:[#allocation3 + $0x80] sm:$0xff] %vm720, %v4602
        %4645 = vst.msk [vmem:[#allocation3 + $0x98] sm:$0xff] %vm720, %v4604
        %4646 = vst.msk [vmem:[#allocation3 + $0xb0] sm:$0xff] %vm720, %v4606
        %4647 = vst.msk [vmem:[#allocation3 + $0xc8] sm:$0xff] %vm720, %v4608
        %4648 = vst.msk [vmem:[#allocation3 + $0xe0] sm:$0xff] %vm720, %v4610
        %4649 = vst.msk [vmem:[#allocation3 + $0xf8] sm:$0xff] %vm720, %v4612
        %4650 = vst.msk [vmem:[#allocation3 + $0x110] sm:$0xff] %vm720, %v4614
        %4651 = vst.msk [vmem:[#allocation3 + $0x128] sm:$0xff] %vm720, %v4616
        %4652 = vst.msk [vmem:[#allocation3 + $0x140] sm:$0xff] %vm720, %v4618
        %4653 = vst.msk [vmem:[#allocation3 + $0x158] sm:$0xff] %vm720, %v4620
        %4654 = vst.msk [vmem:[#allocation3 + $0x170] sm:$0xff] %vm720, %v4622
        %v4655 = vld [vmem:[%s1187] sm:$0xff]
        %v4656 = vld [vmem:[%s1187 + $0x8] sm:$0xff]
        %v4657 = vld [vmem:[%s1187 + $0x18] sm:$0xff]
        %v4658 = vld [vmem:[%s1187 + $0x20] sm:$0xff]
        %v4659 = vld [vmem:[%s1187 + $0x30] sm:$0xff]
        %v4660 = vld [vmem:[%s1187 + $0x38] sm:$0xff]
        %v4661 = vld [vmem:[%s1187 + $0x48] sm:$0xff]
        %v4662 = vld [vmem:[%s1187 + $0x50] sm:$0xff]
        %v4663 = vld [vmem:[%s1187 + $0x60] sm:$0xff]
        %v4664 = vld [vmem:[%s1187 + $0x68] sm:$0xff]
        %v4665 = vld [vmem:[%s1187 + $0x78] sm:$0xff]
        %v4666 = vld [vmem:[%s1187 + $0x80] sm:$0xff]
        %v4667 = vld [vmem:[%s1187 + $0x90] sm:$0xff]
        %v4668 = vld [vmem:[%s1187 + $0x98] sm:$0xff]
        %v4669 = vld [vmem:[%s1187 + $0xa8] sm:$0xff]
        %v4670 = vld [vmem:[%s1187 + $0xb0] sm:$0xff]
        %v4671 = vld [vmem:[%s1187 + $0xc0] sm:$0xff]
        %v4672 = vld [vmem:[%s1187 + $0xc8] sm:$0xff]
        %v4673 = vld [vmem:[%s1187 + $0xd8] sm:$0xff]
        %v4674 = vld [vmem:[%s1187 + $0xe0] sm:$0xff]
        %v4675 = vld [vmem:[%s1187 + $0xf0] sm:$0xff]
        %v4676 = vld [vmem:[%s1187 + $0xf8] sm:$0xff]
        %v4677 = vld [vmem:[%s1187 + $0x108] sm:$0xff]
        %v4678 = vld [vmem:[%s1187 + $0x110] sm:$0xff]
        %v4679 = vld [vmem:[%s1187 + $0x120] sm:$0xff]
        %v4680 = vld [vmem:[%s1187 + $0x128] sm:$0xff]
        %v4681 = vld [vmem:[%s1187 + $0x138] sm:$0xff]
        %v4682 = vld [vmem:[%s1187 + $0x140] sm:$0xff]
        %v4683 = vld [vmem:[%s1187 + $0x150] sm:$0xff]
        %v4684 = vld [vmem:[%s1187 + $0x158] sm:$0xff]
        %v4685 = vld [vmem:[%s1187 + $0x168] sm:$0xff]
        %v4686 = vld [vmem:[%s1187 + $0x170] sm:$0xff]
        %v4687 = vpack.c.bf16 %v4656, %v4655
        %v4688 = vpack.c.bf16 %v4658, %v4657
        %v4689 = vpack.c.bf16 %v4660, %v4659
        %v4690 = vpack.c.bf16 %v4662, %v4661
        %v4691 = vpack.c.bf16 %v4664, %v4663
        %v4692 = vpack.c.bf16 %v4666, %v4665
        %v4693 = vpack.c.bf16 %v4668, %v4667
        %v4694 = vpack.c.bf16 %v4670, %v4669
        %v4695 = vpack.c.bf16 %v4672, %v4671
        %v4696 = vpack.c.bf16 %v4674, %v4673
        %v4697 = vpack.c.bf16 %v4676, %v4675
        %v4698 = vpack.c.bf16 %v4678, %v4677
        %v4699 = vpack.c.bf16 %v4680, %v4679
        %v4700 = vpack.c.bf16 %v4682, %v4681
        %v4701 = vpack.c.bf16 %v4684, %v4683
        %v4702 = vpack.c.bf16 %v4686, %v4685
        %4719 = vrot.lane.b32.xlu0 %v4687, 64
        %v4720 = vpop.permute.xlu0 %4719
        %4721 = vrot.lane.b32.xlu0 %v4688, 64
        %v4722 = vpop.permute.xlu0 %4721
        %4723 = vrot.lane.b32.xlu0 %v4689, 64
        %v4724 = vpop.permute.xlu0 %4723
        %4725 = vrot.lane.b32.xlu0 %v4690, 64
        %v4726 = vpop.permute.xlu0 %4725
        %4727 = vrot.lane.b32.xlu0 %v4691, 64
        %v4728 = vpop.permute.xlu0 %4727
        %4729 = vrot.lane.b32.xlu0 %v4692, 64
        %v4730 = vpop.permute.xlu0 %4729
        %4731 = vrot.lane.b32.xlu0 %v4693, 64
        %v4732 = vpop.permute.xlu0 %4731
        %4733 = vrot.lane.b32.xlu0 %v4694, 64
        %v4734 = vpop.permute.xlu0 %4733
        %4735 = vrot.lane.b32.xlu0 %v4695, 64
        %v4736 = vpop.permute.xlu0 %4735
        %4737 = vrot.lane.b32.xlu0 %v4696, 64
        %v4738 = vpop.permute.xlu0 %4737
        %4739 = vrot.lane.b32.xlu0 %v4697, 64
        %v4740 = vpop.permute.xlu0 %4739
        %4741 = vrot.lane.b32.xlu0 %v4698, 64
        %v4742 = vpop.permute.xlu0 %4741
        %4743 = vrot.lane.b32.xlu0 %v4699, 64
        %v4744 = vpop.permute.xlu0 %4743
        %4745 = vrot.lane.b32.xlu0 %v4700, 64
        %v4746 = vpop.permute.xlu0 %4745
        %4747 = vrot.lane.b32.xlu0 %v4701, 64
        %v4748 = vpop.permute.xlu0 %4747
        %4749 = vrot.lane.b32.xlu0 %v4702, 64
        %v4750 = vpop.permute.xlu0 %4749
        %4767 = vst.msk [vmem:[#allocation3 + $0x8] sm:$0xff] %vm849, %v4720
        %4768 = vst.msk [vmem:[#allocation3 + $0x20] sm:$0xff] %vm849, %v4722
        %4769 = vst.msk [vmem:[#allocation3 + $0x38] sm:$0xff] %vm849, %v4724
        %4770 = vst.msk [vmem:[#allocation3 + $0x50] sm:$0xff] %vm849, %v4726
        %4771 = vst.msk [vmem:[#allocation3 + $0x68] sm:$0xff] %vm849, %v4728
        %4772 = vst.msk [vmem:[#allocation3 + $0x80] sm:$0xff] %vm849, %v4730
        %4773 = vst.msk [vmem:[#allocation3 + $0x98] sm:$0xff] %vm849, %v4732
        %4774 = vst.msk [vmem:[#allocation3 + $0xb0] sm:$0xff] %vm849, %v4734
        %4775 = vst.msk [vmem:[#allocation3 + $0xc8] sm:$0xff] %vm849, %v4736
        %4776 = vst.msk [vmem:[#allocation3 + $0xe0] sm:$0xff] %vm849, %v4738
        %4777 = vst.msk [vmem:[#allocation3 + $0xf8] sm:$0xff] %vm849, %v4740
        %4778 = vst.msk [vmem:[#allocation3 + $0x110] sm:$0xff] %vm849, %v4742
        %4779 = vst.msk [vmem:[#allocation3 + $0x128] sm:$0xff] %vm849, %v4744
        %4780 = vst.msk [vmem:[#allocation3 + $0x140] sm:$0xff] %vm849, %v4746
        %4781 = vst.msk [vmem:[#allocation3 + $0x158] sm:$0xff] %vm849, %v4748
        %4782 = vst.msk [vmem:[#allocation3 + $0x170] sm:$0xff] %vm849, %v4750
        %v4783 = vld [vmem:[%s1187 + $0x1] sm:$0xff]
        %v4784 = vld [vmem:[%s1187 + $0x9] sm:$0xff]
        %v4785 = vld [vmem:[%s1187 + $0x19] sm:$0xff]
        %v4786 = vld [vmem:[%s1187 + $0x21] sm:$0xff]
        %v4787 = vld [vmem:[%s1187 + $0x31] sm:$0xff]
        %v4788 = vld [vmem:[%s1187 + $0x39] sm:$0xff]
        %v4789 = vld [vmem:[%s1187 + $0x49] sm:$0xff]
        %v4790 = vld [vmem:[%s1187 + $0x51] sm:$0xff]
        %v4791 = vld [vmem:[%s1187 + $0x61] sm:$0xff]
        %v4792 = vld [vmem:[%s1187 + $0x69] sm:$0xff]
        %v4793 = vld [vmem:[%s1187 + $0x79] sm:$0xff]
        %v4794 = vld [vmem:[%s1187 + $0x81] sm:$0xff]
        %v4795 = vld [vmem:[%s1187 + $0x91] sm:$0xff]
        %v4796 = vld [vmem:[%s1187 + $0x99] sm:$0xff]
        %v4797 = vld [vmem:[%s1187 + $0xa9] sm:$0xff]
        %v4798 = vld [vmem:[%s1187 + $0xb1] sm:$0xff]
        %v4799 = vld [vmem:[%s1187 + $0xc1] sm:$0xff]
        %v4800 = vld [vmem:[%s1187 + $0xc9] sm:$0xff]
        %v4801 = vld [vmem:[%s1187 + $0xd9] sm:$0xff]
        %v4802 = vld [vmem:[%s1187 + $0xe1] sm:$0xff]
        %v4803 = vld [vmem:[%s1187 + $0xf1] sm:$0xff]
        %v4804 = vld [vmem:[%s1187 + $0xf9] sm:$0xff]
        %v4805 = vld [vmem:[%s1187 + $0x109] sm:$0xff]
        %v4806 = vld [vmem:[%s1187 + $0x111] sm:$0xff]
        %v4807 = vld [vmem:[%s1187 + $0x121] sm:$0xff]
        %v4808 = vld [vmem:[%s1187 + $0x129] sm:$0xff]
        %v4809 = vld [vmem:[%s1187 + $0x139] sm:$0xff]
        %v4810 = vld [vmem:[%s1187 + $0x141] sm:$0xff]
        %v4811 = vld [vmem:[%s1187 + $0x151] sm:$0xff]
        %v4812 = vld [vmem:[%s1187 + $0x159] sm:$0xff]
        %v4813 = vld [vmem:[%s1187 + $0x169] sm:$0xff]
        %v4814 = vld [vmem:[%s1187 + $0x171] sm:$0xff]
        %v4815 = vpack.c.bf16 %v4784, %v4783
        %v4816 = vpack.c.bf16 %v4786, %v4785
        %v4817 = vpack.c.bf16 %v4788, %v4787
        %v4818 = vpack.c.bf16 %v4790, %v4789
        %v4819 = vpack.c.bf16 %v4792, %v4791
        %v4820 = vpack.c.bf16 %v4794, %v4793
        %v4821 = vpack.c.bf16 %v4796, %v4795
        %v4822 = vpack.c.bf16 %v4798, %v4797
        %v4823 = vpack.c.bf16 %v4800, %v4799
        %v4824 = vpack.c.bf16 %v4802, %v4801
        %v4825 = vpack.c.bf16 %v4804, %v4803
        %v4826 = vpack.c.bf16 %v4806, %v4805
        %v4827 = vpack.c.bf16 %v4808, %v4807
        %v4828 = vpack.c.bf16 %v4810, %v4809
        %v4829 = vpack.c.bf16 %v4812, %v4811
        %v4830 = vpack.c.bf16 %v4814, %v4813
        %4847 = vrot.lane.b32.xlu0 %v4815, 96
        %v4848 = vpop.permute.xlu0 %4847
        %4849 = vrot.lane.b32.xlu0 %v4816, 96
        %v4850 = vpop.permute.xlu0 %4849
        %4851 = vrot.lane.b32.xlu0 %v4817, 96
        %v4852 = vpop.permute.xlu0 %4851
        %4853 = vrot.lane.b32.xlu0 %v4818, 96
        %v4854 = vpop.permute.xlu0 %4853
        %4855 = vrot.lane.b32.xlu0 %v4819, 96
        %v4856 = vpop.permute.xlu0 %4855
        %4857 = vrot.lane.b32.xlu0 %v4820, 96
        %v4858 = vpop.permute.xlu0 %4857
        %4859 = vrot.lane.b32.xlu0 %v4821, 96
        %v4860 = vpop.permute.xlu0 %4859
        %4861 = vrot.lane.b32.xlu0 %v4822, 96
        %v4862 = vpop.permute.xlu0 %4861
        %4863 = vrot.lane.b32.xlu0 %v4823, 96
        %v4864 = vpop.permute.xlu0 %4863
        %4865 = vrot.lane.b32.xlu0 %v4824, 96
        %v4866 = vpop.permute.xlu0 %4865
        %4867 = vrot.lane.b32.xlu0 %v4825, 96
        %v4868 = vpop.permute.xlu0 %4867
        %4869 = vrot.lane.b32.xlu0 %v4826, 96
        %v4870 = vpop.permute.xlu0 %4869
        %4871 = vrot.lane.b32.xlu0 %v4827, 96
        %v4872 = vpop.permute.xlu0 %4871
        %4873 = vrot.lane.b32.xlu0 %v4828, 96
        %v4874 = vpop.permute.xlu0 %4873
        %4875 = vrot.lane.b32.xlu0 %v4829, 96
        %v4876 = vpop.permute.xlu0 %4875
        %4877 = vrot.lane.b32.xlu0 %v4830, 96
        %v4878 = vpop.permute.xlu0 %4877
        %4895 = vst.msk [vmem:[#allocation3 + $0x8] sm:$0xff] %vm978, %v4848
        %4896 = vst.msk [vmem:[#allocation3 + $0x20] sm:$0xff] %vm978, %v4850
        %4897 = vst.msk [vmem:[#allocation3 + $0x38] sm:$0xff] %vm978, %v4852
        %4898 = vst.msk [vmem:[#allocation3 + $0x50] sm:$0xff] %vm978, %v4854
        %4899 = vst.msk [vmem:[#allocation3 + $0x68] sm:$0xff] %vm978, %v4856
        %4900 = vst.msk [vmem:[#allocation3 + $0x80] sm:$0xff] %vm978, %v4858
        %4901 = vst.msk [vmem:[#allocation3 + $0x98] sm:$0xff] %vm978, %v4860
        %4902 = vst.msk [vmem:[#allocation3 + $0xb0] sm:$0xff] %vm978, %v4862
        %4903 = vst.msk [vmem:[#allocation3 + $0xc8] sm:$0xff] %vm978, %v4864
        %4904 = vst.msk [vmem:[#allocation3 + $0xe0] sm:$0xff] %vm978, %v4866
        %4905 = vst.msk [vmem:[#allocation3 + $0xf8] sm:$0xff] %vm978, %v4868
        %4906 = vst.msk [vmem:[#allocation3 + $0x110] sm:$0xff] %vm978, %v4870
        %4907 = vst.msk [vmem:[#allocation3 + $0x128] sm:$0xff] %vm978, %v4872
        %4908 = vst.msk [vmem:[#allocation3 + $0x140] sm:$0xff] %vm978, %v4874
        %4909 = vst.msk [vmem:[#allocation3 + $0x158] sm:$0xff] %vm978, %v4876
        %4910 = vst.msk [vmem:[#allocation3 + $0x170] sm:$0xff] %vm978, %v4878
        %v4911 = vld [vmem:[%s1187 + $0x2] sm:$0xff]
        %v4912 = vld [vmem:[%s1187 + $0xa] sm:$0xff]
        %v4913 = vld [vmem:[%s1187 + $0x1a] sm:$0xff]
        %v4914 = vld [vmem:[%s1187 + $0x22] sm:$0xff]
        %v4915 = vld [vmem:[%s1187 + $0x32] sm:$0xff]
        %v4916 = vld [vmem:[%s1187 + $0x3a] sm:$0xff]
        %v4917 = vld [vmem:[%s1187 + $0x4a] sm:$0xff]
        %v4918 = vld [vmem:[%s1187 + $0x52] sm:$0xff]
        %v4919 = vld [vmem:[%s1187 + $0x62] sm:$0xff]
        %v4920 = vld [vmem:[%s1187 + $0x6a] sm:$0xff]
        %v4921 = vld [vmem:[%s1187 + $0x7a] sm:$0xff]
        %v4922 = vld [vmem:[%s1187 + $0x82] sm:$0xff]
        %v4923 = vld [vmem:[%s1187 + $0x92] sm:$0xff]
        %v4924 = vld [vmem:[%s1187 + $0x9a] sm:$0xff]
        %v4925 = vld [vmem:[%s1187 + $0xaa] sm:$0xff]
        %v4926 = vld [vmem:[%s1187 + $0xb2] sm:$0xff]
        %v4927 = vld [vmem:[%s1187 + $0xc2] sm:$0xff]
        %v4928 = vld [vmem:[%s1187 + $0xca] sm:$0xff]
        %v4929 = vld [vmem:[%s1187 + $0xda] sm:$0xff]
        %v4930 = vld [vmem:[%s1187 + $0xe2] sm:$0xff]
        %v4931 = vld [vmem:[%s1187 + $0xf2] sm:$0xff]
        %v4932 = vld [vmem:[%s1187 + $0xfa] sm:$0xff]
        %v4933 = vld [vmem:[%s1187 + $0x10a] sm:$0xff]
        %v4934 = vld [vmem:[%s1187 + $0x112] sm:$0xff]
        %v4935 = vld [vmem:[%s1187 + $0x122] sm:$0xff]
        %v4936 = vld [vmem:[%s1187 + $0x12a] sm:$0xff]
        %v4937 = vld [vmem:[%s1187 + $0x13a] sm:$0xff]
        %v4938 = vld [vmem:[%s1187 + $0x142] sm:$0xff]
        %v4939 = vld [vmem:[%s1187 + $0x152] sm:$0xff]
        %v4940 = vld [vmem:[%s1187 + $0x15a] sm:$0xff]
        %v4941 = vld [vmem:[%s1187 + $0x16a] sm:$0xff]
        %v4942 = vld [vmem:[%s1187 + $0x172] sm:$0xff]
        %v4943 = vpack.c.bf16 %v4912, %v4911
        %v4944 = vpack.c.bf16 %v4914, %v4913
        %v4945 = vpack.c.bf16 %v4916, %v4915
        %v4946 = vpack.c.bf16 %v4918, %v4917
        %v4947 = vpack.c.bf16 %v4920, %v4919
        %v4948 = vpack.c.bf16 %v4922, %v4921
        %v4949 = vpack.c.bf16 %v4924, %v4923
        %v4950 = vpack.c.bf16 %v4926, %v4925
        %v4951 = vpack.c.bf16 %v4928, %v4927
        %v4952 = vpack.c.bf16 %v4930, %v4929
        %v4953 = vpack.c.bf16 %v4932, %v4931
        %v4954 = vpack.c.bf16 %v4934, %v4933
        %v4955 = vpack.c.bf16 %v4936, %v4935
        %v4956 = vpack.c.bf16 %v4938, %v4937
        %v4957 = vpack.c.bf16 %v4940, %v4939
        %v4958 = vpack.c.bf16 %v4942, %v4941
        %4959 = vst.msk [vmem:[#allocation3 + $0x10] sm:$0xff] %vm386, %v4943
        %4960 = vst.msk [vmem:[#allocation3 + $0x28] sm:$0xff] %vm386, %v4944
        %4961 = vst.msk [vmem:[#allocation3 + $0x40] sm:$0xff] %vm386, %v4945
        %4962 = vst.msk [vmem:[#allocation3 + $0x58] sm:$0xff] %vm386, %v4946
        %4963 = vst.msk [vmem:[#allocation3 + $0x70] sm:$0xff] %vm386, %v4947
        %4964 = vst.msk [vmem:[#allocation3 + $0x88] sm:$0xff] %vm386, %v4948
        %4965 = vst.msk [vmem:[#allocation3 + $0xa0] sm:$0xff] %vm386, %v4949
        %4966 = vst.msk [vmem:[#allocation3 + $0xb8] sm:$0xff] %vm386, %v4950
        %4967 = vst.msk [vmem:[#allocation3 + $0xd0] sm:$0xff] %vm386, %v4951
        %4968 = vst.msk [vmem:[#allocation3 + $0xe8] sm:$0xff] %vm386, %v4952
        %4969 = vst.msk [vmem:[#allocation3 + $0x100] sm:$0xff] %vm386, %v4953
        %4970 = vst.msk [vmem:[#allocation3 + $0x118] sm:$0xff] %vm386, %v4954
        %4971 = vst.msk [vmem:[#allocation3 + $0x130] sm:$0xff] %vm386, %v4955
        %4972 = vst.msk [vmem:[#allocation3 + $0x148] sm:$0xff] %vm386, %v4956
        %4973 = vst.msk [vmem:[#allocation3 + $0x160] sm:$0xff] %vm386, %v4957
        %4974 = vst.msk [vmem:[#allocation3 + $0x178] sm:$0xff] %vm386, %v4958
        %v4975 = vld [vmem:[#allocation3] sm:$0xff]
        %v4976 = vld [vmem:[#allocation3 + $0x8] sm:$0xff]
        %v4977 = vld [vmem:[#allocation3 + $0x10] sm:$0xff]
        %v4978 = vld [vmem:[#allocation3 + $0x18] sm:$0xff]
        %v4979 = vld [vmem:[#allocation3 + $0x20] sm:$0xff]
        %v4980 = vld [vmem:[#allocation3 + $0x28] sm:$0xff]
        %v4981 = vld [vmem:[#allocation3 + $0x30] sm:$0xff]
        %v4982 = vld [vmem:[#allocation3 + $0x38] sm:$0xff]
        %v4983 = vld [vmem:[#allocation3 + $0x40] sm:$0xff]
        %v4984 = vld [vmem:[#allocation3 + $0x48] sm:$0xff]
        %v4985 = vld [vmem:[#allocation3 + $0x50] sm:$0xff]
        %v4986 = vld [vmem:[#allocation3 + $0x58] sm:$0xff]
        %v4987 = vld [vmem:[#allocation3 + $0x60] sm:$0xff]
        %v4988 = vld [vmem:[#allocation3 + $0x68] sm:$0xff]
        %v4989 = vld [vmem:[#allocation3 + $0x70] sm:$0xff]
        %v4990 = vld [vmem:[#allocation3 + $0x78] sm:$0xff]
        %v4991 = vld [vmem:[#allocation3 + $0x80] sm:$0xff]
        %v4992 = vld [vmem:[#allocation3 + $0x88] sm:$0xff]
        %v4993 = vld [vmem:[#allocation3 + $0x90] sm:$0xff]
        %v4994 = vld [vmem:[#allocation3 + $0x98] sm:$0xff]
        %v4995 = vld [vmem:[#allocation3 + $0xa0] sm:$0xff]
        %v4996 = vld [vmem:[#allocation3 + $0xa8] sm:$0xff]
        %v4997 = vld [vmem:[#allocation3 + $0xb0] sm:$0xff]
        %v4998 = vld [vmem:[#allocation3 + $0xb8] sm:$0xff]
        %v4999 = vld [vmem:[#allocation3 + $0xc0] sm:$0xff]
        %v5000 = vld [vmem:[#allocation3 + $0xc8] sm:$0xff]
        %v5001 = vld [vmem:[#allocation3 + $0xd0] sm:$0xff]
        %v5002 = vld [vmem:[#allocation3 + $0xd8] sm:$0xff]
        %v5003 = vld [vmem:[#allocation3 + $0xe0] sm:$0xff]
        %v5004 = vld [vmem:[#allocation3 + $0xe8] sm:$0xff]
        %v5005 = vld [vmem:[#allocation3 + $0xf0] sm:$0xff]
        %v5006 = vld [vmem:[#allocation3 + $0xf8] sm:$0xff]
        %v5007 = vld [vmem:[#allocation3 + $0x100] sm:$0xff]
        %v5008 = vld [vmem:[#allocation3 + $0x108] sm:$0xff]
        %v5009 = vld [vmem:[#allocation3 + $0x110] sm:$0xff]
        %v5010 = vld [vmem:[#allocation3 + $0x118] sm:$0xff]
        %v5011 = vld [vmem:[#allocation3 + $0x120] sm:$0xff]
        %v5012 = vld [vmem:[#allocation3 + $0x128] sm:$0xff]
        %v5013 = vld [vmem:[#allocation3 + $0x130] sm:$0xff]
        %v5014 = vld [vmem:[#allocation3 + $0x138] sm:$0xff]
        %v5015 = vld [vmem:[#allocation3 + $0x140] sm:$0xff]
        %v5016 = vld [vmem:[#allocation3 + $0x148] sm:$0xff]
        %v5017 = vld [vmem:[#allocation3 + $0x150] sm:$0xff]
        %v5018 = vld [vmem:[#allocation3 + $0x158] sm:$0xff]
        %v5019 = vld [vmem:[#allocation3 + $0x160] sm:$0xff]
        %v5020 = vld [vmem:[#allocation3 + $0x168] sm:$0xff]
        %v5021 = vld [vmem:[#allocation3 + $0x170] sm:$0xff]
        %v5022 = vld [vmem:[#allocation3 + $0x178] sm:$0xff]
        %v5024 = vlaneseq
        %v5025 = vshrl.u32 %v5024, 7
        %v5026 = vsub.s32 0, %v5025
        %v5027 = vrot.slane %v3982, %v5026
        %v5065 = vunpack.c.l.b16 %v3945
        %v5066 = vunpack.c.l.b16 %v3946
        %v5067 = vunpack.c.l.b16 %v3947
        %v5068 = vunpack.c.l.b16 %v3948
        %v5069 = vunpack.c.l.b16 %v3949
        %v5070 = vunpack.c.l.b16 %v3950
        %v5071 = vunpack.c.l.b16 %v3951
        %v5072 = vunpack.c.l.b16 %v3952
        %v5073 = vunpack.c.l.b16 %v3953
        %v5074 = vunpack.c.l.b16 %v3954
        %v5075 = vunpack.c.l.b16 %v3955
        %v5076 = vunpack.c.l.b16 %v3956
        %v5077 = vunpack.c.l.b16 %v3957
        %v5078 = vunpack.c.l.b16 %v3958
        %v5079 = vunpack.c.l.b16 %v3959
        %v5080 = vunpack.c.l.b16 %v3960
        %v5081 = vunpack.c.l.b16 %v3961
        %v5082 = vunpack.c.l.b16 %v3962
        %v5083 = vunpack.c.l.b16 %v3963
        %v5084 = vunpack.c.l.b16 %v3964
        %v5085 = vunpack.c.l.b16 %v3965
        %v5086 = vunpack.c.l.b16 %v3966
        %v5087 = vunpack.c.l.b16 %v3967
        %v5088 = vunpack.c.l.b16 %v3968
        %v5089 = vunpack.c.l.b16 %v3969
        %v5090 = vunpack.c.l.b16 %v3970
        %v5091 = vunpack.c.l.b16 %v3971
        %v5092 = vunpack.c.l.b16 %v3972
        %v5093 = vunpack.c.l.b16 %v3973
        %v5094 = vunpack.c.l.b16 %v3974
        %v5095 = vunpack.c.l.b16 %v3975
        %v5096 = vunpack.c.l.b16 %v3976
        %v5097 = vunpack.c.l.b16 %v3977
        %v5098 = vunpack.c.l.b16 %v3978
        %v5099 = vunpack.c.l.b16 %v3979
        %v5100 = vunpack.c.l.b16 %v3980
        %v5101 = vpack.c.b16 %v5066, %v5065
        %v5102 = vpack.c.b16 %v5068, %v5067
        %v5103 = vpack.c.b16 %v5070, %v5069
        %v5104 = vpack.c.b16 %v5072, %v5071
        %v5105 = vpack.c.b16 %v5074, %v5073
        %v5106 = vpack.c.b16 %v5076, %v5075
        %v5107 = vpack.c.b16 %v5078, %v5077
        %v5108 = vpack.c.b16 %v5080, %v5079
        %v5109 = vpack.c.b16 %v5082, %v5081
        %v5110 = vpack.c.b16 %v5084, %v5083
        %v5111 = vpack.c.b16 %v5086, %v5085
        %v5112 = vpack.c.b16 %v5088, %v5087
        %v5113 = vpack.c.b16 %v5090, %v5089
        %v5114 = vpack.c.b16 %v5092, %v5091
        %v5115 = vpack.c.b16 %v5094, %v5093
        %v5116 = vpack.c.b16 %v5096, %v5095
        %v5117 = vpack.c.b16 %v5098, %v5097
        %v5118 = vpack.c.b16 %v5100, %v5099
        %v5138 = vsel %vm386, %v4977, 0
        %v5141 = vsel %vm386, %v4980, 0
        %v5144 = vsel %vm386, %v4983, 0
        %v5147 = vsel %vm386, %v4986, 0
        %v5150 = vsel %vm386, %v4989, 0
        %v5153 = vsel %vm386, %v4992, 0
        %v5156 = vsel %vm386, %v4995, 0
        %v5159 = vsel %vm386, %v4998, 0
        %v5162 = vsel %vm386, %v5001, 0
        %v5165 = vsel %vm386, %v5004, 0
        %v5168 = vsel %vm386, %v5007, 0
        %v5171 = vsel %vm386, %v5010, 0
        %v5174 = vsel %vm386, %v5013, 0
        %v5177 = vsel %vm386, %v5016, 0
        %v5180 = vsel %vm386, %v5019, 0
        %v5183 = vsel %vm386, %v5022, 0
        %5185 = vmatprep.subr.bf16.mxu0 0
        %5186 = vmatpush1.bf16.msra.mxu0 %v5101
        %5187 = vmatprep.subr.bf16.mxu0 0
        %5188 = vmatpush1.bf16.msra.mxu0 %v5102
        %5189 = vmatprep.subr.bf16.mxu0 0
        %5190 = vmatpush1.bf16.msra.mxu0 %v5103
        %5191 = vmatprep.subr.bf16.mxu0 0
        %5192 = vmatpush1.bf16.msra.mxu0 %v5104
        %5193 = vmatprep.subr.bf16.mxu0 0
        %5194 = vmatpush1.bf16.msra.mxu0 %v5105
        %5195 = vmatprep.subr.bf16.mxu0 0
        %5196 = vmatpush1.bf16.msra.mxu0 %v5106
        %5197 = vmatprep.subr.bf16.mxu0 0
        %5198 = vmatpush1.bf16.msra.mxu0 %v5107
        %5199 = vmatprep.subr.bf16.mxu0 0
        %5200 = vmatpush1.bf16.msra.mxu0 %v5108
        %5201 = vmatprep.subr.bf16.mxu0 0
        %5202 = vmatpush1.bf16.msra.mxu0 %v5109
        %5203 = vmatprep.subr.bf16.mxu0 0
        %5204 = vmatpush1.bf16.msra.mxu0 %v5110
        %5205 = vmatprep.subr.bf16.mxu0 0
        %5206 = vmatpush1.bf16.msra.mxu0 %v5111
        %5207 = vmatprep.subr.bf16.mxu0 0
        %5208 = vmatpush1.bf16.msra.mxu0 %v5112
        %5209 = vmatprep.subr.bf16.mxu0 0
        %5210 = vmatpush1.bf16.msra.mxu0 %v5113
        %5211 = vmatprep.subr.bf16.mxu0 0
        %5212 = vmatpush1.bf16.msra.mxu0 %v5114
        %5213 = vmatprep.subr.bf16.mxu0 0
        %5214 = vmatpush1.bf16.msra.mxu0 %v5115
        %5215 = vmatprep.subr.bf16.mxu0 0
        %5216 = vmatpush1.bf16.msra.mxu0 %v5116
        %5217 = vmatprep.mubr.bf16.mxu0 %v4976
        %5218 = vmatmul.mubr.bf16.gmra.mrb[0].mxu0 %v4975
        %v5219 = vpop.f32.mrb[0].mxu0
        %v5220 = vadd.f32 %v5027, %v5219
        %v5221 = vpop.f32.mrb[0].mxu0
        %v5222 = vpop.f32.mrb[0].mxu0
        %v5223 = vadd.f32 %v5027, %v5222
        %v5224 = vpop.f32.mrb[0].mxu0
        %5225 = vmatprep.mubr.bf16.mxu0 %v4979
        %5226 = vmatmul.mubr.bf16.gmra.mrb[0].mxu0 %v4978
        %v5227 = vpop.f32.mrb[0].mxu0
        %v5228 = vadd.f32 %v5027, %v5227
        %v5229 = vpop.f32.mrb[0].mxu0
        %v5230 = vpop.f32.mrb[0].mxu0
        %v5231 = vadd.f32 %v5027, %v5230
        %v5232 = vpop.f32.mrb[0].mxu0
        %5233 = vmatprep.mubr.bf16.mxu0 %v4982
        %5234 = vmatmul.mubr.bf16.gmra.mrb[0].mxu0 %v4981
        %v5235 = vpop.f32.mrb[0].mxu0
        %v5236 = vadd.f32 %v5027, %v5235
        %v5237 = vpop.f32.mrb[0].mxu0
        %v5238 = vpop.f32.mrb[0].mxu0
        %v5239 = vadd.f32 %v5027, %v5238
        %v5240 = vpop.f32.mrb[0].mxu0
        %5241 = vmatprep.mubr.bf16.mxu0 %v4985
        %5242 = vmatmul.mubr.bf16.gmra.mrb[0].mxu0 %v4984
        %v5243 = vpop.f32.mrb[0].mxu0
        %v5244 = vadd.f32 %v5027, %v5243
        %v5245 = vpop.f32.mrb[0].mxu0
        %v5246 = vpop.f32.mrb[0].mxu0
        %v5247 = vadd.f32 %v5027, %v5246
        %v5248 = vpop.f32.mrb[0].mxu0
        %5249 = vmatprep.mubr.bf16.mxu0 %v4988
        %5250 = vmatmul.mubr.bf16.gmra.mrb[0].mxu0 %v4987
        %v5251 = vpop.f32.mrb[0].mxu0
        %v5252 = vadd.f32 %v5027, %v5251
        %v5253 = vpop.f32.mrb[0].mxu0
        %v5254 = vpop.f32.mrb[0].mxu0
        %v5255 = vadd.f32 %v5027, %v5254
        %v5256 = vpop.f32.mrb[0].mxu0
        %5257 = vmatprep.mubr.bf16.mxu0 %v4991
        %5258 = vmatmul.mubr.bf16.gmra.mrb[0].mxu0 %v4990
        %v5259 = vpop.f32.mrb[0].mxu0
        %v5260 = vadd.f32 %v5027, %v5259
        %v5261 = vpop.f32.mrb[0].mxu0
        %v5262 = vpop.f32.mrb[0].mxu0
        %v5263 = vadd.f32 %v5027, %v5262
        %v5264 = vpop.f32.mrb[0].mxu0
        %5265 = vmatprep.mubr.bf16.mxu0 %v4994
        %5266 = vmatmul.mubr.bf16.gmra.mrb[0].mxu0 %v4993
        %v5267 = vpop.f32.mrb[0].mxu0
        %v5268 = vadd.f32 %v5027, %v5267
        %v5269 = vpop.f32.mrb[0].mxu0
        %v5270 = vpop.f32.mrb[0].mxu0
        %v5271 = vadd.f32 %v5027, %v5270
        %v5272 = vpop.f32.mrb[0].mxu0
        %5273 = vmatprep.mubr.bf16.mxu0 %v4997
        %5274 = vmatmul.mubr.bf16.gmra.mrb[0].mxu0 %v4996
        %v5275 = vpop.f32.mrb[0].mxu0
        %v5276 = vadd.f32 %v5027, %v5275
        %v5277 = vpop.f32.mrb[0].mxu0
        %v5278 = vpop.f32.mrb[0].mxu0
        %v5279 = vadd.f32 %v5027, %v5278
        %v5280 = vpop.f32.mrb[0].mxu0
        %5281 = vmatprep.mubr.bf16.mxu0 %v5000
        %5282 = vmatmul.mubr.bf16.gmra.mrb[0].mxu0 %v4999
        %v5283 = vpop.f32.mrb[0].mxu0
        %v5284 = vadd.f32 %v5027, %v5283
        %v5285 = vpop.f32.mrb[0].mxu0
        %v5286 = vpop.f32.mrb[0].mxu0
        %v5287 = vadd.f32 %v5027, %v5286
        %v5288 = vpop.f32.mrb[0].mxu0
        %5289 = vmatprep.mubr.bf16.mxu0 %v5003
        %5290 = vmatmul.mubr.bf16.gmra.mrb[0].mxu0 %v5002
        %v5291 = vpop.f32.mrb[0].mxu0
        %v5292 = vadd.f32 %v5027, %v5291
        %v5293 = vpop.f32.mrb[0].mxu0
        %v5294 = vpop.f32.mrb[0].mxu0
        %v5295 = vadd.f32 %v5027, %v5294
        %v5296 = vpop.f32.mrb[0].mxu0
        %5297 = vmatprep.mubr.bf16.mxu0 %v5006
        %5298 = vmatmul.mubr.bf16.gmra.mrb[0].mxu0 %v5005
        %v5299 = vpop.f32.mrb[0].mxu0
        %v5300 = vadd.f32 %v5027, %v5299
        %v5301 = vpop.f32.mrb[0].mxu0
        %v5302 = vpop.f32.mrb[0].mxu0
        %v5303 = vadd.f32 %v5027, %v5302
        %v5304 = vpop.f32.mrb[0].mxu0
        %5305 = vmatprep.mubr.bf16.mxu0 %v5009
        %5306 = vmatmul.mubr.bf16.gmra.mrb[0].mxu0 %v5008
        %v5307 = vpop.f32.mrb[0].mxu0
        %v5308 = vadd.f32 %v5027, %v5307
        %v5309 = vpop.f32.mrb[0].mxu0
        %v5310 = vpop.f32.mrb[0].mxu0
        %v5311 = vadd.f32 %v5027, %v5310
        %v5312 = vpop.f32.mrb[0].mxu0
        %5313 = vmatprep.mubr.bf16.mxu0 %v5012
        %5314 = vmatmul.mubr.bf16.gmra.mrb[0].mxu0 %v5011
        %v5315 = vpop.f32.mrb[0].mxu0
        %v5316 = vadd.f32 %v5027, %v5315
        %v5317 = vpop.f32.mrb[0].mxu0
        %v5318 = vpop.f32.mrb[0].mxu0
        %v5319 = vadd.f32 %v5027, %v5318
        %v5320 = vpop.f32.mrb[0].mxu0
        %5321 = vmatprep.mubr.bf16.mxu0 %v5015
        %5322 = vmatmul.mubr.bf16.gmra.mrb[0].mxu0 %v5014
        %v5323 = vpop.f32.mrb[0].mxu0
        %v5324 = vadd.f32 %v5027, %v5323
        %v5325 = vpop.f32.mrb[0].mxu0
        %v5326 = vpop.f32.mrb[0].mxu0
        %v5327 = vadd.f32 %v5027, %v5326
        %v5328 = vpop.f32.mrb[0].mxu0
        %5329 = vmatprep.mubr.bf16.mxu0 %v5018
        %5330 = vmatmul.mubr.bf16.gmra.mrb[0].mxu0 %v5017
        %v5331 = vpop.f32.mrb[0].mxu0
        %v5332 = vadd.f32 %v5027, %v5331
        %v5333 = vpop.f32.mrb[0].mxu0
        %v5334 = vpop.f32.mrb[0].mxu0
        %v5335 = vadd.f32 %v5027, %v5334
        %v5336 = vpop.f32.mrb[0].mxu0
        %5337 = vmatprep.mubr.bf16.mxu0 %v5021
        %5338 = vmatmul.mubr.bf16.gmra.mrb[0].mxu0 %v5020
        %v5339 = vpop.f32.mrb[0].mxu0
        %v5340 = vadd.f32 %v5027, %v5339
        %v5341 = vpop.f32.mrb[0].mxu0
        %v5342 = vpop.f32.mrb[0].mxu0
        %v5343 = vadd.f32 %v5027, %v5342
        %v5344 = vpop.f32.mrb[0].mxu0
        %5345 = vdwg.mxu0
        %5346 = vmatprep.subr.bf16.mxu0 0
        %5347 = vmatpush1.bf16.msra.mxu0 %v5117
        %5348 = vmatprep.subr.bf16.mxu0 0
        %5349 = vmatpush1.bf16.msra.mxu0 %v5118
        %5350 = vmatprep.subr.bf16.mxu0 0
        %5351 = vmatpush1.bf16.msra.mxu0 0
        %5352 = vmatprep.subr.bf16.mxu0 0
        %5353 = vmatpush1.bf16.msra.mxu0 0
        %5354 = vmatprep.subr.bf16.mxu0 0
        %5355 = vmatpush1.bf16.msra.mxu0 0
        %5356 = vmatprep.subr.bf16.mxu0 0
        %5357 = vmatpush1.bf16.msra.mxu0 0
        %5358 = vmatprep.subr.bf16.mxu0 0
        %5359 = vmatpush1.bf16.msra.mxu0 0
        %5360 = vmatprep.subr.bf16.mxu0 0
        %5361 = vmatpush1.bf16.msra.mxu0 0
        %5362 = vmatprep.subr.bf16.mxu0 0
        %5363 = vmatpush1.bf16.msra.mxu0 0
        %5364 = vmatprep.subr.bf16.mxu0 0
        %5365 = vmatpush1.bf16.msra.mxu0 0
        %5366 = vmatprep.subr.bf16.mxu0 0
        %5367 = vmatpush1.bf16.msra.mxu0 0
        %5368 = vmatprep.subr.bf16.mxu0 0
        %5369 = vmatpush1.bf16.msra.mxu0 0
        %5370 = vmatprep.subr.bf16.mxu0 0
        %5371 = vmatpush1.bf16.msra.mxu0 0
        %5372 = vmatprep.subr.bf16.mxu0 0
        %5373 = vmatpush1.bf16.msra.mxu0 0
        %5374 = vmatprep.subr.bf16.mxu0 0
        %5375 = vmatpush1.bf16.msra.mxu0 0
        %5376 = vmatprep.subr.bf16.mxu0 0
        %5377 = vmatpush1.bf16.msra.mxu0 0
        %5378 = vmatprep.mubr.bf16.mxu0 0
        %5379 = vmatmul.mubr.bf16.gmra.mrb[0].mxu0 %v5138
        %v5380 = vpop.f32.mrb[0].mxu0
        %v5381 = vadd.f32 %v5220, %v5380
        %v5382 = vpop.f32.mrb[0].mxu0
        %v5383 = vpop.f32.mrb[0].mxu0
        %v5384 = vadd.f32 %v5223, %v5383
        %v5385 = vpop.f32.mrb[0].mxu0
        %5386 = vmatprep.mubr.bf16.mxu0 0
        %5387 = vmatmul.mubr.bf16.gmra.mrb[0].mxu0 %v5141
        %v5388 = vpop.f32.mrb[0].mxu0
        %v5389 = vadd.f32 %v5228, %v5388
        %v5390 = vpop.f32.mrb[0].mxu0
        %v5391 = vpop.f32.mrb[0].mxu0
        %v5392 = vadd.f32 %v5231, %v5391
        %v5393 = vpop.f32.mrb[0].mxu0
        %5394 = vmatprep.mubr.bf16.mxu0 0
        %5395 = vmatmul.mubr.bf16.gmra.mrb[0].mxu0 %v5144
        %v5396 = vpop.f32.mrb[0].mxu0
        %v5397 = vadd.f32 %v5236, %v5396
        %v5398 = vpop.f32.mrb[0].mxu0
        %v5399 = vpop.f32.mrb[0].mxu0
        %v5400 = vadd.f32 %v5239, %v5399
        %v5401 = vpop.f32.mrb[0].mxu0
        %5402 = vmatprep.mubr.bf16.mxu0 0
        %5403 = vmatmul.mubr.bf16.gmra.mrb[0].mxu0 %v5147
        %v5404 = vpop.f32.mrb[0].mxu0
        %v5405 = vadd.f32 %v5244, %v5404
        %v5406 = vpop.f32.mrb[0].mxu0
        %v5407 = vpop.f32.mrb[0].mxu0
        %v5408 = vadd.f32 %v5247, %v5407
        %v5409 = vpop.f32.mrb[0].mxu0
        %5410 = vmatprep.mubr.bf16.mxu0 0
        %5411 = vmatmul.mubr.bf16.gmra.mrb[0].mxu0 %v5150
        %v5412 = vpop.f32.mrb[0].mxu0
        %v5413 = vadd.f32 %v5252, %v5412
        %v5414 = vpop.f32.mrb[0].mxu0
        %v5415 = vpop.f32.mrb[0].mxu0
        %v5416 = vadd.f32 %v5255, %v5415
        %v5417 = vpop.f32.mrb[0].mxu0
        %5418 = vmatprep.mubr.bf16.mxu0 0
        %5419 = vmatmul.mubr.bf16.gmra.mrb[0].mxu0 %v5153
        %v5420 = vpop.f32.mrb[0].mxu0
        %v5421 = vadd.f32 %v5260, %v5420
        %v5422 = vpop.f32.mrb[0].mxu0
        %v5423 = vpop.f32.mrb[0].mxu0
        %v5424 = vadd.f32 %v5263, %v5423
        %v5425 = vpop.f32.mrb[0].mxu0
        %5426 = vmatprep.mubr.bf16.mxu0 0
        %5427 = vmatmul.mubr.bf16.gmra.mrb[0].mxu0 %v5156
        %v5428 = vpop.f32.mrb[0].mxu0
        %v5429 = vadd.f32 %v5268, %v5428
        %v5430 = vpop.f32.mrb[0].mxu0
        %v5431 = vpop.f32.mrb[0].mxu0
        %v5432 = vadd.f32 %v5271, %v5431
        %v5433 = vpop.f32.mrb[0].mxu0
        %5434 = vmatprep.mubr.bf16.mxu0 0
        %5435 = vmatmul.mubr.bf16.gmra.mrb[0].mxu0 %v5159
        %v5436 = vpop.f32.mrb[0].mxu0
        %v5437 = vadd.f32 %v5276, %v5436
        %v5438 = vpop.f32.mrb[0].mxu0
        %v5439 = vpop.f32.mrb[0].mxu0
        %v5440 = vadd.f32 %v5279, %v5439
        %v5441 = vpop.f32.mrb[0].mxu0
        %5442 = vmatprep.mubr.bf16.mxu0 0
        %5443 = vmatmul.mubr.bf16.gmra.mrb[0].mxu0 %v5162
        %v5444 = vpop.f32.mrb[0].mxu0
        %v5445 = vadd.f32 %v5284, %v5444
        %v5446 = vpop.f32.mrb[0].mxu0
        %v5447 = vpop.f32.mrb[0].mxu0
        %v5448 = vadd.f32 %v5287, %v5447
        %v5449 = vpop.f32.mrb[0].mxu0
        %5450 = vmatprep.mubr.bf16.mxu0 0
        %5451 = vmatmul.mubr.bf16.gmra.mrb[0].mxu0 %v5165
        %v5452 = vpop.f32.mrb[0].mxu0
        %v5453 = vadd.f32 %v5292, %v5452
        %v5454 = vpop.f32.mrb[0].mxu0
        %v5455 = vpop.f32.mrb[0].mxu0
        %v5456 = vadd.f32 %v5295, %v5455
        %v5457 = vpop.f32.mrb[0].mxu0
        %5458 = vmatprep.mubr.bf16.mxu0 0
        %5459 = vmatmul.mubr.bf16.gmra.mrb[0].mxu0 %v5168
        %v5460 = vpop.f32.mrb[0].mxu0
        %v5461 = vadd.f32 %v5300, %v5460
        %v5462 = vpop.f32.mrb[0].mxu0
        %v5463 = vpop.f32.mrb[0].mxu0
        %v5464 = vadd.f32 %v5303, %v5463
        %v5465 = vpop.f32.mrb[0].mxu0
        %5466 = vmatprep.mubr.bf16.mxu0 0
        %5467 = vmatmul.mubr.bf16.gmra.mrb[0].mxu0 %v5171
        %v5468 = vpop.f32.mrb[0].mxu0
        %v5469 = vadd.f32 %v5308, %v5468
        %v5470 = vpop.f32.mrb[0].mxu0
        %v5471 = vpop.f32.mrb[0].mxu0
        %v5472 = vadd.f32 %v5311, %v5471
        %v5473 = vpop.f32.mrb[0].mxu0
        %5474 = vmatprep.mubr.bf16.mxu0 0
        %5475 = vmatmul.mubr.bf16.gmra.mrb[0].mxu0 %v5174
        %v5476 = vpop.f32.mrb[0].mxu0
        %v5477 = vadd.f32 %v5316, %v5476
        %v5478 = vpop.f32.mrb[0].mxu0
        %v5479 = vpop.f32.mrb[0].mxu0
        %v5480 = vadd.f32 %v5319, %v5479
        %v5481 = vpop.f32.mrb[0].mxu0
        %5482 = vmatprep.mubr.bf16.mxu0 0
        %5483 = vmatmul.mubr.bf16.gmra.mrb[0].mxu0 %v5177
        %v5484 = vpop.f32.mrb[0].mxu0
        %v5485 = vadd.f32 %v5324, %v5484
        %v5486 = vpop.f32.mrb[0].mxu0
        %v5487 = vpop.f32.mrb[0].mxu0
        %v5488 = vadd.f32 %v5327, %v5487
        %v5489 = vpop.f32.mrb[0].mxu0
        %5490 = vmatprep.mubr.bf16.mxu0 0
        %5491 = vmatmul.mubr.bf16.gmra.mrb[0].mxu0 %v5180
        %v5492 = vpop.f32.mrb[0].mxu0
        %v5493 = vadd.f32 %v5332, %v5492
        %v5494 = vpop.f32.mrb[0].mxu0
        %v5495 = vpop.f32.mrb[0].mxu0
        %v5496 = vadd.f32 %v5335, %v5495
        %v5497 = vpop.f32.mrb[0].mxu0
        %5498 = vmatprep.mubr.bf16.mxu0 0
        %5499 = vmatmul.mubr.bf16.gmra.mrb[0].mxu0 %v5183
        %v5500 = vpop.f32.mrb[0].mxu0
        %v5501 = vadd.f32 %v5340, %v5500
        %v5502 = vpop.f32.mrb[0].mxu0
        %v5503 = vpop.f32.mrb[0].mxu0
        %v5504 = vadd.f32 %v5343, %v5503
        %v5505 = vpop.f32.mrb[0].mxu0
        %5506 = vdwg.mxu0
        %v5507 = vmax.f32 %v5381, 0.0
        %v5508 = vmax.f32 %v5384, 0.0
        %v5509 = vmax.f32 %v5389, 0.0
        %v5510 = vmax.f32 %v5392, 0.0
        %v5511 = vmax.f32 %v5397, 0.0
        %v5512 = vmax.f32 %v5400, 0.0
        %v5513 = vmax.f32 %v5405, 0.0
        %v5514 = vmax.f32 %v5408, 0.0
        %v5515 = vmax.f32 %v5413, 0.0
        %v5516 = vmax.f32 %v5416, 0.0
        %v5517 = vmax.f32 %v5421, 0.0
        %v5518 = vmax.f32 %v5424, 0.0
        %v5519 = vmax.f32 %v5429, 0.0
        %v5520 = vmax.f32 %v5432, 0.0
        %v5521 = vmax.f32 %v5437, 0.0
        %v5522 = vmax.f32 %v5440, 0.0
        %v5523 = vmax.f32 %v5445, 0.0
        %v5524 = vmax.f32 %v5448, 0.0
        %v5525 = vmax.f32 %v5453, 0.0
        %v5526 = vmax.f32 %v5456, 0.0
        %v5527 = vmax.f32 %v5461, 0.0
        %v5528 = vmax.f32 %v5464, 0.0
        %v5529 = vmax.f32 %v5469, 0.0
        %v5530 = vmax.f32 %v5472, 0.0
        %v5531 = vmax.f32 %v5477, 0.0
        %v5532 = vmax.f32 %v5480, 0.0
        %v5533 = vmax.f32 %v5485, 0.0
        %v5534 = vmax.f32 %v5488, 0.0
        %v5535 = vmax.f32 %v5493, 0.0
        %v5536 = vmax.f32 %v5496, 0.0
        %v5537 = vmax.f32 %v5501, 0.0
        %v5538 = vmax.f32 %v5504, 0.0
        %s5539 = scalar_lea.vmem %s3, 144
        %v5540 = vld [vmem:[%s5539] sm:$0xf]
        %v5541 = vld [vmem:[%s5539 + $0x4] sm:$0xf]
        %v5542 = vld [vmem:[%s5539 + $0x8] sm:$0xf]
        %v5543 = vld [vmem:[%s5539 + $0xc] sm:$0xf]
        %v5544 = vld [vmem:[%s5539 + $0x10] sm:$0xf]
        %v5545 = vld [vmem:[%s5539 + $0x14] sm:$0xf]
        %v5546 = vld [vmem:[%s5539 + $0x18] sm:$0xf]
        %v5547 = vld [vmem:[%s5539 + $0x1c] sm:$0xf]
        %v5548 = vld [vmem:[%s5539 + $0x20] sm:$0xf]
        %v5549 = vld [vmem:[%s5539 + $0x24] sm:$0xf]
        %v5550 = vld [vmem:[%s5539 + $0x28] sm:$0xf]
        %v5551 = vld [vmem:[%s5539 + $0x2c] sm:$0xf]
        %v5552 = vld [vmem:[%s5539 + $0x30] sm:$0xf]
        %v5553 = vld [vmem:[%s5539 + $0x34] sm:$0xf]
        %v5554 = vld [vmem:[%s5539 + $0x38] sm:$0xf]
        %v5555 = vld [vmem:[%s5539 + $0x3c] sm:$0xf]
        %v5556 = vld [vmem:[%s5539 + $0x40] sm:$0xf]
        %v5557 = vld [vmem:[%s5539 + $0x44] sm:$0xf]
        %v5558 = vld [vmem:[%s5539 + $0x48] sm:$0xf]
        %v5559 = vld [vmem:[%s5539 + $0x4c] sm:$0xf]
        %v5560 = vld [vmem:[%s5539 + $0x50] sm:$0xf]
        %v5561 = vld [vmem:[%s5539 + $0x54] sm:$0xf]
        %v5562 = vld [vmem:[%s5539 + $0x58] sm:$0xf]
        %v5563 = vld [vmem:[%s5539 + $0x5c] sm:$0xf]
        %v5564 = vld [vmem:[%s5539 + $0x60] sm:$0xf]
        %v5565 = vld [vmem:[%s5539 + $0x64] sm:$0xf]
        %v5566 = vld [vmem:[%s5539 + $0x68] sm:$0xf]
        %v5567 = vld [vmem:[%s5539 + $0x6c] sm:$0xf]
        %v5568 = vld [vmem:[%s5539 + $0x70] sm:$0xf]
        %v5569 = vld [vmem:[%s5539 + $0x74] sm:$0xf]
        %v5570 = vld [vmem:[%s5539 + $0x78] sm:$0xf]
        %v5571 = vld [vmem:[%s5539 + $0x7c] sm:$0xf]
        %v5572 = vld [vmem:[%s5539 + $0x80] sm:$0xf]
        %v5573 = vld [vmem:[%s5539 + $0x84] sm:$0xf]
        %v5574 = vld [vmem:[%s5539 + $0x88] sm:$0xf]
        %v5575 = vld [vmem:[%s5539 + $0x8c] sm:$0xf]
        %s5576 = scalar_lea.vmem %s4, 1
        %v5577 = vld [vmem:[%s5576] sm:$0x1]
        %5578 = vst.msk [vmem:[%s511 + $0x1] sm:$0xff] %vm386, %v5507
        %5579 = vst.msk [vmem:[%s511 + $0x9] sm:$0xff] %vm386, %v5508
        %5580 = vst.msk [vmem:[%s511 + $0x19] sm:$0xff] %vm386, %v5509
        %5581 = vst.msk [vmem:[%s511 + $0x21] sm:$0xff] %vm386, %v5510
        %5582 = vst.msk [vmem:[%s511 + $0x31] sm:$0xff] %vm386, %v5511
        %5583 = vst.msk [vmem:[%s511 + $0x39] sm:$0xff] %vm386, %v5512
        %5584 = vst.msk [vmem:[%s511 + $0x49] sm:$0xff] %vm386, %v5513
        %5585 = vst.msk [vmem:[%s511 + $0x51] sm:$0xff] %vm386, %v5514
        %5586 = vst.msk [vmem:[%s511 + $0x61] sm:$0xff] %vm386, %v5515
        %5587 = vst.msk [vmem:[%s511 + $0x69] sm:$0xff] %vm386, %v5516
        %5588 = vst.msk [vmem:[%s511 + $0x79] sm:$0xff] %vm386, %v5517
        %5589 = vst.msk [vmem:[%s511 + $0x81] sm:$0xff] %vm386, %v5518
        %5590 = vst.msk [vmem:[%s511 + $0x91] sm:$0xff] %vm386, %v5519
        %5591 = vst.msk [vmem:[%s511 + $0x99] sm:$0xff] %vm386, %v5520
        %5592 = vst.msk [vmem:[%s511 + $0xa9] sm:$0xff] %vm386, %v5521
        %5593 = vst.msk [vmem:[%s511 + $0xb1] sm:$0xff] %vm386, %v5522
        %5594 = vst.msk [vmem:[%s511 + $0xc1] sm:$0xff] %vm386, %v5523
        %5595 = vst.msk [vmem:[%s511 + $0xc9] sm:$0xff] %vm386, %v5524
        %5596 = vst.msk [vmem:[%s511 + $0xd9] sm:$0xff] %vm386, %v5525
        %5597 = vst.msk [vmem:[%s511 + $0xe1] sm:$0xff] %vm386, %v5526
        %5598 = vst.msk [vmem:[%s511 + $0xf1] sm:$0xff] %vm386, %v5527
        %5599 = vst.msk [vmem:[%s511 + $0xf9] sm:$0xff] %vm386, %v5528
        %5600 = vst.msk [vmem:[%s511 + $0x109] sm:$0xff] %vm386, %v5529
        %5601 = vst.msk [vmem:[%s511 + $0x111] sm:$0xff] %vm386, %v5530
        %5602 = vst.msk [vmem:[%s511 + $0x121] sm:$0xff] %vm386, %v5531
        %5603 = vst.msk [vmem:[%s511 + $0x129] sm:$0xff] %vm386, %v5532
        %5604 = vst.msk [vmem:[%s511 + $0x139] sm:$0xff] %vm386, %v5533
        %5605 = vst.msk [vmem:[%s511 + $0x141] sm:$0xff] %vm386, %v5534
        %5606 = vst.msk [vmem:[%s511 + $0x151] sm:$0xff] %vm386, %v5535
        %5607 = vst.msk [vmem:[%s511 + $0x159] sm:$0xff] %vm386, %v5536
        %5608 = vst.msk [vmem:[%s511 + $0x169] sm:$0xff] %vm386, %v5537
        %5609 = vst.msk [vmem:[%s511 + $0x171] sm:$0xff] %vm386, %v5538
        %v5610 = vld [vmem:[#allocation2] sm:$0xff]
        %v5611 = vld [vmem:[#allocation2 + $0x8] sm:$0xff]
        %v5612 = vld [vmem:[#allocation2 + $0x18] sm:$0xff]
        %v5613 = vld [vmem:[#allocation2 + $0x20] sm:$0xff]
        %v5614 = vld [vmem:[#allocation2 + $0x30] sm:$0xff]
        %v5615 = vld [vmem:[#allocation2 + $0x38] sm:$0xff]
        %v5616 = vld [vmem:[#allocation2 + $0x48] sm:$0xff]
        %v5617 = vld [vmem:[#allocation2 + $0x50] sm:$0xff]
        %v5618 = vld [vmem:[#allocation2 + $0x60] sm:$0xff]
        %v5619 = vld [vmem:[#allocation2 + $0x68] sm:$0xff]
        %v5620 = vld [vmem:[#allocation2 + $0x78] sm:$0xff]
        %v5621 = vld [vmem:[#allocation2 + $0x80] sm:$0xff]
        %v5622 = vld [vmem:[#allocation2 + $0x90] sm:$0xff]
        %v5623 = vld [vmem:[#allocation2 + $0x98] sm:$0xff]
        %v5624 = vld [vmem:[#allocation2 + $0xa8] sm:$0xff]
        %v5625 = vld [vmem:[#allocation2 + $0xb0] sm:$0xff]
        %v5626 = vld [vmem:[#allocation2 + $0xc0] sm:$0xff]
        %v5627 = vld [vmem:[#allocation2 + $0xc8] sm:$0xff]
        %v5628 = vld [vmem:[#allocation2 + $0xd8] sm:$0xff]
        %v5629 = vld [vmem:[#allocation2 + $0xe0] sm:$0xff]
        %v5630 = vld [vmem:[#allocation2 + $0xf0] sm:$0xff]
        %v5631 = vld [vmem:[#allocation2 + $0xf8] sm:$0xff]
        %v5632 = vld [vmem:[#allocation2 + $0x108] sm:$0xff]
        %v5633 = vld [vmem:[#allocation2 + $0x110] sm:$0xff]
        %v5634 = vld [vmem:[#allocation2 + $0x120] sm:$0xff]
        %v5635 = vld [vmem:[#allocation2 + $0x128] sm:$0xff]
        %v5636 = vld [vmem:[#allocation2 + $0x138] sm:$0xff]
        %v5637 = vld [vmem:[#allocation2 + $0x140] sm:$0xff]
        %v5638 = vld [vmem:[#allocation2 + $0x150] sm:$0xff]
        %v5639 = vld [vmem:[#allocation2 + $0x158] sm:$0xff]
        %v5640 = vld [vmem:[#allocation2 + $0x168] sm:$0xff]
        %v5641 = vld [vmem:[#allocation2 + $0x170] sm:$0xff]
        %v5642 = vpack.c.bf16 %v5611, %v5610
        %v5643 = vpack.c.bf16 %v5613, %v5612
        %v5644 = vpack.c.bf16 %v5615, %v5614
        %v5645 = vpack.c.bf16 %v5617, %v5616
        %v5646 = vpack.c.bf16 %v5619, %v5618
        %v5647 = vpack.c.bf16 %v5621, %v5620
        %v5648 = vpack.c.bf16 %v5623, %v5622
        %v5649 = vpack.c.bf16 %v5625, %v5624
        %v5650 = vpack.c.bf16 %v5627, %v5626
        %v5651 = vpack.c.bf16 %v5629, %v5628
        %v5652 = vpack.c.bf16 %v5631, %v5630
        %v5653 = vpack.c.bf16 %v5633, %v5632
        %v5654 = vpack.c.bf16 %v5635, %v5634
        %v5655 = vpack.c.bf16 %v5637, %v5636
        %v5656 = vpack.c.bf16 %v5639, %v5638
        %v5657 = vpack.c.bf16 %v5641, %v5640
        %5658 = vst.msk [vmem:[#allocation3] sm:$0xff] %vm386, %v5642
        %5659 = vst.msk [vmem:[#allocation3 + $0x18] sm:$0xff] %vm386, %v5643
        %5660 = vst.msk [vmem:[#allocation3 + $0x30] sm:$0xff] %vm386, %v5644
        %5661 = vst.msk [vmem:[#allocation3 + $0x48] sm:$0xff] %vm386, %v5645
        %5662 = vst.msk [vmem:[#allocation3 + $0x60] sm:$0xff] %vm386, %v5646
        %5663 = vst.msk [vmem:[#allocation3 + $0x78] sm:$0xff] %vm386, %v5647
        %5664 = vst.msk [vmem:[#allocation3 + $0x90] sm:$0xff] %vm386, %v5648
        %5665 = vst.msk [vmem:[#allocation3 + $0xa8] sm:$0xff] %vm386, %v5649
        %5666 = vst.msk [vmem:[#allocation3 + $0xc0] sm:$0xff] %vm386, %v5650
        %5667 = vst.msk [vmem:[#allocation3 + $0xd8] sm:$0xff] %vm386, %v5651
        %5668 = vst.msk [vmem:[#allocation3 + $0xf0] sm:$0xff] %vm386, %v5652
        %5669 = vst.msk [vmem:[#allocation3 + $0x108] sm:$0xff] %vm386, %v5653
        %5670 = vst.msk [vmem:[#allocation3 + $0x120] sm:$0xff] %vm386, %v5654
        %5671 = vst.msk [vmem:[#allocation3 + $0x138] sm:$0xff] %vm386, %v5655
        %5672 = vst.msk [vmem:[#allocation3 + $0x150] sm:$0xff] %vm386, %v5656
        %5673 = vst.msk [vmem:[#allocation3 + $0x168] sm:$0xff] %vm386, %v5657
        %v5674 = vld [vmem:[#allocation2 + $0x1] sm:$0xff]
        %v5675 = vld [vmem:[#allocation2 + $0x9] sm:$0xff]
        %v5676 = vld [vmem:[#allocation2 + $0x19] sm:$0xff]
        %v5677 = vld [vmem:[#allocation2 + $0x21] sm:$0xff]
        %v5678 = vld [vmem:[#allocation2 + $0x31] sm:$0xff]
        %v5679 = vld [vmem:[#allocation2 + $0x39] sm:$0xff]
        %v5680 = vld [vmem:[#allocation2 + $0x49] sm:$0xff]
        %v5681 = vld [vmem:[#allocation2 + $0x51] sm:$0xff]
        %v5682 = vld [vmem:[#allocation2 + $0x61] sm:$0xff]
        %v5683 = vld [vmem:[#allocation2 + $0x69] sm:$0xff]
        %v5684 = vld [vmem:[#allocation2 + $0x79] sm:$0xff]
        %v5685 = vld [vmem:[#allocation2 + $0x81] sm:$0xff]
        %v5686 = vld [vmem:[#allocation2 + $0x91] sm:$0xff]
        %v5687 = vld [vmem:[#allocation2 + $0x99] sm:$0xff]
        %v5688 = vld [vmem:[#allocation2 + $0xa9] sm:$0xff]
        %v5689 = vld [vmem:[#allocation2 + $0xb1] sm:$0xff]
        %v5690 = vld [vmem:[#allocation2 + $0xc1] sm:$0xff]
        %v5691 = vld [vmem:[#allocation2 + $0xc9] sm:$0xff]
        %v5692 = vld [vmem:[#allocation2 + $0xd9] sm:$0xff]
        %v5693 = vld [vmem:[#allocation2 + $0xe1] sm:$0xff]
        %v5694 = vld [vmem:[#allocation2 + $0xf1] sm:$0xff]
        %v5695 = vld [vmem:[#allocation2 + $0xf9] sm:$0xff]
        %v5696 = vld [vmem:[#allocation2 + $0x109] sm:$0xff]
        %v5697 = vld [vmem:[#allocation2 + $0x111] sm:$0xff]
        %v5698 = vld [vmem:[#allocation2 + $0x121] sm:$0xff]
        %v5699 = vld [vmem:[#allocation2 + $0x129] sm:$0xff]
        %v5700 = vld [vmem:[#allocation2 + $0x139] sm:$0xff]
        %v5701 = vld [vmem:[#allocation2 + $0x141] sm:$0xff]
        %v5702 = vld [vmem:[#allocation2 + $0x151] sm:$0xff]
        %v5703 = vld [vmem:[#allocation2 + $0x159] sm:$0xff]
        %v5704 = vld [vmem:[#allocation2 + $0x169] sm:$0xff]
        %v5705 = vld [vmem:[#allocation2 + $0x171] sm:$0xff]
        %v5706 = vpack.c.bf16 %v5675, %v5674
        %v5707 = vpack.c.bf16 %v5677, %v5676
        %v5708 = vpack.c.bf16 %v5679, %v5678
        %v5709 = vpack.c.bf16 %v5681, %v5680
        %v5710 = vpack.c.bf16 %v5683, %v5682
        %v5711 = vpack.c.bf16 %v5685, %v5684
        %v5712 = vpack.c.bf16 %v5687, %v5686
        %v5713 = vpack.c.bf16 %v5689, %v5688
        %v5714 = vpack.c.bf16 %v5691, %v5690
        %v5715 = vpack.c.bf16 %v5693, %v5692
        %v5716 = vpack.c.bf16 %v5695, %v5694
        %v5717 = vpack.c.bf16 %v5697, %v5696
        %v5718 = vpack.c.bf16 %v5699, %v5698
        %v5719 = vpack.c.bf16 %v5701, %v5700
        %v5720 = vpack.c.bf16 %v5703, %v5702
        %v5721 = vpack.c.bf16 %v5705, %v5704
        %5738 = vrot.lane.b32.xlu0 %v5706, 32
        %v5739 = vpop.permute.xlu0 %5738
        %5740 = vrot.lane.b32.xlu0 %v5707, 32
        %v5741 = vpop.permute.xlu0 %5740
        %5742 = vrot.lane.b32.xlu0 %v5708, 32
        %v5743 = vpop.permute.xlu0 %5742
        %5744 = vrot.lane.b32.xlu0 %v5709, 32
        %v5745 = vpop.permute.xlu0 %5744
        %5746 = vrot.lane.b32.xlu0 %v5710, 32
        %v5747 = vpop.permute.xlu0 %5746
        %5748 = vrot.lane.b32.xlu0 %v5711, 32
        %v5749 = vpop.permute.xlu0 %5748
        %5750 = vrot.lane.b32.xlu0 %v5712, 32
        %v5751 = vpop.permute.xlu0 %5750
        %5752 = vrot.lane.b32.xlu0 %v5713, 32
        %v5753 = vpop.permute.xlu0 %5752
        %5754 = vrot.lane.b32.xlu0 %v5714, 32
        %v5755 = vpop.permute.xlu0 %5754
        %5756 = vrot.lane.b32.xlu0 %v5715, 32
        %v5757 = vpop.permute.xlu0 %5756
        %5758 = vrot.lane.b32.xlu0 %v5716, 32
        %v5759 = vpop.permute.xlu0 %5758
        %5760 = vrot.lane.b32.xlu0 %v5717, 32
        %v5761 = vpop.permute.xlu0 %5760
        %5762 = vrot.lane.b32.xlu0 %v5718, 32
        %v5763 = vpop.permute.xlu0 %5762
        %5764 = vrot.lane.b32.xlu0 %v5719, 32
        %v5765 = vpop.permute.xlu0 %5764
        %5766 = vrot.lane.b32.xlu0 %v5720, 32
        %v5767 = vpop.permute.xlu0 %5766
        %5768 = vrot.lane.b32.xlu0 %v5721, 32
        %v5769 = vpop.permute.xlu0 %5768
        %5786 = vst.msk [vmem:[#allocation3] sm:$0xff] %vm720, %v5739
        %5787 = vst.msk [vmem:[#allocation3 + $0x18] sm:$0xff] %vm720, %v5741
        %5788 = vst.msk [vmem:[#allocation3 + $0x30] sm:$0xff] %vm720, %v5743
        %5789 = vst.msk [vmem:[#allocation3 + $0x48] sm:$0xff] %vm720, %v5745
        %5790 = vst.msk [vmem:[#allocation3 + $0x60] sm:$0xff] %vm720, %v5747
        %5791 = vst.msk [vmem:[#allocation3 + $0x78] sm:$0xff] %vm720, %v5749
        %5792 = vst.msk [vmem:[#allocation3 + $0x90] sm:$0xff] %vm720, %v5751
        %5793 = vst.msk [vmem:[#allocation3 + $0xa8] sm:$0xff] %vm720, %v5753
        %5794 = vst.msk [vmem:[#allocation3 + $0xc0] sm:$0xff] %vm720, %v5755
        %5795 = vst.msk [vmem:[#allocation3 + $0xd8] sm:$0xff] %vm720, %v5757
        %5796 = vst.msk [vmem:[#allocation3 + $0xf0] sm:$0xff] %vm720, %v5759
        %5797 = vst.msk [vmem:[#allocation3 + $0x108] sm:$0xff] %vm720, %v5761
        %5798 = vst.msk [vmem:[#allocation3 + $0x120] sm:$0xff] %vm720, %v5763
        %5799 = vst.msk [vmem:[#allocation3 + $0x138] sm:$0xff] %vm720, %v5765
        %5800 = vst.msk [vmem:[#allocation3 + $0x150] sm:$0xff] %vm720, %v5767
        %5801 = vst.msk [vmem:[#allocation3 + $0x168] sm:$0xff] %vm720, %v5769
        %v5802 = vld [vmem:[#allocation2 + $0x2] sm:$0xff]
        %v5803 = vld [vmem:[#allocation2 + $0xa] sm:$0xff]
        %v5804 = vld [vmem:[#allocation2 + $0x1a] sm:$0xff]
        %v5805 = vld [vmem:[#allocation2 + $0x22] sm:$0xff]
        %v5806 = vld [vmem:[#allocation2 + $0x32] sm:$0xff]
        %v5807 = vld [vmem:[#allocation2 + $0x3a] sm:$0xff]
        %v5808 = vld [vmem:[#allocation2 + $0x4a] sm:$0xff]
        %v5809 = vld [vmem:[#allocation2 + $0x52] sm:$0xff]
        %v5810 = vld [vmem:[#allocation2 + $0x62] sm:$0xff]
        %v5811 = vld [vmem:[#allocation2 + $0x6a] sm:$0xff]
        %v5812 = vld [vmem:[#allocation2 + $0x7a] sm:$0xff]
        %v5813 = vld [vmem:[#allocation2 + $0x82] sm:$0xff]
        %v5814 = vld [vmem:[#allocation2 + $0x92] sm:$0xff]
        %v5815 = vld [vmem:[#allocation2 + $0x9a] sm:$0xff]
        %v5816 = vld [vmem:[#allocation2 + $0xaa] sm:$0xff]
        %v5817 = vld [vmem:[#allocation2 + $0xb2] sm:$0xff]
        %v5818 = vld [vmem:[#allocation2 + $0xc2] sm:$0xff]
        %v5819 = vld [vmem:[#allocation2 + $0xca] sm:$0xff]
        %v5820 = vld [vmem:[#allocation2 + $0xda] sm:$0xff]
        %v5821 = vld [vmem:[#allocation2 + $0xe2] sm:$0xff]
        %v5822 = vld [vmem:[#allocation2 + $0xf2] sm:$0xff]
        %v5823 = vld [vmem:[#allocation2 + $0xfa] sm:$0xff]
        %v5824 = vld [vmem:[#allocation2 + $0x10a] sm:$0xff]
        %v5825 = vld [vmem:[#allocation2 + $0x112] sm:$0xff]
        %v5826 = vld [vmem:[#allocation2 + $0x122] sm:$0xff]
        %v5827 = vld [vmem:[#allocation2 + $0x12a] sm:$0xff]
        %v5828 = vld [vmem:[#allocation2 + $0x13a] sm:$0xff]
        %v5829 = vld [vmem:[#allocation2 + $0x142] sm:$0xff]
        %v5830 = vld [vmem:[#allocation2 + $0x152] sm:$0xff]
        %v5831 = vld [vmem:[#allocation2 + $0x15a] sm:$0xff]
        %v5832 = vld [vmem:[#allocation2 + $0x16a] sm:$0xff]
        %v5833 = vld [vmem:[#allocation2 + $0x172] sm:$0xff]
        %v5834 = vpack.c.bf16 %v5803, %v5802
        %v5835 = vpack.c.bf16 %v5805, %v5804
        %v5836 = vpack.c.bf16 %v5807, %v5806
        %v5837 = vpack.c.bf16 %v5809, %v5808
        %v5838 = vpack.c.bf16 %v5811, %v5810
        %v5839 = vpack.c.bf16 %v5813, %v5812
        %v5840 = vpack.c.bf16 %v5815, %v5814
        %v5841 = vpack.c.bf16 %v5817, %v5816
        %v5842 = vpack.c.bf16 %v5819, %v5818
        %v5843 = vpack.c.bf16 %v5821, %v5820
        %v5844 = vpack.c.bf16 %v5823, %v5822
        %v5845 = vpack.c.bf16 %v5825, %v5824
        %v5846 = vpack.c.bf16 %v5827, %v5826
        %v5847 = vpack.c.bf16 %v5829, %v5828
        %v5848 = vpack.c.bf16 %v5831, %v5830
        %v5849 = vpack.c.bf16 %v5833, %v5832
        %5866 = vrot.lane.b32.xlu0 %v5834, 64
        %v5867 = vpop.permute.xlu0 %5866
        %5868 = vrot.lane.b32.xlu0 %v5835, 64
        %v5869 = vpop.permute.xlu0 %5868
        %5870 = vrot.lane.b32.xlu0 %v5836, 64
        %v5871 = vpop.permute.xlu0 %5870
        %5872 = vrot.lane.b32.xlu0 %v5837, 64
        %v5873 = vpop.permute.xlu0 %5872
        %5874 = vrot.lane.b32.xlu0 %v5838, 64
        %v5875 = vpop.permute.xlu0 %5874
        %5876 = vrot.lane.b32.xlu0 %v5839, 64
        %v5877 = vpop.permute.xlu0 %5876
        %5878 = vrot.lane.b32.xlu0 %v5840, 64
        %v5879 = vpop.permute.xlu0 %5878
        %5880 = vrot.lane.b32.xlu0 %v5841, 64
        %v5881 = vpop.permute.xlu0 %5880
        %5882 = vrot.lane.b32.xlu0 %v5842, 64
        %v5883 = vpop.permute.xlu0 %5882
        %5884 = vrot.lane.b32.xlu0 %v5843, 64
        %v5885 = vpop.permute.xlu0 %5884
        %5886 = vrot.lane.b32.xlu0 %v5844, 64
        %v5887 = vpop.permute.xlu0 %5886
        %5888 = vrot.lane.b32.xlu0 %v5845, 64
        %v5889 = vpop.permute.xlu0 %5888
        %5890 = vrot.lane.b32.xlu0 %v5846, 64
        %v5891 = vpop.permute.xlu0 %5890
        %5892 = vrot.lane.b32.xlu0 %v5847, 64
        %v5893 = vpop.permute.xlu0 %5892
        %5894 = vrot.lane.b32.xlu0 %v5848, 64
        %v5895 = vpop.permute.xlu0 %5894
        %5896 = vrot.lane.b32.xlu0 %v5849, 64
        %v5897 = vpop.permute.xlu0 %5896
        %5914 = vst.msk [vmem:[#allocation3] sm:$0xff] %vm849, %v5867
        %5915 = vst.msk [vmem:[#allocation3 + $0x18] sm:$0xff] %vm849, %v5869
        %5916 = vst.msk [vmem:[#allocation3 + $0x30] sm:$0xff] %vm849, %v5871
        %5917 = vst.msk [vmem:[#allocation3 + $0x48] sm:$0xff] %vm849, %v5873
        %5918 = vst.msk [vmem:[#allocation3 + $0x60] sm:$0xff] %vm849, %v5875
        %5919 = vst.msk [vmem:[#allocation3 + $0x78] sm:$0xff] %vm849, %v5877
        %5920 = vst.msk [vmem:[#allocation3 + $0x90] sm:$0xff] %vm849, %v5879
        %5921 = vst.msk [vmem:[#allocation3 + $0xa8] sm:$0xff] %vm849, %v5881
        %5922 = vst.msk [vmem:[#allocation3 + $0xc0] sm:$0xff] %vm849, %v5883
        %5923 = vst.msk [vmem:[#allocation3 + $0xd8] sm:$0xff] %vm849, %v5885
        %5924 = vst.msk [vmem:[#allocation3 + $0xf0] sm:$0xff] %vm849, %v5887
        %5925 = vst.msk [vmem:[#allocation3 + $0x108] sm:$0xff] %vm849, %v5889
        %5926 = vst.msk [vmem:[#allocation3 + $0x120] sm:$0xff] %vm849, %v5891
        %5927 = vst.msk [vmem:[#allocation3 + $0x138] sm:$0xff] %vm849, %v5893
        %5928 = vst.msk [vmem:[#allocation3 + $0x150] sm:$0xff] %vm849, %v5895
        %5929 = vst.msk [vmem:[#allocation3 + $0x168] sm:$0xff] %vm849, %v5897
        %v5930 = vld [vmem:[%s511] sm:$0xff]
        %v5931 = vld [vmem:[%s511 + $0x8] sm:$0xff]
        %v5932 = vld [vmem:[%s511 + $0x18] sm:$0xff]
        %v5933 = vld [vmem:[%s511 + $0x20] sm:$0xff]
        %v5934 = vld [vmem:[%s511 + $0x30] sm:$0xff]
        %v5935 = vld [vmem:[%s511 + $0x38] sm:$0xff]
        %v5936 = vld [vmem:[%s511 + $0x48] sm:$0xff]
        %v5937 = vld [vmem:[%s511 + $0x50] sm:$0xff]
        %v5938 = vld [vmem:[%s511 + $0x60] sm:$0xff]
        %v5939 = vld [vmem:[%s511 + $0x68] sm:$0xff]
        %v5940 = vld [vmem:[%s511 + $0x78] sm:$0xff]
        %v5941 = vld [vmem:[%s511 + $0x80] sm:$0xff]
        %v5942 = vld [vmem:[%s511 + $0x90] sm:$0xff]
        %v5943 = vld [vmem:[%s511 + $0x98] sm:$0xff]
        %v5944 = vld [vmem:[%s511 + $0xa8] sm:$0xff]
        %v5945 = vld [vmem:[%s511 + $0xb0] sm:$0xff]
        %v5946 = vld [vmem:[%s511 + $0xc0] sm:$0xff]
        %v5947 = vld [vmem:[%s511 + $0xc8] sm:$0xff]
        %v5948 = vld [vmem:[%s511 + $0xd8] sm:$0xff]
        %v5949 = vld [vmem:[%s511 + $0xe0] sm:$0xff]
        %v5950 = vld [vmem:[%s511 + $0xf0] sm:$0xff]
        %v5951 = vld [vmem:[%s511 + $0xf8] sm:$0xff]
        %v5952 = vld [vmem:[%s511 + $0x108] sm:$0xff]
        %v5953 = vld [vmem:[%s511 + $0x110] sm:$0xff]
        %v5954 = vld [vmem:[%s511 + $0x120] sm:$0xff]
        %v5955 = vld [vmem:[%s511 + $0x128] sm:$0xff]
        %v5956 = vld [vmem:[%s511 + $0x138] sm:$0xff]
        %v5957 = vld [vmem:[%s511 + $0x140] sm:$0xff]
        %v5958 = vld [vmem:[%s511 + $0x150] sm:$0xff]
        %v5959 = vld [vmem:[%s511 + $0x158] sm:$0xff]
        %v5960 = vld [vmem:[%s511 + $0x168] sm:$0xff]
        %v5961 = vld [vmem:[%s511 + $0x170] sm:$0xff]
        %v5962 = vpack.c.bf16 %v5931, %v5930
        %v5963 = vpack.c.bf16 %v5933, %v5932
        %v5964 = vpack.c.bf16 %v5935, %v5934
        %v5965 = vpack.c.bf16 %v5937, %v5936
        %v5966 = vpack.c.bf16 %v5939, %v5938
        %v5967 = vpack.c.bf16 %v5941, %v5940
        %v5968 = vpack.c.bf16 %v5943, %v5942
        %v5969 = vpack.c.bf16 %v5945, %v5944
        %v5970 = vpack.c.bf16 %v5947, %v5946
        %v5971 = vpack.c.bf16 %v5949, %v5948
        %v5972 = vpack.c.bf16 %v5951, %v5950
        %v5973 = vpack.c.bf16 %v5953, %v5952
        %v5974 = vpack.c.bf16 %v5955, %v5954
        %v5975 = vpack.c.bf16 %v5957, %v5956
        %v5976 = vpack.c.bf16 %v5959, %v5958
        %v5977 = vpack.c.bf16 %v5961, %v5960
        %5994 = vrot.lane.b32.xlu0 %v5962, 96
        %v5995 = vpop.permute.xlu0 %5994
        %5996 = vrot.lane.b32.xlu0 %v5963, 96
        %v5997 = vpop.permute.xlu0 %5996
        %5998 = vrot.lane.b32.xlu0 %v5964, 96
        %v5999 = vpop.permute.xlu0 %5998
        %6000 = vrot.lane.b32.xlu0 %v5965, 96
        %v6001 = vpop.permute.xlu0 %6000
        %6002 = vrot.lane.b32.xlu0 %v5966, 96
        %v6003 = vpop.permute.xlu0 %6002
        %6004 = vrot.lane.b32.xlu0 %v5967, 96
        %v6005 = vpop.permute.xlu0 %6004
        %6006 = vrot.lane.b32.xlu0 %v5968, 96
        %v6007 = vpop.permute.xlu0 %6006
        %6008 = vrot.lane.b32.xlu0 %v5969, 96
        %v6009 = vpop.permute.xlu0 %6008
        %6010 = vrot.lane.b32.xlu0 %v5970, 96
        %v6011 = vpop.permute.xlu0 %6010
        %6012 = vrot.lane.b32.xlu0 %v5971, 96
        %v6013 = vpop.permute.xlu0 %6012
        %6014 = vrot.lane.b32.xlu0 %v5972, 96
        %v6015 = vpop.permute.xlu0 %6014
        %6016 = vrot.lane.b32.xlu0 %v5973, 96
        %v6017 = vpop.permute.xlu0 %6016
        %6018 = vrot.lane.b32.xlu0 %v5974, 96
        %v6019 = vpop.permute.xlu0 %6018
        %6020 = vrot.lane.b32.xlu0 %v5975, 96
        %v6021 = vpop.permute.xlu0 %6020
        %6022 = vrot.lane.b32.xlu0 %v5976, 96
        %v6023 = vpop.permute.xlu0 %6022
        %6024 = vrot.lane.b32.xlu0 %v5977, 96
        %v6025 = vpop.permute.xlu0 %6024
        %6042 = vst.msk [vmem:[#allocation3] sm:$0xff] %vm978, %v5995
        %6043 = vst.msk [vmem:[#allocation3 + $0x18] sm:$0xff] %vm978, %v5997
        %6044 = vst.msk [vmem:[#allocation3 + $0x30] sm:$0xff] %vm978, %v5999
        %6045 = vst.msk [vmem:[#allocation3 + $0x48] sm:$0xff] %vm978, %v6001
        %6046 = vst.msk [vmem:[#allocation3 + $0x60] sm:$0xff] %vm978, %v6003
        %6047 = vst.msk [vmem:[#allocation3 + $0x78] sm:$0xff] %vm978, %v6005
        %6048 = vst.msk [vmem:[#allocation3 + $0x90] sm:$0xff] %vm978, %v6007
        %6049 = vst.msk [vmem:[#allocation3 + $0xa8] sm:$0xff] %vm978, %v6009
        %6050 = vst.msk [vmem:[#allocation3 + $0xc0] sm:$0xff] %vm978, %v6011
        %6051 = vst.msk [vmem:[#allocation3 + $0xd8] sm:$0xff] %vm978, %v6013
        %6052 = vst.msk [vmem:[#allocation3 + $0xf0] sm:$0xff] %vm978, %v6015
        %6053 = vst.msk [vmem:[#allocation3 + $0x108] sm:$0xff] %vm978, %v6017
        %6054 = vst.msk [vmem:[#allocation3 + $0x120] sm:$0xff] %vm978, %v6019
        %6055 = vst.msk [vmem:[#allocation3 + $0x138] sm:$0xff] %vm978, %v6021
        %6056 = vst.msk [vmem:[#allocation3 + $0x150] sm:$0xff] %vm978, %v6023
        %6057 = vst.msk [vmem:[#allocation3 + $0x168] sm:$0xff] %vm978, %v6025
        %v6058 = vld [vmem:[%s511 + $0x1] sm:$0xff]
        %v6059 = vld [vmem:[%s511 + $0x9] sm:$0xff]
        %v6060 = vld [vmem:[%s511 + $0x19] sm:$0xff]
        %v6061 = vld [vmem:[%s511 + $0x21] sm:$0xff]
        %v6062 = vld [vmem:[%s511 + $0x31] sm:$0xff]
        %v6063 = vld [vmem:[%s511 + $0x39] sm:$0xff]
        %v6064 = vld [vmem:[%s511 + $0x49] sm:$0xff]
        %v6065 = vld [vmem:[%s511 + $0x51] sm:$0xff]
        %v6066 = vld [vmem:[%s511 + $0x61] sm:$0xff]
        %v6067 = vld [vmem:[%s511 + $0x69] sm:$0xff]
        %v6068 = vld [vmem:[%s511 + $0x79] sm:$0xff]
        %v6069 = vld [vmem:[%s511 + $0x81] sm:$0xff]
        %v6070 = vld [vmem:[%s511 + $0x91] sm:$0xff]
        %v6071 = vld [vmem:[%s511 + $0x99] sm:$0xff]
        %v6072 = vld [vmem:[%s511 + $0xa9] sm:$0xff]
        %v6073 = vld [vmem:[%s511 + $0xb1] sm:$0xff]
        %v6074 = vld [vmem:[%s511 + $0xc1] sm:$0xff]
        %v6075 = vld [vmem:[%s511 + $0xc9] sm:$0xff]
        %v6076 = vld [vmem:[%s511 + $0xd9] sm:$0xff]
        %v6077 = vld [vmem:[%s511 + $0xe1] sm:$0xff]
        %v6078 = vld [vmem:[%s511 + $0xf1] sm:$0xff]
        %v6079 = vld [vmem:[%s511 + $0xf9] sm:$0xff]
        %v6080 = vld [vmem:[%s511 + $0x109] sm:$0xff]
        %v6081 = vld [vmem:[%s511 + $0x111] sm:$0xff]
        %v6082 = vld [vmem:[%s511 + $0x121] sm:$0xff]
        %v6083 = vld [vmem:[%s511 + $0x129] sm:$0xff]
        %v6084 = vld [vmem:[%s511 + $0x139] sm:$0xff]
        %v6085 = vld [vmem:[%s511 + $0x141] sm:$0xff]
        %v6086 = vld [vmem:[%s511 + $0x151] sm:$0xff]
        %v6087 = vld [vmem:[%s511 + $0x159] sm:$0xff]
        %v6088 = vld [vmem:[%s511 + $0x169] sm:$0xff]
        %v6089 = vld [vmem:[%s511 + $0x171] sm:$0xff]
        %v6090 = vpack.c.bf16 %v6059, %v6058
        %v6091 = vpack.c.bf16 %v6061, %v6060
        %v6092 = vpack.c.bf16 %v6063, %v6062
        %v6093 = vpack.c.bf16 %v6065, %v6064
        %v6094 = vpack.c.bf16 %v6067, %v6066
        %v6095 = vpack.c.bf16 %v6069, %v6068
        %v6096 = vpack.c.bf16 %v6071, %v6070
        %v6097 = vpack.c.bf16 %v6073, %v6072
        %v6098 = vpack.c.bf16 %v6075, %v6074
        %v6099 = vpack.c.bf16 %v6077, %v6076
        %v6100 = vpack.c.bf16 %v6079, %v6078
        %v6101 = vpack.c.bf16 %v6081, %v6080
        %v6102 = vpack.c.bf16 %v6083, %v6082
        %v6103 = vpack.c.bf16 %v6085, %v6084
        %v6104 = vpack.c.bf16 %v6087, %v6086
        %v6105 = vpack.c.bf16 %v6089, %v6088
        %6106 = vst.msk [vmem:[#allocation3 + $0x8] sm:$0xff] %vm386, %v6090
        %6107 = vst.msk [vmem:[#allocation3 + $0x20] sm:$0xff] %vm386, %v6091
        %6108 = vst.msk [vmem:[#allocation3 + $0x38] sm:$0xff] %vm386, %v6092
        %6109 = vst.msk [vmem:[#allocation3 + $0x50] sm:$0xff] %vm386, %v6093
        %6110 = vst.msk [vmem:[#allocation3 + $0x68] sm:$0xff] %vm386, %v6094
        %6111 = vst.msk [vmem:[#allocation3 + $0x80] sm:$0xff] %vm386, %v6095
        %6112 = vst.msk [vmem:[#allocation3 + $0x98] sm:$0xff] %vm386, %v6096
        %6113 = vst.msk [vmem:[#allocation3 + $0xb0] sm:$0xff] %vm386, %v6097
        %6114 = vst.msk [vmem:[#allocation3 + $0xc8] sm:$0xff] %vm386, %v6098
        %6115 = vst.msk [vmem:[#allocation3 + $0xe0] sm:$0xff] %vm386, %v6099
        %6116 = vst.msk [vmem:[#allocation3 + $0xf8] sm:$0xff] %vm386, %v6100
        %6117 = vst.msk [vmem:[#allocation3 + $0x110] sm:$0xff] %vm386, %v6101
        %6118 = vst.msk [vmem:[#allocation3 + $0x128] sm:$0xff] %vm386, %v6102
        %6119 = vst.msk [vmem:[#allocation3 + $0x140] sm:$0xff] %vm386, %v6103
        %6120 = vst.msk [vmem:[#allocation3 + $0x158] sm:$0xff] %vm386, %v6104
        %6121 = vst.msk [vmem:[#allocation3 + $0x170] sm:$0xff] %vm386, %v6105
        %v6122 = vld [vmem:[%s511 + $0x2] sm:$0xff]
        %v6123 = vld [vmem:[%s511 + $0xa] sm:$0xff]
        %v6124 = vld [vmem:[%s511 + $0x1a] sm:$0xff]
        %v6125 = vld [vmem:[%s511 + $0x22] sm:$0xff]
        %v6126 = vld [vmem:[%s511 + $0x32] sm:$0xff]
        %v6127 = vld [vmem:[%s511 + $0x3a] sm:$0xff]
        %v6128 = vld [vmem:[%s511 + $0x4a] sm:$0xff]
        %v6129 = vld [vmem:[%s511 + $0x52] sm:$0xff]
        %v6130 = vld [vmem:[%s511 + $0x62] sm:$0xff]
        %v6131 = vld [vmem:[%s511 + $0x6a] sm:$0xff]
        %v6132 = vld [vmem:[%s511 + $0x7a] sm:$0xff]
        %v6133 = vld [vmem:[%s511 + $0x82] sm:$0xff]
        %v6134 = vld [vmem:[%s511 + $0x92] sm:$0xff]
        %v6135 = vld [vmem:[%s511 + $0x9a] sm:$0xff]
        %v6136 = vld [vmem:[%s511 + $0xaa] sm:$0xff]
        %v6137 = vld [vmem:[%s511 + $0xb2] sm:$0xff]
        %v6138 = vld [vmem:[%s511 + $0xc2] sm:$0xff]
        %v6139 = vld [vmem:[%s511 + $0xca] sm:$0xff]
        %v6140 = vld [vmem:[%s511 + $0xda] sm:$0xff]
        %v6141 = vld [vmem:[%s511 + $0xe2] sm:$0xff]
        %v6142 = vld [vmem:[%s511 + $0xf2] sm:$0xff]
        %v6143 = vld [vmem:[%s511 + $0xfa] sm:$0xff]
        %v6144 = vld [vmem:[%s511 + $0x10a] sm:$0xff]
        %v6145 = vld [vmem:[%s511 + $0x112] sm:$0xff]
        %v6146 = vld [vmem:[%s511 + $0x122] sm:$0xff]
        %v6147 = vld [vmem:[%s511 + $0x12a] sm:$0xff]
        %v6148 = vld [vmem:[%s511 + $0x13a] sm:$0xff]
        %v6149 = vld [vmem:[%s511 + $0x142] sm:$0xff]
        %v6150 = vld [vmem:[%s511 + $0x152] sm:$0xff]
        %v6151 = vld [vmem:[%s511 + $0x15a] sm:$0xff]
        %v6152 = vld [vmem:[%s511 + $0x16a] sm:$0xff]
        %v6153 = vld [vmem:[%s511 + $0x172] sm:$0xff]
        %v6154 = vpack.c.bf16 %v6123, %v6122
        %v6155 = vpack.c.bf16 %v6125, %v6124
        %v6156 = vpack.c.bf16 %v6127, %v6126
        %v6157 = vpack.c.bf16 %v6129, %v6128
        %v6158 = vpack.c.bf16 %v6131, %v6130
        %v6159 = vpack.c.bf16 %v6133, %v6132
        %v6160 = vpack.c.bf16 %v6135, %v6134
        %v6161 = vpack.c.bf16 %v6137, %v6136
        %v6162 = vpack.c.bf16 %v6139, %v6138
        %v6163 = vpack.c.bf16 %v6141, %v6140
        %v6164 = vpack.c.bf16 %v6143, %v6142
        %v6165 = vpack.c.bf16 %v6145, %v6144
        %v6166 = vpack.c.bf16 %v6147, %v6146
        %v6167 = vpack.c.bf16 %v6149, %v6148
        %v6168 = vpack.c.bf16 %v6151, %v6150
        %v6169 = vpack.c.bf16 %v6153, %v6152
        %6186 = vrot.lane.b32.xlu0 %v6154, 32
        %v6187 = vpop.permute.xlu0 %6186
        %6188 = vrot.lane.b32.xlu0 %v6155, 32
        %v6189 = vpop.permute.xlu0 %6188
        %6190 = vrot.lane.b32.xlu0 %v6156, 32
        %v6191 = vpop.permute.xlu0 %6190
        %6192 = vrot.lane.b32.xlu0 %v6157, 32
        %v6193 = vpop.permute.xlu0 %6192
        %6194 = vrot.lane.b32.xlu0 %v6158, 32
        %v6195 = vpop.permute.xlu0 %6194
        %6196 = vrot.lane.b32.xlu0 %v6159, 32
        %v6197 = vpop.permute.xlu0 %6196
        %6198 = vrot.lane.b32.xlu0 %v6160, 32
        %v6199 = vpop.permute.xlu0 %6198
        %6200 = vrot.lane.b32.xlu0 %v6161, 32
        %v6201 = vpop.permute.xlu0 %6200
        %6202 = vrot.lane.b32.xlu0 %v6162, 32
        %v6203 = vpop.permute.xlu0 %6202
        %6204 = vrot.lane.b32.xlu0 %v6163, 32
        %v6205 = vpop.permute.xlu0 %6204
        %6206 = vrot.lane.b32.xlu0 %v6164, 32
        %v6207 = vpop.permute.xlu0 %6206
        %6208 = vrot.lane.b32.xlu0 %v6165, 32
        %v6209 = vpop.permute.xlu0 %6208
        %6210 = vrot.lane.b32.xlu0 %v6166, 32
        %v6211 = vpop.permute.xlu0 %6210
        %6212 = vrot.lane.b32.xlu0 %v6167, 32
        %v6213 = vpop.permute.xlu0 %6212
        %6214 = vrot.lane.b32.xlu0 %v6168, 32
        %v6215 = vpop.permute.xlu0 %6214
        %6216 = vrot.lane.b32.xlu0 %v6169, 32
        %v6217 = vpop.permute.xlu0 %6216
        %6234 = vst.msk [vmem:[#allocation3 + $0x8] sm:$0xff] %vm720, %v6187
        %6235 = vst.msk [vmem:[#allocation3 + $0x20] sm:$0xff] %vm720, %v6189
        %6236 = vst.msk [vmem:[#allocation3 + $0x38] sm:$0xff] %vm720, %v6191
        %6237 = vst.msk [vmem:[#allocation3 + $0x50] sm:$0xff] %vm720, %v6193
        %6238 = vst.msk [vmem:[#allocation3 + $0x68] sm:$0xff] %vm720, %v6195
        %6239 = vst.msk [vmem:[#allocation3 + $0x80] sm:$0xff] %vm720, %v6197
        %6240 = vst.msk [vmem:[#allocation3 + $0x98] sm:$0xff] %vm720, %v6199
        %6241 = vst.msk [vmem:[#allocation3 + $0xb0] sm:$0xff] %vm720, %v6201
        %6242 = vst.msk [vmem:[#allocation3 + $0xc8] sm:$0xff] %vm720, %v6203
        %6243 = vst.msk [vmem:[#allocation3 + $0xe0] sm:$0xff] %vm720, %v6205
        %6244 = vst.msk [vmem:[#allocation3 + $0xf8] sm:$0xff] %vm720, %v6207
        %6245 = vst.msk [vmem:[#allocation3 + $0x110] sm:$0xff] %vm720, %v6209
        %6246 = vst.msk [vmem:[#allocation3 + $0x128] sm:$0xff] %vm720, %v6211
        %6247 = vst.msk [vmem:[#allocation3 + $0x140] sm:$0xff] %vm720, %v6213
        %6248 = vst.msk [vmem:[#allocation3 + $0x158] sm:$0xff] %vm720, %v6215
        %6249 = vst.msk [vmem:[#allocation3 + $0x170] sm:$0xff] %vm720, %v6217
        %v6250 = vld [vmem:[%s1187] sm:$0xff]
        %v6251 = vld [vmem:[%s1187 + $0x8] sm:$0xff]
        %v6252 = vld [vmem:[%s1187 + $0x18] sm:$0xff]
        %v6253 = vld [vmem:[%s1187 + $0x20] sm:$0xff]
        %v6254 = vld [vmem:[%s1187 + $0x30] sm:$0xff]
        %v6255 = vld [vmem:[%s1187 + $0x38] sm:$0xff]
        %v6256 = vld [vmem:[%s1187 + $0x48] sm:$0xff]
        %v6257 = vld [vmem:[%s1187 + $0x50] sm:$0xff]
        %v6258 = vld [vmem:[%s1187 + $0x60] sm:$0xff]
        %v6259 = vld [vmem:[%s1187 + $0x68] sm:$0xff]
        %v6260 = vld [vmem:[%s1187 + $0x78] sm:$0xff]
        %v6261 = vld [vmem:[%s1187 + $0x80] sm:$0xff]
        %v6262 = vld [vmem:[%s1187 + $0x90] sm:$0xff]
        %v6263 = vld [vmem:[%s1187 + $0x98] sm:$0xff]
        %v6264 = vld [vmem:[%s1187 + $0xa8] sm:$0xff]
        %v6265 = vld [vmem:[%s1187 + $0xb0] sm:$0xff]
        %v6266 = vld [vmem:[%s1187 + $0xc0] sm:$0xff]
        %v6267 = vld [vmem:[%s1187 + $0xc8] sm:$0xff]
        %v6268 = vld [vmem:[%s1187 + $0xd8] sm:$0xff]
        %v6269 = vld [vmem:[%s1187 + $0xe0] sm:$0xff]
        %v6270 = vld [vmem:[%s1187 + $0xf0] sm:$0xff]
        %v6271 = vld [vmem:[%s1187 + $0xf8] sm:$0xff]
        %v6272 = vld [vmem:[%s1187 + $0x108] sm:$0xff]
        %v6273 = vld [vmem:[%s1187 + $0x110] sm:$0xff]
        %v6274 = vld [vmem:[%s1187 + $0x120] sm:$0xff]
        %v6275 = vld [vmem:[%s1187 + $0x128] sm:$0xff]
        %v6276 = vld [vmem:[%s1187 + $0x138] sm:$0xff]
        %v6277 = vld [vmem:[%s1187 + $0x140] sm:$0xff]
        %v6278 = vld [vmem:[%s1187 + $0x150] sm:$0xff]
        %v6279 = vld [vmem:[%s1187 + $0x158] sm:$0xff]
        %v6280 = vld [vmem:[%s1187 + $0x168] sm:$0xff]
        %v6281 = vld [vmem:[%s1187 + $0x170] sm:$0xff]
        %v6282 = vpack.c.bf16 %v6251, %v6250
        %v6283 = vpack.c.bf16 %v6253, %v6252
        %v6284 = vpack.c.bf16 %v6255, %v6254
        %v6285 = vpack.c.bf16 %v6257, %v6256
        %v6286 = vpack.c.bf16 %v6259, %v6258
        %v6287 = vpack.c.bf16 %v6261, %v6260
        %v6288 = vpack.c.bf16 %v6263, %v6262
        %v6289 = vpack.c.bf16 %v6265, %v6264
        %v6290 = vpack.c.bf16 %v6267, %v6266
        %v6291 = vpack.c.bf16 %v6269, %v6268
        %v6292 = vpack.c.bf16 %v6271, %v6270
        %v6293 = vpack.c.bf16 %v6273, %v6272
        %v6294 = vpack.c.bf16 %v6275, %v6274
        %v6295 = vpack.c.bf16 %v6277, %v6276
        %v6296 = vpack.c.bf16 %v6279, %v6278
        %v6297 = vpack.c.bf16 %v6281, %v6280
        %6314 = vrot.lane.b32.xlu0 %v6282, 64
        %v6315 = vpop.permute.xlu0 %6314
        %6316 = vrot.lane.b32.xlu0 %v6283, 64
        %v6317 = vpop.permute.xlu0 %6316
        %6318 = vrot.lane.b32.xlu0 %v6284, 64
        %v6319 = vpop.permute.xlu0 %6318
        %6320 = vrot.lane.b32.xlu0 %v6285, 64
        %v6321 = vpop.permute.xlu0 %6320
        %6322 = vrot.lane.b32.xlu0 %v6286, 64
        %v6323 = vpop.permute.xlu0 %6322
        %6324 = vrot.lane.b32.xlu0 %v6287, 64
        %v6325 = vpop.permute.xlu0 %6324
        %6326 = vrot.lane.b32.xlu0 %v6288, 64
        %v6327 = vpop.permute.xlu0 %6326
        %6328 = vrot.lane.b32.xlu0 %v6289, 64
        %v6329 = vpop.permute.xlu0 %6328
        %6330 = vrot.lane.b32.xlu0 %v6290, 64
        %v6331 = vpop.permute.xlu0 %6330
        %6332 = vrot.lane.b32.xlu0 %v6291, 64
        %v6333 = vpop.permute.xlu0 %6332
        %6334 = vrot.lane.b32.xlu0 %v6292, 64
        %v6335 = vpop.permute.xlu0 %6334
        %6336 = vrot.lane.b32.xlu0 %v6293, 64
        %v6337 = vpop.permute.xlu0 %6336
        %6338 = vrot.lane.b32.xlu0 %v6294, 64
        %v6339 = vpop.permute.xlu0 %6338
        %6340 = vrot.lane.b32.xlu0 %v6295, 64
        %v6341 = vpop.permute.xlu0 %6340
        %6342 = vrot.lane.b32.xlu0 %v6296, 64
        %v6343 = vpop.permute.xlu0 %6342
        %6344 = vrot.lane.b32.xlu0 %v6297, 64
        %v6345 = vpop.permute.xlu0 %6344
        %6362 = vst.msk [vmem:[#allocation3 + $0x8] sm:$0xff] %vm849, %v6315
        %6363 = vst.msk [vmem:[#allocation3 + $0x20] sm:$0xff] %vm849, %v6317
        %6364 = vst.msk [vmem:[#allocation3 + $0x38] sm:$0xff] %vm849, %v6319
        %6365 = vst.msk [vmem:[#allocation3 + $0x50] sm:$0xff] %vm849, %v6321
        %6366 = vst.msk [vmem:[#allocation3 + $0x68] sm:$0xff] %vm849, %v6323
        %6367 = vst.msk [vmem:[#allocation3 + $0x80] sm:$0xff] %vm849, %v6325
        %6368 = vst.msk [vmem:[#allocation3 + $0x98] sm:$0xff] %vm849, %v6327
        %6369 = vst.msk [vmem:[#allocation3 + $0xb0] sm:$0xff] %vm849, %v6329
        %6370 = vst.msk [vmem:[#allocation3 + $0xc8] sm:$0xff] %vm849, %v6331
        %6371 = vst.msk [vmem:[#allocation3 + $0xe0] sm:$0xff] %vm849, %v6333
        %6372 = vst.msk [vmem:[#allocation3 + $0xf8] sm:$0xff] %vm849, %v6335
        %6373 = vst.msk [vmem:[#allocation3 + $0x110] sm:$0xff] %vm849, %v6337
        %6374 = vst.msk [vmem:[#allocation3 + $0x128] sm:$0xff] %vm849, %v6339
        %6375 = vst.msk [vmem:[#allocation3 + $0x140] sm:$0xff] %vm849, %v6341
        %6376 = vst.msk [vmem:[#allocation3 + $0x158] sm:$0xff] %vm849, %v6343
        %6377 = vst.msk [vmem:[#allocation3 + $0x170] sm:$0xff] %vm849, %v6345
        %v6378 = vld [vmem:[%s1187 + $0x1] sm:$0xff]
        %v6379 = vld [vmem:[%s1187 + $0x9] sm:$0xff]
        %v6380 = vld [vmem:[%s1187 + $0x19] sm:$0xff]
        %v6381 = vld [vmem:[%s1187 + $0x21] sm:$0xff]
        %v6382 = vld [vmem:[%s1187 + $0x31] sm:$0xff]
        %v6383 = vld [vmem:[%s1187 + $0x39] sm:$0xff]
        %v6384 = vld [vmem:[%s1187 + $0x49] sm:$0xff]
        %v6385 = vld [vmem:[%s1187 + $0x51] sm:$0xff]
        %v6386 = vld [vmem:[%s1187 + $0x61] sm:$0xff]
        %v6387 = vld [vmem:[%s1187 + $0x69] sm:$0xff]
        %v6388 = vld [vmem:[%s1187 + $0x79] sm:$0xff]
        %v6389 = vld [vmem:[%s1187 + $0x81] sm:$0xff]
        %v6390 = vld [vmem:[%s1187 + $0x91] sm:$0xff]
        %v6391 = vld [vmem:[%s1187 + $0x99] sm:$0xff]
        %v6392 = vld [vmem:[%s1187 + $0xa9] sm:$0xff]
        %v6393 = vld [vmem:[%s1187 + $0xb1] sm:$0xff]
        %v6394 = vld [vmem:[%s1187 + $0xc1] sm:$0xff]
        %v6395 = vld [vmem:[%s1187 + $0xc9] sm:$0xff]
        %v6396 = vld [vmem:[%s1187 + $0xd9] sm:$0xff]
        %v6397 = vld [vmem:[%s1187 + $0xe1] sm:$0xff]
        %v6398 = vld [vmem:[%s1187 + $0xf1] sm:$0xff]
        %v6399 = vld [vmem:[%s1187 + $0xf9] sm:$0xff]
        %v6400 = vld [vmem:[%s1187 + $0x109] sm:$0xff]
        %v6401 = vld [vmem:[%s1187 + $0x111] sm:$0xff]
        %v6402 = vld [vmem:[%s1187 + $0x121] sm:$0xff]
        %v6403 = vld [vmem:[%s1187 + $0x129] sm:$0xff]
        %v6404 = vld [vmem:[%s1187 + $0x139] sm:$0xff]
        %v6405 = vld [vmem:[%s1187 + $0x141] sm:$0xff]
        %v6406 = vld [vmem:[%s1187 + $0x151] sm:$0xff]
        %v6407 = vld [vmem:[%s1187 + $0x159] sm:$0xff]
        %v6408 = vld [vmem:[%s1187 + $0x169] sm:$0xff]
        %v6409 = vld [vmem:[%s1187 + $0x171] sm:$0xff]
        %v6410 = vpack.c.bf16 %v6379, %v6378
        %v6411 = vpack.c.bf16 %v6381, %v6380
        %v6412 = vpack.c.bf16 %v6383, %v6382
        %v6413 = vpack.c.bf16 %v6385, %v6384
        %v6414 = vpack.c.bf16 %v6387, %v6386
        %v6415 = vpack.c.bf16 %v6389, %v6388
        %v6416 = vpack.c.bf16 %v6391, %v6390
        %v6417 = vpack.c.bf16 %v6393, %v6392
        %v6418 = vpack.c.bf16 %v6395, %v6394
        %v6419 = vpack.c.bf16 %v6397, %v6396
        %v6420 = vpack.c.bf16 %v6399, %v6398
        %v6421 = vpack.c.bf16 %v6401, %v6400
        %v6422 = vpack.c.bf16 %v6403, %v6402
        %v6423 = vpack.c.bf16 %v6405, %v6404
        %v6424 = vpack.c.bf16 %v6407, %v6406
        %v6425 = vpack.c.bf16 %v6409, %v6408
        %6442 = vrot.lane.b32.xlu0 %v6410, 96
        %v6443 = vpop.permute.xlu0 %6442
        %6444 = vrot.lane.b32.xlu0 %v6411, 96
        %v6445 = vpop.permute.xlu0 %6444
        %6446 = vrot.lane.b32.xlu0 %v6412, 96
        %v6447 = vpop.permute.xlu0 %6446
        %6448 = vrot.lane.b32.xlu0 %v6413, 96
        %v6449 = vpop.permute.xlu0 %6448
        %6450 = vrot.lane.b32.xlu0 %v6414, 96
        %v6451 = vpop.permute.xlu0 %6450
        %6452 = vrot.lane.b32.xlu0 %v6415, 96
        %v6453 = vpop.permute.xlu0 %6452
        %6454 = vrot.lane.b32.xlu0 %v6416, 96
        %v6455 = vpop.permute.xlu0 %6454
        %6456 = vrot.lane.b32.xlu0 %v6417, 96
        %v6457 = vpop.permute.xlu0 %6456
        %6458 = vrot.lane.b32.xlu0 %v6418, 96
        %v6459 = vpop.permute.xlu0 %6458
        %6460 = vrot.lane.b32.xlu0 %v6419, 96
        %v6461 = vpop.permute.xlu0 %6460
        %6462 = vrot.lane.b32.xlu0 %v6420, 96
        %v6463 = vpop.permute.xlu0 %6462
        %6464 = vrot.lane.b32.xlu0 %v6421, 96
        %v6465 = vpop.permute.xlu0 %6464
        %6466 = vrot.lane.b32.xlu0 %v6422, 96
        %v6467 = vpop.permute.xlu0 %6466
        %6468 = vrot.lane.b32.xlu0 %v6423, 96
        %v6469 = vpop.permute.xlu0 %6468
        %6470 = vrot.lane.b32.xlu0 %v6424, 96
        %v6471 = vpop.permute.xlu0 %6470
        %6472 = vrot.lane.b32.xlu0 %v6425, 96
        %v6473 = vpop.permute.xlu0 %6472
        %6490 = vst.msk [vmem:[#allocation3 + $0x8] sm:$0xff] %vm978, %v6443
        %6491 = vst.msk [vmem:[#allocation3 + $0x20] sm:$0xff] %vm978, %v6445
        %6492 = vst.msk [vmem:[#allocation3 + $0x38] sm:$0xff] %vm978, %v6447
        %6493 = vst.msk [vmem:[#allocation3 + $0x50] sm:$0xff] %vm978, %v6449
        %6494 = vst.msk [vmem:[#allocation3 + $0x68] sm:$0xff] %vm978, %v6451
        %6495 = vst.msk [vmem:[#allocation3 + $0x80] sm:$0xff] %vm978, %v6453
        %6496 = vst.msk [vmem:[#allocation3 + $0x98] sm:$0xff] %vm978, %v6455
        %6497 = vst.msk [vmem:[#allocation3 + $0xb0] sm:$0xff] %vm978, %v6457
        %6498 = vst.msk [vmem:[#allocation3 + $0xc8] sm:$0xff] %vm978, %v6459
        %6499 = vst.msk [vmem:[#allocation3 + $0xe0] sm:$0xff] %vm978, %v6461
        %6500 = vst.msk [vmem:[#allocation3 + $0xf8] sm:$0xff] %vm978, %v6463
        %6501 = vst.msk [vmem:[#allocation3 + $0x110] sm:$0xff] %vm978, %v6465
        %6502 = vst.msk [vmem:[#allocation3 + $0x128] sm:$0xff] %vm978, %v6467
        %6503 = vst.msk [vmem:[#allocation3 + $0x140] sm:$0xff] %vm978, %v6469
        %6504 = vst.msk [vmem:[#allocation3 + $0x158] sm:$0xff] %vm978, %v6471
        %6505 = vst.msk [vmem:[#allocation3 + $0x170] sm:$0xff] %vm978, %v6473
        %v6506 = vld [vmem:[%s1187 + $0x2] sm:$0xff]
        %v6507 = vld [vmem:[%s1187 + $0xa] sm:$0xff]
        %v6508 = vld [vmem:[%s1187 + $0x1a] sm:$0xff]
        %v6509 = vld [vmem:[%s1187 + $0x22] sm:$0xff]
        %v6510 = vld [vmem:[%s1187 + $0x32] sm:$0xff]
        %v6511 = vld [vmem:[%s1187 + $0x3a] sm:$0xff]
        %v6512 = vld [vmem:[%s1187 + $0x4a] sm:$0xff]
        %v6513 = vld [vmem:[%s1187 + $0x52] sm:$0xff]
        %v6514 = vld [vmem:[%s1187 + $0x62] sm:$0xff]
        %v6515 = vld [vmem:[%s1187 + $0x6a] sm:$0xff]
        %v6516 = vld [vmem:[%s1187 + $0x7a] sm:$0xff]
        %v6517 = vld [vmem:[%s1187 + $0x82] sm:$0xff]
        %v6518 = vld [vmem:[%s1187 + $0x92] sm:$0xff]
        %v6519 = vld [vmem:[%s1187 + $0x9a] sm:$0xff]
        %v6520 = vld [vmem:[%s1187 + $0xaa] sm:$0xff]
        %v6521 = vld [vmem:[%s1187 + $0xb2] sm:$0xff]
        %v6522 = vld [vmem:[%s1187 + $0xc2] sm:$0xff]
        %v6523 = vld [vmem:[%s1187 + $0xca] sm:$0xff]
        %v6524 = vld [vmem:[%s1187 + $0xda] sm:$0xff]
        %v6525 = vld [vmem:[%s1187 + $0xe2] sm:$0xff]
        %v6526 = vld [vmem:[%s1187 + $0xf2] sm:$0xff]
        %v6527 = vld [vmem:[%s1187 + $0xfa] sm:$0xff]
        %v6528 = vld [vmem:[%s1187 + $0x10a] sm:$0xff]
        %v6529 = vld [vmem:[%s1187 + $0x112] sm:$0xff]
        %v6530 = vld [vmem:[%s1187 + $0x122] sm:$0xff]
        %v6531 = vld [vmem:[%s1187 + $0x12a] sm:$0xff]
        %v6532 = vld [vmem:[%s1187 + $0x13a] sm:$0xff]
        %v6533 = vld [vmem:[%s1187 + $0x142] sm:$0xff]
        %v6534 = vld [vmem:[%s1187 + $0x152] sm:$0xff]
        %v6535 = vld [vmem:[%s1187 + $0x15a] sm:$0xff]
        %v6536 = vld [vmem:[%s1187 + $0x16a] sm:$0xff]
        %v6537 = vld [vmem:[%s1187 + $0x172] sm:$0xff]
        %v6538 = vpack.c.bf16 %v6507, %v6506
        %v6539 = vpack.c.bf16 %v6509, %v6508
        %v6540 = vpack.c.bf16 %v6511, %v6510
        %v6541 = vpack.c.bf16 %v6513, %v6512
        %v6542 = vpack.c.bf16 %v6515, %v6514
        %v6543 = vpack.c.bf16 %v6517, %v6516
        %v6544 = vpack.c.bf16 %v6519, %v6518
        %v6545 = vpack.c.bf16 %v6521, %v6520
        %v6546 = vpack.c.bf16 %v6523, %v6522
        %v6547 = vpack.c.bf16 %v6525, %v6524
        %v6548 = vpack.c.bf16 %v6527, %v6526
        %v6549 = vpack.c.bf16 %v6529, %v6528
        %v6550 = vpack.c.bf16 %v6531, %v6530
        %v6551 = vpack.c.bf16 %v6533, %v6532
        %v6552 = vpack.c.bf16 %v6535, %v6534
        %v6553 = vpack.c.bf16 %v6537, %v6536
        %6554 = vst.msk [vmem:[#allocation3 + $0x10] sm:$0xff] %vm386, %v6538
        %6555 = vst.msk [vmem:[#allocation3 + $0x28] sm:$0xff] %vm386, %v6539
        %6556 = vst.msk [vmem:[#allocation3 + $0x40] sm:$0xff] %vm386, %v6540
        %6557 = vst.msk [vmem:[#allocation3 + $0x58] sm:$0xff] %vm386, %v6541
        %6558 = vst.msk [vmem:[#allocation3 + $0x70] sm:$0xff] %vm386, %v6542
        %6559 = vst.msk [vmem:[#allocation3 + $0x88] sm:$0xff] %vm386, %v6543
        %6560 = vst.msk [vmem:[#allocation3 + $0xa0] sm:$0xff] %vm386, %v6544
        %6561 = vst.msk [vmem:[#allocation3 + $0xb8] sm:$0xff] %vm386, %v6545
        %6562 = vst.msk [vmem:[#allocation3 + $0xd0] sm:$0xff] %vm386, %v6546
        %6563 = vst.msk [vmem:[#allocation3 + $0xe8] sm:$0xff] %vm386, %v6547
        %6564 = vst.msk [vmem:[#allocation3 + $0x100] sm:$0xff] %vm386, %v6548
        %6565 = vst.msk [vmem:[#allocation3 + $0x118] sm:$0xff] %vm386, %v6549
        %6566 = vst.msk [vmem:[#allocation3 + $0x130] sm:$0xff] %vm386, %v6550
        %6567 = vst.msk [vmem:[#allocation3 + $0x148] sm:$0xff] %vm386, %v6551
        %6568 = vst.msk [vmem:[#allocation3 + $0x160] sm:$0xff] %vm386, %v6552
        %6569 = vst.msk [vmem:[#allocation3 + $0x178] sm:$0xff] %vm386, %v6553
        %v6570 = vld [vmem:[#allocation3] sm:$0xff]
        %v6571 = vld [vmem:[#allocation3 + $0x8] sm:$0xff]
        %v6572 = vld [vmem:[#allocation3 + $0x10] sm:$0xff]
        %v6573 = vld [vmem:[#allocation3 + $0x18] sm:$0xff]
        %v6574 = vld [vmem:[#allocation3 + $0x20] sm:$0xff]
        %v6575 = vld [vmem:[#allocation3 + $0x28] sm:$0xff]
        %v6576 = vld [vmem:[#allocation3 + $0x30] sm:$0xff]
        %v6577 = vld [vmem:[#allocation3 + $0x38] sm:$0xff]
        %v6578 = vld [vmem:[#allocation3 + $0x40] sm:$0xff]
        %v6579 = vld [vmem:[#allocation3 + $0x48] sm:$0xff]
        %v6580 = vld [vmem:[#allocation3 + $0x50] sm:$0xff]
        %v6581 = vld [vmem:[#allocation3 + $0x58] sm:$0xff]
        %v6582 = vld [vmem:[#allocation3 + $0x60] sm:$0xff]
        %v6583 = vld [vmem:[#allocation3 + $0x68] sm:$0xff]
        %v6584 = vld [vmem:[#allocation3 + $0x70] sm:$0xff]
        %v6585 = vld [vmem:[#allocation3 + $0x78] sm:$0xff]
        %v6586 = vld [vmem:[#allocation3 + $0x80] sm:$0xff]
        %v6587 = vld [vmem:[#allocation3 + $0x88] sm:$0xff]
        %v6588 = vld [vmem:[#allocation3 + $0x90] sm:$0xff]
        %v6589 = vld [vmem:[#allocation3 + $0x98] sm:$0xff]
        %v6590 = vld [vmem:[#allocation3 + $0xa0] sm:$0xff]
        %v6591 = vld [vmem:[#allocation3 + $0xa8] sm:$0xff]
        %v6592 = vld [vmem:[#allocation3 + $0xb0] sm:$0xff]
        %v6593 = vld [vmem:[#allocation3 + $0xb8] sm:$0xff]
        %v6594 = vld [vmem:[#allocation3 + $0xc0] sm:$0xff]
        %v6595 = vld [vmem:[#allocation3 + $0xc8] sm:$0xff]
        %v6596 = vld [vmem:[#allocation3 + $0xd0] sm:$0xff]
        %v6597 = vld [vmem:[#allocation3 + $0xd8] sm:$0xff]
        %v6598 = vld [vmem:[#allocation3 + $0xe0] sm:$0xff]
        %v6599 = vld [vmem:[#allocation3 + $0xe8] sm:$0xff]
        %v6600 = vld [vmem:[#allocation3 + $0xf0] sm:$0xff]
        %v6601 = vld [vmem:[#allocation3 + $0xf8] sm:$0xff]
        %v6602 = vld [vmem:[#allocation3 + $0x100] sm:$0xff]
        %v6603 = vld [vmem:[#allocation3 + $0x108] sm:$0xff]
        %v6604 = vld [vmem:[#allocation3 + $0x110] sm:$0xff]
        %v6605 = vld [vmem:[#allocation3 + $0x118] sm:$0xff]
        %v6606 = vld [vmem:[#allocation3 + $0x120] sm:$0xff]
        %v6607 = vld [vmem:[#allocation3 + $0x128] sm:$0xff]
        %v6608 = vld [vmem:[#allocation3 + $0x130] sm:$0xff]
        %v6609 = vld [vmem:[#allocation3 + $0x138] sm:$0xff]
        %v6610 = vld [vmem:[#allocation3 + $0x140] sm:$0xff]
        %v6611 = vld [vmem:[#allocation3 + $0x148] sm:$0xff]
        %v6612 = vld [vmem:[#allocation3 + $0x150] sm:$0xff]
        %v6613 = vld [vmem:[#allocation3 + $0x158] sm:$0xff]
        %v6614 = vld [vmem:[#allocation3 + $0x160] sm:$0xff]
        %v6615 = vld [vmem:[#allocation3 + $0x168] sm:$0xff]
        %v6616 = vld [vmem:[#allocation3 + $0x170] sm:$0xff]
        %v6617 = vld [vmem:[#allocation3 + $0x178] sm:$0xff]
        %v6619 = vlaneseq
        %v6620 = vshrl.u32 %v6619, 7
        %v6621 = vsub.s32 0, %v6620
        %v6622 = vrot.slane %v5577, %v6621
        %v6660 = vunpack.c.l.b16 %v5540
        %v6661 = vunpack.c.l.b16 %v5541
        %v6662 = vunpack.c.l.b16 %v5542
        %v6663 = vunpack.c.l.b16 %v5543
        %v6664 = vunpack.c.l.b16 %v5544
        %v6665 = vunpack.c.l.b16 %v5545
        %v6666 = vunpack.c.l.b16 %v5546
        %v6667 = vunpack.c.l.b16 %v5547
        %v6668 = vunpack.c.l.b16 %v5548
        %v6669 = vunpack.c.l.b16 %v5549
        %v6670 = vunpack.c.l.b16 %v5550
        %v6671 = vunpack.c.l.b16 %v5551
        %v6672 = vunpack.c.l.b16 %v5552
        %v6673 = vunpack.c.l.b16 %v5553
        %v6674 = vunpack.c.l.b16 %v5554
        %v6675 = vunpack.c.l.b16 %v5555
        %v6676 = vunpack.c.l.b16 %v5556
        %v6677 = vunpack.c.l.b16 %v5557
        %v6678 = vunpack.c.l.b16 %v5558
        %v6679 = vunpack.c.l.b16 %v5559
        %v6680 = vunpack.c.l.b16 %v5560
        %v6681 = vunpack.c.l.b16 %v5561
        %v6682 = vunpack.c.l.b16 %v5562
        %v6683 = vunpack.c.l.b16 %v5563
        %v6684 = vunpack.c.l.b16 %v5564
        %v6685 = vunpack.c.l.b16 %v5565
        %v6686 = vunpack.c.l.b16 %v5566
        %v6687 = vunpack.c.l.b16 %v5567
        %v6688 = vunpack.c.l.b16 %v5568
        %v6689 = vunpack.c.l.b16 %v5569
        %v6690 = vunpack.c.l.b16 %v5570
        %v6691 = vunpack.c.l.b16 %v5571
        %v6692 = vunpack.c.l.b16 %v5572
        %v6693 = vunpack.c.l.b16 %v5573
        %v6694 = vunpack.c.l.b16 %v5574
        %v6695 = vunpack.c.l.b16 %v5575
        %v6696 = vpack.c.b16 %v6661, %v6660
        %v6697 = vpack.c.b16 %v6663, %v6662
        %v6698 = vpack.c.b16 %v6665, %v6664
        %v6699 = vpack.c.b16 %v6667, %v6666
        %v6700 = vpack.c.b16 %v6669, %v6668
        %v6701 = vpack.c.b16 %v6671, %v6670
        %v6702 = vpack.c.b16 %v6673, %v6672
        %v6703 = vpack.c.b16 %v6675, %v6674
        %v6704 = vpack.c.b16 %v6677, %v6676
        %v6705 = vpack.c.b16 %v6679, %v6678
        %v6706 = vpack.c.b16 %v6681, %v6680
        %v6707 = vpack.c.b16 %v6683, %v6682
        %v6708 = vpack.c.b16 %v6685, %v6684
        %v6709 = vpack.c.b16 %v6687, %v6686
        %v6710 = vpack.c.b16 %v6689, %v6688
        %v6711 = vpack.c.b16 %v6691, %v6690
        %v6712 = vpack.c.b16 %v6693, %v6692
        %v6713 = vpack.c.b16 %v6695, %v6694
        %v6733 = vsel %vm386, %v6572, 0
        %v6736 = vsel %vm386, %v6575, 0
        %v6739 = vsel %vm386, %v6578, 0
        %v6742 = vsel %vm386, %v6581, 0
        %v6745 = vsel %vm386, %v6584, 0
        %v6748 = vsel %vm386, %v6587, 0
        %v6751 = vsel %vm386, %v6590, 0
        %v6754 = vsel %vm386, %v6593, 0
        %v6757 = vsel %vm386, %v6596, 0
        %v6760 = vsel %vm386, %v6599, 0
        %v6763 = vsel %vm386, %v6602, 0
        %v6766 = vsel %vm386, %v6605, 0
        %v6769 = vsel %vm386, %v6608, 0
        %v6772 = vsel %vm386, %v6611, 0
        %v6775 = vsel %vm386, %v6614, 0
        %v6778 = vsel %vm386, %v6617, 0
        %6780 = vmatprep.subr.bf16.mxu0 0
        %6781 = vmatpush1.bf16.msra.mxu0 %v6696
        %6782 = vmatprep.subr.bf16.mxu0 0
        %6783 = vmatpush1.bf16.msra.mxu0 %v6697
        %6784 = vmatprep.subr.bf16.mxu0 0
        %6785 = vmatpush1.bf16.msra.mxu0 %v6698
        %6786 = vmatprep.subr.bf16.mxu0 0
        %6787 = vmatpush1.bf16.msra.mxu0 %v6699
        %6788 = vmatprep.subr.bf16.mxu0 0
        %6789 = vmatpush1.bf16.msra.mxu0 %v6700
        %6790 = vmatprep.subr.bf16.mxu0 0
        %6791 = vmatpush1.bf16.msra.mxu0 %v6701
        %6792 = vmatprep.subr.bf16.mxu0 0
        %6793 = vmatpush1.bf16.msra.mxu0 %v6702
        %6794 = vmatprep.subr.bf16.mxu0 0
        %6795 = vmatpush1.bf16.msra.mxu0 %v6703
        %6796 = vmatprep.subr.bf16.mxu0 0
        %6797 = vmatpush1.bf16.msra.mxu0 %v6704
        %6798 = vmatprep.subr.bf16.mxu0 0
        %6799 = vmatpush1.bf16.msra.mxu0 %v6705
        %6800 = vmatprep.subr.bf16.mxu0 0
        %6801 = vmatpush1.bf16.msra.mxu0 %v6706
        %6802 = vmatprep.subr.bf16.mxu0 0
        %6803 = vmatpush1.bf16.msra.mxu0 %v6707
        %6804 = vmatprep.subr.bf16.mxu0 0
        %6805 = vmatpush1.bf16.msra.mxu0 %v6708
        %6806 = vmatprep.subr.bf16.mxu0 0
        %6807 = vmatpush1.bf16.msra.mxu0 %v6709
        %6808 = vmatprep.subr.bf16.mxu0 0
        %6809 = vmatpush1.bf16.msra.mxu0 %v6710
        %6810 = vmatprep.subr.bf16.mxu0 0
        %6811 = vmatpush1.bf16.msra.mxu0 %v6711
        %6812 = vmatprep.mubr.bf16.mxu0 %v6571
        %6813 = vmatmul.mubr.bf16.gmra.mrb[0].mxu0 %v6570
        %v6814 = vpop.f32.mrb[0].mxu0
        %v6815 = vadd.f32 %v6622, %v6814
        %v6816 = vpop.f32.mrb[0].mxu0
        %v6817 = vpop.f32.mrb[0].mxu0
        %v6818 = vadd.f32 %v6622, %v6817
        %v6819 = vpop.f32.mrb[0].mxu0
        %6820 = vmatprep.mubr.bf16.mxu0 %v6574
        %6821 = vmatmul.mubr.bf16.gmra.mrb[0].mxu0 %v6573
        %v6822 = vpop.f32.mrb[0].mxu0
        %v6823 = vadd.f32 %v6622, %v6822
        %v6824 = vpop.f32.mrb[0].mxu0
        %v6825 = vpop.f32.mrb[0].mxu0
        %v6826 = vadd.f32 %v6622, %v6825
        %v6827 = vpop.f32.mrb[0].mxu0
        %6828 = vmatprep.mubr.bf16.mxu0 %v6577
        %6829 = vmatmul.mubr.bf16.gmra.mrb[0].mxu0 %v6576
        %v6830 = vpop.f32.mrb[0].mxu0
        %v6831 = vadd.f32 %v6622, %v6830
        %v6832 = vpop.f32.mrb[0].mxu0
        %v6833 = vpop.f32.mrb[0].mxu0
        %v6834 = vadd.f32 %v6622, %v6833
        %v6835 = vpop.f32.mrb[0].mxu0
        %6836 = vmatprep.mubr.bf16.mxu0 %v6580
        %6837 = vmatmul.mubr.bf16.gmra.mrb[0].mxu0 %v6579
        %v6838 = vpop.f32.mrb[0].mxu0
        %v6839 = vadd.f32 %v6622, %v6838
        %v6840 = vpop.f32.mrb[0].mxu0
        %v6841 = vpop.f32.mrb[0].mxu0
        %v6842 = vadd.f32 %v6622, %v6841
        %v6843 = vpop.f32.mrb[0].mxu0
        %6844 = vmatprep.mubr.bf16.mxu0 %v6583
        %6845 = vmatmul.mubr.bf16.gmra.mrb[0].mxu0 %v6582
        %v6846 = vpop.f32.mrb[0].mxu0
        %v6847 = vadd.f32 %v6622, %v6846
        %v6848 = vpop.f32.mrb[0].mxu0
        %v6849 = vpop.f32.mrb[0].mxu0
        %v6850 = vadd.f32 %v6622, %v6849
        %v6851 = vpop.f32.mrb[0].mxu0
        %6852 = vmatprep.mubr.bf16.mxu0 %v6586
        %6853 = vmatmul.mubr.bf16.gmra.mrb[0].mxu0 %v6585
        %v6854 = vpop.f32.mrb[0].mxu0
        %v6855 = vadd.f32 %v6622, %v6854
        %v6856 = vpop.f32.mrb[0].mxu0
        %v6857 = vpop.f32.mrb[0].mxu0
        %v6858 = vadd.f32 %v6622, %v6857
        %v6859 = vpop.f32.mrb[0].mxu0
        %6860 = vmatprep.mubr.bf16.mxu0 %v6589
        %6861 = vmatmul.mubr.bf16.gmra.mrb[0].mxu0 %v6588
        %v6862 = vpop.f32.mrb[0].mxu0
        %v6863 = vadd.f32 %v6622, %v6862
        %v6864 = vpop.f32.mrb[0].mxu0
        %v6865 = vpop.f32.mrb[0].mxu0
        %v6866 = vadd.f32 %v6622, %v6865
        %v6867 = vpop.f32.mrb[0].mxu0
        %6868 = vmatprep.mubr.bf16.mxu0 %v6592
        %6869 = vmatmul.mubr.bf16.gmra.mrb[0].mxu0 %v6591
        %v6870 = vpop.f32.mrb[0].mxu0
        %v6871 = vadd.f32 %v6622, %v6870
        %v6872 = vpop.f32.mrb[0].mxu0
        %v6873 = vpop.f32.mrb[0].mxu0
        %v6874 = vadd.f32 %v6622, %v6873
        %v6875 = vpop.f32.mrb[0].mxu0
        %6876 = vmatprep.mubr.bf16.mxu0 %v6595
        %6877 = vmatmul.mubr.bf16.gmra.mrb[0].mxu0 %v6594
        %v6878 = vpop.f32.mrb[0].mxu0
        %v6879 = vadd.f32 %v6622, %v6878
        %v6880 = vpop.f32.mrb[0].mxu0
        %v6881 = vpop.f32.mrb[0].mxu0
        %v6882 = vadd.f32 %v6622, %v6881
        %v6883 = vpop.f32.mrb[0].mxu0
        %6884 = vmatprep.mubr.bf16.mxu0 %v6598
        %6885 = vmatmul.mubr.bf16.gmra.mrb[0].mxu0 %v6597
        %v6886 = vpop.f32.mrb[0].mxu0
        %v6887 = vadd.f32 %v6622, %v6886
        %v6888 = vpop.f32.mrb[0].mxu0
        %v6889 = vpop.f32.mrb[0].mxu0
        %v6890 = vadd.f32 %v6622, %v6889
        %v6891 = vpop.f32.mrb[0].mxu0
        %6892 = vmatprep.mubr.bf16.mxu0 %v6601
        %6893 = vmatmul.mubr.bf16.gmra.mrb[0].mxu0 %v6600
        %v6894 = vpop.f32.mrb[0].mxu0
        %v6895 = vadd.f32 %v6622, %v6894
        %v6896 = vpop.f32.mrb[0].mxu0
        %v6897 = vpop.f32.mrb[0].mxu0
        %v6898 = vadd.f32 %v6622, %v6897
        %v6899 = vpop.f32.mrb[0].mxu0
        %6900 = vmatprep.mubr.bf16.mxu0 %v6604
        %6901 = vmatmul.mubr.bf16.gmra.mrb[0].mxu0 %v6603
        %v6902 = vpop.f32.mrb[0].mxu0
        %v6903 = vadd.f32 %v6622, %v6902
        %v6904 = vpop.f32.mrb[0].mxu0
        %v6905 = vpop.f32.mrb[0].mxu0
        %v6906 = vadd.f32 %v6622, %v6905
        %v6907 = vpop.f32.mrb[0].mxu0
        %6908 = vmatprep.mubr.bf16.mxu0 %v6607
        %6909 = vmatmul.mubr.bf16.gmra.mrb[0].mxu0 %v6606
        %v6910 = vpop.f32.mrb[0].mxu0
        %v6911 = vadd.f32 %v6622, %v6910
        %v6912 = vpop.f32.mrb[0].mxu0
        %v6913 = vpop.f32.mrb[0].mxu0
        %v6914 = vadd.f32 %v6622, %v6913
        %v6915 = vpop.f32.mrb[0].mxu0
        %6916 = vmatprep.mubr.bf16.mxu0 %v6610
        %6917 = vmatmul.mubr.bf16.gmra.mrb[0].mxu0 %v6609
        %v6918 = vpop.f32.mrb[0].mxu0
        %v6919 = vadd.f32 %v6622, %v6918
        %v6920 = vpop.f32.mrb[0].mxu0
        %v6921 = vpop.f32.mrb[0].mxu0
        %v6922 = vadd.f32 %v6622, %v6921
        %v6923 = vpop.f32.mrb[0].mxu0
        %6924 = vmatprep.mubr.bf16.mxu0 %v6613
        %6925 = vmatmul.mubr.bf16.gmra.mrb[0].mxu0 %v6612
        %v6926 = vpop.f32.mrb[0].mxu0
        %v6927 = vadd.f32 %v6622, %v6926
        %v6928 = vpop.f32.mrb[0].mxu0
        %v6929 = vpop.f32.mrb[0].mxu0
        %v6930 = vadd.f32 %v6622, %v6929
        %v6931 = vpop.f32.mrb[0].mxu0
        %6932 = vmatprep.mubr.bf16.mxu0 %v6616
        %6933 = vmatmul.mubr.bf16.gmra.mrb[0].mxu0 %v6615
        %v6934 = vpop.f32.mrb[0].mxu0
        %v6935 = vadd.f32 %v6622, %v6934
        %v6936 = vpop.f32.mrb[0].mxu0
        %v6937 = vpop.f32.mrb[0].mxu0
        %v6938 = vadd.f32 %v6622, %v6937
        %v6939 = vpop.f32.mrb[0].mxu0
        %6940 = vdwg.mxu0
        %6941 = vmatprep.subr.bf16.mxu0 0
        %6942 = vmatpush1.bf16.msra.mxu0 %v6712
        %6943 = vmatprep.subr.bf16.mxu0 0
        %6944 = vmatpush1.bf16.msra.mxu0 %v6713
        %6945 = vmatprep.subr.bf16.mxu0 0
        %6946 = vmatpush1.bf16.msra.mxu0 0
        %6947 = vmatprep.subr.bf16.mxu0 0
        %6948 = vmatpush1.bf16.msra.mxu0 0
        %6949 = vmatprep.subr.bf16.mxu0 0
        %6950 = vmatpush1.bf16.msra.mxu0 0
        %6951 = vmatprep.subr.bf16.mxu0 0
        %6952 = vmatpush1.bf16.msra.mxu0 0
        %6953 = vmatprep.subr.bf16.mxu0 0
        %6954 = vmatpush1.bf16.msra.mxu0 0
        %6955 = vmatprep.subr.bf16.mxu0 0
        %6956 = vmatpush1.bf16.msra.mxu0 0
        %6957 = vmatprep.subr.bf16.mxu0 0
        %6958 = vmatpush1.bf16.msra.mxu0 0
        %6959 = vmatprep.subr.bf16.mxu0 0
        %6960 = vmatpush1.bf16.msra.mxu0 0
        %6961 = vmatprep.subr.bf16.mxu0 0
        %6962 = vmatpush1.bf16.msra.mxu0 0
        %6963 = vmatprep.subr.bf16.mxu0 0
        %6964 = vmatpush1.bf16.msra.mxu0 0
        %6965 = vmatprep.subr.bf16.mxu0 0
        %6966 = vmatpush1.bf16.msra.mxu0 0
        %6967 = vmatprep.subr.bf16.mxu0 0
        %6968 = vmatpush1.bf16.msra.mxu0 0
        %6969 = vmatprep.subr.bf16.mxu0 0
        %6970 = vmatpush1.bf16.msra.mxu0 0
        %6971 = vmatprep.subr.bf16.mxu0 0
        %6972 = vmatpush1.bf16.msra.mxu0 0
        %6973 = vmatprep.mubr.bf16.mxu0 0
        %6974 = vmatmul.mubr.bf16.gmra.mrb[0].mxu0 %v6733
        %v6975 = vpop.f32.mrb[0].mxu0
        %v6976 = vadd.f32 %v6815, %v6975
        %v6977 = vpop.f32.mrb[0].mxu0
        %v6978 = vpop.f32.mrb[0].mxu0
        %v6979 = vadd.f32 %v6818, %v6978
        %v6980 = vpop.f32.mrb[0].mxu0
        %6981 = vmatprep.mubr.bf16.mxu0 0
        %6982 = vmatmul.mubr.bf16.gmra.mrb[0].mxu0 %v6736
        %v6983 = vpop.f32.mrb[0].mxu0
        %v6984 = vadd.f32 %v6823, %v6983
        %v6985 = vpop.f32.mrb[0].mxu0
        %v6986 = vpop.f32.mrb[0].mxu0
        %v6987 = vadd.f32 %v6826, %v6986
        %v6988 = vpop.f32.mrb[0].mxu0
        %6989 = vmatprep.mubr.bf16.mxu0 0
        %6990 = vmatmul.mubr.bf16.gmra.mrb[0].mxu0 %v6739
        %v6991 = vpop.f32.mrb[0].mxu0
        %v6992 = vadd.f32 %v6831, %v6991
        %v6993 = vpop.f32.mrb[0].mxu0
        %v6994 = vpop.f32.mrb[0].mxu0
        %v6995 = vadd.f32 %v6834, %v6994
        %v6996 = vpop.f32.mrb[0].mxu0
        %6997 = vmatprep.mubr.bf16.mxu0 0
        %6998 = vmatmul.mubr.bf16.gmra.mrb[0].mxu0 %v6742
        %v6999 = vpop.f32.mrb[0].mxu0
        %v7000 = vadd.f32 %v6839, %v6999
        %v7001 = vpop.f32.mrb[0].mxu0
        %v7002 = vpop.f32.mrb[0].mxu0
        %v7003 = vadd.f32 %v6842, %v7002
        %v7004 = vpop.f32.mrb[0].mxu0
        %7005 = vmatprep.mubr.bf16.mxu0 0
        %7006 = vmatmul.mubr.bf16.gmra.mrb[0].mxu0 %v6745
        %v7007 = vpop.f32.mrb[0].mxu0
        %v7008 = vadd.f32 %v6847, %v7007
        %v7009 = vpop.f32.mrb[0].mxu0
        %v7010 = vpop.f32.mrb[0].mxu0
        %v7011 = vadd.f32 %v6850, %v7010
        %v7012 = vpop.f32.mrb[0].mxu0
        %7013 = vmatprep.mubr.bf16.mxu0 0
        %7014 = vmatmul.mubr.bf16.gmra.mrb[0].mxu0 %v6748
        %v7015 = vpop.f32.mrb[0].mxu0
        %v7016 = vadd.f32 %v6855, %v7015
        %v7017 = vpop.f32.mrb[0].mxu0
        %v7018 = vpop.f32.mrb[0].mxu0
        %v7019 = vadd.f32 %v6858, %v7018
        %v7020 = vpop.f32.mrb[0].mxu0
        %7021 = vmatprep.mubr.bf16.mxu0 0
        %7022 = vmatmul.mubr.bf16.gmra.mrb[0].mxu0 %v6751
        %v7023 = vpop.f32.mrb[0].mxu0
        %v7024 = vadd.f32 %v6863, %v7023
        %v7025 = vpop.f32.mrb[0].mxu0
        %v7026 = vpop.f32.mrb[0].mxu0
        %v7027 = vadd.f32 %v6866, %v7026
        %v7028 = vpop.f32.mrb[0].mxu0
        %7029 = vmatprep.mubr.bf16.mxu0 0
        %7030 = vmatmul.mubr.bf16.gmra.mrb[0].mxu0 %v6754
        %v7031 = vpop.f32.mrb[0].mxu0
        %v7032 = vadd.f32 %v6871, %v7031
        %v7033 = vpop.f32.mrb[0].mxu0
        %v7034 = vpop.f32.mrb[0].mxu0
        %v7035 = vadd.f32 %v6874, %v7034
        %v7036 = vpop.f32.mrb[0].mxu0
        %7037 = vmatprep.mubr.bf16.mxu0 0
        %7038 = vmatmul.mubr.bf16.gmra.mrb[0].mxu0 %v6757
        %v7039 = vpop.f32.mrb[0].mxu0
        %v7040 = vadd.f32 %v6879, %v7039
        %v7041 = vpop.f32.mrb[0].mxu0
        %v7042 = vpop.f32.mrb[0].mxu0
        %v7043 = vadd.f32 %v6882, %v7042
        %v7044 = vpop.f32.mrb[0].mxu0
        %7045 = vmatprep.mubr.bf16.mxu0 0
        %7046 = vmatmul.mubr.bf16.gmra.mrb[0].mxu0 %v6760
        %v7047 = vpop.f32.mrb[0].mxu0
        %v7048 = vadd.f32 %v6887, %v7047
        %v7049 = vpop.f32.mrb[0].mxu0
        %v7050 = vpop.f32.mrb[0].mxu0
        %v7051 = vadd.f32 %v6890, %v7050
        %v7052 = vpop.f32.mrb[0].mxu0
        %7053 = vmatprep.mubr.bf16.mxu0 0
        %7054 = vmatmul.mubr.bf16.gmra.mrb[0].mxu0 %v6763
        %v7055 = vpop.f32.mrb[0].mxu0
        %v7056 = vadd.f32 %v6895, %v7055
        %v7057 = vpop.f32.mrb[0].mxu0
        %v7058 = vpop.f32.mrb[0].mxu0
        %v7059 = vadd.f32 %v6898, %v7058
        %v7060 = vpop.f32.mrb[0].mxu0
        %7061 = vmatprep.mubr.bf16.mxu0 0
        %7062 = vmatmul.mubr.bf16.gmra.mrb[0].mxu0 %v6766
        %v7063 = vpop.f32.mrb[0].mxu0
        %v7064 = vadd.f32 %v6903, %v7063
        %v7065 = vpop.f32.mrb[0].mxu0
        %v7066 = vpop.f32.mrb[0].mxu0
        %v7067 = vadd.f32 %v6906, %v7066
        %v7068 = vpop.f32.mrb[0].mxu0
        %7069 = vmatprep.mubr.bf16.mxu0 0
        %7070 = vmatmul.mubr.bf16.gmra.mrb[0].mxu0 %v6769
        %v7071 = vpop.f32.mrb[0].mxu0
        %v7072 = vadd.f32 %v6911, %v7071
        %v7073 = vpop.f32.mrb[0].mxu0
        %v7074 = vpop.f32.mrb[0].mxu0
        %v7075 = vadd.f32 %v6914, %v7074
        %v7076 = vpop.f32.mrb[0].mxu0
        %7077 = vmatprep.mubr.bf16.mxu0 0
        %7078 = vmatmul.mubr.bf16.gmra.mrb[0].mxu0 %v6772
        %v7079 = vpop.f32.mrb[0].mxu0
        %v7080 = vadd.f32 %v6919, %v7079
        %v7081 = vpop.f32.mrb[0].mxu0
        %v7082 = vpop.f32.mrb[0].mxu0
        %v7083 = vadd.f32 %v6922, %v7082
        %v7084 = vpop.f32.mrb[0].mxu0
        %7085 = vmatprep.mubr.bf16.mxu0 0
        %7086 = vmatmul.mubr.bf16.gmra.mrb[0].mxu0 %v6775
        %v7087 = vpop.f32.mrb[0].mxu0
        %v7088 = vadd.f32 %v6927, %v7087
        %v7089 = vpop.f32.mrb[0].mxu0
        %v7090 = vpop.f32.mrb[0].mxu0
        %v7091 = vadd.f32 %v6930, %v7090
        %v7092 = vpop.f32.mrb[0].mxu0
        %7093 = vmatprep.mubr.bf16.mxu0 0
        %7094 = vmatmul.mubr.bf16.gmra.mrb[0].mxu0 %v6778
        %v7095 = vpop.f32.mrb[0].mxu0
        %v7096 = vadd.f32 %v6935, %v7095
        %v7097 = vpop.f32.mrb[0].mxu0
        %v7098 = vpop.f32.mrb[0].mxu0
        %v7099 = vadd.f32 %v6938, %v7098
        %v7100 = vpop.f32.mrb[0].mxu0
        %7101 = vdwg.mxu0
        %v7102 = vsel %vm386, %v6976, 0.0
        %v7103 = vsel %vm386, %v6979, 0.0
        %v7104 = vadd.f32 %v7102, %v7103
        %v7105 = vsel %vm386, %v6984, 0.0
        %v7106 = vadd.f32 %v7104, %v7105
        %v7107 = vsel %vm386, %v6987, 0.0
        %v7108 = vadd.f32 %v7106, %v7107
        %v7109 = vsel %vm386, %v6992, 0.0
        %v7110 = vadd.f32 %v7108, %v7109
        %v7111 = vsel %vm386, %v6995, 0.0
        %v7112 = vadd.f32 %v7110, %v7111
        %v7113 = vsel %vm386, %v7000, 0.0
        %v7114 = vadd.f32 %v7112, %v7113
        %v7115 = vsel %vm386, %v7003, 0.0
        %v7116 = vadd.f32 %v7114, %v7115
        %v7117 = vsel %vm386, %v7008, 0.0
        %v7118 = vadd.f32 %v7116, %v7117
        %v7119 = vsel %vm386, %v7011, 0.0
        %v7120 = vadd.f32 %v7118, %v7119
        %v7121 = vsel %vm386, %v7016, 0.0
        %v7122 = vadd.f32 %v7120, %v7121
        %v7123 = vsel %vm386, %v7019, 0.0
        %v7124 = vadd.f32 %v7122, %v7123
        %v7125 = vsel %vm386, %v7024, 0.0
        %v7126 = vadd.f32 %v7124, %v7125
        %v7127 = vsel %vm386, %v7027, 0.0
        %v7128 = vadd.f32 %v7126, %v7127
        %v7129 = vsel %vm386, %v7032, 0.0
        %v7130 = vadd.f32 %v7128, %v7129
        %v7131 = vsel %vm386, %v7035, 0.0
        %v7132 = vadd.f32 %v7130, %v7131
        %v7133 = vsel %vm386, %v7040, 0.0
        %v7134 = vadd.f32 %v7132, %v7133
        %v7135 = vsel %vm386, %v7043, 0.0
        %v7136 = vadd.f32 %v7134, %v7135
        %v7137 = vsel %vm386, %v7048, 0.0
        %v7138 = vadd.f32 %v7136, %v7137
        %v7139 = vsel %vm386, %v7051, 0.0
        %v7140 = vadd.f32 %v7138, %v7139
        %v7141 = vsel %vm386, %v7056, 0.0
        %v7142 = vadd.f32 %v7140, %v7141
        %v7143 = vsel %vm386, %v7059, 0.0
        %v7144 = vadd.f32 %v7142, %v7143
        %v7145 = vsel %vm386, %v7064, 0.0
        %v7146 = vadd.f32 %v7144, %v7145
        %v7147 = vsel %vm386, %v7067, 0.0
        %v7148 = vadd.f32 %v7146, %v7147
        %v7149 = vsel %vm386, %v7072, 0.0
        %v7150 = vadd.f32 %v7148, %v7149
        %v7151 = vsel %vm386, %v7075, 0.0
        %v7152 = vadd.f32 %v7150, %v7151
        %v7153 = vsel %vm386, %v7080, 0.0
        %v7154 = vadd.f32 %v7152, %v7153
        %v7155 = vsel %vm386, %v7083, 0.0
        %v7156 = vadd.f32 %v7154, %v7155
        %v7157 = vsel %vm386, %v7088, 0.0
        %v7158 = vadd.f32 %v7156, %v7157
        %v7159 = vsel %vm386, %v7091, 0.0
        %v7160 = vadd.f32 %v7158, %v7159
        %v7161 = vsel %vm386, %v7096, 0.0
        %v7162 = vadd.f32 %v7160, %v7161
        %v7163 = vsel %vm386, %v7099, 0.0
        %v7164 = vadd.f32 %v7162, %v7163
        %v7165 = vrot.slane %v7164, 4
        %v7166 = vadd.f32 %v7164, %v7165
        %v7167 = vrot.slane %v7166, 2
        %v7168 = vadd.f32 %v7166, %v7167
        %v7169 = vrot.slane %v7168, 1
        %v7170 = vadd.f32 %v7168, %v7169
        %v7171 = vmul.f32 %v7170, 0.00390625
        %s7172 = scalar_lea.vmem %s5, 32
        %v7173 = vld [vmem:[%s7172] sm:$0xff]
        %v7174 = vld [vmem:[%s7172 + $0x8] sm:$0xff]
        %v7175 = vld [vmem:[%s7172 + $0x10] sm:$0xff]
        %v7176 = vld [vmem:[%s7172 + $0x18] sm:$0xff]
        %s7177 = scalar_lea.vmem %s6, 1
        %v7178 = vld [vmem:[%s7177] sm:$0x1]
        %v7180 = vlaneseq
        %v7181 = vshrl.u32 %v7180, 7
        %v7182 = vsub.s32 0, %v7181
        %v7183 = vrot.slane %v7178, %v7182
        %v7186 = vsel %vm386, %v7171, 0
        %7188 = vmatprep.subr.mxu0 0.0
        %7189 = vmatpush1.msra.mxu0 %v7173
        %7190 = vmatprep.subr.mxu0 0.0
        %7191 = vmatpush1.msra.mxu0 %v7174
        %7192 = vmatprep.subr.mxu0 0.0
        %7193 = vmatpush1.msra.mxu0 %v7175
        %7194 = vmatprep.subr.mxu0 0.0
        %7195 = vmatpush1.msra.mxu0 %v7176
        %7196 = vmatprep.subr.mxu0 0.0
        %7197 = vmatpush1.msra.mxu0 0.0
        %7198 = vmatprep.subr.mxu0 0.0
        %7199 = vmatpush1.msra.mxu0 0.0
        %7200 = vmatprep.subr.mxu0 0.0
        %7201 = vmatpush1.msra.mxu0 0.0
        %7202 = vmatprep.subr.mxu0 0.0
        %7203 = vmatpush1.msra.mxu0 0.0
        %7204 = vmatprep.subr.mxu0 0.0
        %7205 = vmatpush1.msra.mxu0 0.0
        %7206 = vmatprep.subr.mxu0 0.0
        %7207 = vmatpush1.msra.mxu0 0.0
        %7208 = vmatprep.subr.mxu0 0.0
        %7209 = vmatpush1.msra.mxu0 0.0
        %7210 = vmatprep.subr.mxu0 0.0
        %7211 = vmatpush1.msra.mxu0 0.0
        %7212 = vmatprep.subr.mxu0 0.0
        %7213 = vmatpush1.msra.mxu0 0.0
        %7214 = vmatprep.subr.mxu0 0.0
        %7215 = vmatpush1.msra.mxu0 0.0
        %7216 = vmatprep.subr.mxu0 0.0
        %7217 = vmatpush1.msra.mxu0 0.0
        %7218 = vmatprep.subr.mxu0 0.0
        %7219 = vmatpush1.msra.mxu0 0.0
        %7220 = vmatprep.subr.mxu0 0.0
        %7221 = vmatpush1.msra.mxu0 0.0
        %7222 = vmatprep.subr.mxu0 0.0
        %7223 = vmatpush1.msra.mxu0 0.0
        %7224 = vmatprep.subr.mxu0 0.0
        %7225 = vmatpush1.msra.mxu0 0.0
        %7226 = vmatprep.subr.mxu0 0.0
        %7227 = vmatpush1.msra.mxu0 0.0
        %7228 = vmatprep.subr.mxu0 0.0
        %7229 = vmatpush1.msra.mxu0 0.0
        %7230 = vmatprep.subr.mxu0 0.0
        %7231 = vmatpush1.msra.mxu0 0.0
        %7232 = vmatprep.subr.mxu0 0.0
        %7233 = vmatpush1.msra.mxu0 0.0
        %7234 = vmatprep.subr.mxu0 0.0
        %7235 = vmatpush1.msra.mxu0 0.0
        %7236 = vmatprep.subr.mxu0 0.0
        %7237 = vmatpush1.msra.mxu0 0.0
        %7238 = vmatprep.subr.mxu0 0.0
        %7239 = vmatpush1.msra.mxu0 0.0
        %7240 = vmatprep.subr.mxu0 0.0
        %7241 = vmatpush1.msra.mxu0 0.0
        %7242 = vmatprep.subr.mxu0 0.0
        %7243 = vmatpush1.msra.mxu0 0.0
        %7244 = vmatprep.subr.mxu0 0.0
        %7245 = vmatpush1.msra.mxu0 0.0
        %7246 = vmatprep.subr.mxu0 0.0
        %7247 = vmatpush1.msra.mxu0 0.0
        %7248 = vmatprep.subr.mxu0 0.0
        %7249 = vmatpush1.msra.mxu0 0.0
        %7250 = vmatprep.subr.mxu0 0.0
        %7251 = vmatpush1.msra.mxu0 0.0
        %7252 = vmatprep.mubr.f32.mxu0 0.0
        %7253 = vmatmul.mubr.f32.gmra.mrb[0].mxu0 %v7186
        %v7254 = vpop.f32.mrb[0].mxu0
        %v7255 = vadd.f32 %v7183, %v7254
        %v7256 = vpop.f32.mrb[0].mxu0
        %7257 = vdwg.mxu0
        %v7258 = vmax.f32 %v7255, 0.0
        %s7259 = scalar_lea.vmem %s7, 8
        %v7260 = vld [vmem:[%s7259] sm:$0xff]
        %s7261 = scalar_lea.vmem %s8, 1
        %v7262 = vld [vmem:[%s7261] sm:$0x1]
        %v7264 = vlaneseq
        %v7265 = vshrl.u32 %v7264, 7
        %v7266 = vsub.s32 0, %v7265
        %v7267 = vrot.slane %v7262, %v7266
        %v7270 = vsel %vm3796, %v7258, 0
        %7272 = vmatprep.subr.mxu0 0.0
        %7273 = vmatpush1.msra.mxu0 %v7260
        %7274 = vmatprep.subr.mxu0 0.0
        %7275 = vmatpush1.msra.mxu0 0.0
        %7276 = vmatprep.subr.mxu0 0.0
        %7277 = vmatpush1.msra.mxu0 0.0
        %7278 = vmatprep.subr.mxu0 0.0
        %7279 = vmatpush1.msra.mxu0 0.0
        %7280 = vmatprep.subr.mxu0 0.0
        %7281 = vmatpush1.msra.mxu0 0.0
        %7282 = vmatprep.subr.mxu0 0.0
        %7283 = vmatpush1.msra.mxu0 0.0
        %7284 = vmatprep.subr.mxu0 0.0
        %7285 = vmatpush1.msra.mxu0 0.0
        %7286 = vmatprep.subr.mxu0 0.0
        %7287 = vmatpush1.msra.mxu0 0.0
        %7288 = vmatprep.subr.mxu0 0.0
        %7289 = vmatpush1.msra.mxu0 0.0
        %7290 = vmatprep.subr.mxu0 0.0
        %7291 = vmatpush1.msra.mxu0 0.0
        %7292 = vmatprep.subr.mxu0 0.0
        %7293 = vmatpush1.msra.mxu0 0.0
        %7294 = vmatprep.subr.mxu0 0.0
        %7295 = vmatpush1.msra.mxu0 0.0
        %7296 = vmatprep.subr.mxu0 0.0
        %7297 = vmatpush1.msra.mxu0 0.0
        %7298 = vmatprep.subr.mxu0 0.0
        %7299 = vmatpush1.msra.mxu0 0.0
        %7300 = vmatprep.subr.mxu0 0.0
        %7301 = vmatpush1.msra.mxu0 0.0
        %7302 = vmatprep.subr.mxu0 0.0
        %7303 = vmatpush1.msra.mxu0 0.0
        %7304 = vmatprep.subr.mxu0 0.0
        %7305 = vmatpush1.msra.mxu0 0.0
        %7306 = vmatprep.subr.mxu0 0.0
        %7307 = vmatpush1.msra.mxu0 0.0
        %7308 = vmatprep.subr.mxu0 0.0
        %7309 = vmatpush1.msra.mxu0 0.0
        %7310 = vmatprep.subr.mxu0 0.0
        %7311 = vmatpush1.msra.mxu0 0.0
        %7312 = vmatprep.subr.mxu0 0.0
        %7313 = vmatpush1.msra.mxu0 0.0
        %7314 = vmatprep.subr.mxu0 0.0
        %7315 = vmatpush1.msra.mxu0 0.0
        %7316 = vmatprep.subr.mxu0 0.0
        %7317 = vmatpush1.msra.mxu0 0.0
        %7318 = vmatprep.subr.mxu0 0.0
        %7319 = vmatpush1.msra.mxu0 0.0
        %7320 = vmatprep.subr.mxu0 0.0
        %7321 = vmatpush1.msra.mxu0 0.0
        %7322 = vmatprep.subr.mxu0 0.0
        %7323 = vmatpush1.msra.mxu0 0.0
        %7324 = vmatprep.subr.mxu0 0.0
        %7325 = vmatpush1.msra.mxu0 0.0
        %7326 = vmatprep.subr.mxu0 0.0
        %7327 = vmatpush1.msra.mxu0 0.0
        %7328 = vmatprep.subr.mxu0 0.0
        %7329 = vmatpush1.msra.mxu0 0.0
        %7330 = vmatprep.subr.mxu0 0.0
        %7331 = vmatpush1.msra.mxu0 0.0
        %7332 = vmatprep.subr.mxu0 0.0
        %7333 = vmatpush1.msra.mxu0 0.0
        %7334 = vmatprep.subr.mxu0 0.0
        %7335 = vmatpush1.msra.mxu0 0.0
        %7336 = vmatprep.mubr.f32.mxu0 0.0
        %7337 = vmatmul.mubr.f32.gmra.mrb[0].mxu0 %v7270
        %v7338 = vpop.f32.mrb[0].mxu0
        %v7339 = vadd.f32 %v7267, %v7338
        %v7340 = vpop.f32.mrb[0].mxu0
        %7341 = vdwg.mxu0
        %v7342 = vsub.f32 0.0, %v7339
        %v7343 = vmul.f32 %v7342, 1.442695
        %v7344 = vpow.pop %v7343
        %v7345 = vadd.f32 %v7344, 1.0
        %v7346 = vrcp.pop %v7345
        %v7347 = vmul.f32 1.0, %v7346
        %v7348 = vlaneseq
        %v7349 = vshrl.u32 %v7348, 7
        %v7350 = vsub.s32 0, %v7349
        %v7351 = vrot.slane %v7347, %v7350
        %v7352 = vmul.f32 %v6976, %v7351
        %v7353 = vmul.f32 %v6979, %v7351
        %v7354 = vmul.f32 %v6984, %v7351
        %v7355 = vmul.f32 %v6987, %v7351
        %v7356 = vmul.f32 %v6992, %v7351
        %v7357 = vmul.f32 %v6995, %v7351
        %v7358 = vmul.f32 %v7000, %v7351
        %v7359 = vmul.f32 %v7003, %v7351
        %v7360 = vmul.f32 %v7008, %v7351
        %v7361 = vmul.f32 %v7011, %v7351
        %v7362 = vmul.f32 %v7016, %v7351
        %v7363 = vmul.f32 %v7019, %v7351
        %v7364 = vmul.f32 %v7024, %v7351
        %v7365 = vmul.f32 %v7027, %v7351
        %v7366 = vmul.f32 %v7032, %v7351
        %v7367 = vmul.f32 %v7035, %v7351
        %v7368 = vmul.f32 %v7040, %v7351
        %v7369 = vmul.f32 %v7043, %v7351
        %v7370 = vmul.f32 %v7048, %v7351
        %v7371 = vmul.f32 %v7051, %v7351
        %v7372 = vmul.f32 %v7056, %v7351
        %v7373 = vmul.f32 %v7059, %v7351
        %v7374 = vmul.f32 %v7064, %v7351
        %v7375 = vmul.f32 %v7067, %v7351
        %v7376 = vmul.f32 %v7072, %v7351
        %v7377 = vmul.f32 %v7075, %v7351
        %v7378 = vmul.f32 %v7080, %v7351
        %v7379 = vmul.f32 %v7083, %v7351
        %v7380 = vmul.f32 %v7088, %v7351
        %v7381 = vmul.f32 %v7091, %v7351
        %v7382 = vmul.f32 %v7096, %v7351
        %v7383 = vmul.f32 %v7099, %v7351
        %v7384 = vadd.f32 %v7352, %v3912
        %v7385 = vadd.f32 %v7353, %v3913
        %v7386 = vadd.f32 %v7354, %v3914
        %v7387 = vadd.f32 %v7355, %v3915
        %v7388 = vadd.f32 %v7356, %v3916
        %v7389 = vadd.f32 %v7357, %v3917
        %v7390 = vadd.f32 %v7358, %v3918
        %v7391 = vadd.f32 %v7359, %v3919
        %v7392 = vadd.f32 %v7360, %v3920
        %v7393 = vadd.f32 %v7361, %v3921
        %v7394 = vadd.f32 %v7362, %v3922
        %v7395 = vadd.f32 %v7363, %v3923
        %v7396 = vadd.f32 %v7364, %v3924
        %v7397 = vadd.f32 %v7365, %v3925
        %v7398 = vadd.f32 %v7366, %v3926
        %v7399 = vadd.f32 %v7367, %v3927
        %v7400 = vadd.f32 %v7368, %v3928
        %v7401 = vadd.f32 %v7369, %v3929
        %v7402 = vadd.f32 %v7370, %v3930
        %v7403 = vadd.f32 %v7371, %v3931
        %v7404 = vadd.f32 %v7372, %v3932
        %v7405 = vadd.f32 %v7373, %v3933
        %v7406 = vadd.f32 %v7374, %v3934
        %v7407 = vadd.f32 %v7375, %v3935
        %v7408 = vadd.f32 %v7376, %v3936
        %v7409 = vadd.f32 %v7377, %v3937
        %v7410 = vadd.f32 %v7378, %v3938
        %v7411 = vadd.f32 %v7379, %v3939
        %v7412 = vadd.f32 %v7380, %v3940
        %v7413 = vadd.f32 %v7381, %v3941
        %v7414 = vadd.f32 %v7382, %v3942
        %v7415 = vadd.f32 %v7383, %v3943
        %v7416 = vld [vmem:[%s9] sm:$0xf]
        %v7417 = vld [vmem:[%s9 + $0x4] sm:$0xf]
        %v7418 = vld [vmem:[%s9 + $0x8] sm:$0xf]
        %v7419 = vld [vmem:[%s9 + $0xc] sm:$0xf]
        %v7420 = vld [vmem:[%s9 + $0x10] sm:$0xf]
        %v7421 = vld [vmem:[%s9 + $0x14] sm:$0xf]
        %v7422 = vld [vmem:[%s9 + $0x18] sm:$0xf]
        %v7423 = vld [vmem:[%s9 + $0x1c] sm:$0xf]
        %v7424 = vld [vmem:[%s9 + $0x20] sm:$0xf]
        %v7425 = vld [vmem:[%s9 + $0x24] sm:$0xf]
        %v7426 = vld [vmem:[%s9 + $0x28] sm:$0xf]
        %v7427 = vld [vmem:[%s9 + $0x2c] sm:$0xf]
        %v7428 = vld [vmem:[%s9 + $0x30] sm:$0xf]
        %v7429 = vld [vmem:[%s9 + $0x34] sm:$0xf]
        %v7430 = vld [vmem:[%s9 + $0x38] sm:$0xf]
        %v7431 = vld [vmem:[%s9 + $0x3c] sm:$0xf]
        %v7432 = vld [vmem:[%s9 + $0x40] sm:$0xf]
        %v7433 = vld [vmem:[%s9 + $0x44] sm:$0xf]
        %v7434 = vld [vmem:[%s9 + $0x48] sm:$0xf]
        %v7435 = vld [vmem:[%s9 + $0x4c] sm:$0xf]
        %v7436 = vld [vmem:[%s9 + $0x50] sm:$0xf]
        %v7437 = vld [vmem:[%s9 + $0x54] sm:$0xf]
        %v7438 = vld [vmem:[%s9 + $0x58] sm:$0xf]
        %v7439 = vld [vmem:[%s9 + $0x5c] sm:$0xf]
        %v7440 = vld [vmem:[%s9 + $0x60] sm:$0xf]
        %v7441 = vld [vmem:[%s9 + $0x64] sm:$0xf]
        %v7442 = vld [vmem:[%s9 + $0x68] sm:$0xf]
        %v7443 = vld [vmem:[%s9 + $0x6c] sm:$0xf]
        %v7444 = vld [vmem:[%s9 + $0x70] sm:$0xf]
        %v7445 = vld [vmem:[%s9 + $0x74] sm:$0xf]
        %v7446 = vld [vmem:[%s9 + $0x78] sm:$0xf]
        %v7447 = vld [vmem:[%s9 + $0x7c] sm:$0xf]
        %v7448 = vld [vmem:[%s9 + $0x80] sm:$0xf]
        %v7449 = vld [vmem:[%s9 + $0x84] sm:$0xf]
        %v7450 = vld [vmem:[%s9 + $0x88] sm:$0xf]
        %v7451 = vld [vmem:[%s9 + $0x8c] sm:$0xf]
        %v7452 = vld [vmem:[%s10] sm:$0x1]
        %7453 = vst.msk [vmem:[%s511 + $0x1] sm:$0xff] %vm386, %v7384
        %7454 = vst.msk [vmem:[%s511 + $0x9] sm:$0xff] %vm386, %v7385
        %7455 = vst.msk [vmem:[%s511 + $0x19] sm:$0xff] %vm386, %v7386
        %7456 = vst.msk [vmem:[%s511 + $0x21] sm:$0xff] %vm386, %v7387
        %7457 = vst.msk [vmem:[%s511 + $0x31] sm:$0xff] %vm386, %v7388
        %7458 = vst.msk [vmem:[%s511 + $0x39] sm:$0xff] %vm386, %v7389
        %7459 = vst.msk [vmem:[%s511 + $0x49] sm:$0xff] %vm386, %v7390
        %7460 = vst.msk [vmem:[%s511 + $0x51] sm:$0xff] %vm386, %v7391
        %7461 = vst.msk [vmem:[%s511 + $0x61] sm:$0xff] %vm386, %v7392
        %7462 = vst.msk [vmem:[%s511 + $0x69] sm:$0xff] %vm386, %v7393
        %7463 = vst.msk [vmem:[%s511 + $0x79] sm:$0xff] %vm386, %v7394
        %7464 = vst.msk [vmem:[%s511 + $0x81] sm:$0xff] %vm386, %v7395
        %7465 = vst.msk [vmem:[%s511 + $0x91] sm:$0xff] %vm386, %v7396
        %7466 = vst.msk [vmem:[%s511 + $0x99] sm:$0xff] %vm386, %v7397
        %7467 = vst.msk [vmem:[%s511 + $0xa9] sm:$0xff] %vm386, %v7398
        %7468 = vst.msk [vmem:[%s511 + $0xb1] sm:$0xff] %vm386, %v7399
        %7469 = vst.msk [vmem:[%s511 + $0xc1] sm:$0xff] %vm386, %v7400
        %7470 = vst.msk [vmem:[%s511 + $0xc9] sm:$0xff] %vm386, %v7401
        %7471 = vst.msk [vmem:[%s511 + $0xd9] sm:$0xff] %vm386, %v7402
        %7472 = vst.msk [vmem:[%s511 + $0xe1] sm:$0xff] %vm386, %v7403
        %7473 = vst.msk [vmem:[%s511 + $0xf1] sm:$0xff] %vm386, %v7404
        %7474 = vst.msk [vmem:[%s511 + $0xf9] sm:$0xff] %vm386, %v7405
        %7475 = vst.msk [vmem:[%s511 + $0x109] sm:$0xff] %vm386, %v7406
        %7476 = vst.msk [vmem:[%s511 + $0x111] sm:$0xff] %vm386, %v7407
        %7477 = vst.msk [vmem:[%s511 + $0x121] sm:$0xff] %vm386, %v7408
        %7478 = vst.msk [vmem:[%s511 + $0x129] sm:$0xff] %vm386, %v7409
        %7479 = vst.msk [vmem:[%s511 + $0x139] sm:$0xff] %vm386, %v7410
        %7480 = vst.msk [vmem:[%s511 + $0x141] sm:$0xff] %vm386, %v7411
        %7481 = vst.msk [vmem:[%s511 + $0x151] sm:$0xff] %vm386, %v7412
        %7482 = vst.msk [vmem:[%s511 + $0x159] sm:$0xff] %vm386, %v7413
        %7483 = vst.msk [vmem:[%s511 + $0x169] sm:$0xff] %vm386, %v7414
        %7484 = vst.msk [vmem:[%s511 + $0x171] sm:$0xff] %vm386, %v7415
        %v7485 = vld [vmem:[#allocation2] sm:$0xff]
        %v7486 = vld [vmem:[#allocation2 + $0x8] sm:$0xff]
        %v7487 = vld [vmem:[#allocation2 + $0x18] sm:$0xff]
        %v7488 = vld [vmem:[#allocation2 + $0x20] sm:$0xff]
        %v7489 = vld [vmem:[#allocation2 + $0x30] sm:$0xff]
        %v7490 = vld [vmem:[#allocation2 + $0x38] sm:$0xff]
        %v7491 = vld [vmem:[#allocation2 + $0x48] sm:$0xff]
        %v7492 = vld [vmem:[#allocation2 + $0x50] sm:$0xff]
        %v7493 = vld [vmem:[#allocation2 + $0x60] sm:$0xff]
        %v7494 = vld [vmem:[#allocation2 + $0x68] sm:$0xff]
        %v7495 = vld [vmem:[#allocation2 + $0x78] sm:$0xff]
        %v7496 = vld [vmem:[#allocation2 + $0x80] sm:$0xff]
        %v7497 = vld [vmem:[#allocation2 + $0x90] sm:$0xff]
        %v7498 = vld [vmem:[#allocation2 + $0x98] sm:$0xff]
        %v7499 = vld [vmem:[#allocation2 + $0xa8] sm:$0xff]
        %v7500 = vld [vmem:[#allocation2 + $0xb0] sm:$0xff]
        %v7501 = vld [vmem:[#allocation2 + $0xc0] sm:$0xff]
        %v7502 = vld [vmem:[#allocation2 + $0xc8] sm:$0xff]
        %v7503 = vld [vmem:[#allocation2 + $0xd8] sm:$0xff]
        %v7504 = vld [vmem:[#allocation2 + $0xe0] sm:$0xff]
        %v7505 = vld [vmem:[#allocation2 + $0xf0] sm:$0xff]
        %v7506 = vld [vmem:[#allocation2 + $0xf8] sm:$0xff]
        %v7507 = vld [vmem:[#allocation2 + $0x108] sm:$0xff]
        %v7508 = vld [vmem:[#allocation2 + $0x110] sm:$0xff]
        %v7509 = vld [vmem:[#allocation2 + $0x120] sm:$0xff]
        %v7510 = vld [vmem:[#allocation2 + $0x128] sm:$0xff]
        %v7511 = vld [vmem:[#allocation2 + $0x138] sm:$0xff]
        %v7512 = vld [vmem:[#allocation2 + $0x140] sm:$0xff]
        %v7513 = vld [vmem:[#allocation2 + $0x150] sm:$0xff]
        %v7514 = vld [vmem:[#allocation2 + $0x158] sm:$0xff]
        %v7515 = vld [vmem:[#allocation2 + $0x168] sm:$0xff]
        %v7516 = vld [vmem:[#allocation2 + $0x170] sm:$0xff]
        %v7517 = vpack.c.bf16 %v7486, %v7485
        %v7518 = vpack.c.bf16 %v7488, %v7487
        %v7519 = vpack.c.bf16 %v7490, %v7489
        %v7520 = vpack.c.bf16 %v7492, %v7491
        %v7521 = vpack.c.bf16 %v7494, %v7493
        %v7522 = vpack.c.bf16 %v7496, %v7495
        %v7523 = vpack.c.bf16 %v7498, %v7497
        %v7524 = vpack.c.bf16 %v7500, %v7499
        %v7525 = vpack.c.bf16 %v7502, %v7501
        %v7526 = vpack.c.bf16 %v7504, %v7503
        %v7527 = vpack.c.bf16 %v7506, %v7505
        %v7528 = vpack.c.bf16 %v7508, %v7507
        %v7529 = vpack.c.bf16 %v7510, %v7509
        %v7530 = vpack.c.bf16 %v7512, %v7511
        %v7531 = vpack.c.bf16 %v7514, %v7513
        %v7532 = vpack.c.bf16 %v7516, %v7515
        %7533 = vst.msk [vmem:[#allocation3] sm:$0xff] %vm386, %v7517
        %7534 = vst.msk [vmem:[#allocation3 + $0x18] sm:$0xff] %vm386, %v7518
        %7535 = vst.msk [vmem:[#allocation3 + $0x30] sm:$0xff] %vm386, %v7519
        %7536 = vst.msk [vmem:[#allocation3 + $0x48] sm:$0xff] %vm386, %v7520
        %7537 = vst.msk [vmem:[#allocation3 + $0x60] sm:$0xff] %vm386, %v7521
        %7538 = vst.msk [vmem:[#allocation3 + $0x78] sm:$0xff] %vm386, %v7522
        %7539 = vst.msk [vmem:[#allocation3 + $0x90] sm:$0xff] %vm386, %v7523
        %7540 = vst.msk [vmem:[#allocation3 + $0xa8] sm:$0xff] %vm386, %v7524
        %7541 = vst.msk [vmem:[#allocation3 + $0xc0] sm:$0xff] %vm386, %v7525
        %7542 = vst.msk [vmem:[#allocation3 + $0xd8] sm:$0xff] %vm386, %v7526
        %7543 = vst.msk [vmem:[#allocation3 + $0xf0] sm:$0xff] %vm386, %v7527
        %7544 = vst.msk [vmem:[#allocation3 + $0x108] sm:$0xff] %vm386, %v7528
        %7545 = vst.msk [vmem:[#allocation3 + $0x120] sm:$0xff] %vm386, %v7529
        %7546 = vst.msk [vmem:[#allocation3 + $0x138] sm:$0xff] %vm386, %v7530
        %7547 = vst.msk [vmem:[#allocation3 + $0x150] sm:$0xff] %vm386, %v7531
        %7548 = vst.msk [vmem:[#allocation3 + $0x168] sm:$0xff] %vm386, %v7532
        %v7549 = vld [vmem:[#allocation2 + $0x1] sm:$0xff]
        %v7550 = vld [vmem:[#allocation2 + $0x9] sm:$0xff]
        %v7551 = vld [vmem:[#allocation2 + $0x19] sm:$0xff]
        %v7552 = vld [vmem:[#allocation2 + $0x21] sm:$0xff]
        %v7553 = vld [vmem:[#allocation2 + $0x31] sm:$0xff]
        %v7554 = vld [vmem:[#allocation2 + $0x39] sm:$0xff]
        %v7555 = vld [vmem:[#allocation2 + $0x49] sm:$0xff]
        %v7556 = vld [vmem:[#allocation2 + $0x51] sm:$0xff]
        %v7557 = vld [vmem:[#allocation2 + $0x61] sm:$0xff]
        %v7558 = vld [vmem:[#allocation2 + $0x69] sm:$0xff]
        %v7559 = vld [vmem:[#allocation2 + $0x79] sm:$0xff]
        %v7560 = vld [vmem:[#allocation2 + $0x81] sm:$0xff]
        %v7561 = vld [vmem:[#allocation2 + $0x91] sm:$0xff]
        %v7562 = vld [vmem:[#allocation2 + $0x99] sm:$0xff]
        %v7563 = vld [vmem:[#allocation2 + $0xa9] sm:$0xff]
        %v7564 = vld [vmem:[#allocation2 + $0xb1] sm:$0xff]
        %v7565 = vld [vmem:[#allocation2 + $0xc1] sm:$0xff]
        %v7566 = vld [vmem:[#allocation2 + $0xc9] sm:$0xff]
        %v7567 = vld [vmem:[#allocation2 + $0xd9] sm:$0xff]
        %v7568 = vld [vmem:[#allocation2 + $0xe1] sm:$0xff]
        %v7569 = vld [vmem:[#allocation2 + $0xf1] sm:$0xff]
        %v7570 = vld [vmem:[#allocation2 + $0xf9] sm:$0xff]
        %v7571 = vld [vmem:[#allocation2 + $0x109] sm:$0xff]
        %v7572 = vld [vmem:[#allocation2 + $0x111] sm:$0xff]
        %v7573 = vld [vmem:[#allocation2 + $0x121] sm:$0xff]
        %v7574 = vld [vmem:[#allocation2 + $0x129] sm:$0xff]
        %v7575 = vld [vmem:[#allocation2 + $0x139] sm:$0xff]
        %v7576 = vld [vmem:[#allocation2 + $0x141] sm:$0xff]
        %v7577 = vld [vmem:[#allocation2 + $0x151] sm:$0xff]
        %v7578 = vld [vmem:[#allocation2 + $0x159] sm:$0xff]
        %v7579 = vld [vmem:[#allocation2 + $0x169] sm:$0xff]
        %v7580 = vld [vmem:[#allocation2 + $0x171] sm:$0xff]
        %v7581 = vpack.c.bf16 %v7550, %v7549
        %v7582 = vpack.c.bf16 %v7552, %v7551
        %v7583 = vpack.c.bf16 %v7554, %v7553
        %v7584 = vpack.c.bf16 %v7556, %v7555
        %v7585 = vpack.c.bf16 %v7558, %v7557
        %v7586 = vpack.c.bf16 %v7560, %v7559
        %v7587 = vpack.c.bf16 %v7562, %v7561
        %v7588 = vpack.c.bf16 %v7564, %v7563
        %v7589 = vpack.c.bf16 %v7566, %v7565
        %v7590 = vpack.c.bf16 %v7568, %v7567
        %v7591 = vpack.c.bf16 %v7570, %v7569
        %v7592 = vpack.c.bf16 %v7572, %v7571
        %v7593 = vpack.c.bf16 %v7574, %v7573
        %v7594 = vpack.c.bf16 %v7576, %v7575
        %v7595 = vpack.c.bf16 %v7578, %v7577
        %v7596 = vpack.c.bf16 %v7580, %v7579
        %7613 = vrot.lane.b32.xlu0 %v7581, 32
        %v7614 = vpop.permute.xlu0 %7613
        %7615 = vrot.lane.b32.xlu0 %v7582, 32
        %v7616 = vpop.permute.xlu0 %7615
        %7617 = vrot.lane.b32.xlu0 %v7583, 32
        %v7618 = vpop.permute.xlu0 %7617
        %7619 = vrot.lane.b32.xlu0 %v7584, 32
        %v7620 = vpop.permute.xlu0 %7619
        %7621 = vrot.lane.b32.xlu0 %v7585, 32
        %v7622 = vpop.permute.xlu0 %7621
        %7623 = vrot.lane.b32.xlu0 %v7586, 32
        %v7624 = vpop.permute.xlu0 %7623
        %7625 = vrot.lane.b32.xlu0 %v7587, 32
        %v7626 = vpop.permute.xlu0 %7625
        %7627 = vrot.lane.b32.xlu0 %v7588, 32
        %v7628 = vpop.permute.xlu0 %7627
        %7629 = vrot.lane.b32.xlu0 %v7589, 32
        %v7630 = vpop.permute.xlu0 %7629
        %7631 = vrot.lane.b32.xlu0 %v7590, 32
        %v7632 = vpop.permute.xlu0 %7631
        %7633 = vrot.lane.b32.xlu0 %v7591, 32
        %v7634 = vpop.permute.xlu0 %7633
        %7635 = vrot.lane.b32.xlu0 %v7592, 32
        %v7636 = vpop.permute.xlu0 %7635
        %7637 = vrot.lane.b32.xlu0 %v7593, 32
        %v7638 = vpop.permute.xlu0 %7637
        %7639 = vrot.lane.b32.xlu0 %v7594, 32
        %v7640 = vpop.permute.xlu0 %7639
        %7641 = vrot.lane.b32.xlu0 %v7595, 32
        %v7642 = vpop.permute.xlu0 %7641
        %7643 = vrot.lane.b32.xlu0 %v7596, 32
        %v7644 = vpop.permute.xlu0 %7643
        %7661 = vst.msk [vmem:[#allocation3] sm:$0xff] %vm720, %v7614
        %7662 = vst.msk [vmem:[#allocation3 + $0x18] sm:$0xff] %vm720, %v7616
        %7663 = vst.msk [vmem:[#allocation3 + $0x30] sm:$0xff] %vm720, %v7618
        %7664 = vst.msk [vmem:[#allocation3 + $0x48] sm:$0xff] %vm720, %v7620
        %7665 = vst.msk [vmem:[#allocation3 + $0x60] sm:$0xff] %vm720, %v7622
        %7666 = vst.msk [vmem:[#allocation3 + $0x78] sm:$0xff] %vm720, %v7624
        %7667 = vst.msk [vmem:[#allocation3 + $0x90] sm:$0xff] %vm720, %v7626
        %7668 = vst.msk [vmem:[#allocation3 + $0xa8] sm:$0xff] %vm720, %v7628
        %7669 = vst.msk [vmem:[#allocation3 + $0xc0] sm:$0xff] %vm720, %v7630
        %7670 = vst.msk [vmem:[#allocation3 + $0xd8] sm:$0xff] %vm720, %v7632
        %7671 = vst.msk [vmem:[#allocation3 + $0xf0] sm:$0xff] %vm720, %v7634
        %7672 = vst.msk [vmem:[#allocation3 + $0x108] sm:$0xff] %vm720, %v7636
        %7673 = vst.msk [vmem:[#allocation3 + $0x120] sm:$0xff] %vm720, %v7638
        %7674 = vst.msk [vmem:[#allocation3 + $0x138] sm:$0xff] %vm720, %v7640
        %7675 = vst.msk [vmem:[#allocation3 + $0x150] sm:$0xff] %vm720, %v7642
        %7676 = vst.msk [vmem:[#allocation3 + $0x168] sm:$0xff] %vm720, %v7644
        %v7677 = vld [vmem:[#allocation2 + $0x2] sm:$0xff]
        %v7678 = vld [vmem:[#allocation2 + $0xa] sm:$0xff]
        %v7679 = vld [vmem:[#allocation2 + $0x1a] sm:$0xff]
        %v7680 = vld [vmem:[#allocation2 + $0x22] sm:$0xff]
        %v7681 = vld [vmem:[#allocation2 + $0x32] sm:$0xff]
        %v7682 = vld [vmem:[#allocation2 + $0x3a] sm:$0xff]
        %v7683 = vld [vmem:[#allocation2 + $0x4a] sm:$0xff]
        %v7684 = vld [vmem:[#allocation2 + $0x52] sm:$0xff]
        %v7685 = vld [vmem:[#allocation2 + $0x62] sm:$0xff]
        %v7686 = vld [vmem:[#allocation2 + $0x6a] sm:$0xff]
        %v7687 = vld [vmem:[#allocation2 + $0x7a] sm:$0xff]
        %v7688 = vld [vmem:[#allocation2 + $0x82] sm:$0xff]
        %v7689 = vld [vmem:[#allocation2 + $0x92] sm:$0xff]
        %v7690 = vld [vmem:[#allocation2 + $0x9a] sm:$0xff]
        %v7691 = vld [vmem:[#allocation2 + $0xaa] sm:$0xff]
        %v7692 = vld [vmem:[#allocation2 + $0xb2] sm:$0xff]
        %v7693 = vld [vmem:[#allocation2 + $0xc2] sm:$0xff]
        %v7694 = vld [vmem:[#allocation2 + $0xca] sm:$0xff]
        %v7695 = vld [vmem:[#allocation2 + $0xda] sm:$0xff]
        %v7696 = vld [vmem:[#allocation2 + $0xe2] sm:$0xff]
        %v7697 = vld [vmem:[#allocation2 + $0xf2] sm:$0xff]
        %v7698 = vld [vmem:[#allocation2 + $0xfa] sm:$0xff]
        %v7699 = vld [vmem:[#allocation2 + $0x10a] sm:$0xff]
        %v7700 = vld [vmem:[#allocation2 + $0x112] sm:$0xff]
        %v7701 = vld [vmem:[#allocation2 + $0x122] sm:$0xff]
        %v7702 = vld [vmem:[#allocation2 + $0x12a] sm:$0xff]
        %v7703 = vld [vmem:[#allocation2 + $0x13a] sm:$0xff]
        %v7704 = vld [vmem:[#allocation2 + $0x142] sm:$0xff]
        %v7705 = vld [vmem:[#allocation2 + $0x152] sm:$0xff]
        %v7706 = vld [vmem:[#allocation2 + $0x15a] sm:$0xff]
        %v7707 = vld [vmem:[#allocation2 + $0x16a] sm:$0xff]
        %v7708 = vld [vmem:[#allocation2 + $0x172] sm:$0xff]
        %v7709 = vpack.c.bf16 %v7678, %v7677
        %v7710 = vpack.c.bf16 %v7680, %v7679
        %v7711 = vpack.c.bf16 %v7682, %v7681
        %v7712 = vpack.c.bf16 %v7684, %v7683
        %v7713 = vpack.c.bf16 %v7686, %v7685
        %v7714 = vpack.c.bf16 %v7688, %v7687
        %v7715 = vpack.c.bf16 %v7690, %v7689
        %v7716 = vpack.c.bf16 %v7692, %v7691
        %v7717 = vpack.c.bf16 %v7694, %v7693
        %v7718 = vpack.c.bf16 %v7696, %v7695
        %v7719 = vpack.c.bf16 %v7698, %v7697
        %v7720 = vpack.c.bf16 %v7700, %v7699
        %v7721 = vpack.c.bf16 %v7702, %v7701
        %v7722 = vpack.c.bf16 %v7704, %v7703
        %v7723 = vpack.c.bf16 %v7706, %v7705
        %v7724 = vpack.c.bf16 %v7708, %v7707
        %7741 = vrot.lane.b32.xlu0 %v7709, 64
        %v7742 = vpop.permute.xlu0 %7741
        %7743 = vrot.lane.b32.xlu0 %v7710, 64
        %v7744 = vpop.permute.xlu0 %7743
        %7745 = vrot.lane.b32.xlu0 %v7711, 64
        %v7746 = vpop.permute.xlu0 %7745
        %7747 = vrot.lane.b32.xlu0 %v7712, 64
        %v7748 = vpop.permute.xlu0 %7747
        %7749 = vrot.lane.b32.xlu0 %v7713, 64
        %v7750 = vpop.permute.xlu0 %7749
        %7751 = vrot.lane.b32.xlu0 %v7714, 64
        %v7752 = vpop.permute.xlu0 %7751
        %7753 = vrot.lane.b32.xlu0 %v7715, 64
        %v7754 = vpop.permute.xlu0 %7753
        %7755 = vrot.lane.b32.xlu0 %v7716, 64
        %v7756 = vpop.permute.xlu0 %7755
        %7757 = vrot.lane.b32.xlu0 %v7717, 64
        %v7758 = vpop.permute.xlu0 %7757
        %7759 = vrot.lane.b32.xlu0 %v7718, 64
        %v7760 = vpop.permute.xlu0 %7759
        %7761 = vrot.lane.b32.xlu0 %v7719, 64
        %v7762 = vpop.permute.xlu0 %7761
        %7763 = vrot.lane.b32.xlu0 %v7720, 64
        %v7764 = vpop.permute.xlu0 %7763
        %7765 = vrot.lane.b32.xlu0 %v7721, 64
        %v7766 = vpop.permute.xlu0 %7765
        %7767 = vrot.lane.b32.xlu0 %v7722, 64
        %v7768 = vpop.permute.xlu0 %7767
        %7769 = vrot.lane.b32.xlu0 %v7723, 64
        %v7770 = vpop.permute.xlu0 %7769
        %7771 = vrot.lane.b32.xlu0 %v7724, 64
        %v7772 = vpop.permute.xlu0 %7771
        %7789 = vst.msk [vmem:[#allocation3] sm:$0xff] %vm849, %v7742
        %7790 = vst.msk [vmem:[#allocation3 + $0x18] sm:$0xff] %vm849, %v7744
        %7791 = vst.msk [vmem:[#allocation3 + $0x30] sm:$0xff] %vm849, %v7746
        %7792 = vst.msk [vmem:[#allocation3 + $0x48] sm:$0xff] %vm849, %v7748
        %7793 = vst.msk [vmem:[#allocation3 + $0x60] sm:$0xff] %vm849, %v7750
        %7794 = vst.msk [vmem:[#allocation3 + $0x78] sm:$0xff] %vm849, %v7752
        %7795 = vst.msk [vmem:[#allocation3 + $0x90] sm:$0xff] %vm849, %v7754
        %7796 = vst.msk [vmem:[#allocation3 + $0xa8] sm:$0xff] %vm849, %v7756
        %7797 = vst.msk [vmem:[#allocation3 + $0xc0] sm:$0xff] %vm849, %v7758
        %7798 = vst.msk [vmem:[#allocation3 + $0xd8] sm:$0xff] %vm849, %v7760
        %7799 = vst.msk [vmem:[#allocation3 + $0xf0] sm:$0xff] %vm849, %v7762
        %7800 = vst.msk [vmem:[#allocation3 + $0x108] sm:$0xff] %vm849, %v7764
        %7801 = vst.msk [vmem:[#allocation3 + $0x120] sm:$0xff] %vm849, %v7766
        %7802 = vst.msk [vmem:[#allocation3 + $0x138] sm:$0xff] %vm849, %v7768
        %7803 = vst.msk [vmem:[#allocation3 + $0x150] sm:$0xff] %vm849, %v7770
        %7804 = vst.msk [vmem:[#allocation3 + $0x168] sm:$0xff] %vm849, %v7772
        %v7805 = vld [vmem:[%s511] sm:$0xff]
        %v7806 = vld [vmem:[%s511 + $0x8] sm:$0xff]
        %v7807 = vld [vmem:[%s511 + $0x18] sm:$0xff]
        %v7808 = vld [vmem:[%s511 + $0x20] sm:$0xff]
        %v7809 = vld [vmem:[%s511 + $0x30] sm:$0xff]
        %v7810 = vld [vmem:[%s511 + $0x38] sm:$0xff]
        %v7811 = vld [vmem:[%s511 + $0x48] sm:$0xff]
        %v7812 = vld [vmem:[%s511 + $0x50] sm:$0xff]
        %v7813 = vld [vmem:[%s511 + $0x60] sm:$0xff]
        %v7814 = vld [vmem:[%s511 + $0x68] sm:$0xff]
        %v7815 = vld [vmem:[%s511 + $0x78] sm:$0xff]
        %v7816 = vld [vmem:[%s511 + $0x80] sm:$0xff]
        %v7817 = vld [vmem:[%s511 + $0x90] sm:$0xff]
        %v7818 = vld [vmem:[%s511 + $0x98] sm:$0xff]
        %v7819 = vld [vmem:[%s511 + $0xa8] sm:$0xff]
        %v7820 = vld [vmem:[%s511 + $0xb0] sm:$0xff]
        %v7821 = vld [vmem:[%s511 + $0xc0] sm:$0xff]
        %v7822 = vld [vmem:[%s511 + $0xc8] sm:$0xff]
        %v7823 = vld [vmem:[%s511 + $0xd8] sm:$0xff]
        %v7824 = vld [vmem:[%s511 + $0xe0] sm:$0xff]
        %v7825 = vld [vmem:[%s511 + $0xf0] sm:$0xff]
        %v7826 = vld [vmem:[%s511 + $0xf8] sm:$0xff]
        %v7827 = vld [vmem:[%s511 + $0x108] sm:$0xff]
        %v7828 = vld [vmem:[%s511 + $0x110] sm:$0xff]
        %v7829 = vld [vmem:[%s511 + $0x120] sm:$0xff]
        %v7830 = vld [vmem:[%s511 + $0x128] sm:$0xff]
        %v7831 = vld [vmem:[%s511 + $0x138] sm:$0xff]
        %v7832 = vld [vmem:[%s511 + $0x140] sm:$0xff]
        %v7833 = vld [vmem:[%s511 + $0x150] sm:$0xff]
        %v7834 = vld [vmem:[%s511 + $0x158] sm:$0xff]
        %v7835 = vld [vmem:[%s511 + $0x168] sm:$0xff]
        %v7836 = vld [vmem:[%s511 + $0x170] sm:$0xff]
        %v7837 = vpack.c.bf16 %v7806, %v7805
        %v7838 = vpack.c.bf16 %v7808, %v7807
        %v7839 = vpack.c.bf16 %v7810, %v7809
        %v7840 = vpack.c.bf16 %v7812, %v7811
        %v7841 = vpack.c.bf16 %v7814, %v7813
        %v7842 = vpack.c.bf16 %v7816, %v7815
        %v7843 = vpack.c.bf16 %v7818, %v7817
        %v7844 = vpack.c.bf16 %v7820, %v7819
        %v7845 = vpack.c.bf16 %v7822, %v7821
        %v7846 = vpack.c.bf16 %v7824, %v7823
        %v7847 = vpack.c.bf16 %v7826, %v7825
        %v7848 = vpack.c.bf16 %v7828, %v7827
        %v7849 = vpack.c.bf16 %v7830, %v7829
        %v7850 = vpack.c.bf16 %v7832, %v7831
        %v7851 = vpack.c.bf16 %v7834, %v7833
        %v7852 = vpack.c.bf16 %v7836, %v7835
        %7869 = vrot.lane.b32.xlu0 %v7837, 96
        %v7870 = vpop.permute.xlu0 %7869
        %7871 = vrot.lane.b32.xlu0 %v7838, 96
        %v7872 = vpop.permute.xlu0 %7871
        %7873 = vrot.lane.b32.xlu0 %v7839, 96
        %v7874 = vpop.permute.xlu0 %7873
        %7875 = vrot.lane.b32.xlu0 %v7840, 96
        %v7876 = vpop.permute.xlu0 %7875
        %7877 = vrot.lane.b32.xlu0 %v7841, 96
        %v7878 = vpop.permute.xlu0 %7877
        %7879 = vrot.lane.b32.xlu0 %v7842, 96
        %v7880 = vpop.permute.xlu0 %7879
        %7881 = vrot.lane.b32.xlu0 %v7843, 96
        %v7882 = vpop.permute.xlu0 %7881
        %7883 = vrot.lane.b32.xlu0 %v7844, 96
        %v7884 = vpop.permute.xlu0 %7883
        %7885 = vrot.lane.b32.xlu0 %v7845, 96
        %v7886 = vpop.permute.xlu0 %7885
        %7887 = vrot.lane.b32.xlu0 %v7846, 96
        %v7888 = vpop.permute.xlu0 %7887
        %7889 = vrot.lane.b32.xlu0 %v7847, 96
        %v7890 = vpop.permute.xlu0 %7889
        %7891 = vrot.lane.b32.xlu0 %v7848, 96
        %v7892 = vpop.permute.xlu0 %7891
        %7893 = vrot.lane.b32.xlu0 %v7849, 96
        %v7894 = vpop.permute.xlu0 %7893
        %7895 = vrot.lane.b32.xlu0 %v7850, 96
        %v7896 = vpop.permute.xlu0 %7895
        %7897 = vrot.lane.b32.xlu0 %v7851, 96
        %v7898 = vpop.permute.xlu0 %7897
        %7899 = vrot.lane.b32.xlu0 %v7852, 96
        %v7900 = vpop.permute.xlu0 %7899
        %7917 = vst.msk [vmem:[#allocation3] sm:$0xff] %vm978, %v7870
        %7918 = vst.msk [vmem:[#allocation3 + $0x18] sm:$0xff] %vm978, %v7872
        %7919 = vst.msk [vmem:[#allocation3 + $0x30] sm:$0xff] %vm978, %v7874
        %7920 = vst.msk [vmem:[#allocation3 + $0x48] sm:$0xff] %vm978, %v7876
        %7921 = vst.msk [vmem:[#allocation3 + $0x60] sm:$0xff] %vm978, %v7878
        %7922 = vst.msk [vmem:[#allocation3 + $0x78] sm:$0xff] %vm978, %v7880
        %7923 = vst.msk [vmem:[#allocation3 + $0x90] sm:$0xff] %vm978, %v7882
        %7924 = vst.msk [vmem:[#allocation3 + $0xa8] sm:$0xff] %vm978, %v7884
        %7925 = vst.msk [vmem:[#allocation3 + $0xc0] sm:$0xff] %vm978, %v7886
        %7926 = vst.msk [vmem:[#allocation3 + $0xd8] sm:$0xff] %vm978, %v7888
        %7927 = vst.msk [vmem:[#allocation3 + $0xf0] sm:$0xff] %vm978, %v7890
        %7928 = vst.msk [vmem:[#allocation3 + $0x108] sm:$0xff] %vm978, %v7892
        %7929 = vst.msk [vmem:[#allocation3 + $0x120] sm:$0xff] %vm978, %v7894
        %7930 = vst.msk [vmem:[#allocation3 + $0x138] sm:$0xff] %vm978, %v7896
        %7931 = vst.msk [vmem:[#allocation3 + $0x150] sm:$0xff] %vm978, %v7898
        %7932 = vst.msk [vmem:[#allocation3 + $0x168] sm:$0xff] %vm978, %v7900
        %v7933 = vld [vmem:[%s511 + $0x1] sm:$0xff]
        %v7934 = vld [vmem:[%s511 + $0x9] sm:$0xff]
        %v7935 = vld [vmem:[%s511 + $0x19] sm:$0xff]
        %v7936 = vld [vmem:[%s511 + $0x21] sm:$0xff]
        %v7937 = vld [vmem:[%s511 + $0x31] sm:$0xff]
        %v7938 = vld [vmem:[%s511 + $0x39] sm:$0xff]
        %v7939 = vld [vmem:[%s511 + $0x49] sm:$0xff]
        %v7940 = vld [vmem:[%s511 + $0x51] sm:$0xff]
        %v7941 = vld [vmem:[%s511 + $0x61] sm:$0xff]
        %v7942 = vld [vmem:[%s511 + $0x69] sm:$0xff]
        %v7943 = vld [vmem:[%s511 + $0x79] sm:$0xff]
        %v7944 = vld [vmem:[%s511 + $0x81] sm:$0xff]
        %v7945 = vld [vmem:[%s511 + $0x91] sm:$0xff]
        %v7946 = vld [vmem:[%s511 + $0x99] sm:$0xff]
        %v7947 = vld [vmem:[%s511 + $0xa9] sm:$0xff]
        %v7948 = vld [vmem:[%s511 + $0xb1] sm:$0xff]
        %v7949 = vld [vmem:[%s511 + $0xc1] sm:$0xff]
        %v7950 = vld [vmem:[%s511 + $0xc9] sm:$0xff]
        %v7951 = vld [vmem:[%s511 + $0xd9] sm:$0xff]
        %v7952 = vld [vmem:[%s511 + $0xe1] sm:$0xff]
        %v7953 = vld [vmem:[%s511 + $0xf1] sm:$0xff]
        %v7954 = vld [vmem:[%s511 + $0xf9] sm:$0xff]
        %v7955 = vld [vmem:[%s511 + $0x109] sm:$0xff]
        %v7956 = vld [vmem:[%s511 + $0x111] sm:$0xff]
        %v7957 = vld [vmem:[%s511 + $0x121] sm:$0xff]
        %v7958 = vld [vmem:[%s511 + $0x129] sm:$0xff]
        %v7959 = vld [vmem:[%s511 + $0x139] sm:$0xff]
        %v7960 = vld [vmem:[%s511 + $0x141] sm:$0xff]
        %v7961 = vld [vmem:[%s511 + $0x151] sm:$0xff]
        %v7962 = vld [vmem:[%s511 + $0x159] sm:$0xff]
        %v7963 = vld [vmem:[%s511 + $0x169] sm:$0xff]
        %v7964 = vld [vmem:[%s511 + $0x171] sm:$0xff]
        %v7965 = vpack.c.bf16 %v7934, %v7933
        %v7966 = vpack.c.bf16 %v7936, %v7935
        %v7967 = vpack.c.bf16 %v7938, %v7937
        %v7968 = vpack.c.bf16 %v7940, %v7939
        %v7969 = vpack.c.bf16 %v7942, %v7941
        %v7970 = vpack.c.bf16 %v7944, %v7943
        %v7971 = vpack.c.bf16 %v7946, %v7945
        %v7972 = vpack.c.bf16 %v7948, %v7947
        %v7973 = vpack.c.bf16 %v7950, %v7949
        %v7974 = vpack.c.bf16 %v7952, %v7951
        %v7975 = vpack.c.bf16 %v7954, %v7953
        %v7976 = vpack.c.bf16 %v7956, %v7955
        %v7977 = vpack.c.bf16 %v7958, %v7957
        %v7978 = vpack.c.bf16 %v7960, %v7959
        %v7979 = vpack.c.bf16 %v7962, %v7961
        %v7980 = vpack.c.bf16 %v7964, %v7963
        %7981 = vst.msk [vmem:[#allocation3 + $0x8] sm:$0xff] %vm386, %v7965
        %7982 = vst.msk [vmem:[#allocation3 + $0x20] sm:$0xff] %vm386, %v7966
        %7983 = vst.msk [vmem:[#allocation3 + $0x38] sm:$0xff] %vm386, %v7967
        %7984 = vst.msk [vmem:[#allocation3 + $0x50] sm:$0xff] %vm386, %v7968
        %7985 = vst.msk [vmem:[#allocation3 + $0x68] sm:$0xff] %vm386, %v7969
        %7986 = vst.msk [vmem:[#allocation3 + $0x80] sm:$0xff] %vm386, %v7970
        %7987 = vst.msk [vmem:[#allocation3 + $0x98] sm:$0xff] %vm386, %v7971
        %7988 = vst.msk [vmem:[#allocation3 + $0xb0] sm:$0xff] %vm386, %v7972
        %7989 = vst.msk [vmem:[#allocation3 + $0xc8] sm:$0xff] %vm386, %v7973
        %7990 = vst.msk [vmem:[#allocation3 + $0xe0] sm:$0xff] %vm386, %v7974
        %7991 = vst.msk [vmem:[#allocation3 + $0xf8] sm:$0xff] %vm386, %v7975
        %7992 = vst.msk [vmem:[#allocation3 + $0x110] sm:$0xff] %vm386, %v7976
        %7993 = vst.msk [vmem:[#allocation3 + $0x128] sm:$0xff] %vm386, %v7977
        %7994 = vst.msk [vmem:[#allocation3 + $0x140] sm:$0xff] %vm386, %v7978
        %7995 = vst.msk [vmem:[#allocation3 + $0x158] sm:$0xff] %vm386, %v7979
        %7996 = vst.msk [vmem:[#allocation3 + $0x170] sm:$0xff] %vm386, %v7980
        %v7997 = vld [vmem:[%s511 + $0x2] sm:$0xff]
        %v7998 = vld [vmem:[%s511 + $0xa] sm:$0xff]
        %v7999 = vld [vmem:[%s511 + $0x1a] sm:$0xff]
        %v8000 = vld [vmem:[%s511 + $0x22] sm:$0xff]
        %v8001 = vld [vmem:[%s511 + $0x32] sm:$0xff]
        %v8002 = vld [vmem:[%s511 + $0x3a] sm:$0xff]
        %v8003 = vld [vmem:[%s511 + $0x4a] sm:$0xff]
        %v8004 = vld [vmem:[%s511 + $0x52] sm:$0xff]
        %v8005 = vld [vmem:[%s511 + $0x62] sm:$0xff]
        %v8006 = vld [vmem:[%s511 + $0x6a] sm:$0xff]
        %v8007 = vld [vmem:[%s511 + $0x7a] sm:$0xff]
        %v8008 = vld [vmem:[%s511 + $0x82] sm:$0xff]
        %v8009 = vld [vmem:[%s511 + $0x92] sm:$0xff]
        %v8010 = vld [vmem:[%s511 + $0x9a] sm:$0xff]
        %v8011 = vld [vmem:[%s511 + $0xaa] sm:$0xff]
        %v8012 = vld [vmem:[%s511 + $0xb2] sm:$0xff]
        %v8013 = vld [vmem:[%s511 + $0xc2] sm:$0xff]
        %v8014 = vld [vmem:[%s511 + $0xca] sm:$0xff]
        %v8015 = vld [vmem:[%s511 + $0xda] sm:$0xff]
        %v8016 = vld [vmem:[%s511 + $0xe2] sm:$0xff]
        %v8017 = vld [vmem:[%s511 + $0xf2] sm:$0xff]
        %v8018 = vld [vmem:[%s511 + $0xfa] sm:$0xff]
        %v8019 = vld [vmem:[%s511 + $0x10a] sm:$0xff]
        %v8020 = vld [vmem:[%s511 + $0x112] sm:$0xff]
        %v8021 = vld [vmem:[%s511 + $0x122] sm:$0xff]
        %v8022 = vld [vmem:[%s511 + $0x12a] sm:$0xff]
        %v8023 = vld [vmem:[%s511 + $0x13a] sm:$0xff]
        %v8024 = vld [vmem:[%s511 + $0x142] sm:$0xff]
        %v8025 = vld [vmem:[%s511 + $0x152] sm:$0xff]
        %v8026 = vld [vmem:[%s511 + $0x15a] sm:$0xff]
        %v8027 = vld [vmem:[%s511 + $0x16a] sm:$0xff]
        %v8028 = vld [vmem:[%s511 + $0x172] sm:$0xff]
        %v8029 = vpack.c.bf16 %v7998, %v7997
        %v8030 = vpack.c.bf16 %v8000, %v7999
        %v8031 = vpack.c.bf16 %v8002, %v8001
        %v8032 = vpack.c.bf16 %v8004, %v8003
        %v8033 = vpack.c.bf16 %v8006, %v8005
        %v8034 = vpack.c.bf16 %v8008, %v8007
        %v8035 = vpack.c.bf16 %v8010, %v8009
        %v8036 = vpack.c.bf16 %v8012, %v8011
        %v8037 = vpack.c.bf16 %v8014, %v8013
        %v8038 = vpack.c.bf16 %v8016, %v8015
        %v8039 = vpack.c.bf16 %v8018, %v8017
        %v8040 = vpack.c.bf16 %v8020, %v8019
        %v8041 = vpack.c.bf16 %v8022, %v8021
        %v8042 = vpack.c.bf16 %v8024, %v8023
        %v8043 = vpack.c.bf16 %v8026, %v8025
        %v8044 = vpack.c.bf16 %v8028, %v8027
        %8061 = vrot.lane.b32.xlu0 %v8029, 32
        %v8062 = vpop.permute.xlu0 %8061
        %8063 = vrot.lane.b32.xlu0 %v8030, 32
        %v8064 = vpop.permute.xlu0 %8063
        %8065 = vrot.lane.b32.xlu0 %v8031, 32
        %v8066 = vpop.permute.xlu0 %8065
        %8067 = vrot.lane.b32.xlu0 %v8032, 32
        %v8068 = vpop.permute.xlu0 %8067
        %8069 = vrot.lane.b32.xlu0 %v8033, 32
        %v8070 = vpop.permute.xlu0 %8069
        %8071 = vrot.lane.b32.xlu0 %v8034, 32
        %v8072 = vpop.permute.xlu0 %8071
        %8073 = vrot.lane.b32.xlu0 %v8035, 32
        %v8074 = vpop.permute.xlu0 %8073
        %8075 = vrot.lane.b32.xlu0 %v8036, 32
        %v8076 = vpop.permute.xlu0 %8075
        %8077 = vrot.lane.b32.xlu0 %v8037, 32
        %v8078 = vpop.permute.xlu0 %8077
        %8079 = vrot.lane.b32.xlu0 %v8038, 32
        %v8080 = vpop.permute.xlu0 %8079
        %8081 = vrot.lane.b32.xlu0 %v8039, 32
        %v8082 = vpop.permute.xlu0 %8081
        %8083 = vrot.lane.b32.xlu0 %v8040, 32
        %v8084 = vpop.permute.xlu0 %8083
        %8085 = vrot.lane.b32.xlu0 %v8041, 32
        %v8086 = vpop.permute.xlu0 %8085
        %8087 = vrot.lane.b32.xlu0 %v8042, 32
        %v8088 = vpop.permute.xlu0 %8087
        %8089 = vrot.lane.b32.xlu0 %v8043, 32
        %v8090 = vpop.permute.xlu0 %8089
        %8091 = vrot.lane.b32.xlu0 %v8044, 32
        %v8092 = vpop.permute.xlu0 %8091
        %8109 = vst.msk [vmem:[#allocation3 + $0x8] sm:$0xff] %vm720, %v8062
        %8110 = vst.msk [vmem:[#allocation3 + $0x20] sm:$0xff] %vm720, %v8064
        %8111 = vst.msk [vmem:[#allocation3 + $0x38] sm:$0xff] %vm720, %v8066
        %8112 = vst.msk [vmem:[#allocation3 + $0x50] sm:$0xff] %vm720, %v8068
        %8113 = vst.msk [vmem:[#allocation3 + $0x68] sm:$0xff] %vm720, %v8070
        %8114 = vst.msk [vmem:[#allocation3 + $0x80] sm:$0xff] %vm720, %v8072
        %8115 = vst.msk [vmem:[#allocation3 + $0x98] sm:$0xff] %vm720, %v8074
        %8116 = vst.msk [vmem:[#allocation3 + $0xb0] sm:$0xff] %vm720, %v8076
        %8117 = vst.msk [vmem:[#allocation3 + $0xc8] sm:$0xff] %vm720, %v8078
        %8118 = vst.msk [vmem:[#allocation3 + $0xe0] sm:$0xff] %vm720, %v8080
        %8119 = vst.msk [vmem:[#allocation3 + $0xf8] sm:$0xff] %vm720, %v8082
        %8120 = vst.msk [vmem:[#allocation3 + $0x110] sm:$0xff] %vm720, %v8084
        %8121 = vst.msk [vmem:[#allocation3 + $0x128] sm:$0xff] %vm720, %v8086
        %8122 = vst.msk [vmem:[#allocation3 + $0x140] sm:$0xff] %vm720, %v8088
        %8123 = vst.msk [vmem:[#allocation3 + $0x158] sm:$0xff] %vm720, %v8090
        %8124 = vst.msk [vmem:[#allocation3 + $0x170] sm:$0xff] %vm720, %v8092
        %v8125 = vld [vmem:[%s1187] sm:$0xff]
        %v8126 = vld [vmem:[%s1187 + $0x8] sm:$0xff]
        %v8127 = vld [vmem:[%s1187 + $0x18] sm:$0xff]
        %v8128 = vld [vmem:[%s1187 + $0x20] sm:$0xff]
        %v8129 = vld [vmem:[%s1187 + $0x30] sm:$0xff]
        %v8130 = vld [vmem:[%s1187 + $0x38] sm:$0xff]
        %v8131 = vld [vmem:[%s1187 + $0x48] sm:$0xff]
        %v8132 = vld [vmem:[%s1187 + $0x50] sm:$0xff]
        %v8133 = vld [vmem:[%s1187 + $0x60] sm:$0xff]
        %v8134 = vld [vmem:[%s1187 + $0x68] sm:$0xff]
        %v8135 = vld [vmem:[%s1187 + $0x78] sm:$0xff]
        %v8136 = vld [vmem:[%s1187 + $0x80] sm:$0xff]
        %v8137 = vld [vmem:[%s1187 + $0x90] sm:$0xff]
        %v8138 = vld [vmem:[%s1187 + $0x98] sm:$0xff]
        %v8139 = vld [vmem:[%s1187 + $0xa8] sm:$0xff]
        %v8140 = vld [vmem:[%s1187 + $0xb0] sm:$0xff]
        %v8141 = vld [vmem:[%s1187 + $0xc0] sm:$0xff]
        %v8142 = vld [vmem:[%s1187 + $0xc8] sm:$0xff]
        %v8143 = vld [vmem:[%s1187 + $0xd8] sm:$0xff]
        %v8144 = vld [vmem:[%s1187 + $0xe0] sm:$0xff]
        %v8145 = vld [vmem:[%s1187 + $0xf0] sm:$0xff]
        %v8146 = vld [vmem:[%s1187 + $0xf8] sm:$0xff]
        %v8147 = vld [vmem:[%s1187 + $0x108] sm:$0xff]
        %v8148 = vld [vmem:[%s1187 + $0x110] sm:$0xff]
        %v8149 = vld [vmem:[%s1187 + $0x120] sm:$0xff]
        %v8150 = vld [vmem:[%s1187 + $0x128] sm:$0xff]
        %v8151 = vld [vmem:[%s1187 + $0x138] sm:$0xff]
        %v8152 = vld [vmem:[%s1187 + $0x140] sm:$0xff]
        %v8153 = vld [vmem:[%s1187 + $0x150] sm:$0xff]
        %v8154 = vld [vmem:[%s1187 + $0x158] sm:$0xff]
        %v8155 = vld [vmem:[%s1187 + $0x168] sm:$0xff]
        %v8156 = vld [vmem:[%s1187 + $0x170] sm:$0xff]
        %v8157 = vpack.c.bf16 %v8126, %v8125
        %v8158 = vpack.c.bf16 %v8128, %v8127
        %v8159 = vpack.c.bf16 %v8130, %v8129
        %v8160 = vpack.c.bf16 %v8132, %v8131
        %v8161 = vpack.c.bf16 %v8134, %v8133
        %v8162 = vpack.c.bf16 %v8136, %v8135
        %v8163 = vpack.c.bf16 %v8138, %v8137
        %v8164 = vpack.c.bf16 %v8140, %v8139
        %v8165 = vpack.c.bf16 %v8142, %v8141
        %v8166 = vpack.c.bf16 %v8144, %v8143
        %v8167 = vpack.c.bf16 %v8146, %v8145
        %v8168 = vpack.c.bf16 %v8148, %v8147
        %v8169 = vpack.c.bf16 %v8150, %v8149
        %v8170 = vpack.c.bf16 %v8152, %v8151
        %v8171 = vpack.c.bf16 %v8154, %v8153
        %v8172 = vpack.c.bf16 %v8156, %v8155
        %8189 = vrot.lane.b32.xlu0 %v8157, 64
        %v8190 = vpop.permute.xlu0 %8189
        %8191 = vrot.lane.b32.xlu0 %v8158, 64
        %v8192 = vpop.permute.xlu0 %8191
        %8193 = vrot.lane.b32.xlu0 %v8159, 64
        %v8194 = vpop.permute.xlu0 %8193
        %8195 = vrot.lane.b32.xlu0 %v8160, 64
        %v8196 = vpop.permute.xlu0 %8195
        %8197 = vrot.lane.b32.xlu0 %v8161, 64
        %v8198 = vpop.permute.xlu0 %8197
        %8199 = vrot.lane.b32.xlu0 %v8162, 64
        %v8200 = vpop.permute.xlu0 %8199
        %8201 = vrot.lane.b32.xlu0 %v8163, 64
        %v8202 = vpop.permute.xlu0 %8201
        %8203 = vrot.lane.b32.xlu0 %v8164, 64
        %v8204 = vpop.permute.xlu0 %8203
        %8205 = vrot.lane.b32.xlu0 %v8165, 64
        %v8206 = vpop.permute.xlu0 %8205
        %8207 = vrot.lane.b32.xlu0 %v8166, 64
        %v8208 = vpop.permute.xlu0 %8207
        %8209 = vrot.lane.b32.xlu0 %v8167, 64
        %v8210 = vpop.permute.xlu0 %8209
        %8211 = vrot.lane.b32.xlu0 %v8168, 64
        %v8212 = vpop.permute.xlu0 %8211
        %8213 = vrot.lane.b32.xlu0 %v8169, 64
        %v8214 = vpop.permute.xlu0 %8213
        %8215 = vrot.lane.b32.xlu0 %v8170, 64
        %v8216 = vpop.permute.xlu0 %8215
        %8217 = vrot.lane.b32.xlu0 %v8171, 64
        %v8218 = vpop.permute.xlu0 %8217
        %8219 = vrot.lane.b32.xlu0 %v8172, 64
        %v8220 = vpop.permute.xlu0 %8219
        %8237 = vst.msk [vmem:[#allocation3 + $0x8] sm:$0xff] %vm849, %v8190
        %8238 = vst.msk [vmem:[#allocation3 + $0x20] sm:$0xff] %vm849, %v8192
        %8239 = vst.msk [vmem:[#allocation3 + $0x38] sm:$0xff] %vm849, %v8194
        %8240 = vst.msk [vmem:[#allocation3 + $0x50] sm:$0xff] %vm849, %v8196
        %8241 = vst.msk [vmem:[#allocation3 + $0x68] sm:$0xff] %vm849, %v8198
        %8242 = vst.msk [vmem:[#allocation3 + $0x80] sm:$0xff] %vm849, %v8200
        %8243 = vst.msk [vmem:[#allocation3 + $0x98] sm:$0xff] %vm849, %v8202
        %8244 = vst.msk [vmem:[#allocation3 + $0xb0] sm:$0xff] %vm849, %v8204
        %8245 = vst.msk [vmem:[#allocation3 + $0xc8] sm:$0xff] %vm849, %v8206
        %8246 = vst.msk [vmem:[#allocation3 + $0xe0] sm:$0xff] %vm849, %v8208
        %8247 = vst.msk [vmem:[#allocation3 + $0xf8] sm:$0xff] %vm849, %v8210
        %8248 = vst.msk [vmem:[#allocation3 + $0x110] sm:$0xff] %vm849, %v8212
        %8249 = vst.msk [vmem:[#allocation3 + $0x128] sm:$0xff] %vm849, %v8214
        %8250 = vst.msk [vmem:[#allocation3 + $0x140] sm:$0xff] %vm849, %v8216
        %8251 = vst.msk [vmem:[#allocation3 + $0x158] sm:$0xff] %vm849, %v8218
        %8252 = vst.msk [vmem:[#allocation3 + $0x170] sm:$0xff] %vm849, %v8220
        %v8253 = vld [vmem:[%s1187 + $0x1] sm:$0xff]
        %v8254 = vld [vmem:[%s1187 + $0x9] sm:$0xff]
        %v8255 = vld [vmem:[%s1187 + $0x19] sm:$0xff]
        %v8256 = vld [vmem:[%s1187 + $0x21] sm:$0xff]
        %v8257 = vld [vmem:[%s1187 + $0x31] sm:$0xff]
        %v8258 = vld [vmem:[%s1187 + $0x39] sm:$0xff]
        %v8259 = vld [vmem:[%s1187 + $0x49] sm:$0xff]
        %v8260 = vld [vmem:[%s1187 + $0x51] sm:$0xff]
        %v8261 = vld [vmem:[%s1187 + $0x61] sm:$0xff]
        %v8262 = vld [vmem:[%s1187 + $0x69] sm:$0xff]
        %v8263 = vld [vmem:[%s1187 + $0x79] sm:$0xff]
        %v8264 = vld [vmem:[%s1187 + $0x81] sm:$0xff]
        %v8265 = vld [vmem:[%s1187 + $0x91] sm:$0xff]
        %v8266 = vld [vmem:[%s1187 + $0x99] sm:$0xff]
        %v8267 = vld [vmem:[%s1187 + $0xa9] sm:$0xff]
        %v8268 = vld [vmem:[%s1187 + $0xb1] sm:$0xff]
        %v8269 = vld [vmem:[%s1187 + $0xc1] sm:$0xff]
        %v8270 = vld [vmem:[%s1187 + $0xc9] sm:$0xff]
        %v8271 = vld [vmem:[%s1187 + $0xd9] sm:$0xff]
        %v8272 = vld [vmem:[%s1187 + $0xe1] sm:$0xff]
        %v8273 = vld [vmem:[%s1187 + $0xf1] sm:$0xff]
        %v8274 = vld [vmem:[%s1187 + $0xf9] sm:$0xff]
        %v8275 = vld [vmem:[%s1187 + $0x109] sm:$0xff]
        %v8276 = vld [vmem:[%s1187 + $0x111] sm:$0xff]
        %v8277 = vld [vmem:[%s1187 + $0x121] sm:$0xff]
        %v8278 = vld [vmem:[%s1187 + $0x129] sm:$0xff]
        %v8279 = vld [vmem:[%s1187 + $0x139] sm:$0xff]
        %v8280 = vld [vmem:[%s1187 + $0x141] sm:$0xff]
        %v8281 = vld [vmem:[%s1187 + $0x151] sm:$0xff]
        %v8282 = vld [vmem:[%s1187 + $0x159] sm:$0xff]
        %v8283 = vld [vmem:[%s1187 + $0x169] sm:$0xff]
        %v8284 = vld [vmem:[%s1187 + $0x171] sm:$0xff]
        %v8285 = vpack.c.bf16 %v8254, %v8253
        %v8286 = vpack.c.bf16 %v8256, %v8255
        %v8287 = vpack.c.bf16 %v8258, %v8257
        %v8288 = vpack.c.bf16 %v8260, %v8259
        %v8289 = vpack.c.bf16 %v8262, %v8261
        %v8290 = vpack.c.bf16 %v8264, %v8263
        %v8291 = vpack.c.bf16 %v8266, %v8265
        %v8292 = vpack.c.bf16 %v8268, %v8267
        %v8293 = vpack.c.bf16 %v8270, %v8269
        %v8294 = vpack.c.bf16 %v8272, %v8271
        %v8295 = vpack.c.bf16 %v8274, %v8273
        %v8296 = vpack.c.bf16 %v8276, %v8275
        %v8297 = vpack.c.bf16 %v8278, %v8277
        %v8298 = vpack.c.bf16 %v8280, %v8279
        %v8299 = vpack.c.bf16 %v8282, %v8281
        %v8300 = vpack.c.bf16 %v8284, %v8283
        %8317 = vrot.lane.b32.xlu0 %v8285, 96
        %v8318 = vpop.permute.xlu0 %8317
        %8319 = vrot.lane.b32.xlu0 %v8286, 96
        %v8320 = vpop.permute.xlu0 %8319
        %8321 = vrot.lane.b32.xlu0 %v8287, 96
        %v8322 = vpop.permute.xlu0 %8321
        %8323 = vrot.lane.b32.xlu0 %v8288, 96
        %v8324 = vpop.permute.xlu0 %8323
        %8325 = vrot.lane.b32.xlu0 %v8289, 96
        %v8326 = vpop.permute.xlu0 %8325
        %8327 = vrot.lane.b32.xlu0 %v8290, 96
        %v8328 = vpop.permute.xlu0 %8327
        %8329 = vrot.lane.b32.xlu0 %v8291, 96
        %v8330 = vpop.permute.xlu0 %8329
        %8331 = vrot.lane.b32.xlu0 %v8292, 96
        %v8332 = vpop.permute.xlu0 %8331
        %8333 = vrot.lane.b32.xlu0 %v8293, 96
        %v8334 = vpop.permute.xlu0 %8333
        %8335 = vrot.lane.b32.xlu0 %v8294, 96
        %v8336 = vpop.permute.xlu0 %8335
        %8337 = vrot.lane.b32.xlu0 %v8295, 96
        %v8338 = vpop.permute.xlu0 %8337
        %8339 = vrot.lane.b32.xlu0 %v8296, 96
        %v8340 = vpop.permute.xlu0 %8339
        %8341 = vrot.lane.b32.xlu0 %v8297, 96
        %v8342 = vpop.permute.xlu0 %8341
        %8343 = vrot.lane.b32.xlu0 %v8298, 96
        %v8344 = vpop.permute.xlu0 %8343
        %8345 = vrot.lane.b32.xlu0 %v8299, 96
        %v8346 = vpop.permute.xlu0 %8345
        %8347 = vrot.lane.b32.xlu0 %v8300, 96
        %v8348 = vpop.permute.xlu0 %8347
        %8365 = vst.msk [vmem:[#allocation3 + $0x8] sm:$0xff] %vm978, %v8318
        %8366 = vst.msk [vmem:[#allocation3 + $0x20] sm:$0xff] %vm978, %v8320
        %8367 = vst.msk [vmem:[#allocation3 + $0x38] sm:$0xff] %vm978, %v8322
        %8368 = vst.msk [vmem:[#allocation3 + $0x50] sm:$0xff] %vm978, %v8324
        %8369 = vst.msk [vmem:[#allocation3 + $0x68] sm:$0xff] %vm978, %v8326
        %8370 = vst.msk [vmem:[#allocation3 + $0x80] sm:$0xff] %vm978, %v8328
        %8371 = vst.msk [vmem:[#allocation3 + $0x98] sm:$0xff] %vm978, %v8330
        %8372 = vst.msk [vmem:[#allocation3 + $0xb0] sm:$0xff] %vm978, %v8332
        %8373 = vst.msk [vmem:[#allocation3 + $0xc8] sm:$0xff] %vm978, %v8334
        %8374 = vst.msk [vmem:[#allocation3 + $0xe0] sm:$0xff] %vm978, %v8336
        %8375 = vst.msk [vmem:[#allocation3 + $0xf8] sm:$0xff] %vm978, %v8338
        %8376 = vst.msk [vmem:[#allocation3 + $0x110] sm:$0xff] %vm978, %v8340
        %8377 = vst.msk [vmem:[#allocation3 + $0x128] sm:$0xff] %vm978, %v8342
        %8378 = vst.msk [vmem:[#allocation3 + $0x140] sm:$0xff] %vm978, %v8344
        %8379 = vst.msk [vmem:[#allocation3 + $0x158] sm:$0xff] %vm978, %v8346
        %8380 = vst.msk [vmem:[#allocation3 + $0x170] sm:$0xff] %vm978, %v8348
        %v8381 = vld [vmem:[%s1187 + $0x2] sm:$0xff]
        %v8382 = vld [vmem:[%s1187 + $0xa] sm:$0xff]
        %v8383 = vld [vmem:[%s1187 + $0x1a] sm:$0xff]
        %v8384 = vld [vmem:[%s1187 + $0x22] sm:$0xff]
        %v8385 = vld [vmem:[%s1187 + $0x32] sm:$0xff]
        %v8386 = vld [vmem:[%s1187 + $0x3a] sm:$0xff]
        %v8387 = vld [vmem:[%s1187 + $0x4a] sm:$0xff]
        %v8388 = vld [vmem:[%s1187 + $0x52] sm:$0xff]
        %v8389 = vld [vmem:[%s1187 + $0x62] sm:$0xff]
        %v8390 = vld [vmem:[%s1187 + $0x6a] sm:$0xff]
        %v8391 = vld [vmem:[%s1187 + $0x7a] sm:$0xff]
        %v8392 = vld [vmem:[%s1187 + $0x82] sm:$0xff]
        %v8393 = vld [vmem:[%s1187 + $0x92] sm:$0xff]
        %v8394 = vld [vmem:[%s1187 + $0x9a] sm:$0xff]
        %v8395 = vld [vmem:[%s1187 + $0xaa] sm:$0xff]
        %v8396 = vld [vmem:[%s1187 + $0xb2] sm:$0xff]
        %v8397 = vld [vmem:[%s1187 + $0xc2] sm:$0xff]
        %v8398 = vld [vmem:[%s1187 + $0xca] sm:$0xff]
        %v8399 = vld [vmem:[%s1187 + $0xda] sm:$0xff]
        %v8400 = vld [vmem:[%s1187 + $0xe2] sm:$0xff]
        %v8401 = vld [vmem:[%s1187 + $0xf2] sm:$0xff]
        %v8402 = vld [vmem:[%s1187 + $0xfa] sm:$0xff]
        %v8403 = vld [vmem:[%s1187 + $0x10a] sm:$0xff]
        %v8404 = vld [vmem:[%s1187 + $0x112] sm:$0xff]
        %v8405 = vld [vmem:[%s1187 + $0x122] sm:$0xff]
        %v8406 = vld [vmem:[%s1187 + $0x12a] sm:$0xff]
        %v8407 = vld [vmem:[%s1187 + $0x13a] sm:$0xff]
        %v8408 = vld [vmem:[%s1187 + $0x142] sm:$0xff]
        %v8409 = vld [vmem:[%s1187 + $0x152] sm:$0xff]
        %v8410 = vld [vmem:[%s1187 + $0x15a] sm:$0xff]
        %v8411 = vld [vmem:[%s1187 + $0x16a] sm:$0xff]
        %v8412 = vld [vmem:[%s1187 + $0x172] sm:$0xff]
        %v8413 = vpack.c.bf16 %v8382, %v8381
        %v8414 = vpack.c.bf16 %v8384, %v8383
        %v8415 = vpack.c.bf16 %v8386, %v8385
        %v8416 = vpack.c.bf16 %v8388, %v8387
        %v8417 = vpack.c.bf16 %v8390, %v8389
        %v8418 = vpack.c.bf16 %v8392, %v8391
        %v8419 = vpack.c.bf16 %v8394, %v8393
        %v8420 = vpack.c.bf16 %v8396, %v8395
        %v8421 = vpack.c.bf16 %v8398, %v8397
        %v8422 = vpack.c.bf16 %v8400, %v8399
        %v8423 = vpack.c.bf16 %v8402, %v8401
        %v8424 = vpack.c.bf16 %v8404, %v8403
        %v8425 = vpack.c.bf16 %v8406, %v8405
        %v8426 = vpack.c.bf16 %v8408, %v8407
        %v8427 = vpack.c.bf16 %v8410, %v8409
        %v8428 = vpack.c.bf16 %v8412, %v8411
        %8429 = vst.msk [vmem:[#allocation3 + $0x10] sm:$0xff] %vm386, %v8413
        %8430 = vst.msk [vmem:[#allocation3 + $0x28] sm:$0xff] %vm386, %v8414
        %8431 = vst.msk [vmem:[#allocation3 + $0x40] sm:$0xff] %vm386, %v8415
        %8432 = vst.msk [vmem:[#allocation3 + $0x58] sm:$0xff] %vm386, %v8416
        %8433 = vst.msk [vmem:[#allocation3 + $0x70] sm:$0xff] %vm386, %v8417
        %8434 = vst.msk [vmem:[#allocation3 + $0x88] sm:$0xff] %vm386, %v8418
        %8435 = vst.msk [vmem:[#allocation3 + $0xa0] sm:$0xff] %vm386, %v8419
        %8436 = vst.msk [vmem:[#allocation3 + $0xb8] sm:$0xff] %vm386, %v8420
        %8437 = vst.msk [vmem:[#allocation3 + $0xd0] sm:$0xff] %vm386, %v8421
        %8438 = vst.msk [vmem:[#allocation3 + $0xe8] sm:$0xff] %vm386, %v8422
        %8439 = vst.msk [vmem:[#allocation3 + $0x100] sm:$0xff] %vm386, %v8423
        %8440 = vst.msk [vmem:[#allocation3 + $0x118] sm:$0xff] %vm386, %v8424
        %8441 = vst.msk [vmem:[#allocation3 + $0x130] sm:$0xff] %vm386, %v8425
        %8442 = vst.msk [vmem:[#allocation3 + $0x148] sm:$0xff] %vm386, %v8426
        %8443 = vst.msk [vmem:[#allocation3 + $0x160] sm:$0xff] %vm386, %v8427
        %8444 = vst.msk [vmem:[#allocation3 + $0x178] sm:$0xff] %vm386, %v8428
        %v8445 = vld [vmem:[#allocation3] sm:$0xff]
        %v8446 = vld [vmem:[#allocation3 + $0x8] sm:$0xff]
        %v8447 = vld [vmem:[#allocation3 + $0x10] sm:$0xff]
        %v8448 = vld [vmem:[#allocation3 + $0x18] sm:$0xff]
        %v8449 = vld [vmem:[#allocation3 + $0x20] sm:$0xff]
        %v8450 = vld [vmem:[#allocation3 + $0x28] sm:$0xff]
        %v8451 = vld [vmem:[#allocation3 + $0x30] sm:$0xff]
        %v8452 = vld [vmem:[#allocation3 + $0x38] sm:$0xff]
        %v8453 = vld [vmem:[#allocation3 + $0x40] sm:$0xff]
        %v8454 = vld [vmem:[#allocation3 + $0x48] sm:$0xff]
        %v8455 = vld [vmem:[#allocation3 + $0x50] sm:$0xff]
        %v8456 = vld [vmem:[#allocation3 + $0x58] sm:$0xff]
        %v8457 = vld [vmem:[#allocation3 + $0x60] sm:$0xff]
        %v8458 = vld [vmem:[#allocation3 + $0x68] sm:$0xff]
        %v8459 = vld [vmem:[#allocation3 + $0x70] sm:$0xff]
        %v8460 = vld [vmem:[#allocation3 + $0x78] sm:$0xff]
        %v8461 = vld [vmem:[#allocation3 + $0x80] sm:$0xff]
        %v8462 = vld [vmem:[#allocation3 + $0x88] sm:$0xff]
        %v8463 = vld [vmem:[#allocation3 + $0x90] sm:$0xff]
        %v8464 = vld [vmem:[#allocation3 + $0x98] sm:$0xff]
        %v8465 = vld [vmem:[#allocation3 + $0xa0] sm:$0xff]
        %v8466 = vld [vmem:[#allocation3 + $0xa8] sm:$0xff]
        %v8467 = vld [vmem:[#allocation3 + $0xb0] sm:$0xff]
        %v8468 = vld [vmem:[#allocation3 + $0xb8] sm:$0xff]
        %v8469 = vld [vmem:[#allocation3 + $0xc0] sm:$0xff]
        %v8470 = vld [vmem:[#allocation3 + $0xc8] sm:$0xff]
        %v8471 = vld [vmem:[#allocation3 + $0xd0] sm:$0xff]
        %v8472 = vld [vmem:[#allocation3 + $0xd8] sm:$0xff]
        %v8473 = vld [vmem:[#allocation3 + $0xe0] sm:$0xff]
        %v8474 = vld [vmem:[#allocation3 + $0xe8] sm:$0xff]
        %v8475 = vld [vmem:[#allocation3 + $0xf0] sm:$0xff]
        %v8476 = vld [vmem:[#allocation3 + $0xf8] sm:$0xff]
        %v8477 = vld [vmem:[#allocation3 + $0x100] sm:$0xff]
        %v8478 = vld [vmem:[#allocation3 + $0x108] sm:$0xff]
        %v8479 = vld [vmem:[#allocation3 + $0x110] sm:$0xff]
        %v8480 = vld [vmem:[#allocation3 + $0x118] sm:$0xff]
        %v8481 = vld [vmem:[#allocation3 + $0x120] sm:$0xff]
        %v8482 = vld [vmem:[#allocation3 + $0x128] sm:$0xff]
        %v8483 = vld [vmem:[#allocation3 + $0x130] sm:$0xff]
        %v8484 = vld [vmem:[#allocation3 + $0x138] sm:$0xff]
        %v8485 = vld [vmem:[#allocation3 + $0x140] sm:$0xff]
        %v8486 = vld [vmem:[#allocation3 + $0x148] sm:$0xff]
        %v8487 = vld [vmem:[#allocation3 + $0x150] sm:$0xff]
        %v8488 = vld [vmem:[#allocation3 + $0x158] sm:$0xff]
        %v8489 = vld [vmem:[#allocation3 + $0x160] sm:$0xff]
        %v8490 = vld [vmem:[#allocation3 + $0x168] sm:$0xff]
        %v8491 = vld [vmem:[#allocation3 + $0x170] sm:$0xff]
        %v8492 = vld [vmem:[#allocation3 + $0x178] sm:$0xff]
        %v8494 = vlaneseq
        %v8495 = vshrl.u32 %v8494, 7
        %v8496 = vsub.s32 0, %v8495
        %v8497 = vrot.slane %v7452, %v8496
        %v8535 = vunpack.c.l.b16 %v7416
        %v8536 = vunpack.c.l.b16 %v7417
        %v8537 = vunpack.c.l.b16 %v7418
        %v8538 = vunpack.c.l.b16 %v7419
        %v8539 = vunpack.c.l.b16 %v7420
        %v8540 = vunpack.c.l.b16 %v7421
        %v8541 = vunpack.c.l.b16 %v7422
        %v8542 = vunpack.c.l.b16 %v7423
        %v8543 = vunpack.c.l.b16 %v7424
        %v8544 = vunpack.c.l.b16 %v7425
        %v8545 = vunpack.c.l.b16 %v7426
        %v8546 = vunpack.c.l.b16 %v7427
        %v8547 = vunpack.c.l.b16 %v7428
        %v8548 = vunpack.c.l.b16 %v7429
        %v8549 = vunpack.c.l.b16 %v7430
        %v8550 = vunpack.c.l.b16 %v7431
        %v8551 = vunpack.c.l.b16 %v7432
        %v8552 = vunpack.c.l.b16 %v7433
        %v8553 = vunpack.c.l.b16 %v7434
        %v8554 = vunpack.c.l.b16 %v7435
        %v8555 = vunpack.c.l.b16 %v7436
        %v8556 = vunpack.c.l.b16 %v7437
        %v8557 = vunpack.c.l.b16 %v7438
        %v8558 = vunpack.c.l.b16 %v7439
        %v8559 = vunpack.c.l.b16 %v7440
        %v8560 = vunpack.c.l.b16 %v7441
        %v8561 = vunpack.c.l.b16 %v7442
        %v8562 = vunpack.c.l.b16 %v7443
        %v8563 = vunpack.c.l.b16 %v7444
        %v8564 = vunpack.c.l.b16 %v7445
        %v8565 = vunpack.c.l.b16 %v7446
        %v8566 = vunpack.c.l.b16 %v7447
        %v8567 = vunpack.c.l.b16 %v7448
        %v8568 = vunpack.c.l.b16 %v7449
        %v8569 = vunpack.c.l.b16 %v7450
        %v8570 = vunpack.c.l.b16 %v7451
        %v8571 = vpack.c.b16 %v8536, %v8535
        %v8572 = vpack.c.b16 %v8538, %v8537
        %v8573 = vpack.c.b16 %v8540, %v8539
        %v8574 = vpack.c.b16 %v8542, %v8541
        %v8575 = vpack.c.b16 %v8544, %v8543
        %v8576 = vpack.c.b16 %v8546, %v8545
        %v8577 = vpack.c.b16 %v8548, %v8547
        %v8578 = vpack.c.b16 %v8550, %v8549
        %v8579 = vpack.c.b16 %v8552, %v8551
        %v8580 = vpack.c.b16 %v8554, %v8553
        %v8581 = vpack.c.b16 %v8556, %v8555
        %v8582 = vpack.c.b16 %v8558, %v8557
        %v8583 = vpack.c.b16 %v8560, %v8559
        %v8584 = vpack.c.b16 %v8562, %v8561
        %v8585 = vpack.c.b16 %v8564, %v8563
        %v8586 = vpack.c.b16 %v8566, %v8565
        %v8587 = vpack.c.b16 %v8568, %v8567
        %v8588 = vpack.c.b16 %v8570, %v8569
        %v8608 = vsel %vm386, %v8447, 0
        %v8611 = vsel %vm386, %v8450, 0
        %v8614 = vsel %vm386, %v8453, 0
        %v8617 = vsel %vm386, %v8456, 0
        %v8620 = vsel %vm386, %v8459, 0
        %v8623 = vsel %vm386, %v8462, 0
        %v8626 = vsel %vm386, %v8465, 0
        %v8629 = vsel %vm386, %v8468, 0
        %v8632 = vsel %vm386, %v8471, 0
        %v8635 = vsel %vm386, %v8474, 0
        %v8638 = vsel %vm386, %v8477, 0
        %v8641 = vsel %vm386, %v8480, 0
        %v8644 = vsel %vm386, %v8483, 0
        %v8647 = vsel %vm386, %v8486, 0
        %v8650 = vsel %vm386, %v8489, 0
        %v8653 = vsel %vm386, %v8492, 0
        %8655 = vmatprep.subr.bf16.mxu0 0
        %8656 = vmatpush1.bf16.msra.mxu0 %v8571
        %8657 = vmatprep.subr.bf16.mxu0 0
        %8658 = vmatpush1.bf16.msra.mxu0 %v8572
        %8659 = vmatprep.subr.bf16.mxu0 0
        %8660 = vmatpush1.bf16.msra.mxu0 %v8573
        %8661 = vmatprep.subr.bf16.mxu0 0
        %8662 = vmatpush1.bf16.msra.mxu0 %v8574
        %8663 = vmatprep.subr.bf16.mxu0 0
        %8664 = vmatpush1.bf16.msra.mxu0 %v8575
        %8665 = vmatprep.subr.bf16.mxu0 0
        %8666 = vmatpush1.bf16.msra.mxu0 %v8576
        %8667 = vmatprep.subr.bf16.mxu0 0
        %8668 = vmatpush1.bf16.msra.mxu0 %v8577
        %8669 = vmatprep.subr.bf16.mxu0 0
        %8670 = vmatpush1.bf16.msra.mxu0 %v8578
        %8671 = vmatprep.subr.bf16.mxu0 0
        %8672 = vmatpush1.bf16.msra.mxu0 %v8579
        %8673 = vmatprep.subr.bf16.mxu0 0
        %8674 = vmatpush1.bf16.msra.mxu0 %v8580
        %8675 = vmatprep.subr.bf16.mxu0 0
        %8676 = vmatpush1.bf16.msra.mxu0 %v8581
        %8677 = vmatprep.subr.bf16.mxu0 0
        %8678 = vmatpush1.bf16.msra.mxu0 %v8582
        %8679 = vmatprep.subr.bf16.mxu0 0
        %8680 = vmatpush1.bf16.msra.mxu0 %v8583
        %8681 = vmatprep.subr.bf16.mxu0 0
        %8682 = vmatpush1.bf16.msra.mxu0 %v8584
        %8683 = vmatprep.subr.bf16.mxu0 0
        %8684 = vmatpush1.bf16.msra.mxu0 %v8585
        %8685 = vmatprep.subr.bf16.mxu0 0
        %8686 = vmatpush1.bf16.msra.mxu0 %v8586
        %8687 = vmatprep.mubr.bf16.mxu0 %v8446
        %8688 = vmatmul.mubr.bf16.gmra.mrb[0].mxu0 %v8445
        %v8689 = vpop.f32.mrb[0].mxu0
        %v8690 = vadd.f32 %v8497, %v8689
        %v8691 = vpop.f32.mrb[0].mxu0
        %v8692 = vpop.f32.mrb[0].mxu0
        %v8693 = vadd.f32 %v8497, %v8692
        %v8694 = vpop.f32.mrb[0].mxu0
        %8695 = vmatprep.mubr.bf16.mxu0 %v8449
        %8696 = vmatmul.mubr.bf16.gmra.mrb[0].mxu0 %v8448
        %v8697 = vpop.f32.mrb[0].mxu0
        %v8698 = vadd.f32 %v8497, %v8697
        %v8699 = vpop.f32.mrb[0].mxu0
        %v8700 = vpop.f32.mrb[0].mxu0
        %v8701 = vadd.f32 %v8497, %v8700
        %v8702 = vpop.f32.mrb[0].mxu0
        %8703 = vmatprep.mubr.bf16.mxu0 %v8452
        %8704 = vmatmul.mubr.bf16.gmra.mrb[0].mxu0 %v8451
        %v8705 = vpop.f32.mrb[0].mxu0
        %v8706 = vadd.f32 %v8497, %v8705
        %v8707 = vpop.f32.mrb[0].mxu0
        %v8708 = vpop.f32.mrb[0].mxu0
        %v8709 = vadd.f32 %v8497, %v8708
        %v8710 = vpop.f32.mrb[0].mxu0
        %8711 = vmatprep.mubr.bf16.mxu0 %v8455
        %8712 = vmatmul.mubr.bf16.gmra.mrb[0].mxu0 %v8454
        %v8713 = vpop.f32.mrb[0].mxu0
        %v8714 = vadd.f32 %v8497, %v8713
        %v8715 = vpop.f32.mrb[0].mxu0
        %v8716 = vpop.f32.mrb[0].mxu0
        %v8717 = vadd.f32 %v8497, %v8716
        %v8718 = vpop.f32.mrb[0].mxu0
        %8719 = vmatprep.mubr.bf16.mxu0 %v8458
        %8720 = vmatmul.mubr.bf16.gmra.mrb[0].mxu0 %v8457
        %v8721 = vpop.f32.mrb[0].mxu0
        %v8722 = vadd.f32 %v8497, %v8721
        %v8723 = vpop.f32.mrb[0].mxu0
        %v8724 = vpop.f32.mrb[0].mxu0
        %v8725 = vadd.f32 %v8497, %v8724
        %v8726 = vpop.f32.mrb[0].mxu0
        %8727 = vmatprep.mubr.bf16.mxu0 %v8461
        %8728 = vmatmul.mubr.bf16.gmra.mrb[0].mxu0 %v8460
        %v8729 = vpop.f32.mrb[0].mxu0
        %v8730 = vadd.f32 %v8497, %v8729
        %v8731 = vpop.f32.mrb[0].mxu0
        %v8732 = vpop.f32.mrb[0].mxu0
        %v8733 = vadd.f32 %v8497, %v8732
        %v8734 = vpop.f32.mrb[0].mxu0
        %8735 = vmatprep.mubr.bf16.mxu0 %v8464
        %8736 = vmatmul.mubr.bf16.gmra.mrb[0].mxu0 %v8463
        %v8737 = vpop.f32.mrb[0].mxu0
        %v8738 = vadd.f32 %v8497, %v8737
        %v8739 = vpop.f32.mrb[0].mxu0
        %v8740 = vpop.f32.mrb[0].mxu0
        %v8741 = vadd.f32 %v8497, %v8740
        %v8742 = vpop.f32.mrb[0].mxu0
        %8743 = vmatprep.mubr.bf16.mxu0 %v8467
        %8744 = vmatmul.mubr.bf16.gmra.mrb[0].mxu0 %v8466
        %v8745 = vpop.f32.mrb[0].mxu0
        %v8746 = vadd.f32 %v8497, %v8745
        %v8747 = vpop.f32.mrb[0].mxu0
        %v8748 = vpop.f32.mrb[0].mxu0
        %v8749 = vadd.f32 %v8497, %v8748
        %v8750 = vpop.f32.mrb[0].mxu0
        %8751 = vmatprep.mubr.bf16.mxu0 %v8470
        %8752 = vmatmul.mubr.bf16.gmra.mrb[0].mxu0 %v8469
        %v8753 = vpop.f32.mrb[0].mxu0
        %v8754 = vadd.f32 %v8497, %v8753
        %v8755 = vpop.f32.mrb[0].mxu0
        %v8756 = vpop.f32.mrb[0].mxu0
        %v8757 = vadd.f32 %v8497, %v8756
        %v8758 = vpop.f32.mrb[0].mxu0
        %8759 = vmatprep.mubr.bf16.mxu0 %v8473
        %8760 = vmatmul.mubr.bf16.gmra.mrb[0].mxu0 %v8472
        %v8761 = vpop.f32.mrb[0].mxu0
        %v8762 = vadd.f32 %v8497, %v8761
        %v8763 = vpop.f32.mrb[0].mxu0
        %v8764 = vpop.f32.mrb[0].mxu0
        %v8765 = vadd.f32 %v8497, %v8764
        %v8766 = vpop.f32.mrb[0].mxu0
        %8767 = vmatprep.mubr.bf16.mxu0 %v8476
        %8768 = vmatmul.mubr.bf16.gmra.mrb[0].mxu0 %v8475
        %v8769 = vpop.f32.mrb[0].mxu0
        %v8770 = vadd.f32 %v8497, %v8769
        %v8771 = vpop.f32.mrb[0].mxu0
        %v8772 = vpop.f32.mrb[0].mxu0
        %v8773 = vadd.f32 %v8497, %v8772
        %v8774 = vpop.f32.mrb[0].mxu0
        %8775 = vmatprep.mubr.bf16.mxu0 %v8479
        %8776 = vmatmul.mubr.bf16.gmra.mrb[0].mxu0 %v8478
        %v8777 = vpop.f32.mrb[0].mxu0
        %v8778 = vadd.f32 %v8497, %v8777
        %v8779 = vpop.f32.mrb[0].mxu0
        %v8780 = vpop.f32.mrb[0].mxu0
        %v8781 = vadd.f32 %v8497, %v8780
        %v8782 = vpop.f32.mrb[0].mxu0
        %8783 = vmatprep.mubr.bf16.mxu0 %v8482
        %8784 = vmatmul.mubr.bf16.gmra.mrb[0].mxu0 %v8481
        %v8785 = vpop.f32.mrb[0].mxu0
        %v8786 = vadd.f32 %v8497, %v8785
        %v8787 = vpop.f32.mrb[0].mxu0
        %v8788 = vpop.f32.mrb[0].mxu0
        %v8789 = vadd.f32 %v8497, %v8788
        %v8790 = vpop.f32.mrb[0].mxu0
        %8791 = vmatprep.mubr.bf16.mxu0 %v8485
        %8792 = vmatmul.mubr.bf16.gmra.mrb[0].mxu0 %v8484
        %v8793 = vpop.f32.mrb[0].mxu0
        %v8794 = vadd.f32 %v8497, %v8793
        %v8795 = vpop.f32.mrb[0].mxu0
        %v8796 = vpop.f32.mrb[0].mxu0
        %v8797 = vadd.f32 %v8497, %v8796
        %v8798 = vpop.f32.mrb[0].mxu0
        %8799 = vmatprep.mubr.bf16.mxu0 %v8488
        %8800 = vmatmul.mubr.bf16.gmra.mrb[0].mxu0 %v8487
        %v8801 = vpop.f32.mrb[0].mxu0
        %v8802 = vadd.f32 %v8497, %v8801
        %v8803 = vpop.f32.mrb[0].mxu0
        %v8804 = vpop.f32.mrb[0].mxu0
        %v8805 = vadd.f32 %v8497, %v8804
        %v8806 = vpop.f32.mrb[0].mxu0
        %8807 = vmatprep.mubr.bf16.mxu0 %v8491
        %8808 = vmatmul.mubr.bf16.gmra.mrb[0].mxu0 %v8490
        %v8809 = vpop.f32.mrb[0].mxu0
        %v8810 = vadd.f32 %v8497, %v8809
        %v8811 = vpop.f32.mrb[0].mxu0
        %v8812 = vpop.f32.mrb[0].mxu0
        %v8813 = vadd.f32 %v8497, %v8812
        %v8814 = vpop.f32.mrb[0].mxu0
        %8815 = vdwg.mxu0
        %8816 = vmatprep.subr.bf16.mxu0 0
        %8817 = vmatpush1.bf16.msra.mxu0 %v8587
        %8818 = vmatprep.subr.bf16.mxu0 0
        %8819 = vmatpush1.bf16.msra.mxu0 %v8588
        %8820 = vmatprep.subr.bf16.mxu0 0
        %8821 = vmatpush1.bf16.msra.mxu0 0
        %8822 = vmatprep.subr.bf16.mxu0 0
        %8823 = vmatpush1.bf16.msra.mxu0 0
        %8824 = vmatprep.subr.bf16.mxu0 0
        %8825 = vmatpush1.bf16.msra.mxu0 0
        %8826 = vmatprep.subr.bf16.mxu0 0
        %8827 = vmatpush1.bf16.msra.mxu0 0
        %8828 = vmatprep.subr.bf16.mxu0 0
        %8829 = vmatpush1.bf16.msra.mxu0 0
        %8830 = vmatprep.subr.bf16.mxu0 0
        %8831 = vmatpush1.bf16.msra.mxu0 0
        %8832 = vmatprep.subr.bf16.mxu0 0
        %8833 = vmatpush1.bf16.msra.mxu0 0
        %8834 = vmatprep.subr.bf16.mxu0 0
        %8835 = vmatpush1.bf16.msra.mxu0 0
        %8836 = vmatprep.subr.bf16.mxu0 0
        %8837 = vmatpush1.bf16.msra.mxu0 0
        %8838 = vmatprep.subr.bf16.mxu0 0
        %8839 = vmatpush1.bf16.msra.mxu0 0
        %8840 = vmatprep.subr.bf16.mxu0 0
        %8841 = vmatpush1.bf16.msra.mxu0 0
        %8842 = vmatprep.subr.bf16.mxu0 0
        %8843 = vmatpush1.bf16.msra.mxu0 0
        %8844 = vmatprep.subr.bf16.mxu0 0
        %8845 = vmatpush1.bf16.msra.mxu0 0
        %8846 = vmatprep.subr.bf16.mxu0 0
        %8847 = vmatpush1.bf16.msra.mxu0 0
        %8848 = vmatprep.mubr.bf16.mxu0 0
        %8849 = vmatmul.mubr.bf16.gmra.mrb[0].mxu0 %v8608
        %v8850 = vpop.f32.mrb[0].mxu0
        %v8851 = vadd.f32 %v8690, %v8850
        %v8852 = vpop.f32.mrb[0].mxu0
        %v8853 = vpop.f32.mrb[0].mxu0
        %v8854 = vadd.f32 %v8693, %v8853
        %v8855 = vpop.f32.mrb[0].mxu0
        %8856 = vmatprep.mubr.bf16.mxu0 0
        %8857 = vmatmul.mubr.bf16.gmra.mrb[0].mxu0 %v8611
        %v8858 = vpop.f32.mrb[0].mxu0
        %v8859 = vadd.f32 %v8698, %v8858
        %v8860 = vpop.f32.mrb[0].mxu0
        %v8861 = vpop.f32.mrb[0].mxu0
        %v8862 = vadd.f32 %v8701, %v8861
        %v8863 = vpop.f32.mrb[0].mxu0
        %8864 = vmatprep.mubr.bf16.mxu0 0
        %8865 = vmatmul.mubr.bf16.gmra.mrb[0].mxu0 %v8614
        %v8866 = vpop.f32.mrb[0].mxu0
        %v8867 = vadd.f32 %v8706, %v8866
        %v8868 = vpop.f32.mrb[0].mxu0
        %v8869 = vpop.f32.mrb[0].mxu0
        %v8870 = vadd.f32 %v8709, %v8869
        %v8871 = vpop.f32.mrb[0].mxu0
        %8872 = vmatprep.mubr.bf16.mxu0 0
        %8873 = vmatmul.mubr.bf16.gmra.mrb[0].mxu0 %v8617
        %v8874 = vpop.f32.mrb[0].mxu0
        %v8875 = vadd.f32 %v8714, %v8874
        %v8876 = vpop.f32.mrb[0].mxu0
        %v8877 = vpop.f32.mrb[0].mxu0
        %v8878 = vadd.f32 %v8717, %v8877
        %v8879 = vpop.f32.mrb[0].mxu0
        %8880 = vmatprep.mubr.bf16.mxu0 0
        %8881 = vmatmul.mubr.bf16.gmra.mrb[0].mxu0 %v8620
        %v8882 = vpop.f32.mrb[0].mxu0
        %v8883 = vadd.f32 %v8722, %v8882
        %v8884 = vpop.f32.mrb[0].mxu0
        %v8885 = vpop.f32.mrb[0].mxu0
        %v8886 = vadd.f32 %v8725, %v8885
        %v8887 = vpop.f32.mrb[0].mxu0
        %8888 = vmatprep.mubr.bf16.mxu0 0
        %8889 = vmatmul.mubr.bf16.gmra.mrb[0].mxu0 %v8623
        %v8890 = vpop.f32.mrb[0].mxu0
        %v8891 = vadd.f32 %v8730, %v8890
        %v8892 = vpop.f32.mrb[0].mxu0
        %v8893 = vpop.f32.mrb[0].mxu0
        %v8894 = vadd.f32 %v8733, %v8893
        %v8895 = vpop.f32.mrb[0].mxu0
        %8896 = vmatprep.mubr.bf16.mxu0 0
        %8897 = vmatmul.mubr.bf16.gmra.mrb[0].mxu0 %v8626
        %v8898 = vpop.f32.mrb[0].mxu0
        %v8899 = vadd.f32 %v8738, %v8898
        %v8900 = vpop.f32.mrb[0].mxu0
        %v8901 = vpop.f32.mrb[0].mxu0
        %v8902 = vadd.f32 %v8741, %v8901
        %v8903 = vpop.f32.mrb[0].mxu0
        %8904 = vmatprep.mubr.bf16.mxu0 0
        %8905 = vmatmul.mubr.bf16.gmra.mrb[0].mxu0 %v8629
        %v8906 = vpop.f32.mrb[0].mxu0
        %v8907 = vadd.f32 %v8746, %v8906
        %v8908 = vpop.f32.mrb[0].mxu0
        %v8909 = vpop.f32.mrb[0].mxu0
        %v8910 = vadd.f32 %v8749, %v8909
        %v8911 = vpop.f32.mrb[0].mxu0
        %8912 = vmatprep.mubr.bf16.mxu0 0
        %8913 = vmatmul.mubr.bf16.gmra.mrb[0].mxu0 %v8632
        %v8914 = vpop.f32.mrb[0].mxu0
        %v8915 = vadd.f32 %v8754, %v8914
        %v8916 = vpop.f32.mrb[0].mxu0
        %v8917 = vpop.f32.mrb[0].mxu0
        %v8918 = vadd.f32 %v8757, %v8917
        %v8919 = vpop.f32.mrb[0].mxu0
        %8920 = vmatprep.mubr.bf16.mxu0 0
        %8921 = vmatmul.mubr.bf16.gmra.mrb[0].mxu0 %v8635
        %v8922 = vpop.f32.mrb[0].mxu0
        %v8923 = vadd.f32 %v8762, %v8922
        %v8924 = vpop.f32.mrb[0].mxu0
        %v8925 = vpop.f32.mrb[0].mxu0
        %v8926 = vadd.f32 %v8765, %v8925
        %v8927 = vpop.f32.mrb[0].mxu0
        %8928 = vmatprep.mubr.bf16.mxu0 0
        %8929 = vmatmul.mubr.bf16.gmra.mrb[0].mxu0 %v8638
        %v8930 = vpop.f32.mrb[0].mxu0
        %v8931 = vadd.f32 %v8770, %v8930
        %v8932 = vpop.f32.mrb[0].mxu0
        %v8933 = vpop.f32.mrb[0].mxu0
        %v8934 = vadd.f32 %v8773, %v8933
        %v8935 = vpop.f32.mrb[0].mxu0
        %8936 = vmatprep.mubr.bf16.mxu0 0
        %8937 = vmatmul.mubr.bf16.gmra.mrb[0].mxu0 %v8641
        %v8938 = vpop.f32.mrb[0].mxu0
        %v8939 = vadd.f32 %v8778, %v8938
        %v8940 = vpop.f32.mrb[0].mxu0
        %v8941 = vpop.f32.mrb[0].mxu0
        %v8942 = vadd.f32 %v8781, %v8941
        %v8943 = vpop.f32.mrb[0].mxu0
        %8944 = vmatprep.mubr.bf16.mxu0 0
        %8945 = vmatmul.mubr.bf16.gmra.mrb[0].mxu0 %v8644
        %v8946 = vpop.f32.mrb[0].mxu0
        %v8947 = vadd.f32 %v8786, %v8946
        %v8948 = vpop.f32.mrb[0].mxu0
        %v8949 = vpop.f32.mrb[0].mxu0
        %v8950 = vadd.f32 %v8789, %v8949
        %v8951 = vpop.f32.mrb[0].mxu0
        %8952 = vmatprep.mubr.bf16.mxu0 0
        %8953 = vmatmul.mubr.bf16.gmra.mrb[0].mxu0 %v8647
        %v8954 = vpop.f32.mrb[0].mxu0
        %v8955 = vadd.f32 %v8794, %v8954
        %v8956 = vpop.f32.mrb[0].mxu0
        %v8957 = vpop.f32.mrb[0].mxu0
        %v8958 = vadd.f32 %v8797, %v8957
        %v8959 = vpop.f32.mrb[0].mxu0
        %8960 = vmatprep.mubr.bf16.mxu0 0
        %8961 = vmatmul.mubr.bf16.gmra.mrb[0].mxu0 %v8650
        %v8962 = vpop.f32.mrb[0].mxu0
        %v8963 = vadd.f32 %v8802, %v8962
        %v8964 = vpop.f32.mrb[0].mxu0
        %v8965 = vpop.f32.mrb[0].mxu0
        %v8966 = vadd.f32 %v8805, %v8965
        %v8967 = vpop.f32.mrb[0].mxu0
        %8968 = vmatprep.mubr.bf16.mxu0 0
        %8969 = vmatmul.mubr.bf16.gmra.mrb[0].mxu0 %v8653
        %v8970 = vpop.f32.mrb[0].mxu0
        %v8971 = vadd.f32 %v8810, %v8970
        %v8972 = vpop.f32.mrb[0].mxu0
        %v8973 = vpop.f32.mrb[0].mxu0
        %v8974 = vadd.f32 %v8813, %v8973
        %v8975 = vpop.f32.mrb[0].mxu0
        %8976 = vdwg.mxu0
        %v8977 = vadd.f32 %v8851, %v442
        %v8978 = vadd.f32 %v8854, %v443
        %v8979 = vadd.f32 %v8859, %v444
        %v8980 = vadd.f32 %v8862, %v445
        %v8981 = vadd.f32 %v8867, %v446
        %v8982 = vadd.f32 %v8870, %v447
        %v8983 = vadd.f32 %v8875, %v448
        %v8984 = vadd.f32 %v8878, %v449
        %v8985 = vadd.f32 %v8883, %v450
        %v8986 = vadd.f32 %v8886, %v451
        %v8987 = vadd.f32 %v8891, %v452
        %v8988 = vadd.f32 %v8894, %v453
        %v8989 = vadd.f32 %v8899, %v454
        %v8990 = vadd.f32 %v8902, %v455
        %v8991 = vadd.f32 %v8907, %v456
        %v8992 = vadd.f32 %v8910, %v457
        %v8993 = vadd.f32 %v8915, %v458
        %v8994 = vadd.f32 %v8918, %v459
        %v8995 = vadd.f32 %v8923, %v460
        %v8996 = vadd.f32 %v8926, %v461
        %v8997 = vadd.f32 %v8931, %v462
        %v8998 = vadd.f32 %v8934, %v463
        %v8999 = vadd.f32 %v8939, %v464
        %v9000 = vadd.f32 %v8942, %v465
        %v9001 = vadd.f32 %v8947, %v466
        %v9002 = vadd.f32 %v8950, %v467
        %v9003 = vadd.f32 %v8955, %v468
        %v9004 = vadd.f32 %v8958, %v469
        %v9005 = vadd.f32 %v8963, %v470
        %v9006 = vadd.f32 %v8966, %v471
        %v9007 = vadd.f32 %v8971, %v472
        %v9008 = vadd.f32 %v8974, %v473
        %9009 = vst.msk [vmem:[%s379] sm:$0xff] %vm386, %v8977
        %9010 = vst.msk [vmem:[%s379 + $0x8] sm:$0xff] %vm386, %v8978
        %9011 = vst.msk [vmem:[%s379 + $0x10] sm:$0xff] %vm386, %v8979
        %9012 = vst.msk [vmem:[%s379 + $0x18] sm:$0xff] %vm386, %v8980
        %9013 = vst.msk [vmem:[%s379 + $0x20] sm:$0xff] %vm386, %v8981
        %9014 = vst.msk [vmem:[%s379 + $0x28] sm:$0xff] %vm386, %v8982
        %9015 = vst.msk [vmem:[%s379 + $0x30] sm:$0xff] %vm386, %v8983
        %9016 = vst.msk [vmem:[%s379 + $0x38] sm:$0xff] %vm386, %v8984
        %9017 = vst.msk [vmem:[%s379 + $0x40] sm:$0xff] %vm386, %v8985
        %9018 = vst.msk [vmem:[%s379 + $0x48] sm:$0xff] %vm386, %v8986
        %9019 = vst.msk [vmem:[%s379 + $0x50] sm:$0xff] %vm386, %v8987
        %9020 = vst.msk [vmem:[%s379 + $0x58] sm:$0xff] %vm386, %v8988
        %9021 = vst.msk [vmem:[%s379 + $0x60] sm:$0xff] %vm386, %v8989
        %9022 = vst.msk [vmem:[%s379 + $0x68] sm:$0xff] %vm386, %v8990
        %9023 = vst.msk [vmem:[%s379 + $0x70] sm:$0xff] %vm386, %v8991
        %9024 = vst.msk [vmem:[%s379 + $0x78] sm:$0xff] %vm386, %v8992
        %9025 = vst.msk [vmem:[%s379 + $0x80] sm:$0xff] %vm386, %v8993
        %9026 = vst.msk [vmem:[%s379 + $0x88] sm:$0xff] %vm386, %v8994
        %9027 = vst.msk [vmem:[%s379 + $0x90] sm:$0xff] %vm386, %v8995
        %9028 = vst.msk [vmem:[%s379 + $0x98] sm:$0xff] %vm386, %v8996
        %9029 = vst.msk [vmem:[%s379 + $0xa0] sm:$0xff] %vm386, %v8997
        %9030 = vst.msk [vmem:[%s379 + $0xa8] sm:$0xff] %vm386, %v8998
        %9031 = vst.msk [vmem:[%s379 + $0xb0] sm:$0xff] %vm386, %v8999
        %9032 = vst.msk [vmem:[%s379 + $0xb8] sm:$0xff] %vm386, %v9000
        %9033 = vst.msk [vmem:[%s379 + $0xc0] sm:$0xff] %vm386, %v9001
        %9034 = vst.msk [vmem:[%s379 + $0xc8] sm:$0xff] %vm386, %v9002
        %9035 = vst.msk [vmem:[%s379 + $0xd0] sm:$0xff] %vm386, %v9003
        %9036 = vst.msk [vmem:[%s379 + $0xd8] sm:$0xff] %vm386, %v9004
        %9037 = vst.msk [vmem:[%s379 + $0xe0] sm:$0xff] %vm386, %v9005
        %9038 = vst.msk [vmem:[%s379 + $0xe8] sm:$0xff] %vm386, %v9006
        %9039 = vst.msk [vmem:[%s379 + $0xf0] sm:$0xff] %vm386, %v9007
        %9040 = vst.msk [vmem:[%s379 + $0xf8] sm:$0xff] %vm386, %v9008
        %s9041 = sand.u32 %s269, 1
        %s9042 = scalar_lea.sflag [#allocation5], %s9041
        %s9043 = sand.u32 %s269, 1
        %s9044 = smul.addr %s9043, 256
        %s9045 = scalar_lea.vmem [#allocation4], %s9044
        // Predicated region
        $region65: #{rg_forward.1} parent=63 // pred_check
          %p9046 = pneg %p279
        $region66: #{rg_forward.1} parent=63 // pred_check_branch
          %9048 = sbr.rel (%p9046) target = $region68
        $region67: #{rg_forward.1} parent=63 // pred_region
          %s9050 = ssub.s32 4096, 4096
          %9051 = vsyncadd %s9042, %s9050
          %s9052 = smul.addr %s25, 32
          %s9053 = smul.addr %s9052, 128
          %s9054 = scalar_lea.hbm %s11, %s9053
          %s9055 = sshll.u32 %s9045, 4
          %s9056 = int_to_ptr.vmem [resolvable:$true] %s9055
          %9061 = dma.vmem_to_hbm [thread:$0]  %s9056, 4096, %s9054, %s9042, 128, 128, 8
        $region68: #{rg_forward.1} parent=63 // pred_fallthru
          _
      $region64: #{rg_forward.1} parent=5 // pred_fallthru
        _
      %p9062 = scmp.le.s32.totalorder 2, %s20
      // Predicated region
      $region69: #{rg_forward.1} parent=5 // pred_check
        %p9063 = pneg %p9062
      $region70: #{rg_forward.1} parent=5 // pred_check_branch
        %9065 = sbr.rel (%p9063) target = $region72
      $region71: #{rg_forward.1} parent=5 // pred_region
        %s9066 = ssub.s32 %s20, 2
        // Predicated region
        $region73: #{rg_forward.1} parent=71 // pred_check
          %p9067 = pneg %p285
        $region74: #{rg_forward.1} parent=71 // pred_check_branch
          %9069 = sbr.rel (%p9067) target = $region76
        $region75: #{rg_forward.1} parent=71 // pred_region
          %s9070 = sand.u32 %s270, 1
          %s9071 = scalar_lea.sflag [#allocation5], %s9070
          %s9072 = sand.u32 %s270, 1
          %s9073 = smul.addr %s9072, 256
          %s9074 = scalar_lea.vmem [#allocation4], %s9073
          %9075 = dma.done %s9071, 4096
        $region76: #{rg_forward.1} parent=71 // pred_fallthru
          _
      $region72: #{rg_forward.1} parent=5 // pred_fallthru
        _
    $region6: #{rg_forward.1} parent=1 // loop_footer
      %s24 = sadd.s32 1, %s20
    $region7: #{rg_forward.1} parent=1 // loop_footer_branch
      %19 = sbr.rel target = $region3
    $region8: #{rg_forward.1} parent=1 // loop_exit
      _
    %9076 = vsyncpa [#allocation5], 1
    %s9077 = scalar_lea.sflag [#allocation5], 1
    %9078 = vsyncpa %s9077, 1

</llo_original>
